<compile_context>
chip_gen: v7x
topology: tpu7x:2x2x1
jax: 0.10.0
libtpu: 0.0.40
codegen_flags: <defaults>
</compile_context>

<pallas_src>
import math
import functools

import numpy as np
import jax
import jax.numpy as jnp
from jax.experimental import pallas as pl
from jax.experimental.pallas import tpu as pltpu

LN_EPS = 1e-5  # nn.LayerNorm default eps


def _mha_kernel(x_ref, pe_ref, vec_ref, wqkv_ref, bqkv_ref, wo_ref, out_ref,
                *, n_head, head_dim, tb, b, c):
    # Packed small parameters (rows of an (8, C) array).
    g1 = vec_ref[0:1, :]
    b1 = vec_ref[1:2, :]
    bo = vec_ref[2:3, :]
    g2 = vec_ref[3:4, :]
    b2 = vec_ref[4:5, :]

    x = x_ref[...]                                            # (TB, B, C)

    # --- attn_in_norm: LayerNorm over C, then +PE (per-t, broadcast over B) ---
    mu = jnp.mean(x, axis=-1, keepdims=True)
    xc = x - mu
    var = jnp.mean(xc * xc, axis=-1, keepdims=True)
    y3 = xc * jax.lax.rsqrt(var + LN_EPS) * g1 + b1 + pe_ref[...]

    # --- fused QKV projection on the stacked (TB*B, C) slab ---
    y = y3.reshape(tb * b, c)
    qkv = jnp.dot(y, wqkv_ref[...],
                  preferred_element_type=jnp.float32) + bqkv_ref[...]
    qkv3 = qkv.reshape(tb, b, 3 * c)                          # (TB, B, 3C)

    # --- per-head attention, batched over t (sequence axis is B) ---
    head_outs = []
    for h in range(n_head):
        lo = h * head_dim
        qh = qkv3[:, :, lo:lo + head_dim]                     # (TB, B, hd), pre-scaled
        kh = qkv3[:, :, c + lo:c + lo + head_dim]
        vh = qkv3[:, :, 2 * c + lo:2 * c + lo + head_dim]
        s = jnp.einsum("tqd,tkd->tqk", qh, kh,
                       preferred_element_type=jnp.float32)    # (TB, B, B)
        s = s - jnp.max(s, axis=-1, keepdims=True)
        p = jnp.exp(s)
        p = p * pl.reciprocal(jnp.sum(p, axis=-1, keepdims=True), approx=True)
        head_outs.append(jnp.einsum("tqk,tkd->tqd", p, vh,
                                    preferred_element_type=jnp.float32))
    o3 = jnp.concatenate(head_outs, axis=-1)                  # (TB, B, C)

    # --- single out_proj matmul over the stacked slab ---
    o = jnp.dot(o3.reshape(tb * b, c), wo_ref[...],
                preferred_element_type=jnp.float32) + bo

    # --- norm(output + dropout(output)); dropout == identity at inference ---
    z = o + o
    mu2 = jnp.mean(z, axis=-1, keepdims=True)
    zc = z - mu2
    var2 = jnp.mean(zc * zc, axis=-1, keepdims=True)
    res = zc * jax.lax.rsqrt(var2 + LN_EPS) * g2 + b2
    out_ref[...] = res.reshape(tb, b, c)


def positional_encoding(length, channels):
    pos = np.arange(length, dtype=np.float32)[:, None]
    div = np.exp(np.arange(0, channels, 2, dtype=np.float32)
                 * (-math.log(10000.0) / channels))
    pe = np.zeros((length, channels), np.float32)
    pe[:, 0::2] = np.sin(pos * div)
    pe[:, 1::2] = np.cos(pos * div)
    return jnp.asarray(pe)


def mha_forward(x_bct, params, n_head):
    """x_bct: (B, C, T) float32 -> (B, C, T) float32."""
    B, C, T = x_bct.shape
    head_dim = C // n_head
    scale = 1.0 / math.sqrt(head_dim)

    x_tbc = jnp.transpose(x_bct, (2, 0, 1)).astype(jnp.float32)   # (T, B, C)
    pe = positional_encoding(T, C).reshape(T, 1, C)

    # Parameter preprocessing (once, outside the kernel):
    #  - fuse Q/K/V into one (C, 3C) weight / (1, 3C) bias,
    #  - fold the 1/sqrt(head_dim) scale into the Q weight & bias,
    #  - pack all (1, C) vectors into one (8, C) array.
    wqkv = jnp.concatenate([params["wq"].T * scale,
                            params["wk"].T,
                            params["wv"].T], axis=1)              # (C, 3C)
    bqkv = jnp.concatenate([params["bq"] * scale,
                            params["bk"],
                            params["bv"]], axis=1)                # (1, 3C)
    wo_t = params["wo"].T                                         # (C, C)
    vecs = jnp.concatenate([params["ln1_g"], params["ln1_b"], params["bo"],
                            params["ln2_g"], params["ln2_b"],
                            jnp.zeros((3, C), jnp.float32)], axis=0)  # (8, C)

    nblk = 2 if (T % 2 == 0 and T >= 2) else 1   # 2 fat steps -> feeds both v7x TCs
    tb = T // nblk

    kernel = functools.partial(_mha_kernel, n_head=n_head, head_dim=head_dim,
                               tb=tb, b=B, c=C)

    def const(shape):
        nd = len(shape)
        return pl.BlockSpec(shape, lambda g, _nd=nd: (0,) * _nd)

    out_tbc = pl.pallas_call(
        kernel,
        out_shape=jax.ShapeDtypeStruct((T, B, C), jnp.float32),
        grid_spec=pltpu.PrefetchScalarGridSpec(
            num_scalar_prefetch=0,
            grid=(nblk,),
            in_specs=[
                pl.BlockSpec((tb, B, C), lambda g: (g, 0, 0)),    # x (T,B,C)
                pl.BlockSpec((tb, 1, C), lambda g: (g, 0, 0)),    # pe (T,1,C)
                const((8, C)),                                    # packed (1,C) params
                const((C, 3 * C)),                                # fused Wqkv^T (scaled)
                const((1, 3 * C)),                                # fused bqkv (scaled)
                const((C, C)),                                    # Wo^T
            ],
            out_specs=pl.BlockSpec((tb, B, C), lambda g: (g, 0, 0)),
        ),
        compiler_params=pltpu.CompilerParams(
            dimension_semantics=("parallel",)),
    )(x_tbc, pe, vecs, wqkv, bqkv, wo_t)
    return jnp.transpose(out_tbc, (1, 2, 0))                      # (B, C, T)


def mha_reference(x_bct, params, n_head):
    """Pure-JAX reference matching the PyTorch forward exactly (eval mode)."""
    B, C, T = x_bct.shape
    hd = C // n_head
    x = jnp.transpose(x_bct, (0, 2, 1))                           # (B, T, C)
    mu = x.mean(-1, keepdims=True)
    var = ((x - mu) ** 2).mean(-1, keepdims=True)
    y = (x - mu) / jnp.sqrt(var + LN_EPS) * params["ln1_g"] + params["ln1_b"]
    y = y + positional_encoding(T, C)[None, :, :]
    q = y @ params["wq"].T + params["bq"]
    k = y @ params["wk"].T + params["bk"]
    v = y @ params["wv"].T + params["bv"]
    qh = q.reshape(B, T, n_head, hd) / math.sqrt(hd)
    kh = k.reshape(B, T, n_head, hd)
    vh = v.reshape(B, T, n_head, hd)
    # nn.MultiheadAttention (batch_first=False): sequence axis is B, batch is T
    s = jnp.einsum("bthd,sthd->thbs", qh, kh)
    p = jax.nn.softmax(s, axis=-1)
    o = jnp.einsum("thbs,sthd->bthd", p, vh).reshape(B, T, C)
    o = o @ params["wo"].T + params["bo"]
    z = o + o
    mu2 = z.mean(-1, keepdims=True)
    var2 = ((z - mu2) ** 2).mean(-1, keepdims=True)
    out = (z - mu2) / jnp.sqrt(var2 + LN_EPS) * params["ln2_g"] + params["ln2_b"]
    return jnp.transpose(out, (0, 2, 1))


if __name__ == "__main__":
    B, C, T, N_HEAD = 8, 32, 16, 4                                # C % N_HEAD == 0

    key = jax.random.PRNGKey(0)
    ks = jax.random.split(key, 13)
    params = {
        "ln1_g": 1.0 + 0.1 * jax.random.normal(ks[0], (1, C), jnp.float32),
        "ln1_b": 0.05 * jax.random.normal(ks[1], (1, C), jnp.float32),
        "wq": 0.2 * jax.random.normal(ks[2], (C, C), jnp.float32),
        "wk": 0.2 * jax.random.normal(ks[3], (C, C), jnp.float32),
        "wv": 0.2 * jax.random.normal(ks[4], (C, C), jnp.float32),
        "bq": 0.02 * jax.random.normal(ks[5], (1, C), jnp.float32),
        "bk": 0.02 * jax.random.normal(ks[6], (1, C), jnp.float32),
        "bv": 0.02 * jax.random.normal(ks[7], (1, C), jnp.float32),
        "wo": 0.2 * jax.random.normal(ks[8], (C, C), jnp.float32),
        "bo": 0.02 * jax.random.normal(ks[9], (1, C), jnp.float32),
        "ln2_g": 1.0 + 0.1 * jax.random.normal(ks[10], (1, C), jnp.float32),
        "ln2_b": 0.05 * jax.random.normal(ks[11], (1, C), jnp.float32),
    }
    x = jax.random.normal(ks[12], (B, C, T), jnp.float32)         # (B, C, T)

    out = jax.block_until_ready(mha_forward(x, params, N_HEAD))
    ref = jax.block_until_ready(mha_reference(x, params, N_HEAD))

    assert out.shape == (B, C, T)
    np.testing.assert_allclose(np.asarray(out), np.asarray(ref),
                               rtol=2e-2, atol=2e-2)
    print("KERNEL_OK")
</pallas_src>

<mosaic_0001>
module attributes {stable_mosaic.version = 11 : i64} {
  func.func @_mha_kernel(%arg0: i32, %arg1: memref<8x8x32xf32, #tpu.memory_space<vmem>>, %arg2: memref<8x1x32xf32, #tpu.memory_space<vmem>>, %arg3: memref<8x32xf32, #tpu.memory_space<vmem>>, %arg4: memref<32x96xf32, #tpu.memory_space<vmem>>, %arg5: memref<1x96xf32, #tpu.memory_space<vmem>>, %arg6: memref<32x32xf32, #tpu.memory_space<vmem>>, %arg7: memref<8x8x32xf32, #tpu.memory_space<vmem>>) attributes {dimension_semantics = [#tpu.dimension_semantics<parallel>], iteration_bounds = array<i64: 2>, scalar_prefetch = 0 : i64, scratch_operands = 0 : i64, tpu.core_type = #tpu.core_type<tc>, window_params = [{transform_indices = @transform_0, window_bounds = array<i64: 8, 8, 32>}, {transform_indices = @transform_1, window_bounds = array<i64: 8, 1, 32>}, {pipeline_mode = #tpu.pipeline_mode<synchronous>, transform_indices = @transform_2, window_bounds = array<i64: 8, 32>}, {pipeline_mode = #tpu.pipeline_mode<synchronous>, transform_indices = @transform_3, window_bounds = array<i64: 32, 96>}, {pipeline_mode = #tpu.pipeline_mode<synchronous>, transform_indices = @transform_4, window_bounds = array<i64: 1, 96>}, {pipeline_mode = #tpu.pipeline_mode<synchronous>, transform_indices = @transform_5, window_bounds = array<i64: 32, 32>}, {transform_indices = @transform_6, window_bounds = array<i64: 8, 8, 32>}]} {
    %c0 = arith.constant 0 : index
    %c0_0 = arith.constant 0 : index
    %0 = vector.load %arg3[%c0, %c0_0] : memref<8x32xf32, #tpu.memory_space<vmem>>, vector<1x32xf32>
    %c1 = arith.constant 1 : index
    %c0_1 = arith.constant 0 : index
    %1 = vector.load %arg3[%c1, %c0_1] : memref<8x32xf32, #tpu.memory_space<vmem>>, vector<1x32xf32>
    %c2 = arith.constant 2 : index
    %c0_2 = arith.constant 0 : index
    %2 = vector.load %arg3[%c2, %c0_2] : memref<8x32xf32, #tpu.memory_space<vmem>>, vector<1x32xf32>
    %c3 = arith.constant 3 : index
    %c0_3 = arith.constant 0 : index
    %3 = vector.load %arg3[%c3, %c0_3] : memref<8x32xf32, #tpu.memory_space<vmem>>, vector<1x32xf32>
    %c4 = arith.constant 4 : index
    %c0_4 = arith.constant 0 : index
    %4 = vector.load %arg3[%c4, %c0_4] : memref<8x32xf32, #tpu.memory_space<vmem>>, vector<1x32xf32>
    %c0_5 = arith.constant 0 : index
    %c0_6 = arith.constant 0 : index
    %c0_7 = arith.constant 0 : index
    %5 = vector.load %arg1[%c0_5, %c0_6, %c0_7] : memref<8x8x32xf32, #tpu.memory_space<vmem>>, vector<8x8x32xf32>
    %cst = arith.constant dense<0.000000e+00> : vector<8x8xf32>
    %6 = vector.multi_reduction <add>, %5, %cst [2] : vector<8x8x32xf32> to vector<8x8xf32>
    %7 = vector.shape_cast %6 : vector<8x8xf32> to vector<8x8x1xf32>
    %cst_8 = arith.constant 3.200000e+01 : f32
    %8 = vector.broadcast %cst_8 : f32 to vector<8x8x1xf32>
    %9 = arith.divf %7, %8 : vector<8x8x1xf32>
    %10 = vector.broadcast %9 : vector<8x8x1xf32> to vector<8x8x32xf32>
    %11 = arith.subf %5, %10 : vector<8x8x32xf32>
    %12 = arith.mulf %11, %11 : vector<8x8x32xf32>
    %cst_9 = arith.constant dense<0.000000e+00> : vector<8x8xf32>
    %13 = vector.multi_reduction <add>, %12, %cst_9 [2] : vector<8x8x32xf32> to vector<8x8xf32>
    %14 = vector.shape_cast %13 : vector<8x8xf32> to vector<8x8x1xf32>
    %cst_10 = arith.constant 3.200000e+01 : f32
    %15 = vector.broadcast %cst_10 : f32 to vector<8x8x1xf32>
    %16 = arith.divf %14, %15 : vector<8x8x1xf32>
    %cst_11 = arith.constant 9.99999974E-6 : f32
    %17 = vector.broadcast %cst_11 : f32 to vector<8x8x1xf32>
    %18 = arith.addf %16, %17 : vector<8x8x1xf32>
    %19 = math.rsqrt %18 : vector<8x8x1xf32>
    %20 = vector.broadcast %19 : vector<8x8x1xf32> to vector<8x8x32xf32>
    %21 = arith.mulf %11, %20 : vector<8x8x32xf32>
    %22 = vector.shape_cast %0 : vector<1x32xf32> to vector<1x1x32xf32>
    %23 = vector.broadcast %22 : vector<1x1x32xf32> to vector<8x8x32xf32>
    %24 = arith.mulf %21, %23 : vector<8x8x32xf32>
    %25 = vector.shape_cast %1 : vector<1x32xf32> to vector<1x1x32xf32>
    %26 = vector.broadcast %25 : vector<1x1x32xf32> to vector<8x8x32xf32>
    %27 = arith.addf %24, %26 : vector<8x8x32xf32>
    %c0_12 = arith.constant 0 : index
    %c0_13 = arith.constant 0 : index
    %c0_14 = arith.constant 0 : index
    %28 = vector.load %arg2[%c0_12, %c0_13, %c0_14] : memref<8x1x32xf32, #tpu.memory_space<vmem>>, vector<8x1x32xf32>
    %29 = vector.broadcast %28 : vector<8x1x32xf32> to vector<8x8x32xf32>
    %30 = arith.addf %27, %29 : vector<8x8x32xf32>
    %31 = vector.shape_cast %30 : vector<8x8x32xf32> to vector<64x32xf32>
    %c0_15 = arith.constant 0 : index
    %c0_16 = arith.constant 0 : index
    %32 = vector.load %arg4[%c0_15, %c0_16] : memref<32x96xf32, #tpu.memory_space<vmem>>, vector<32x96xf32>
    %cst_17 = arith.constant dense<0.000000e+00> : vector<64x96xf32>
    %33 = tpu.matmul %31, %32, %cst_17 {dimension_numbers = #tpu.dot_dimension_numbers<[1], [0], [0], [1], [0, 0, 1, 1], [], []>} : vector<64x32xf32>, vector<32x96xf32>, vector<64x96xf32> -> vector<64x96xf32>
    %c0_18 = arith.constant 0 : index
    %c0_19 = arith.constant 0 : index
    %34 = vector.load %arg5[%c0_18, %c0_19] : memref<1x96xf32, #tpu.memory_space<vmem>>, vector<1x96xf32>
    %35 = vector.broadcast %34 : vector<1x96xf32> to vector<64x96xf32>
    %36 = arith.addf %33, %35 : vector<64x96xf32>
    %37 = vector.shape_cast %36 : vector<64x96xf32> to vector<8x8x96xf32>
    %38 = vector.extract_strided_slice %37 {offsets = [0, 0, 0], sizes = [8, 8, 8], strides = [1, 1, 1]} : vector<8x8x96xf32> to vector<8x8x8xf32>
    %39 = vector.extract_strided_slice %37 {offsets = [0, 0, 32], sizes = [8, 8, 8], strides = [1, 1, 1]} : vector<8x8x96xf32> to vector<8x8x8xf32>
    %40 = vector.extract_strided_slice %37 {offsets = [0, 0, 64], sizes = [8, 8, 8], strides = [1, 1, 1]} : vector<8x8x96xf32> to vector<8x8x8xf32>
    "tpu.trace_start"() <{level = 10 : i32, message = "tqd,tkd->tqk"}> : () -> ()
    %cst_20 = arith.constant dense<0.000000e+00> : vector<8x8x8xf32>
    %41 = tpu.matmul %38, %39, %cst_20 {dimension_numbers = #tpu.dot_dimension_numbers<[2], [2], [1], [1], [0, 0, 0, 1, 1, 1], [0], [0]>} : vector<8x8x8xf32>, vector<8x8x8xf32>, vector<8x8x8xf32> -> vector<8x8x8xf32>
    "tpu.trace_stop"() : () -> ()
    %cst_21 = arith.constant dense<0xFF800000> : vector<8x8xf32>
    %42 = vector.multi_reduction <maximumf>, %41, %cst_21 [2] : vector<8x8x8xf32> to vector<8x8xf32>
    %43 = vector.shape_cast %42 : vector<8x8xf32> to vector<8x8x1xf32>
    %44 = vector.broadcast %43 : vector<8x8x1xf32> to vector<8x8x8xf32>
    %45 = arith.subf %41, %44 : vector<8x8x8xf32>
    %46 = math.exp %45 : vector<8x8x8xf32>
    %cst_22 = arith.constant dense<0.000000e+00> : vector<8x8xf32>
    %47 = vector.multi_reduction <add>, %46, %cst_22 [2] : vector<8x8x8xf32> to vector<8x8xf32>
    %48 = vector.shape_cast %47 : vector<8x8xf32> to vector<8x8x1xf32>
    %49 = tpu.reciprocal %48 {approx = true} : vector<8x8x1xf32> -> vector<8x8x1xf32>
    %50 = vector.broadcast %49 : vector<8x8x1xf32> to vector<8x8x8xf32>
    %51 = arith.mulf %46, %50 : vector<8x8x8xf32>
    "tpu.trace_start"() <{level = 10 : i32, message = "tqk,tkd->tqd"}> : () -> ()
    %cst_23 = arith.constant dense<0.000000e+00> : vector<8x8x8xf32>
    %52 = tpu.matmul %51, %40, %cst_23 {dimension_numbers = #tpu.dot_dimension_numbers<[2], [1], [1], [2], [0, 0, 0, 1, 1, 2], [0], [0]>} : vector<8x8x8xf32>, vector<8x8x8xf32>, vector<8x8x8xf32> -> vector<8x8x8xf32>
    "tpu.trace_stop"() : () -> ()
    %53 = vector.extract_strided_slice %37 {offsets = [0, 0, 8], sizes = [8, 8, 8], strides = [1, 1, 1]} : vector<8x8x96xf32> to vector<8x8x8xf32>
    %54 = vector.extract_strided_slice %37 {offsets = [0, 0, 40], sizes = [8, 8, 8], strides = [1, 1, 1]} : vector<8x8x96xf32> to vector<8x8x8xf32>
    %55 = vector.extract_strided_slice %37 {offsets = [0, 0, 72], sizes = [8, 8, 8], strides = [1, 1, 1]} : vector<8x8x96xf32> to vector<8x8x8xf32>
    "tpu.trace_start"() <{level = 10 : i32, message = "tqd,tkd->tqk"}> : () -> ()
    %cst_24 = arith.constant dense<0.000000e+00> : vector<8x8x8xf32>
    %56 = tpu.matmul %53, %54, %cst_24 {dimension_numbers = #tpu.dot_dimension_numbers<[2], [2], [1], [1], [0, 0, 0, 1, 1, 1], [0], [0]>} : vector<8x8x8xf32>, vector<8x8x8xf32>, vector<8x8x8xf32> -> vector<8x8x8xf32>
    "tpu.trace_stop"() : () -> ()
    %cst_25 = arith.constant dense<0xFF800000> : vector<8x8xf32>
    %57 = vector.multi_reduction <maximumf>, %56, %cst_25 [2] : vector<8x8x8xf32> to vector<8x8xf32>
    %58 = vector.shape_cast %57 : vector<8x8xf32> to vector<8x8x1xf32>
    %59 = vector.broadcast %58 : vector<8x8x1xf32> to vector<8x8x8xf32>
    %60 = arith.subf %56, %59 : vector<8x8x8xf32>
    %61 = math.exp %60 : vector<8x8x8xf32>
    %cst_26 = arith.constant dense<0.000000e+00> : vector<8x8xf32>
    %62 = vector.multi_reduction <add>, %61, %cst_26 [2] : vector<8x8x8xf32> to vector<8x8xf32>
    %63 = vector.shape_cast %62 : vector<8x8xf32> to vector<8x8x1xf32>
    %64 = tpu.reciprocal %63 {approx = true} : vector<8x8x1xf32> -> vector<8x8x1xf32>
    %65 = vector.broadcast %64 : vector<8x8x1xf32> to vector<8x8x8xf32>
    %66 = arith.mulf %61, %65 : vector<8x8x8xf32>
    "tpu.trace_start"() <{level = 10 : i32, message = "tqk,tkd->tqd"}> : () -> ()
    %cst_27 = arith.constant dense<0.000000e+00> : vector<8x8x8xf32>
    %67 = tpu.matmul %66, %55, %cst_27 {dimension_numbers = #tpu.dot_dimension_numbers<[2], [1], [1], [2], [0, 0, 0, 1, 1, 2], [0], [0]>} : vector<8x8x8xf32>, vector<8x8x8xf32>, vector<8x8x8xf32> -> vector<8x8x8xf32>
    "tpu.trace_stop"() : () -> ()
    %68 = vector.extract_strided_slice %37 {offsets = [0, 0, 16], sizes = [8, 8, 8], strides = [1, 1, 1]} : vector<8x8x96xf32> to vector<8x8x8xf32>
    %69 = vector.extract_strided_slice %37 {offsets = [0, 0, 48], sizes = [8, 8, 8], strides = [1, 1, 1]} : vector<8x8x96xf32> to vector<8x8x8xf32>
    %70 = vector.extract_strided_slice %37 {offsets = [0, 0, 80], sizes = [8, 8, 8], strides = [1, 1, 1]} : vector<8x8x96xf32> to vector<8x8x8xf32>
    "tpu.trace_start"() <{level = 10 : i32, message = "tqd,tkd->tqk"}> : () -> ()
    %cst_28 = arith.constant dense<0.000000e+00> : vector<8x8x8xf32>
    %71 = tpu.matmul %68, %69, %cst_28 {dimension_numbers = #tpu.dot_dimension_numbers<[2], [2], [1], [1], [0, 0, 0, 1, 1, 1], [0], [0]>} : vector<8x8x8xf32>, vector<8x8x8xf32>, vector<8x8x8xf32> -> vector<8x8x8xf32>
    "tpu.trace_stop"() : () -> ()
    %cst_29 = arith.constant dense<0xFF800000> : vector<8x8xf32>
    %72 = vector.multi_reduction <maximumf>, %71, %cst_29 [2] : vector<8x8x8xf32> to vector<8x8xf32>
    %73 = vector.shape_cast %72 : vector<8x8xf32> to vector<8x8x1xf32>
    %74 = vector.broadcast %73 : vector<8x8x1xf32> to vector<8x8x8xf32>
    %75 = arith.subf %71, %74 : vector<8x8x8xf32>
    %76 = math.exp %75 : vector<8x8x8xf32>
    %cst_30 = arith.constant dense<0.000000e+00> : vector<8x8xf32>
    %77 = vector.multi_reduction <add>, %76, %cst_30 [2] : vector<8x8x8xf32> to vector<8x8xf32>
    %78 = vector.shape_cast %77 : vector<8x8xf32> to vector<8x8x1xf32>
    %79 = tpu.reciprocal %78 {approx = true} : vector<8x8x1xf32> -> vector<8x8x1xf32>
    %80 = vector.broadcast %79 : vector<8x8x1xf32> to vector<8x8x8xf32>
    %81 = arith.mulf %76, %80 : vector<8x8x8xf32>
    "tpu.trace_start"() <{level = 10 : i32, message = "tqk,tkd->tqd"}> : () -> ()
    %cst_31 = arith.constant dense<0.000000e+00> : vector<8x8x8xf32>
    %82 = tpu.matmul %81, %70, %cst_31 {dimension_numbers = #tpu.dot_dimension_numbers<[2], [1], [1], [2], [0, 0, 0, 1, 1, 2], [0], [0]>} : vector<8x8x8xf32>, vector<8x8x8xf32>, vector<8x8x8xf32> -> vector<8x8x8xf32>
    "tpu.trace_stop"() : () -> ()
    %83 = vector.extract_strided_slice %37 {offsets = [0, 0, 24], sizes = [8, 8, 8], strides = [1, 1, 1]} : vector<8x8x96xf32> to vector<8x8x8xf32>
    %84 = vector.extract_strided_slice %37 {offsets = [0, 0, 56], sizes = [8, 8, 8], strides = [1, 1, 1]} : vector<8x8x96xf32> to vector<8x8x8xf32>
    %85 = vector.extract_strided_slice %37 {offsets = [0, 0, 88], sizes = [8, 8, 8], strides = [1, 1, 1]} : vector<8x8x96xf32> to vector<8x8x8xf32>
    "tpu.trace_start"() <{level = 10 : i32, message = "tqd,tkd->tqk"}> : () -> ()
    %cst_32 = arith.constant dense<0.000000e+00> : vector<8x8x8xf32>
    %86 = tpu.matmul %83, %84, %cst_32 {dimension_numbers = #tpu.dot_dimension_numbers<[2], [2], [1], [1], [0, 0, 0, 1, 1, 1], [0], [0]>} : vector<8x8x8xf32>, vector<8x8x8xf32>, vector<8x8x8xf32> -> vector<8x8x8xf32>
    "tpu.trace_stop"() : () -> ()
    %cst_33 = arith.constant dense<0xFF800000> : vector<8x8xf32>
    %87 = vector.multi_reduction <maximumf>, %86, %cst_33 [2] : vector<8x8x8xf32> to vector<8x8xf32>
    %88 = vector.shape_cast %87 : vector<8x8xf32> to vector<8x8x1xf32>
    %89 = vector.broadcast %88 : vector<8x8x1xf32> to vector<8x8x8xf32>
    %90 = arith.subf %86, %89 : vector<8x8x8xf32>
    %91 = math.exp %90 : vector<8x8x8xf32>
    %cst_34 = arith.constant dense<0.000000e+00> : vector<8x8xf32>
    %92 = vector.multi_reduction <add>, %91, %cst_34 [2] : vector<8x8x8xf32> to vector<8x8xf32>
    %93 = vector.shape_cast %92 : vector<8x8xf32> to vector<8x8x1xf32>
    %94 = tpu.reciprocal %93 {approx = true} : vector<8x8x1xf32> -> vector<8x8x1xf32>
    %95 = vector.broadcast %94 : vector<8x8x1xf32> to vector<8x8x8xf32>
    %96 = arith.mulf %91, %95 : vector<8x8x8xf32>
    "tpu.trace_start"() <{level = 10 : i32, message = "tqk,tkd->tqd"}> : () -> ()
    %cst_35 = arith.constant dense<0.000000e+00> : vector<8x8x8xf32>
    %97 = tpu.matmul %96, %85, %cst_35 {dimension_numbers = #tpu.dot_dimension_numbers<[2], [1], [1], [2], [0, 0, 0, 1, 1, 2], [0], [0]>} : vector<8x8x8xf32>, vector<8x8x8xf32>, vector<8x8x8xf32> -> vector<8x8x8xf32>
    "tpu.trace_stop"() : () -> ()
    %98 = tpu.concatenate %52, %67, %82, %97 in 2 : vector<8x8x8xf32>, vector<8x8x8xf32>, vector<8x8x8xf32>, vector<8x8x8xf32> -> vector<8x8x32xf32>
    %99 = vector.shape_cast %98 : vector<8x8x32xf32> to vector<64x32xf32>
    %c0_36 = arith.constant 0 : index
    %c0_37 = arith.constant 0 : index
    %100 = vector.load %arg6[%c0_36, %c0_37] : memref<32x32xf32, #tpu.memory_space<vmem>>, vector<32x32xf32>
    %cst_38 = arith.constant dense<0.000000e+00> : vector<64x32xf32>
    %101 = tpu.matmul %99, %100, %cst_38 {dimension_numbers = #tpu.dot_dimension_numbers<[1], [0], [0], [1], [0, 0, 1, 1], [], []>} : vector<64x32xf32>, vector<32x32xf32>, vector<64x32xf32> -> vector<64x32xf32>
    %102 = vector.broadcast %2 : vector<1x32xf32> to vector<64x32xf32>
    %103 = arith.addf %101, %102 : vector<64x32xf32>
    %104 = arith.addf %103, %103 : vector<64x32xf32>
    %cst_39 = arith.constant dense<0.000000e+00> : vector<64xf32>
    %105 = vector.multi_reduction <add>, %104, %cst_39 [1] : vector<64x32xf32> to vector<64xf32>
    %106 = vector.shape_cast %105 : vector<64xf32> to vector<64x1xf32>
    %cst_40 = arith.constant 3.200000e+01 : f32
    %107 = vector.broadcast %cst_40 : f32 to vector<64x1xf32>
    %108 = arith.divf %106, %107 : vector<64x1xf32>
    %109 = vector.broadcast %108 : vector<64x1xf32> to vector<64x32xf32>
    %110 = arith.subf %104, %109 : vector<64x32xf32>
    %111 = arith.mulf %110, %110 : vector<64x32xf32>
    %cst_41 = arith.constant dense<0.000000e+00> : vector<64xf32>
    %112 = vector.multi_reduction <add>, %111, %cst_41 [1] : vector<64x32xf32> to vector<64xf32>
    %113 = vector.shape_cast %112 : vector<64xf32> to vector<64x1xf32>
    %cst_42 = arith.constant 3.200000e+01 : f32
    %114 = vector.broadcast %cst_42 : f32 to vector<64x1xf32>
    %115 = arith.divf %113, %114 : vector<64x1xf32>
    %cst_43 = arith.constant 9.99999974E-6 : f32
    %116 = vector.broadcast %cst_43 : f32 to vector<64x1xf32>
    %117 = arith.addf %115, %116 : vector<64x1xf32>
    %118 = math.rsqrt %117 : vector<64x1xf32>
    %119 = vector.broadcast %118 : vector<64x1xf32> to vector<64x32xf32>
    %120 = arith.mulf %110, %119 : vector<64x32xf32>
    %121 = vector.broadcast %3 : vector<1x32xf32> to vector<64x32xf32>
    %122 = arith.mulf %120, %121 : vector<64x32xf32>
    %123 = vector.broadcast %4 : vector<1x32xf32> to vector<64x32xf32>
    %124 = arith.addf %122, %123 : vector<64x32xf32>
    %125 = vector.shape_cast %124 : vector<64x32xf32> to vector<8x8x32xf32>
    %c0_44 = arith.constant 0 : index
    %c0_45 = arith.constant 0 : index
    %c0_46 = arith.constant 0 : index
    %126 = vector.load %arg7[%c0_44, %c0_45, %c0_46] : memref<8x8x32xf32, #tpu.memory_space<vmem>>, vector<8x8x32xf32>
    tpu.vector_store %arg7[%c0_44, %c0_45, %c0_46], %125 {strides = array<i32>} : memref<8x8x32xf32, #tpu.memory_space<vmem>>, vector<8x8x32xf32>,
    return
  }
  func.func @transform_0(%arg0: i32) -> (i32, i32, i32) {
    %c0_i32 = arith.constant 0 : i32
    %c0_i32_0 = arith.constant 0 : i32
    %c0_i32_1 = arith.constant 0 : i32
    return %arg0, %c0_i32, %c0_i32_0 : i32, i32, i32
  }
  func.func @transform_1(%arg0: i32) -> (i32, i32, i32) {
    %c0_i32 = arith.constant 0 : i32
    %c0_i32_0 = arith.constant 0 : i32
    %c0_i32_1 = arith.constant 0 : i32
    return %arg0, %c0_i32, %c0_i32_0 : i32, i32, i32
  }
  func.func @transform_2(%arg0: i32) -> (i32, i32) {
    %c0_i32 = arith.constant 0 : i32
    %c0_i32_0 = arith.constant 0 : i32
    %c0_i32_1 = arith.constant 0 : i32
    return %c0_i32, %c0_i32_0 : i32, i32
  }
  func.func @transform_3(%arg0: i32) -> (i32, i32) {
    %c0_i32 = arith.constant 0 : i32
    %c0_i32_0 = arith.constant 0 : i32
    %c0_i32_1 = arith.constant 0 : i32
    return %c0_i32, %c0_i32_0 : i32, i32
  }
  func.func @transform_4(%arg0: i32) -> (i32, i32) {
    %c0_i32 = arith.constant 0 : i32
    %c0_i32_0 = arith.constant 0 : i32
    %c0_i32_1 = arith.constant 0 : i32
    return %c0_i32, %c0_i32_0 : i32, i32
  }
  func.func @transform_5(%arg0: i32) -> (i32, i32) {
    %c0_i32 = arith.constant 0 : i32
    %c0_i32_0 = arith.constant 0 : i32
    %c0_i32_1 = arith.constant 0 : i32
    return %c0_i32, %c0_i32_0 : i32, i32
  }
  func.func @transform_6(%arg0: i32) -> (i32, i32, i32) {
    %c0_i32 = arith.constant 0 : i32
    %c0_i32_0 = arith.constant 0 : i32
    %c0_i32_1 = arith.constant 0 : i32
    return %arg0, %c0_i32, %c0_i32_0 : i32, i32, i32
  }
}

</mosaic_0001>

<llo_original>
// kernel: tpu_custom_call.1
$region0: #{tpu_custom_call.1}
  #allocation0 [shape = 'u32[]', space=smem, size = 0x4, offset = 0x4, fixed_abs, tag = 'smem constant byte address 0x4 - core index']
  #allocation1 [shape = 'u32[144,128]{1,0:T(1,128)}', space=vmem, size = 0x12000, scoped, tag = 'internal scratch']
  %s0 = inlined_call_operand.hbm [shape: f32[16,8,32], index: 0, kind: input, shape index: {}]
  %s1 = inlined_call_operand.hbm [shape: f32[16,1,32], index: 1, kind: input, shape index: {}]
  %s2 = inlined_call_operand.hbm [shape: f32[8,32], index: 2, kind: input, shape index: {}]
  %s3 = inlined_call_operand.hbm [shape: f32[32,96], index: 3, kind: input, shape index: {}]
  %s4 = inlined_call_operand.vmem [shape: f32[1,96], index: 4, kind: input, shape index: {}]
  %s5 = inlined_call_operand.hbm [shape: f32[32,32], index: 5, kind: input, shape index: {}]
  %s6 = inlined_call_operand.hbm [shape: f32[16,8,32], index: 6, kind: output, shape index: {}]
  %s7 = sld [smem:[#allocation0]]
  $region77: #{tpu_custom_call.1} parent=0
    _
  %s9 = ssub.s32 1, %s7
  %s10 = scalar_select 0, %s9, %s7
  $region1: #{tpu_custom_call.1} parent=0
    #allocation2 [shape = 'u8[65536]{0}', space=vmem, size = 0x10000, scoped, tag = 'input window, operand 0']
    #allocation3 [shape = 's32[2]{0}', space=sflag, size = 0x8, scoped, tag = 'scoped memory for tpu_custom_call.1']
    #allocation4 [shape = 's32[2]{0}', space=sflag, size = 0x8, scoped, tag = 'scoped memory for tpu_custom_call.1']
    #allocation5 [shape = 'u8[8192]{0}', space=vmem, size = 0x2000, scoped, tag = 'input window, operand 1']
    #allocation6 [shape = 's32[2]{0}', space=sflag, size = 0x8, scoped, tag = 'scoped memory for tpu_custom_call.1']
    #allocation7 [shape = 'u8[4096]{0}', space=vmem, size = 0x1000, scoped, tag = 'input window, operand 2, single buffered']
    #allocation8 [shape = 'u8[16384]{0}', space=vmem, size = 0x4000, scoped, tag = 'input window, operand 3, single buffered']
    #allocation9 [shape = 's32[1]{0}', space=sflag, size = 0x4, scoped, tag = 'scoped memory for tpu_custom_call.1']
    #allocation10 [shape = 'u8[16384]{0}', space=vmem, size = 0x4000, scoped, tag = 'input window, operand 5, single buffered']
    #allocation11 [shape = 'u8[65536]{0}', space=vmem, size = 0x10000, scoped, tag = 'output window, operand 0']
    %11 = vsyncpa [#allocation3], 0
    %s12 = scalar_lea.sflag [#allocation3], 1
    %13 = vsyncpa %s12, 0
    %14 = vsyncpa [#allocation6], 0
    %s15 = scalar_lea.sflag [#allocation6], 1
    %16 = vsyncpa %s15, 0
    %17 = vsyncpa [#allocation9], 0
    %18 = vsyncpa [#allocation4], 0
    %s19 = scalar_lea.sflag [#allocation4], 1
    %20 = vsyncpa %s19, 0
    loop: start=0, step=1, limit=4
    $region2: #{tpu_custom_call.1} parent=1 // loop_pre_header
      _
    $region3: #{tpu_custom_call.1} parent=1 // loop_header
      %s22 = sphi 0, %s26
      %p23 = scmp.ge.s32.totalorder %s22, 4
      %s32 = sphi 0, %s34
      %s35 = sphi 0, %s32
      %s36 = sphi 0, %s35
      %s52 = sphi 0, %s36
      %s58 = sphi 0, %s60
      %s61 = sphi 0, %s58
      %s62 = sphi 0, %s61
      %s78 = sphi 0, %s62
      %s82 = sphi 0, %s82
      %s84 = sphi 0, %s82
      %s85 = sphi 0, %s84
      %s99 = sphi 0, %s85
      %s103 = sphi 0, %s103
      %s105 = sphi 0, %s103
      %s106 = sphi 0, %s105
      %s120 = sphi 0, %s106
      %s124 = sphi 0, %s124
      %s126 = sphi 0, %s124
      %s127 = sphi 0, %s126
      %s141 = sphi 0, %s127
      %s145 = sphi 0, %s145
      %s147 = sphi 0, %s145
      %s148 = sphi 0, %s147
      %s162 = sphi 0, %s148
      %s168 = sphi 0, %s170
      %s171 = sphi 0, %s168
      %s172 = sphi 0, %s171
      %s188 = sphi 0, %s172
    $region4: #{tpu_custom_call.1} parent=1 // loop_header_branch
      %25 = sbr.rel (%p23) target = $region8
    $region5: #{tpu_custom_call.1} parent=1 // loop_body
      %s27 = ssub.s32 %s22, 1
      %s28 = ssub.s32 %s22, 2
      %s29 = sadd.s32 %s22, 1
      %s30 = ssub.s32 %s22, %s29
      %p31 = scmp.eq.s32.totalorder %s30, 0
      %s33 = sadd.s32 %s32, 1
      %s34 = scalar_select %p31, %s32, %s33
      %p37 = pneg %p31
      %p38 = scmp.eq.s32.totalorder %s22, 1
      %p39 = por %p37, %p38
      %p40 = scmp.ne.s32.totalorder %s32, %s35
      %p41 = scmp.eq.s32.totalorder %s22, 0
      %p42 = por %p40, %p41
      %p43 = scmp.ne.s32.totalorder %s32, %s35
      %p44 = scmp.eq.s32.totalorder %s27, 1
      %p45 = por %p43, %p44
      %p46 = scmp.ne.s32.totalorder %s35, %s36
      %p47 = scmp.eq.s32.totalorder %s27, 0
      %p48 = por %p46, %p47
      %p49 = scmp.ne.s32.totalorder %s35, %s36
      %p50 = scmp.eq.s32.totalorder %s28, 1
      %p51 = por %p49, %p50
      %p53 = scmp.ne.s32.totalorder %s36, %s52
      %p54 = scmp.eq.s32.totalorder %s28, 0
      %p55 = por %p53, %p54
      %s56 = ssub.s32 %s22, %s29
      %p57 = scmp.eq.s32.totalorder %s56, 0
      %s59 = sadd.s32 %s58, 1
      %s60 = scalar_select %p57, %s58, %s59
      %p63 = pneg %p57
      %p64 = scmp.eq.s32.totalorder %s22, 1
      %p65 = por %p63, %p64
      %p66 = scmp.ne.s32.totalorder %s58, %s61
      %p67 = scmp.eq.s32.totalorder %s22, 0
      %p68 = por %p66, %p67
      %p69 = scmp.ne.s32.totalorder %s58, %s61
      %p70 = scmp.eq.s32.totalorder %s27, 1
      %p71 = por %p69, %p70
      %p72 = scmp.ne.s32.totalorder %s61, %s62
      %p73 = scmp.eq.s32.totalorder %s27, 0
      %p74 = por %p72, %p73
      %p75 = scmp.ne.s32.totalorder %s61, %s62
      %p76 = scmp.eq.s32.totalorder %s28, 1
      %p77 = por %p75, %p76
      %p79 = scmp.ne.s32.totalorder %s62, %s78
      %p80 = scmp.eq.s32.totalorder %s28, 0
      %p81 = por %p79, %p80
      %s83 = sadd.s32 %s82, 1
      %p86 = scmp.eq.s32.totalorder %s22, 1
      %p87 = scmp.ne.s32.totalorder %s82, %s84
      %p88 = scmp.eq.s32.totalorder %s22, 0
      %p89 = por %p87, %p88
      %p90 = scmp.ne.s32.totalorder %s82, %s84
      %p91 = scmp.eq.s32.totalorder %s27, 1
      %p92 = por %p90, %p91
      %p93 = scmp.ne.s32.totalorder %s84, %s85
      %p94 = scmp.eq.s32.totalorder %s27, 0
      %p95 = por %p93, %p94
      %p96 = scmp.ne.s32.totalorder %s84, %s85
      %p97 = scmp.eq.s32.totalorder %s28, 1
      %p98 = por %p96, %p97
      %p100 = scmp.ne.s32.totalorder %s85, %s99
      %p101 = scmp.eq.s32.totalorder %s28, 0
      %p102 = por %p100, %p101
      %s104 = sadd.s32 %s103, 1
      %p107 = scmp.eq.s32.totalorder %s22, 1
      %p108 = scmp.ne.s32.totalorder %s103, %s105
      %p109 = scmp.eq.s32.totalorder %s22, 0
      %p110 = por %p108, %p109
      %p111 = scmp.ne.s32.totalorder %s103, %s105
      %p112 = scmp.eq.s32.totalorder %s27, 1
      %p113 = por %p111, %p112
      %p114 = scmp.ne.s32.totalorder %s105, %s106
      %p115 = scmp.eq.s32.totalorder %s27, 0
      %p116 = por %p114, %p115
      %p117 = scmp.ne.s32.totalorder %s105, %s106
      %p118 = scmp.eq.s32.totalorder %s28, 1
      %p119 = por %p117, %p118
      %p121 = scmp.ne.s32.totalorder %s106, %s120
      %p122 = scmp.eq.s32.totalorder %s28, 0
      %p123 = por %p121, %p122
      %s125 = sadd.s32 %s124, 1
      %p128 = scmp.eq.s32.totalorder %s22, 1
      %p129 = scmp.ne.s32.totalorder %s124, %s126
      %p130 = scmp.eq.s32.totalorder %s22, 0
      %p131 = por %p129, %p130
      %p132 = scmp.ne.s32.totalorder %s124, %s126
      %p133 = scmp.eq.s32.totalorder %s27, 1
      %p134 = por %p132, %p133
      %p135 = scmp.ne.s32.totalorder %s126, %s127
      %p136 = scmp.eq.s32.totalorder %s27, 0
      %p137 = por %p135, %p136
      %p138 = scmp.ne.s32.totalorder %s126, %s127
      %p139 = scmp.eq.s32.totalorder %s28, 1
      %p140 = por %p138, %p139
      %p142 = scmp.ne.s32.totalorder %s127, %s141
      %p143 = scmp.eq.s32.totalorder %s28, 0
      %p144 = por %p142, %p143
      %s146 = sadd.s32 %s145, 1
      %p149 = scmp.eq.s32.totalorder %s22, 1
      %p150 = scmp.ne.s32.totalorder %s145, %s147
      %p151 = scmp.eq.s32.totalorder %s22, 0
      %p152 = por %p150, %p151
      %p153 = scmp.ne.s32.totalorder %s145, %s147
      %p154 = scmp.eq.s32.totalorder %s27, 1
      %p155 = por %p153, %p154
      %p156 = scmp.ne.s32.totalorder %s147, %s148
      %p157 = scmp.eq.s32.totalorder %s27, 0
      %p158 = por %p156, %p157
      %p159 = scmp.ne.s32.totalorder %s147, %s148
      %p160 = scmp.eq.s32.totalorder %s28, 1
      %p161 = por %p159, %p160
      %p163 = scmp.ne.s32.totalorder %s148, %s162
      %p164 = scmp.eq.s32.totalorder %s28, 0
      %p165 = por %p163, %p164
      %s166 = ssub.s32 %s22, %s29
      %p167 = scmp.eq.s32.totalorder %s166, 0
      %s169 = sadd.s32 %s168, 1
      %s170 = scalar_select %p167, %s168, %s169
      %p173 = pneg %p167
      %p174 = scmp.eq.s32.totalorder %s22, 1
      %p175 = por %p173, %p174
      %p176 = scmp.ne.s32.totalorder %s168, %s171
      %p177 = scmp.eq.s32.totalorder %s22, 0
      %p178 = por %p176, %p177
      %p179 = scmp.ne.s32.totalorder %s168, %s171
      %p180 = scmp.eq.s32.totalorder %s27, 1
      %p181 = por %p179, %p180
      %p182 = scmp.ne.s32.totalorder %s171, %s172
      %p183 = scmp.eq.s32.totalorder %s27, 0
      %p184 = por %p182, %p183
      %p185 = scmp.ne.s32.totalorder %s171, %s172
      %p186 = scmp.eq.s32.totalorder %s28, 1
      %p187 = por %p185, %p186
      %p189 = scmp.ne.s32.totalorder %s172, %s188
      %p190 = scmp.eq.s32.totalorder %s28, 0
      %p191 = por %p189, %p190
      %p192 = scmp.le.s32.totalorder 1, %s22
      %p193 = scmp.lt.s32.totalorder %s22, 3
      %p194 = pnand %p192, %p193
      %p195 = pneg %p194
      // Predicated region
      $region9: #{tpu_custom_call.1} parent=5 // pred_check
        _
      $region10: #{tpu_custom_call.1} parent=5 // pred_check_branch
        %197 = sbr.rel (%p194) target = $region12
      $region11: #{tpu_custom_call.1} parent=5 // pred_region
        %s198 = ssub.s32 %s22, 1
        // Predicated region
        $region13: #{tpu_custom_call.1} parent=11 // pred_check
          %p199 = pneg %p95
        $region14: #{tpu_custom_call.1} parent=11 // pred_check_branch
          %201 = sbr.rel (%p199) target = $region16
        $region15: #{tpu_custom_call.1} parent=11 // pred_region
          %s203 = ssub.s32 128, 128
          %204 = vsyncadd [#allocation6], %s203
          %s206 = sshll.u32 [#allocation7], 4
          %s207 = int_to_ptr.vmem [resolvable:$true] %s206
          %209 = dma.hbm_to_vmem [thread:$0]  %s2, 128, %s207, [#allocation6]
        $region16: #{tpu_custom_call.1} parent=11 // pred_fallthru
          _
        // Predicated region
        $region17: #{tpu_custom_call.1} parent=11 // pred_check
          %p210 = pneg %p116
        $region18: #{tpu_custom_call.1} parent=11 // pred_check_branch
          %212 = sbr.rel (%p210) target = $region20
        $region19: #{tpu_custom_call.1} parent=11 // pred_region
          %s214 = ssub.s32 512, 512
          %215 = vsyncadd [#allocation9], %s214
          %s216 = sshll.u32 [#allocation8], 4
          %s217 = int_to_ptr.vmem [resolvable:$true] %s216
          %222 = dma.hbm_to_vmem [thread:$0]  %s3, 512, %s217, [#allocation9], 128, 128, 8
        $region20: #{tpu_custom_call.1} parent=11 // pred_fallthru
          _
        // Predicated region
        $region21: #{tpu_custom_call.1} parent=11 // pred_check
          %p223 = pneg %p137
        $region22: #{tpu_custom_call.1} parent=11 // pred_check_branch
          %225 = sbr.rel (%p223) target = $region24
        $region23: #{tpu_custom_call.1} parent=11 // pred_region
          _
        $region24: #{tpu_custom_call.1} parent=11 // pred_fallthru
          _
        // Predicated region
        $region25: #{tpu_custom_call.1} parent=11 // pred_check
          %p226 = pneg %p158
        $region26: #{tpu_custom_call.1} parent=11 // pred_check_branch
          %228 = sbr.rel (%p226) target = $region28
        $region27: #{tpu_custom_call.1} parent=11 // pred_region
          %s230 = ssub.s32 512, 512
          %231 = vsyncadd [#allocation9], %s230
          %s232 = sshll.u32 [#allocation10], 4
          %s233 = int_to_ptr.vmem [resolvable:$true] %s232
          %238 = dma.hbm_to_vmem [thread:$0]  %s5, 512, %s233, [#allocation9], 128, 128, 8
        $region28: #{tpu_custom_call.1} parent=11 // pred_fallthru
          _
      $region12: #{tpu_custom_call.1} parent=5 // pred_fallthru
        _
      %p239 = scmp.lt.s32.totalorder %s22, 2
      // Predicated region
      $region29: #{tpu_custom_call.1} parent=5 // pred_check
        %p240 = pneg %p239
      $region30: #{tpu_custom_call.1} parent=5 // pred_check_branch
        %242 = sbr.rel (%p240) target = $region32
      $region31: #{tpu_custom_call.1} parent=5 // pred_region
        // Predicated region
        $region33: #{tpu_custom_call.1} parent=31 // pred_check
          %p243 = pneg %p42
        $region34: #{tpu_custom_call.1} parent=31 // pred_check_branch
          %245 = sbr.rel (%p243) target = $region36
        $region35: #{tpu_custom_call.1} parent=31 // pred_region
          %s246 = sand.u32 %s32, 1
          %s247 = scalar_lea.sflag [#allocation3], %s246
          %s248 = sand.u32 %s32, 1
          %s249 = smul.addr %s248, 64
          %s250 = scalar_lea.vmem [#allocation2], %s249
          %s251 = smul.u32 8, %s22
          %s253 = ssub.s32 1024, 1024
          %254 = vsyncadd %s247, %s253
          %s255 = smul.addr %s251, 128
          %s256 = scalar_lea.hbm %s0, %s255
          %s257 = sshll.u32 %s250, 4
          %s258 = int_to_ptr.vmem [resolvable:$true] %s257
          %263 = dma.hbm_to_vmem [thread:$0]  %s256, 1024, %s258, %s247, 128, 128, 8
        $region36: #{tpu_custom_call.1} parent=31 // pred_fallthru
          _
        // Predicated region
        $region37: #{tpu_custom_call.1} parent=31 // pred_check
          %p264 = pneg %p68
        $region38: #{tpu_custom_call.1} parent=31 // pred_check_branch
          %266 = sbr.rel (%p264) target = $region40
        $region39: #{tpu_custom_call.1} parent=31 // pred_region
          %s267 = sand.u32 %s22, 1
          %s268 = scalar_lea.sflag [#allocation6], %s267
          %s269 = sand.u32 %s58, 1
          %s270 = smul.addr %s269, 8
          %s271 = scalar_lea.vmem [#allocation5], %s270
          %s272 = smul.u32 8, %s22
          %s274 = ssub.s32 128, 128
          %275 = vsyncadd %s268, %s274
          %s276 = smul.addr %s272, 16
          %s277 = scalar_lea.hbm %s1, %s276
          %s278 = sshll.u32 %s271, 4
          %s279 = int_to_ptr.vmem [resolvable:$true] %s278
          %284 = dma.hbm_to_vmem [thread:$0]  %s277, 128, %s279, %s268, 16, 16, 1
        $region40: #{tpu_custom_call.1} parent=31 // pred_fallthru
          _
      $region32: #{tpu_custom_call.1} parent=5 // pred_fallthru
        _
      %p285 = scmp.le.s32.totalorder 1, %s22
      %p286 = scmp.lt.s32.totalorder %s22, 3
      %p287 = pnand %p285, %p286
      %p288 = pneg %p287
      // Predicated region
      $region41: #{tpu_custom_call.1} parent=5 // pred_check
        _
      $region42: #{tpu_custom_call.1} parent=5 // pred_check_branch
        %290 = sbr.rel (%p287) target = $region44
      $region43: #{tpu_custom_call.1} parent=5 // pred_region
        %s291 = ssub.s32 %s22, 1
        %s292 = sand.u32 %s35, 1
        %s293 = scalar_lea.sflag [#allocation3], %s292
        %s294 = sand.u32 %s35, 1
        %s295 = smul.addr %s294, 64
        %s296 = scalar_lea.vmem [#allocation2], %s295
        // Predicated region
        $region45: #{tpu_custom_call.1} parent=43 // pred_check
          %p297 = pneg %p48
        $region46: #{tpu_custom_call.1} parent=43 // pred_check_branch
          %299 = sbr.rel (%p297) target = $region48
        $region47: #{tpu_custom_call.1} parent=43 // pred_region
          %300 = dma.done %s293, 1024
        $region48: #{tpu_custom_call.1} parent=43 // pred_fallthru
          _
        %s301 = sand.u32 %s27, 1
        %s302 = scalar_lea.sflag [#allocation6], %s301
        %s303 = sand.u32 %s61, 1
        %s304 = smul.addr %s303, 8
        %s305 = scalar_lea.vmem [#allocation5], %s304
        // Predicated region
        $region49: #{tpu_custom_call.1} parent=43 // pred_check
          %p306 = pneg %p74
        $region50: #{tpu_custom_call.1} parent=43 // pred_check_branch
          %308 = sbr.rel (%p306) target = $region52
        $region51: #{tpu_custom_call.1} parent=43 // pred_region
          %309 = dma.done %s302, 128
        $region52: #{tpu_custom_call.1} parent=43 // pred_fallthru
          _
        // Predicated region
        $region53: #{tpu_custom_call.1} parent=43 // pred_check
          %p310 = pneg %p95
        $region54: #{tpu_custom_call.1} parent=43 // pred_check_branch
          %312 = sbr.rel (%p310) target = $region56
        $region55: #{tpu_custom_call.1} parent=43 // pred_region
          %313 = dma.done [#allocation6], 128
        $region56: #{tpu_custom_call.1} parent=43 // pred_fallthru
          _
        // Predicated region
        $region57: #{tpu_custom_call.1} parent=43 // pred_check
          %p314 = pneg %p116
        $region58: #{tpu_custom_call.1} parent=43 // pred_check_branch
          %316 = sbr.rel (%p314) target = $region60
        $region59: #{tpu_custom_call.1} parent=43 // pred_region
          %317 = dma.done [#allocation9], 512
        $region60: #{tpu_custom_call.1} parent=43 // pred_fallthru
          _
        // Predicated region
        $region61: #{tpu_custom_call.1} parent=43 // pred_check
          %p318 = pneg %p158
        $region62: #{tpu_custom_call.1} parent=43 // pred_check_branch
          %320 = sbr.rel (%p318) target = $region64
        $region63: #{tpu_custom_call.1} parent=43 // pred_region
          %321 = dma.done [#allocation9], 512
        $region64: #{tpu_custom_call.1} parent=43 // pred_fallthru
          _
        %s322 = sand.u32 %s35, 1
        %s323 = scalar_lea.sflag [#allocation3], %s322
        %s324 = sand.u32 %s35, 1
        %s325 = smul.addr %s324, 64
        %s326 = scalar_lea.vmem [#allocation2], %s325
        %p327 = pneg %p48
        %p328 = pneg %p45
        %s329 = sand.u32 %s27, 1
        %s330 = scalar_lea.sflag [#allocation6], %s329
        %s331 = sand.u32 %s61, 1
        %s332 = smul.addr %s331, 8
        %s333 = scalar_lea.vmem [#allocation5], %s332
        %p334 = pneg %p74
        %p335 = pneg %p71
        %p336 = pneg %p95
        %p337 = pneg %p92
        %p338 = pneg %p116
        %p339 = pneg %p113
        %p340 = pneg %p137
        %p341 = pneg %p134
        %p342 = pneg %p158
        %p343 = pneg %p155
        %p344 = pneg %p184
        %p345 = pneg %p181
        %s346 = sand.u32 %s171, 1
        %s347 = scalar_lea.sflag [#allocation4], %s346
        %s348 = sand.u32 %s171, 1
        %s349 = smul.addr %s348, 64
        %s350 = scalar_lea.vmem [#allocation11], %s349
        %s351 = smul.u32 8, %s27
        %s352 = smul.u32 8, %s27
        %s353 = smul.u32 8, %s27
        %v354 = vld [vmem:[#allocation7] sm:$0x1]
        %v355 = vld [vmem:[#allocation7 + $0x1] sm:$0x1]
        %v356 = vld [vmem:[#allocation7 + $0x2] sm:$0x1]
        %v357 = vld [vmem:[#allocation7 + $0x3] sm:$0x1]
        %v358 = vld [vmem:[#allocation7 + $0x4] sm:$0x1]
        %v359 = vld [vmem:[%s296] sm:$0xff]
        %v360 = vld [vmem:[%s296 + $0x8] sm:$0xff]
        %v361 = vld [vmem:[%s296 + $0x10] sm:$0xff]
        %v362 = vld [vmem:[%s296 + $0x18] sm:$0xff]
        %v363 = vld [vmem:[%s296 + $0x20] sm:$0xff]
        %v364 = vld [vmem:[%s296 + $0x28] sm:$0xff]
        %v365 = vld [vmem:[%s296 + $0x30] sm:$0xff]
        %v366 = vld [vmem:[%s296 + $0x38] sm:$0xff]
        %vm367 = vcmask 261120
        %v368 = vsel %vm367, %v359, 0.0
        %369 = vadd.xlane.f32.xlu0 %v368
        %v370 = vpop.xlane.xlu0 %369
        %v371 = vsel %vm367, %v360, 0.0
        %372 = vadd.xlane.f32.xlu0 %v371
        %v373 = vpop.xlane.xlu0 %372
        %v374 = vsel %vm367, %v361, 0.0
        %375 = vadd.xlane.f32.xlu0 %v374
        %v376 = vpop.xlane.xlu0 %375
        %v377 = vsel %vm367, %v362, 0.0
        %378 = vadd.xlane.f32.xlu0 %v377
        %v379 = vpop.xlane.xlu0 %378
        %v380 = vsel %vm367, %v363, 0.0
        %381 = vadd.xlane.f32.xlu0 %v380
        %v382 = vpop.xlane.xlu0 %381
        %v383 = vsel %vm367, %v364, 0.0
        %384 = vadd.xlane.f32.xlu0 %v383
        %v385 = vpop.xlane.xlu0 %384
        %v386 = vsel %vm367, %v365, 0.0
        %387 = vadd.xlane.f32.xlu0 %v386
        %v388 = vpop.xlane.xlu0 %387
        %v389 = vsel %vm367, %v366, 0.0
        %390 = vadd.xlane.f32.xlu0 %v389
        %v391 = vpop.xlane.xlu0 %390
        %v392 = vrcp.pop 32.0
        %v393 = vmul.f32 %v370, %v392
        %v394 = vmul.f32 %v373, %v392
        %v395 = vmul.f32 %v376, %v392
        %v396 = vmul.f32 %v379, %v392
        %v397 = vmul.f32 %v382, %v392
        %v398 = vmul.f32 %v385, %v392
        %v399 = vmul.f32 %v388, %v392
        %v400 = vmul.f32 %v391, %v392
        %v401 = vsub.f32 %v359, %v393
        %v402 = vsub.f32 %v360, %v394
        %v403 = vsub.f32 %v361, %v395
        %v404 = vsub.f32 %v362, %v396
        %v405 = vsub.f32 %v363, %v397
        %v406 = vsub.f32 %v364, %v398
        %v407 = vsub.f32 %v365, %v399
        %v408 = vsub.f32 %v366, %v400
        %v409 = vmul.f32 %v401, %v401
        %v410 = vmul.f32 %v402, %v402
        %v411 = vmul.f32 %v403, %v403
        %v412 = vmul.f32 %v404, %v404
        %v413 = vmul.f32 %v405, %v405
        %v414 = vmul.f32 %v406, %v406
        %v415 = vmul.f32 %v407, %v407
        %v416 = vmul.f32 %v408, %v408
        %v417 = vsel %vm367, %v409, 0.0
        %418 = vadd.xlane.f32.xlu0 %v417
        %v419 = vpop.xlane.xlu0 %418
        %v420 = vsel %vm367, %v410, 0.0
        %421 = vadd.xlane.f32.xlu0 %v420
        %v422 = vpop.xlane.xlu0 %421
        %v423 = vsel %vm367, %v411, 0.0
        %424 = vadd.xlane.f32.xlu0 %v423
        %v425 = vpop.xlane.xlu0 %424
        %v426 = vsel %vm367, %v412, 0.0
        %427 = vadd.xlane.f32.xlu0 %v426
        %v428 = vpop.xlane.xlu0 %427
        %v429 = vsel %vm367, %v413, 0.0
        %430 = vadd.xlane.f32.xlu0 %v429
        %v431 = vpop.xlane.xlu0 %430
        %v432 = vsel %vm367, %v414, 0.0
        %433 = vadd.xlane.f32.xlu0 %v432
        %v434 = vpop.xlane.xlu0 %433
        %v435 = vsel %vm367, %v415, 0.0
        %436 = vadd.xlane.f32.xlu0 %v435
        %v437 = vpop.xlane.xlu0 %436
        %v438 = vsel %vm367, %v416, 0.0
        %439 = vadd.xlane.f32.xlu0 %v438
        %v440 = vpop.xlane.xlu0 %439
        %v441 = vmul.f32 %v419, %v392
        %v442 = vmul.f32 %v422, %v392
        %v443 = vmul.f32 %v425, %v392
        %v444 = vmul.f32 %v428, %v392
        %v445 = vmul.f32 %v431, %v392
        %v446 = vmul.f32 %v434, %v392
        %v447 = vmul.f32 %v437, %v392
        %v448 = vmul.f32 %v440, %v392
        %v449 = vadd.f32 %v441, 1e-05
        %v450 = vadd.f32 %v442, 1e-05
        %v451 = vadd.f32 %v443, 1e-05
        %v452 = vadd.f32 %v444, 1e-05
        %v453 = vadd.f32 %v445, 1e-05
        %v454 = vadd.f32 %v446, 1e-05
        %v455 = vadd.f32 %v447, 1e-05
        %v456 = vadd.f32 %v448, 1e-05
        %v457 = vrsqrt.pop %v449
        %v458 = vrsqrt.pop %v450
        %v459 = vrsqrt.pop %v451
        %v460 = vrsqrt.pop %v452
        %v461 = vrsqrt.pop %v453
        %v462 = vrsqrt.pop %v454
        %v463 = vrsqrt.pop %v455
        %v464 = vrsqrt.pop %v456
        %v465 = vmul.f32 %v401, %v457
        %v466 = vmul.f32 %v402, %v458
        %v467 = vmul.f32 %v403, %v459
        %v468 = vmul.f32 %v404, %v460
        %v469 = vmul.f32 %v405, %v461
        %v470 = vmul.f32 %v406, %v462
        %v471 = vmul.f32 %v407, %v463
        %v472 = vmul.f32 %v408, %v464
        %v473 = vlaneseq
        %v474 = vshrl.u32 %v473, 7
        %v475 = vsub.s32 0, %v474
        %v476 = vrot.slane %v354, %v475
        %v477 = vmul.f32 %v465, %v476
        %v478 = vmul.f32 %v466, %v476
        %v479 = vmul.f32 %v467, %v476
        %v480 = vmul.f32 %v468, %v476
        %v481 = vmul.f32 %v469, %v476
        %v482 = vmul.f32 %v470, %v476
        %v483 = vmul.f32 %v471, %v476
        %v484 = vmul.f32 %v472, %v476
        %v485 = vlaneseq
        %v486 = vshrl.u32 %v485, 7
        %v487 = vsub.s32 0, %v486
        %v488 = vrot.slane %v355, %v487
        %v489 = vadd.f32 %v477, %v488
        %v490 = vadd.f32 %v478, %v488
        %v491 = vadd.f32 %v479, %v488
        %v492 = vadd.f32 %v480, %v488
        %v493 = vadd.f32 %v481, %v488
        %v494 = vadd.f32 %v482, %v488
        %v495 = vadd.f32 %v483, %v488
        %v496 = vadd.f32 %v484, %v488
        %v497 = vld [vmem:[%s305] sm:$0x1]
        %v498 = vld [vmem:[%s305 + $0x1] sm:$0x1]
        %v499 = vld [vmem:[%s305 + $0x2] sm:$0x1]
        %v500 = vld [vmem:[%s305 + $0x3] sm:$0x1]
        %v501 = vld [vmem:[%s305 + $0x4] sm:$0x1]
        %v502 = vld [vmem:[%s305 + $0x5] sm:$0x1]
        %v503 = vld [vmem:[%s305 + $0x6] sm:$0x1]
        %v504 = vld [vmem:[%s305 + $0x7] sm:$0x1]
        %v513 = vlaneseq
        %v514 = vshrl.u32 %v513, 7
        %v515 = vsub.s32 0, %v514
        %v516 = vrot.slane %v497, %v515
        %v517 = vlaneseq
        %v518 = vshrl.u32 %v517, 7
        %v519 = vsub.s32 0, %v518
        %v520 = vrot.slane %v498, %v519
        %v521 = vlaneseq
        %v522 = vshrl.u32 %v521, 7
        %v523 = vsub.s32 0, %v522
        %v524 = vrot.slane %v499, %v523
        %v525 = vlaneseq
        %v526 = vshrl.u32 %v525, 7
        %v527 = vsub.s32 0, %v526
        %v528 = vrot.slane %v500, %v527
        %v529 = vlaneseq
        %v530 = vshrl.u32 %v529, 7
        %v531 = vsub.s32 0, %v530
        %v532 = vrot.slane %v501, %v531
        %v533 = vlaneseq
        %v534 = vshrl.u32 %v533, 7
        %v535 = vsub.s32 0, %v534
        %v536 = vrot.slane %v502, %v535
        %v537 = vlaneseq
        %v538 = vshrl.u32 %v537, 7
        %v539 = vsub.s32 0, %v538
        %v540 = vrot.slane %v503, %v539
        %v541 = vlaneseq
        %v542 = vshrl.u32 %v541, 7
        %v543 = vsub.s32 0, %v542
        %v544 = vrot.slane %v504, %v543
        %v553 = vadd.f32 %v489, %v516
        %v554 = vadd.f32 %v490, %v520
        %v555 = vadd.f32 %v491, %v524
        %v556 = vadd.f32 %v492, %v528
        %v557 = vadd.f32 %v493, %v532
        %v558 = vadd.f32 %v494, %v536
        %v559 = vadd.f32 %v495, %v540
        %v560 = vadd.f32 %v496, %v544
        %v561 = vld [vmem:[#allocation8] sm:$0xff]
        %v562 = vld [vmem:[#allocation8 + $0x8] sm:$0xff]
        %v563 = vld [vmem:[#allocation8 + $0x10] sm:$0xff]
        %v564 = vld [vmem:[#allocation8 + $0x18] sm:$0xff]
        %v565 = vld [vmem:[%s4] sm:$0x1]
        %v567 = vlaneseq
        %v568 = vshrl.u32 %v567, 7
        %v569 = vsub.s32 0, %v568
        %v570 = vrot.slane %v565, %v569
        %v573 = vsel %vm367, %v553, 0
        %v576 = vsel %vm367, %v554, 0
        %v579 = vsel %vm367, %v555, 0
        %v582 = vsel %vm367, %v556, 0
        %v585 = vsel %vm367, %v557, 0
        %v588 = vsel %vm367, %v558, 0
        %v591 = vsel %vm367, %v559, 0
        %v594 = vsel %vm367, %v560, 0
        %596 = vmatprep.subr.mxu0 0.0
        %597 = vmatpush1.msra.mxu0 %v561
        %598 = vmatprep.subr.mxu0 0.0
        %599 = vmatpush1.msra.mxu0 %v562
        %600 = vmatprep.subr.mxu0 0.0
        %601 = vmatpush1.msra.mxu0 %v563
        %602 = vmatprep.subr.mxu0 0.0
        %603 = vmatpush1.msra.mxu0 %v564
        %604 = vmatprep.subr.mxu0 0.0
        %605 = vmatpush1.msra.mxu0 0.0
        %606 = vmatprep.subr.mxu0 0.0
        %607 = vmatpush1.msra.mxu0 0.0
        %608 = vmatprep.subr.mxu0 0.0
        %609 = vmatpush1.msra.mxu0 0.0
        %610 = vmatprep.subr.mxu0 0.0
        %611 = vmatpush1.msra.mxu0 0.0
        %612 = vmatprep.subr.mxu0 0.0
        %613 = vmatpush1.msra.mxu0 0.0
        %614 = vmatprep.subr.mxu0 0.0
        %615 = vmatpush1.msra.mxu0 0.0
        %616 = vmatprep.subr.mxu0 0.0
        %617 = vmatpush1.msra.mxu0 0.0
        %618 = vmatprep.subr.mxu0 0.0
        %619 = vmatpush1.msra.mxu0 0.0
        %620 = vmatprep.subr.mxu0 0.0
        %621 = vmatpush1.msra.mxu0 0.0
        %622 = vmatprep.subr.mxu0 0.0
        %623 = vmatpush1.msra.mxu0 0.0
        %624 = vmatprep.subr.mxu0 0.0
        %625 = vmatpush1.msra.mxu0 0.0
        %626 = vmatprep.subr.mxu0 0.0
        %627 = vmatpush1.msra.mxu0 0.0
        %628 = vmatprep.subr.mxu0 0.0
        %629 = vmatpush1.msra.mxu0 0.0
        %630 = vmatprep.subr.mxu0 0.0
        %631 = vmatpush1.msra.mxu0 0.0
        %632 = vmatprep.subr.mxu0 0.0
        %633 = vmatpush1.msra.mxu0 0.0
        %634 = vmatprep.subr.mxu0 0.0
        %635 = vmatpush1.msra.mxu0 0.0
        %636 = vmatprep.subr.mxu0 0.0
        %637 = vmatpush1.msra.mxu0 0.0
        %638 = vmatprep.subr.mxu0 0.0
        %639 = vmatpush1.msra.mxu0 0.0
        %640 = vmatprep.subr.mxu0 0.0
        %641 = vmatpush1.msra.mxu0 0.0
        %642 = vmatprep.subr.mxu0 0.0
        %643 = vmatpush1.msra.mxu0 0.0
        %644 = vmatprep.subr.mxu0 0.0
        %645 = vmatpush1.msra.mxu0 0.0
        %646 = vmatprep.subr.mxu0 0.0
        %647 = vmatpush1.msra.mxu0 0.0
        %648 = vmatprep.subr.mxu0 0.0
        %649 = vmatpush1.msra.mxu0 0.0
        %650 = vmatprep.subr.mxu0 0.0
        %651 = vmatpush1.msra.mxu0 0.0
        %652 = vmatprep.subr.mxu0 0.0
        %653 = vmatpush1.msra.mxu0 0.0
        %654 = vmatprep.subr.mxu0 0.0
        %655 = vmatpush1.msra.mxu0 0.0
        %656 = vmatprep.subr.mxu0 0.0
        %657 = vmatpush1.msra.mxu0 0.0
        %658 = vmatprep.subr.mxu0 0.0
        %659 = vmatpush1.msra.mxu0 0.0
        %660 = vmatprep.mubr.f32.mxu0 0.0
        %661 = vmatmul.mubr.f32.gmra.mrb[0].mxu0 %v573
        %v662 = vpop.f32.mrb[0].mxu0
        %v663 = vadd.f32 %v570, %v662
        %v664 = vpop.f32.mrb[0].mxu0
        %665 = vmatprep.mubr.f32.mxu0 0.0
        %666 = vmatmul.mubr.f32.gmra.mrb[0].mxu0 %v576
        %v667 = vpop.f32.mrb[0].mxu0
        %v668 = vadd.f32 %v570, %v667
        %v669 = vpop.f32.mrb[0].mxu0
        %670 = vmatprep.mubr.f32.mxu0 0.0
        %671 = vmatmul.mubr.f32.gmra.mrb[0].mxu0 %v579
        %v672 = vpop.f32.mrb[0].mxu0
        %v673 = vadd.f32 %v570, %v672
        %v674 = vpop.f32.mrb[0].mxu0
        %675 = vmatprep.mubr.f32.mxu0 0.0
        %676 = vmatmul.mubr.f32.gmra.mrb[0].mxu0 %v582
        %v677 = vpop.f32.mrb[0].mxu0
        %v678 = vadd.f32 %v570, %v677
        %v679 = vpop.f32.mrb[0].mxu0
        %680 = vmatprep.mubr.f32.mxu0 0.0
        %681 = vmatmul.mubr.f32.gmra.mrb[0].mxu0 %v585
        %v682 = vpop.f32.mrb[0].mxu0
        %v683 = vadd.f32 %v570, %v682
        %v684 = vpop.f32.mrb[0].mxu0
        %685 = vmatprep.mubr.f32.mxu0 0.0
        %686 = vmatmul.mubr.f32.gmra.mrb[0].mxu0 %v588
        %v687 = vpop.f32.mrb[0].mxu0
        %v688 = vadd.f32 %v570, %v687
        %v689 = vpop.f32.mrb[0].mxu0
        %690 = vmatprep.mubr.f32.mxu0 0.0
        %691 = vmatmul.mubr.f32.gmra.mrb[0].mxu0 %v591
        %v692 = vpop.f32.mrb[0].mxu0
        %v693 = vadd.f32 %v570, %v692
        %v694 = vpop.f32.mrb[0].mxu0
        %695 = vmatprep.mubr.f32.mxu0 0.0
        %696 = vmatmul.mubr.f32.gmra.mrb[0].mxu0 %v594
        %v697 = vpop.f32.mrb[0].mxu0
        %v698 = vadd.f32 %v570, %v697
        %v699 = vpop.f32.mrb[0].mxu0
        %700 = vdwg.mxu0
        %702 = vrot.lane.b32.xlu0 %v663, 96
        %v703 = vpop.permute.xlu0 %702
        %vm704 = vcmask 64512
        %v705 = vsel %vm704, %v663, 0
        %v707 = vsel %vm704, %v703, 0
        %709 = vmatprep.subr.mxu0 0.0
        %710 = vmatpush1.xpose.msra.mxu0 %v707
        %711 = vmatprep.subr.mxu0 0.0
        %712 = vmatpush1.xpose.msra.mxu0 0.0
        %713 = vmatprep.subr.mxu0 0.0
        %714 = vmatpush1.xpose.msra.mxu0 0.0
        %715 = vmatprep.subr.mxu0 0.0
        %716 = vmatpush1.xpose.msra.mxu0 0.0
        %717 = vmatprep.subr.mxu0 0.0
        %718 = vmatpush1.xpose.msra.mxu0 0.0
        %719 = vmatprep.subr.mxu0 0.0
        %720 = vmatpush1.xpose.msra.mxu0 0.0
        %721 = vmatprep.subr.mxu0 0.0
        %722 = vmatpush1.xpose.msra.mxu0 0.0
        %723 = vmatprep.subr.mxu0 0.0
        %724 = vmatpush1.xpose.msra.mxu0 0.0
        %725 = vmatprep.subr.mxu0 0.0
        %726 = vmatpush1.xpose.msra.mxu0 0.0
        %727 = vmatprep.subr.mxu0 0.0
        %728 = vmatpush1.xpose.msra.mxu0 0.0
        %729 = vmatprep.subr.mxu0 0.0
        %730 = vmatpush1.xpose.msra.mxu0 0.0
        %731 = vmatprep.subr.mxu0 0.0
        %732 = vmatpush1.xpose.msra.mxu0 0.0
        %733 = vmatprep.subr.mxu0 0.0
        %734 = vmatpush1.xpose.msra.mxu0 0.0
        %735 = vmatprep.subr.mxu0 0.0
        %736 = vmatpush1.xpose.msra.mxu0 0.0
        %737 = vmatprep.subr.mxu0 0.0
        %738 = vmatpush1.xpose.msra.mxu0 0.0
        %739 = vmatprep.subr.mxu0 0.0
        %740 = vmatpush1.xpose.msra.mxu0 0.0
        %741 = vmatprep.subr.mxu0 0.0
        %742 = vmatpush1.xpose.msra.mxu0 0.0
        %743 = vmatprep.subr.mxu0 0.0
        %744 = vmatpush1.xpose.msra.mxu0 0.0
        %745 = vmatprep.subr.mxu0 0.0
        %746 = vmatpush1.xpose.msra.mxu0 0.0
        %747 = vmatprep.subr.mxu0 0.0
        %748 = vmatpush1.xpose.msra.mxu0 0.0
        %749 = vmatprep.subr.mxu0 0.0
        %750 = vmatpush1.xpose.msra.mxu0 0.0
        %751 = vmatprep.subr.mxu0 0.0
        %752 = vmatpush1.xpose.msra.mxu0 0.0
        %753 = vmatprep.subr.mxu0 0.0
        %754 = vmatpush1.xpose.msra.mxu0 0.0
        %755 = vmatprep.subr.mxu0 0.0
        %756 = vmatpush1.xpose.msra.mxu0 0.0
        %757 = vmatprep.subr.mxu0 0.0
        %758 = vmatpush1.xpose.msra.mxu0 0.0
        %759 = vmatprep.subr.mxu0 0.0
        %760 = vmatpush1.xpose.msra.mxu0 0.0
        %761 = vmatprep.subr.mxu0 0.0
        %762 = vmatpush1.xpose.msra.mxu0 0.0
        %763 = vmatprep.subr.mxu0 0.0
        %764 = vmatpush1.xpose.msra.mxu0 0.0
        %765 = vmatprep.subr.mxu0 0.0
        %766 = vmatpush1.xpose.msra.mxu0 0.0
        %767 = vmatprep.subr.mxu0 0.0
        %768 = vmatpush1.xpose.msra.mxu0 0.0
        %769 = vmatprep.subr.mxu0 0.0
        %770 = vmatpush1.xpose.msra.mxu0 0.0
        %771 = vmatprep.subr.mxu0 0.0
        %772 = vmatpush1.xpose.msra.mxu0 0.0
        %773 = vmatprep.mubr.f32.mxu0 0.0
        %774 = vmatmul.mubr.f32.gmra.mrb[0].mxu0 %v705
        %v775 = vpop.f32.mrb[0].mxu0
        %v776 = vadd.f32 0.0, %v775
        %v777 = vpop.f32.mrb[0].mxu0
        %778 = vdwg.mxu0
        %780 = vrot.lane.b32.xlu0 %v668, 96
        %v781 = vpop.permute.xlu0 %780
        %v782 = vsel %vm704, %v668, 0
        %v784 = vsel %vm704, %v781, 0
        %786 = vmatprep.subr.mxu0 0.0
        %787 = vmatpush1.xpose.msra.mxu0 %v784
        %788 = vmatprep.subr.mxu0 0.0
        %789 = vmatpush1.xpose.msra.mxu0 0.0
        %790 = vmatprep.subr.mxu0 0.0
        %791 = vmatpush1.xpose.msra.mxu0 0.0
        %792 = vmatprep.subr.mxu0 0.0
        %793 = vmatpush1.xpose.msra.mxu0 0.0
        %794 = vmatprep.subr.mxu0 0.0
        %795 = vmatpush1.xpose.msra.mxu0 0.0
        %796 = vmatprep.subr.mxu0 0.0
        %797 = vmatpush1.xpose.msra.mxu0 0.0
        %798 = vmatprep.subr.mxu0 0.0
        %799 = vmatpush1.xpose.msra.mxu0 0.0
        %800 = vmatprep.subr.mxu0 0.0
        %801 = vmatpush1.xpose.msra.mxu0 0.0
        %802 = vmatprep.subr.mxu0 0.0
        %803 = vmatpush1.xpose.msra.mxu0 0.0
        %804 = vmatprep.subr.mxu0 0.0
        %805 = vmatpush1.xpose.msra.mxu0 0.0
        %806 = vmatprep.subr.mxu0 0.0
        %807 = vmatpush1.xpose.msra.mxu0 0.0
        %808 = vmatprep.subr.mxu0 0.0
        %809 = vmatpush1.xpose.msra.mxu0 0.0
        %810 = vmatprep.subr.mxu0 0.0
        %811 = vmatpush1.xpose.msra.mxu0 0.0
        %812 = vmatprep.subr.mxu0 0.0
        %813 = vmatpush1.xpose.msra.mxu0 0.0
        %814 = vmatprep.subr.mxu0 0.0
        %815 = vmatpush1.xpose.msra.mxu0 0.0
        %816 = vmatprep.subr.mxu0 0.0
        %817 = vmatpush1.xpose.msra.mxu0 0.0
        %818 = vmatprep.subr.mxu0 0.0
        %819 = vmatpush1.xpose.msra.mxu0 0.0
        %820 = vmatprep.subr.mxu0 0.0
        %821 = vmatpush1.xpose.msra.mxu0 0.0
        %822 = vmatprep.subr.mxu0 0.0
        %823 = vmatpush1.xpose.msra.mxu0 0.0
        %824 = vmatprep.subr.mxu0 0.0
        %825 = vmatpush1.xpose.msra.mxu0 0.0
        %826 = vmatprep.subr.mxu0 0.0
        %827 = vmatpush1.xpose.msra.mxu0 0.0
        %828 = vmatprep.subr.mxu0 0.0
        %829 = vmatpush1.xpose.msra.mxu0 0.0
        %830 = vmatprep.subr.mxu0 0.0
        %831 = vmatpush1.xpose.msra.mxu0 0.0
        %832 = vmatprep.subr.mxu0 0.0
        %833 = vmatpush1.xpose.msra.mxu0 0.0
        %834 = vmatprep.subr.mxu0 0.0
        %835 = vmatpush1.xpose.msra.mxu0 0.0
        %836 = vmatprep.subr.mxu0 0.0
        %837 = vmatpush1.xpose.msra.mxu0 0.0
        %838 = vmatprep.subr.mxu0 0.0
        %839 = vmatpush1.xpose.msra.mxu0 0.0
        %840 = vmatprep.subr.mxu0 0.0
        %841 = vmatpush1.xpose.msra.mxu0 0.0
        %842 = vmatprep.subr.mxu0 0.0
        %843 = vmatpush1.xpose.msra.mxu0 0.0
        %844 = vmatprep.subr.mxu0 0.0
        %845 = vmatpush1.xpose.msra.mxu0 0.0
        %846 = vmatprep.subr.mxu0 0.0
        %847 = vmatpush1.xpose.msra.mxu0 0.0
        %848 = vmatprep.subr.mxu0 0.0
        %849 = vmatpush1.xpose.msra.mxu0 0.0
        %850 = vmatprep.mubr.f32.mxu0 0.0
        %851 = vmatmul.mubr.f32.gmra.mrb[0].mxu0 %v782
        %v852 = vpop.f32.mrb[0].mxu0
        %v853 = vadd.f32 0.0, %v852
        %v854 = vpop.f32.mrb[0].mxu0
        %855 = vdwg.mxu0
        %857 = vrot.lane.b32.xlu0 %v673, 96
        %v858 = vpop.permute.xlu0 %857
        %v859 = vsel %vm704, %v673, 0
        %v861 = vsel %vm704, %v858, 0
        %863 = vmatprep.subr.mxu0 0.0
        %864 = vmatpush1.xpose.msra.mxu0 %v861
        %865 = vmatprep.subr.mxu0 0.0
        %866 = vmatpush1.xpose.msra.mxu0 0.0
        %867 = vmatprep.subr.mxu0 0.0
        %868 = vmatpush1.xpose.msra.mxu0 0.0
        %869 = vmatprep.subr.mxu0 0.0
        %870 = vmatpush1.xpose.msra.mxu0 0.0
        %871 = vmatprep.subr.mxu0 0.0
        %872 = vmatpush1.xpose.msra.mxu0 0.0
        %873 = vmatprep.subr.mxu0 0.0
        %874 = vmatpush1.xpose.msra.mxu0 0.0
        %875 = vmatprep.subr.mxu0 0.0
        %876 = vmatpush1.xpose.msra.mxu0 0.0
        %877 = vmatprep.subr.mxu0 0.0
        %878 = vmatpush1.xpose.msra.mxu0 0.0
        %879 = vmatprep.subr.mxu0 0.0
        %880 = vmatpush1.xpose.msra.mxu0 0.0
        %881 = vmatprep.subr.mxu0 0.0
        %882 = vmatpush1.xpose.msra.mxu0 0.0
        %883 = vmatprep.subr.mxu0 0.0
        %884 = vmatpush1.xpose.msra.mxu0 0.0
        %885 = vmatprep.subr.mxu0 0.0
        %886 = vmatpush1.xpose.msra.mxu0 0.0
        %887 = vmatprep.subr.mxu0 0.0
        %888 = vmatpush1.xpose.msra.mxu0 0.0
        %889 = vmatprep.subr.mxu0 0.0
        %890 = vmatpush1.xpose.msra.mxu0 0.0
        %891 = vmatprep.subr.mxu0 0.0
        %892 = vmatpush1.xpose.msra.mxu0 0.0
        %893 = vmatprep.subr.mxu0 0.0
        %894 = vmatpush1.xpose.msra.mxu0 0.0
        %895 = vmatprep.subr.mxu0 0.0
        %896 = vmatpush1.xpose.msra.mxu0 0.0
        %897 = vmatprep.subr.mxu0 0.0
        %898 = vmatpush1.xpose.msra.mxu0 0.0
        %899 = vmatprep.subr.mxu0 0.0
        %900 = vmatpush1.xpose.msra.mxu0 0.0
        %901 = vmatprep.subr.mxu0 0.0
        %902 = vmatpush1.xpose.msra.mxu0 0.0
        %903 = vmatprep.subr.mxu0 0.0
        %904 = vmatpush1.xpose.msra.mxu0 0.0
        %905 = vmatprep.subr.mxu0 0.0
        %906 = vmatpush1.xpose.msra.mxu0 0.0
        %907 = vmatprep.subr.mxu0 0.0
        %908 = vmatpush1.xpose.msra.mxu0 0.0
        %909 = vmatprep.subr.mxu0 0.0
        %910 = vmatpush1.xpose.msra.mxu0 0.0
        %911 = vmatprep.subr.mxu0 0.0
        %912 = vmatpush1.xpose.msra.mxu0 0.0
        %913 = vmatprep.subr.mxu0 0.0
        %914 = vmatpush1.xpose.msra.mxu0 0.0
        %915 = vmatprep.subr.mxu0 0.0
        %916 = vmatpush1.xpose.msra.mxu0 0.0
        %917 = vmatprep.subr.mxu0 0.0
        %918 = vmatpush1.xpose.msra.mxu0 0.0
        %919 = vmatprep.subr.mxu0 0.0
        %920 = vmatpush1.xpose.msra.mxu0 0.0
        %921 = vmatprep.subr.mxu0 0.0
        %922 = vmatpush1.xpose.msra.mxu0 0.0
        %923 = vmatprep.subr.mxu0 0.0
        %924 = vmatpush1.xpose.msra.mxu0 0.0
        %925 = vmatprep.subr.mxu0 0.0
        %926 = vmatpush1.xpose.msra.mxu0 0.0
        %927 = vmatprep.mubr.f32.mxu0 0.0
        %928 = vmatmul.mubr.f32.gmra.mrb[0].mxu0 %v859
        %v929 = vpop.f32.mrb[0].mxu0
        %v930 = vadd.f32 0.0, %v929
        %v931 = vpop.f32.mrb[0].mxu0
        %932 = vdwg.mxu0
        %934 = vrot.lane.b32.xlu0 %v678, 96
        %v935 = vpop.permute.xlu0 %934
        %v936 = vsel %vm704, %v678, 0
        %v938 = vsel %vm704, %v935, 0
        %940 = vmatprep.subr.mxu0 0.0
        %941 = vmatpush1.xpose.msra.mxu0 %v938
        %942 = vmatprep.subr.mxu0 0.0
        %943 = vmatpush1.xpose.msra.mxu0 0.0
        %944 = vmatprep.subr.mxu0 0.0
        %945 = vmatpush1.xpose.msra.mxu0 0.0
        %946 = vmatprep.subr.mxu0 0.0
        %947 = vmatpush1.xpose.msra.mxu0 0.0
        %948 = vmatprep.subr.mxu0 0.0
        %949 = vmatpush1.xpose.msra.mxu0 0.0
        %950 = vmatprep.subr.mxu0 0.0
        %951 = vmatpush1.xpose.msra.mxu0 0.0
        %952 = vmatprep.subr.mxu0 0.0
        %953 = vmatpush1.xpose.msra.mxu0 0.0
        %954 = vmatprep.subr.mxu0 0.0
        %955 = vmatpush1.xpose.msra.mxu0 0.0
        %956 = vmatprep.subr.mxu0 0.0
        %957 = vmatpush1.xpose.msra.mxu0 0.0
        %958 = vmatprep.subr.mxu0 0.0
        %959 = vmatpush1.xpose.msra.mxu0 0.0
        %960 = vmatprep.subr.mxu0 0.0
        %961 = vmatpush1.xpose.msra.mxu0 0.0
        %962 = vmatprep.subr.mxu0 0.0
        %963 = vmatpush1.xpose.msra.mxu0 0.0
        %964 = vmatprep.subr.mxu0 0.0
        %965 = vmatpush1.xpose.msra.mxu0 0.0
        %966 = vmatprep.subr.mxu0 0.0
        %967 = vmatpush1.xpose.msra.mxu0 0.0
        %968 = vmatprep.subr.mxu0 0.0
        %969 = vmatpush1.xpose.msra.mxu0 0.0
        %970 = vmatprep.subr.mxu0 0.0
        %971 = vmatpush1.xpose.msra.mxu0 0.0
        %972 = vmatprep.subr.mxu0 0.0
        %973 = vmatpush1.xpose.msra.mxu0 0.0
        %974 = vmatprep.subr.mxu0 0.0
        %975 = vmatpush1.xpose.msra.mxu0 0.0
        %976 = vmatprep.subr.mxu0 0.0
        %977 = vmatpush1.xpose.msra.mxu0 0.0
        %978 = vmatprep.subr.mxu0 0.0
        %979 = vmatpush1.xpose.msra.mxu0 0.0
        %980 = vmatprep.subr.mxu0 0.0
        %981 = vmatpush1.xpose.msra.mxu0 0.0
        %982 = vmatprep.subr.mxu0 0.0
        %983 = vmatpush1.xpose.msra.mxu0 0.0
        %984 = vmatprep.subr.mxu0 0.0
        %985 = vmatpush1.xpose.msra.mxu0 0.0
        %986 = vmatprep.subr.mxu0 0.0
        %987 = vmatpush1.xpose.msra.mxu0 0.0
        %988 = vmatprep.subr.mxu0 0.0
        %989 = vmatpush1.xpose.msra.mxu0 0.0
        %990 = vmatprep.subr.mxu0 0.0
        %991 = vmatpush1.xpose.msra.mxu0 0.0
        %992 = vmatprep.subr.mxu0 0.0
        %993 = vmatpush1.xpose.msra.mxu0 0.0
        %994 = vmatprep.subr.mxu0 0.0
        %995 = vmatpush1.xpose.msra.mxu0 0.0
        %996 = vmatprep.subr.mxu0 0.0
        %997 = vmatpush1.xpose.msra.mxu0 0.0
        %998 = vmatprep.subr.mxu0 0.0
        %999 = vmatpush1.xpose.msra.mxu0 0.0
        %1000 = vmatprep.subr.mxu0 0.0
        %1001 = vmatpush1.xpose.msra.mxu0 0.0
        %1002 = vmatprep.subr.mxu0 0.0
        %1003 = vmatpush1.xpose.msra.mxu0 0.0
        %1004 = vmatprep.mubr.f32.mxu0 0.0
        %1005 = vmatmul.mubr.f32.gmra.mrb[0].mxu0 %v936
        %v1006 = vpop.f32.mrb[0].mxu0
        %v1007 = vadd.f32 0.0, %v1006
        %v1008 = vpop.f32.mrb[0].mxu0
        %1009 = vdwg.mxu0
        %1011 = vrot.lane.b32.xlu0 %v683, 96
        %v1012 = vpop.permute.xlu0 %1011
        %v1013 = vsel %vm704, %v683, 0
        %v1015 = vsel %vm704, %v1012, 0
        %1017 = vmatprep.subr.mxu0 0.0
        %1018 = vmatpush1.xpose.msra.mxu0 %v1015
        %1019 = vmatprep.subr.mxu0 0.0
        %1020 = vmatpush1.xpose.msra.mxu0 0.0
        %1021 = vmatprep.subr.mxu0 0.0
        %1022 = vmatpush1.xpose.msra.mxu0 0.0
        %1023 = vmatprep.subr.mxu0 0.0
        %1024 = vmatpush1.xpose.msra.mxu0 0.0
        %1025 = vmatprep.subr.mxu0 0.0
        %1026 = vmatpush1.xpose.msra.mxu0 0.0
        %1027 = vmatprep.subr.mxu0 0.0
        %1028 = vmatpush1.xpose.msra.mxu0 0.0
        %1029 = vmatprep.subr.mxu0 0.0
        %1030 = vmatpush1.xpose.msra.mxu0 0.0
        %1031 = vmatprep.subr.mxu0 0.0
        %1032 = vmatpush1.xpose.msra.mxu0 0.0
        %1033 = vmatprep.subr.mxu0 0.0
        %1034 = vmatpush1.xpose.msra.mxu0 0.0
        %1035 = vmatprep.subr.mxu0 0.0
        %1036 = vmatpush1.xpose.msra.mxu0 0.0
        %1037 = vmatprep.subr.mxu0 0.0
        %1038 = vmatpush1.xpose.msra.mxu0 0.0
        %1039 = vmatprep.subr.mxu0 0.0
        %1040 = vmatpush1.xpose.msra.mxu0 0.0
        %1041 = vmatprep.subr.mxu0 0.0
        %1042 = vmatpush1.xpose.msra.mxu0 0.0
        %1043 = vmatprep.subr.mxu0 0.0
        %1044 = vmatpush1.xpose.msra.mxu0 0.0
        %1045 = vmatprep.subr.mxu0 0.0
        %1046 = vmatpush1.xpose.msra.mxu0 0.0
        %1047 = vmatprep.subr.mxu0 0.0
        %1048 = vmatpush1.xpose.msra.mxu0 0.0
        %1049 = vmatprep.subr.mxu0 0.0
        %1050 = vmatpush1.xpose.msra.mxu0 0.0
        %1051 = vmatprep.subr.mxu0 0.0
        %1052 = vmatpush1.xpose.msra.mxu0 0.0
        %1053 = vmatprep.subr.mxu0 0.0
        %1054 = vmatpush1.xpose.msra.mxu0 0.0
        %1055 = vmatprep.subr.mxu0 0.0
        %1056 = vmatpush1.xpose.msra.mxu0 0.0
        %1057 = vmatprep.subr.mxu0 0.0
        %1058 = vmatpush1.xpose.msra.mxu0 0.0
        %1059 = vmatprep.subr.mxu0 0.0
        %1060 = vmatpush1.xpose.msra.mxu0 0.0
        %1061 = vmatprep.subr.mxu0 0.0
        %1062 = vmatpush1.xpose.msra.mxu0 0.0
        %1063 = vmatprep.subr.mxu0 0.0
        %1064 = vmatpush1.xpose.msra.mxu0 0.0
        %1065 = vmatprep.subr.mxu0 0.0
        %1066 = vmatpush1.xpose.msra.mxu0 0.0
        %1067 = vmatprep.subr.mxu0 0.0
        %1068 = vmatpush1.xpose.msra.mxu0 0.0
        %1069 = vmatprep.subr.mxu0 0.0
        %1070 = vmatpush1.xpose.msra.mxu0 0.0
        %1071 = vmatprep.subr.mxu0 0.0
        %1072 = vmatpush1.xpose.msra.mxu0 0.0
        %1073 = vmatprep.subr.mxu0 0.0
        %1074 = vmatpush1.xpose.msra.mxu0 0.0
        %1075 = vmatprep.subr.mxu0 0.0
        %1076 = vmatpush1.xpose.msra.mxu0 0.0
        %1077 = vmatprep.subr.mxu0 0.0
        %1078 = vmatpush1.xpose.msra.mxu0 0.0
        %1079 = vmatprep.subr.mxu0 0.0
        %1080 = vmatpush1.xpose.msra.mxu0 0.0
        %1081 = vmatprep.mubr.f32.mxu0 0.0
        %1082 = vmatmul.mubr.f32.gmra.mrb[0].mxu0 %v1013
        %v1083 = vpop.f32.mrb[0].mxu0
        %v1084 = vadd.f32 0.0, %v1083
        %v1085 = vpop.f32.mrb[0].mxu0
        %1086 = vdwg.mxu0
        %1088 = vrot.lane.b32.xlu0 %v688, 96
        %v1089 = vpop.permute.xlu0 %1088
        %v1090 = vsel %vm704, %v688, 0
        %v1092 = vsel %vm704, %v1089, 0
        %1094 = vmatprep.subr.mxu0 0.0
        %1095 = vmatpush1.xpose.msra.mxu0 %v1092
        %1096 = vmatprep.subr.mxu0 0.0
        %1097 = vmatpush1.xpose.msra.mxu0 0.0
        %1098 = vmatprep.subr.mxu0 0.0
        %1099 = vmatpush1.xpose.msra.mxu0 0.0
        %1100 = vmatprep.subr.mxu0 0.0
        %1101 = vmatpush1.xpose.msra.mxu0 0.0
        %1102 = vmatprep.subr.mxu0 0.0
        %1103 = vmatpush1.xpose.msra.mxu0 0.0
        %1104 = vmatprep.subr.mxu0 0.0
        %1105 = vmatpush1.xpose.msra.mxu0 0.0
        %1106 = vmatprep.subr.mxu0 0.0
        %1107 = vmatpush1.xpose.msra.mxu0 0.0
        %1108 = vmatprep.subr.mxu0 0.0
        %1109 = vmatpush1.xpose.msra.mxu0 0.0
        %1110 = vmatprep.subr.mxu0 0.0
        %1111 = vmatpush1.xpose.msra.mxu0 0.0
        %1112 = vmatprep.subr.mxu0 0.0
        %1113 = vmatpush1.xpose.msra.mxu0 0.0
        %1114 = vmatprep.subr.mxu0 0.0
        %1115 = vmatpush1.xpose.msra.mxu0 0.0
        %1116 = vmatprep.subr.mxu0 0.0
        %1117 = vmatpush1.xpose.msra.mxu0 0.0
        %1118 = vmatprep.subr.mxu0 0.0
        %1119 = vmatpush1.xpose.msra.mxu0 0.0
        %1120 = vmatprep.subr.mxu0 0.0
        %1121 = vmatpush1.xpose.msra.mxu0 0.0
        %1122 = vmatprep.subr.mxu0 0.0
        %1123 = vmatpush1.xpose.msra.mxu0 0.0
        %1124 = vmatprep.subr.mxu0 0.0
        %1125 = vmatpush1.xpose.msra.mxu0 0.0
        %1126 = vmatprep.subr.mxu0 0.0
        %1127 = vmatpush1.xpose.msra.mxu0 0.0
        %1128 = vmatprep.subr.mxu0 0.0
        %1129 = vmatpush1.xpose.msra.mxu0 0.0
        %1130 = vmatprep.subr.mxu0 0.0
        %1131 = vmatpush1.xpose.msra.mxu0 0.0
        %1132 = vmatprep.subr.mxu0 0.0
        %1133 = vmatpush1.xpose.msra.mxu0 0.0
        %1134 = vmatprep.subr.mxu0 0.0
        %1135 = vmatpush1.xpose.msra.mxu0 0.0
        %1136 = vmatprep.subr.mxu0 0.0
        %1137 = vmatpush1.xpose.msra.mxu0 0.0
        %1138 = vmatprep.subr.mxu0 0.0
        %1139 = vmatpush1.xpose.msra.mxu0 0.0
        %1140 = vmatprep.subr.mxu0 0.0
        %1141 = vmatpush1.xpose.msra.mxu0 0.0
        %1142 = vmatprep.subr.mxu0 0.0
        %1143 = vmatpush1.xpose.msra.mxu0 0.0
        %1144 = vmatprep.subr.mxu0 0.0
        %1145 = vmatpush1.xpose.msra.mxu0 0.0
        %1146 = vmatprep.subr.mxu0 0.0
        %1147 = vmatpush1.xpose.msra.mxu0 0.0
        %1148 = vmatprep.subr.mxu0 0.0
        %1149 = vmatpush1.xpose.msra.mxu0 0.0
        %1150 = vmatprep.subr.mxu0 0.0
        %1151 = vmatpush1.xpose.msra.mxu0 0.0
        %1152 = vmatprep.subr.mxu0 0.0
        %1153 = vmatpush1.xpose.msra.mxu0 0.0
        %1154 = vmatprep.subr.mxu0 0.0
        %1155 = vmatpush1.xpose.msra.mxu0 0.0
        %1156 = vmatprep.subr.mxu0 0.0
        %1157 = vmatpush1.xpose.msra.mxu0 0.0
        %1158 = vmatprep.mubr.f32.mxu0 0.0
        %1159 = vmatmul.mubr.f32.gmra.mrb[0].mxu0 %v1090
        %v1160 = vpop.f32.mrb[0].mxu0
        %v1161 = vadd.f32 0.0, %v1160
        %v1162 = vpop.f32.mrb[0].mxu0
        %1163 = vdwg.mxu0
        %1165 = vrot.lane.b32.xlu0 %v693, 96
        %v1166 = vpop.permute.xlu0 %1165
        %v1167 = vsel %vm704, %v693, 0
        %v1169 = vsel %vm704, %v1166, 0
        %1171 = vmatprep.subr.mxu0 0.0
        %1172 = vmatpush1.xpose.msra.mxu0 %v1169
        %1173 = vmatprep.subr.mxu0 0.0
        %1174 = vmatpush1.xpose.msra.mxu0 0.0
        %1175 = vmatprep.subr.mxu0 0.0
        %1176 = vmatpush1.xpose.msra.mxu0 0.0
        %1177 = vmatprep.subr.mxu0 0.0
        %1178 = vmatpush1.xpose.msra.mxu0 0.0
        %1179 = vmatprep.subr.mxu0 0.0
        %1180 = vmatpush1.xpose.msra.mxu0 0.0
        %1181 = vmatprep.subr.mxu0 0.0
        %1182 = vmatpush1.xpose.msra.mxu0 0.0
        %1183 = vmatprep.subr.mxu0 0.0
        %1184 = vmatpush1.xpose.msra.mxu0 0.0
        %1185 = vmatprep.subr.mxu0 0.0
        %1186 = vmatpush1.xpose.msra.mxu0 0.0
        %1187 = vmatprep.subr.mxu0 0.0
        %1188 = vmatpush1.xpose.msra.mxu0 0.0
        %1189 = vmatprep.subr.mxu0 0.0
        %1190 = vmatpush1.xpose.msra.mxu0 0.0
        %1191 = vmatprep.subr.mxu0 0.0
        %1192 = vmatpush1.xpose.msra.mxu0 0.0
        %1193 = vmatprep.subr.mxu0 0.0
        %1194 = vmatpush1.xpose.msra.mxu0 0.0
        %1195 = vmatprep.subr.mxu0 0.0
        %1196 = vmatpush1.xpose.msra.mxu0 0.0
        %1197 = vmatprep.subr.mxu0 0.0
        %1198 = vmatpush1.xpose.msra.mxu0 0.0
        %1199 = vmatprep.subr.mxu0 0.0
        %1200 = vmatpush1.xpose.msra.mxu0 0.0
        %1201 = vmatprep.subr.mxu0 0.0
        %1202 = vmatpush1.xpose.msra.mxu0 0.0
        %1203 = vmatprep.subr.mxu0 0.0
        %1204 = vmatpush1.xpose.msra.mxu0 0.0
        %1205 = vmatprep.subr.mxu0 0.0
        %1206 = vmatpush1.xpose.msra.mxu0 0.0
        %1207 = vmatprep.subr.mxu0 0.0
        %1208 = vmatpush1.xpose.msra.mxu0 0.0
        %1209 = vmatprep.subr.mxu0 0.0
        %1210 = vmatpush1.xpose.msra.mxu0 0.0
        %1211 = vmatprep.subr.mxu0 0.0
        %1212 = vmatpush1.xpose.msra.mxu0 0.0
        %1213 = vmatprep.subr.mxu0 0.0
        %1214 = vmatpush1.xpose.msra.mxu0 0.0
        %1215 = vmatprep.subr.mxu0 0.0
        %1216 = vmatpush1.xpose.msra.mxu0 0.0
        %1217 = vmatprep.subr.mxu0 0.0
        %1218 = vmatpush1.xpose.msra.mxu0 0.0
        %1219 = vmatprep.subr.mxu0 0.0
        %1220 = vmatpush1.xpose.msra.mxu0 0.0
        %1221 = vmatprep.subr.mxu0 0.0
        %1222 = vmatpush1.xpose.msra.mxu0 0.0
        %1223 = vmatprep.subr.mxu0 0.0
        %1224 = vmatpush1.xpose.msra.mxu0 0.0
        %1225 = vmatprep.subr.mxu0 0.0
        %1226 = vmatpush1.xpose.msra.mxu0 0.0
        %1227 = vmatprep.subr.mxu0 0.0
        %1228 = vmatpush1.xpose.msra.mxu0 0.0
        %1229 = vmatprep.subr.mxu0 0.0
        %1230 = vmatpush1.xpose.msra.mxu0 0.0
        %1231 = vmatprep.subr.mxu0 0.0
        %1232 = vmatpush1.xpose.msra.mxu0 0.0
        %1233 = vmatprep.subr.mxu0 0.0
        %1234 = vmatpush1.xpose.msra.mxu0 0.0
        %1235 = vmatprep.mubr.f32.mxu0 0.0
        %1236 = vmatmul.mubr.f32.gmra.mrb[0].mxu0 %v1167
        %v1237 = vpop.f32.mrb[0].mxu0
        %v1238 = vadd.f32 0.0, %v1237
        %v1239 = vpop.f32.mrb[0].mxu0
        %1240 = vdwg.mxu0
        %1242 = vrot.lane.b32.xlu0 %v698, 96
        %v1243 = vpop.permute.xlu0 %1242
        %v1244 = vsel %vm704, %v698, 0
        %v1246 = vsel %vm704, %v1243, 0
        %1248 = vmatprep.subr.mxu0 0.0
        %1249 = vmatpush1.xpose.msra.mxu0 %v1246
        %1250 = vmatprep.subr.mxu0 0.0
        %1251 = vmatpush1.xpose.msra.mxu0 0.0
        %1252 = vmatprep.subr.mxu0 0.0
        %1253 = vmatpush1.xpose.msra.mxu0 0.0
        %1254 = vmatprep.subr.mxu0 0.0
        %1255 = vmatpush1.xpose.msra.mxu0 0.0
        %1256 = vmatprep.subr.mxu0 0.0
        %1257 = vmatpush1.xpose.msra.mxu0 0.0
        %1258 = vmatprep.subr.mxu0 0.0
        %1259 = vmatpush1.xpose.msra.mxu0 0.0
        %1260 = vmatprep.subr.mxu0 0.0
        %1261 = vmatpush1.xpose.msra.mxu0 0.0
        %1262 = vmatprep.subr.mxu0 0.0
        %1263 = vmatpush1.xpose.msra.mxu0 0.0
        %1264 = vmatprep.subr.mxu0 0.0
        %1265 = vmatpush1.xpose.msra.mxu0 0.0
        %1266 = vmatprep.subr.mxu0 0.0
        %1267 = vmatpush1.xpose.msra.mxu0 0.0
        %1268 = vmatprep.subr.mxu0 0.0
        %1269 = vmatpush1.xpose.msra.mxu0 0.0
        %1270 = vmatprep.subr.mxu0 0.0
        %1271 = vmatpush1.xpose.msra.mxu0 0.0
        %1272 = vmatprep.subr.mxu0 0.0
        %1273 = vmatpush1.xpose.msra.mxu0 0.0
        %1274 = vmatprep.subr.mxu0 0.0
        %1275 = vmatpush1.xpose.msra.mxu0 0.0
        %1276 = vmatprep.subr.mxu0 0.0
        %1277 = vmatpush1.xpose.msra.mxu0 0.0
        %1278 = vmatprep.subr.mxu0 0.0
        %1279 = vmatpush1.xpose.msra.mxu0 0.0
        %1280 = vmatprep.subr.mxu0 0.0
        %1281 = vmatpush1.xpose.msra.mxu0 0.0
        %1282 = vmatprep.subr.mxu0 0.0
        %1283 = vmatpush1.xpose.msra.mxu0 0.0
        %1284 = vmatprep.subr.mxu0 0.0
        %1285 = vmatpush1.xpose.msra.mxu0 0.0
        %1286 = vmatprep.subr.mxu0 0.0
        %1287 = vmatpush1.xpose.msra.mxu0 0.0
        %1288 = vmatprep.subr.mxu0 0.0
        %1289 = vmatpush1.xpose.msra.mxu0 0.0
        %1290 = vmatprep.subr.mxu0 0.0
        %1291 = vmatpush1.xpose.msra.mxu0 0.0
        %1292 = vmatprep.subr.mxu0 0.0
        %1293 = vmatpush1.xpose.msra.mxu0 0.0
        %1294 = vmatprep.subr.mxu0 0.0
        %1295 = vmatpush1.xpose.msra.mxu0 0.0
        %1296 = vmatprep.subr.mxu0 0.0
        %1297 = vmatpush1.xpose.msra.mxu0 0.0
        %1298 = vmatprep.subr.mxu0 0.0
        %1299 = vmatpush1.xpose.msra.mxu0 0.0
        %1300 = vmatprep.subr.mxu0 0.0
        %1301 = vmatpush1.xpose.msra.mxu0 0.0
        %1302 = vmatprep.subr.mxu0 0.0
        %1303 = vmatpush1.xpose.msra.mxu0 0.0
        %1304 = vmatprep.subr.mxu0 0.0
        %1305 = vmatpush1.xpose.msra.mxu0 0.0
        %1306 = vmatprep.subr.mxu0 0.0
        %1307 = vmatpush1.xpose.msra.mxu0 0.0
        %1308 = vmatprep.subr.mxu0 0.0
        %1309 = vmatpush1.xpose.msra.mxu0 0.0
        %1310 = vmatprep.subr.mxu0 0.0
        %1311 = vmatpush1.xpose.msra.mxu0 0.0
        %1312 = vmatprep.mubr.f32.mxu0 0.0
        %1313 = vmatmul.mubr.f32.gmra.mrb[0].mxu0 %v1244
        %v1314 = vpop.f32.mrb[0].mxu0
        %v1315 = vadd.f32 0.0, %v1314
        %v1316 = vpop.f32.mrb[0].mxu0
        %1317 = vdwg.mxu0
        %v1318 = vsel %vm704, %v776, -inf
        %1319 = vmax.xlane.f32.xlu0 %v1318
        %v1320 = vpop.xlane.xlu0 %1319
        %v1321 = vsel %vm704, %v853, -inf
        %1322 = vmax.xlane.f32.xlu0 %v1321
        %v1323 = vpop.xlane.xlu0 %1322
        %v1324 = vsel %vm704, %v930, -inf
        %1325 = vmax.xlane.f32.xlu0 %v1324
        %v1326 = vpop.xlane.xlu0 %1325
        %v1327 = vsel %vm704, %v1007, -inf
        %1328 = vmax.xlane.f32.xlu0 %v1327
        %v1329 = vpop.xlane.xlu0 %1328
        %v1330 = vsel %vm704, %v1084, -inf
        %1331 = vmax.xlane.f32.xlu0 %v1330
        %v1332 = vpop.xlane.xlu0 %1331
        %v1333 = vsel %vm704, %v1161, -inf
        %1334 = vmax.xlane.f32.xlu0 %v1333
        %v1335 = vpop.xlane.xlu0 %1334
        %v1336 = vsel %vm704, %v1238, -inf
        %1337 = vmax.xlane.f32.xlu0 %v1336
        %v1338 = vpop.xlane.xlu0 %1337
        %v1339 = vsel %vm704, %v1315, -inf
        %1340 = vmax.xlane.f32.xlu0 %v1339
        %v1341 = vpop.xlane.xlu0 %1340
        %v1342 = vsub.f32 %v776, %v1320
        %v1343 = vsub.f32 %v853, %v1323
        %v1344 = vsub.f32 %v930, %v1326
        %v1345 = vsub.f32 %v1007, %v1329
        %v1346 = vsub.f32 %v1084, %v1332
        %v1347 = vsub.f32 %v1161, %v1335
        %v1348 = vsub.f32 %v1238, %v1338
        %v1349 = vsub.f32 %v1315, %v1341
        %v1350 = vmul.f32 %v1342, 1.442695
        %v1351 = vpow.pop %v1350
        %v1352 = vmul.f32 %v1343, 1.442695
        %v1353 = vpow.pop %v1352
        %v1354 = vmul.f32 %v1344, 1.442695
        %v1355 = vpow.pop %v1354
        %v1356 = vmul.f32 %v1345, 1.442695
        %v1357 = vpow.pop %v1356
        %v1358 = vmul.f32 %v1346, 1.442695
        %v1359 = vpow.pop %v1358
        %v1360 = vmul.f32 %v1347, 1.442695
        %v1361 = vpow.pop %v1360
        %v1362 = vmul.f32 %v1348, 1.442695
        %v1363 = vpow.pop %v1362
        %v1364 = vmul.f32 %v1349, 1.442695
        %v1365 = vpow.pop %v1364
        %v1366 = vsel %vm704, %v1351, 0.0
        %1367 = vadd.xlane.f32.xlu0 %v1366
        %v1368 = vpop.xlane.xlu0 %1367
        %v1369 = vsel %vm704, %v1353, 0.0
        %1370 = vadd.xlane.f32.xlu0 %v1369
        %v1371 = vpop.xlane.xlu0 %1370
        %v1372 = vsel %vm704, %v1355, 0.0
        %1373 = vadd.xlane.f32.xlu0 %v1372
        %v1374 = vpop.xlane.xlu0 %1373
        %v1375 = vsel %vm704, %v1357, 0.0
        %1376 = vadd.xlane.f32.xlu0 %v1375
        %v1377 = vpop.xlane.xlu0 %1376
        %v1378 = vsel %vm704, %v1359, 0.0
        %1379 = vadd.xlane.f32.xlu0 %v1378
        %v1380 = vpop.xlane.xlu0 %1379
        %v1381 = vsel %vm704, %v1361, 0.0
        %1382 = vadd.xlane.f32.xlu0 %v1381
        %v1383 = vpop.xlane.xlu0 %1382
        %v1384 = vsel %vm704, %v1363, 0.0
        %1385 = vadd.xlane.f32.xlu0 %v1384
        %v1386 = vpop.xlane.xlu0 %1385
        %v1387 = vsel %vm704, %v1365, 0.0
        %1388 = vadd.xlane.f32.xlu0 %v1387
        %v1389 = vpop.xlane.xlu0 %1388
        %v1390 = vrcp.pop %v1368
        %v1391 = vrcp.pop %v1371
        %v1392 = vrcp.pop %v1374
        %v1393 = vrcp.pop %v1377
        %v1394 = vrcp.pop %v1380
        %v1395 = vrcp.pop %v1383
        %v1396 = vrcp.pop %v1386
        %v1397 = vrcp.pop %v1389
        %v1398 = vmul.f32 %v1351, %v1390
        %v1399 = vmul.f32 %v1353, %v1391
        %v1400 = vmul.f32 %v1355, %v1392
        %v1401 = vmul.f32 %v1357, %v1393
        %v1402 = vmul.f32 %v1359, %v1394
        %v1403 = vmul.f32 %v1361, %v1395
        %v1404 = vmul.f32 %v1363, %v1396
        %v1405 = vmul.f32 %v1365, %v1397
        %1406 = vrot.lane.b32.xlu0 %v663, 64
        %v1407 = vpop.permute.xlu0 %1406
        %v1410 = vsel %vm704, %v1398, 0
        %1412 = vmatprep.subr.mxu0 0.0
        %1413 = vmatpush1.msra.mxu0 %v1407
        %1414 = vmatprep.subr.mxu0 0.0
        %1415 = vmatpush1.msra.mxu0 0.0
        %1416 = vmatprep.subr.mxu0 0.0
        %1417 = vmatpush1.msra.mxu0 0.0
        %1418 = vmatprep.subr.mxu0 0.0
        %1419 = vmatpush1.msra.mxu0 0.0
        %1420 = vmatprep.subr.mxu0 0.0
        %1421 = vmatpush1.msra.mxu0 0.0
        %1422 = vmatprep.subr.mxu0 0.0
        %1423 = vmatpush1.msra.mxu0 0.0
        %1424 = vmatprep.subr.mxu0 0.0
        %1425 = vmatpush1.msra.mxu0 0.0
        %1426 = vmatprep.subr.mxu0 0.0
        %1427 = vmatpush1.msra.mxu0 0.0
        %1428 = vmatprep.subr.mxu0 0.0
        %1429 = vmatpush1.msra.mxu0 0.0
        %1430 = vmatprep.subr.mxu0 0.0
        %1431 = vmatpush1.msra.mxu0 0.0
        %1432 = vmatprep.subr.mxu0 0.0
        %1433 = vmatpush1.msra.mxu0 0.0
        %1434 = vmatprep.subr.mxu0 0.0
        %1435 = vmatpush1.msra.mxu0 0.0
        %1436 = vmatprep.subr.mxu0 0.0
        %1437 = vmatpush1.msra.mxu0 0.0
        %1438 = vmatprep.subr.mxu0 0.0
        %1439 = vmatpush1.msra.mxu0 0.0
        %1440 = vmatprep.subr.mxu0 0.0
        %1441 = vmatpush1.msra.mxu0 0.0
        %1442 = vmatprep.subr.mxu0 0.0
        %1443 = vmatpush1.msra.mxu0 0.0
        %1444 = vmatprep.subr.mxu0 0.0
        %1445 = vmatpush1.msra.mxu0 0.0
        %1446 = vmatprep.subr.mxu0 0.0
        %1447 = vmatpush1.msra.mxu0 0.0
        %1448 = vmatprep.subr.mxu0 0.0
        %1449 = vmatpush1.msra.mxu0 0.0
        %1450 = vmatprep.subr.mxu0 0.0
        %1451 = vmatpush1.msra.mxu0 0.0
        %1452 = vmatprep.subr.mxu0 0.0
        %1453 = vmatpush1.msra.mxu0 0.0
        %1454 = vmatprep.subr.mxu0 0.0
        %1455 = vmatpush1.msra.mxu0 0.0
        %1456 = vmatprep.subr.mxu0 0.0
        %1457 = vmatpush1.msra.mxu0 0.0
        %1458 = vmatprep.subr.mxu0 0.0
        %1459 = vmatpush1.msra.mxu0 0.0
        %1460 = vmatprep.subr.mxu0 0.0
        %1461 = vmatpush1.msra.mxu0 0.0
        %1462 = vmatprep.subr.mxu0 0.0
        %1463 = vmatpush1.msra.mxu0 0.0
        %1464 = vmatprep.subr.mxu0 0.0
        %1465 = vmatpush1.msra.mxu0 0.0
        %1466 = vmatprep.subr.mxu0 0.0
        %1467 = vmatpush1.msra.mxu0 0.0
        %1468 = vmatprep.subr.mxu0 0.0
        %1469 = vmatpush1.msra.mxu0 0.0
        %1470 = vmatprep.subr.mxu0 0.0
        %1471 = vmatpush1.msra.mxu0 0.0
        %1472 = vmatprep.subr.mxu0 0.0
        %1473 = vmatpush1.msra.mxu0 0.0
        %1474 = vmatprep.subr.mxu0 0.0
        %1475 = vmatpush1.msra.mxu0 0.0
        %1476 = vmatprep.mubr.f32.mxu0 0.0
        %1477 = vmatmul.mubr.f32.gmra.mrb[0].mxu0 %v1410
        %v1478 = vpop.f32.mrb[0].mxu0
        %v1479 = vadd.f32 0.0, %v1478
        %v1480 = vpop.f32.mrb[0].mxu0
        %1481 = vdwg.mxu0
        %1482 = vrot.lane.b32.xlu0 %v668, 64
        %v1483 = vpop.permute.xlu0 %1482
        %v1486 = vsel %vm704, %v1399, 0
        %1488 = vmatprep.subr.mxu0 0.0
        %1489 = vmatpush1.msra.mxu0 %v1483
        %1490 = vmatprep.subr.mxu0 0.0
        %1491 = vmatpush1.msra.mxu0 0.0
        %1492 = vmatprep.subr.mxu0 0.0
        %1493 = vmatpush1.msra.mxu0 0.0
        %1494 = vmatprep.subr.mxu0 0.0
        %1495 = vmatpush1.msra.mxu0 0.0
        %1496 = vmatprep.subr.mxu0 0.0
        %1497 = vmatpush1.msra.mxu0 0.0
        %1498 = vmatprep.subr.mxu0 0.0
        %1499 = vmatpush1.msra.mxu0 0.0
        %1500 = vmatprep.subr.mxu0 0.0
        %1501 = vmatpush1.msra.mxu0 0.0
        %1502 = vmatprep.subr.mxu0 0.0
        %1503 = vmatpush1.msra.mxu0 0.0
        %1504 = vmatprep.subr.mxu0 0.0
        %1505 = vmatpush1.msra.mxu0 0.0
        %1506 = vmatprep.subr.mxu0 0.0
        %1507 = vmatpush1.msra.mxu0 0.0
        %1508 = vmatprep.subr.mxu0 0.0
        %1509 = vmatpush1.msra.mxu0 0.0
        %1510 = vmatprep.subr.mxu0 0.0
        %1511 = vmatpush1.msra.mxu0 0.0
        %1512 = vmatprep.subr.mxu0 0.0
        %1513 = vmatpush1.msra.mxu0 0.0
        %1514 = vmatprep.subr.mxu0 0.0
        %1515 = vmatpush1.msra.mxu0 0.0
        %1516 = vmatprep.subr.mxu0 0.0
        %1517 = vmatpush1.msra.mxu0 0.0
        %1518 = vmatprep.subr.mxu0 0.0
        %1519 = vmatpush1.msra.mxu0 0.0
        %1520 = vmatprep.subr.mxu0 0.0
        %1521 = vmatpush1.msra.mxu0 0.0
        %1522 = vmatprep.subr.mxu0 0.0
        %1523 = vmatpush1.msra.mxu0 0.0
        %1524 = vmatprep.subr.mxu0 0.0
        %1525 = vmatpush1.msra.mxu0 0.0
        %1526 = vmatprep.subr.mxu0 0.0
        %1527 = vmatpush1.msra.mxu0 0.0
        %1528 = vmatprep.subr.mxu0 0.0
        %1529 = vmatpush1.msra.mxu0 0.0
        %1530 = vmatprep.subr.mxu0 0.0
        %1531 = vmatpush1.msra.mxu0 0.0
        %1532 = vmatprep.subr.mxu0 0.0
        %1533 = vmatpush1.msra.mxu0 0.0
        %1534 = vmatprep.subr.mxu0 0.0
        %1535 = vmatpush1.msra.mxu0 0.0
        %1536 = vmatprep.subr.mxu0 0.0
        %1537 = vmatpush1.msra.mxu0 0.0
        %1538 = vmatprep.subr.mxu0 0.0
        %1539 = vmatpush1.msra.mxu0 0.0
        %1540 = vmatprep.subr.mxu0 0.0
        %1541 = vmatpush1.msra.mxu0 0.0
        %1542 = vmatprep.subr.mxu0 0.0
        %1543 = vmatpush1.msra.mxu0 0.0
        %1544 = vmatprep.subr.mxu0 0.0
        %1545 = vmatpush1.msra.mxu0 0.0
        %1546 = vmatprep.subr.mxu0 0.0
        %1547 = vmatpush1.msra.mxu0 0.0
        %1548 = vmatprep.subr.mxu0 0.0
        %1549 = vmatpush1.msra.mxu0 0.0
        %1550 = vmatprep.subr.mxu0 0.0
        %1551 = vmatpush1.msra.mxu0 0.0
        %1552 = vmatprep.mubr.f32.mxu0 0.0
        %1553 = vmatmul.mubr.f32.gmra.mrb[0].mxu0 %v1486
        %v1554 = vpop.f32.mrb[0].mxu0
        %v1555 = vadd.f32 0.0, %v1554
        %v1556 = vpop.f32.mrb[0].mxu0
        %1557 = vdwg.mxu0
        %1558 = vrot.lane.b32.xlu0 %v673, 64
        %v1559 = vpop.permute.xlu0 %1558
        %v1562 = vsel %vm704, %v1400, 0
        %1564 = vmatprep.subr.mxu0 0.0
        %1565 = vmatpush1.msra.mxu0 %v1559
        %1566 = vmatprep.subr.mxu0 0.0
        %1567 = vmatpush1.msra.mxu0 0.0
        %1568 = vmatprep.subr.mxu0 0.0
        %1569 = vmatpush1.msra.mxu0 0.0
        %1570 = vmatprep.subr.mxu0 0.0
        %1571 = vmatpush1.msra.mxu0 0.0
        %1572 = vmatprep.subr.mxu0 0.0
        %1573 = vmatpush1.msra.mxu0 0.0
        %1574 = vmatprep.subr.mxu0 0.0
        %1575 = vmatpush1.msra.mxu0 0.0
        %1576 = vmatprep.subr.mxu0 0.0
        %1577 = vmatpush1.msra.mxu0 0.0
        %1578 = vmatprep.subr.mxu0 0.0
        %1579 = vmatpush1.msra.mxu0 0.0
        %1580 = vmatprep.subr.mxu0 0.0
        %1581 = vmatpush1.msra.mxu0 0.0
        %1582 = vmatprep.subr.mxu0 0.0
        %1583 = vmatpush1.msra.mxu0 0.0
        %1584 = vmatprep.subr.mxu0 0.0
        %1585 = vmatpush1.msra.mxu0 0.0
        %1586 = vmatprep.subr.mxu0 0.0
        %1587 = vmatpush1.msra.mxu0 0.0
        %1588 = vmatprep.subr.mxu0 0.0
        %1589 = vmatpush1.msra.mxu0 0.0
        %1590 = vmatprep.subr.mxu0 0.0
        %1591 = vmatpush1.msra.mxu0 0.0
        %1592 = vmatprep.subr.mxu0 0.0
        %1593 = vmatpush1.msra.mxu0 0.0
        %1594 = vmatprep.subr.mxu0 0.0
        %1595 = vmatpush1.msra.mxu0 0.0
        %1596 = vmatprep.subr.mxu0 0.0
        %1597 = vmatpush1.msra.mxu0 0.0
        %1598 = vmatprep.subr.mxu0 0.0
        %1599 = vmatpush1.msra.mxu0 0.0
        %1600 = vmatprep.subr.mxu0 0.0
        %1601 = vmatpush1.msra.mxu0 0.0
        %1602 = vmatprep.subr.mxu0 0.0
        %1603 = vmatpush1.msra.mxu0 0.0
        %1604 = vmatprep.subr.mxu0 0.0
        %1605 = vmatpush1.msra.mxu0 0.0
        %1606 = vmatprep.subr.mxu0 0.0
        %1607 = vmatpush1.msra.mxu0 0.0
        %1608 = vmatprep.subr.mxu0 0.0
        %1609 = vmatpush1.msra.mxu0 0.0
        %1610 = vmatprep.subr.mxu0 0.0
        %1611 = vmatpush1.msra.mxu0 0.0
        %1612 = vmatprep.subr.mxu0 0.0
        %1613 = vmatpush1.msra.mxu0 0.0
        %1614 = vmatprep.subr.mxu0 0.0
        %1615 = vmatpush1.msra.mxu0 0.0
        %1616 = vmatprep.subr.mxu0 0.0
        %1617 = vmatpush1.msra.mxu0 0.0
        %1618 = vmatprep.subr.mxu0 0.0
        %1619 = vmatpush1.msra.mxu0 0.0
        %1620 = vmatprep.subr.mxu0 0.0
        %1621 = vmatpush1.msra.mxu0 0.0
        %1622 = vmatprep.subr.mxu0 0.0
        %1623 = vmatpush1.msra.mxu0 0.0
        %1624 = vmatprep.subr.mxu0 0.0
        %1625 = vmatpush1.msra.mxu0 0.0
        %1626 = vmatprep.subr.mxu0 0.0
        %1627 = vmatpush1.msra.mxu0 0.0
        %1628 = vmatprep.mubr.f32.mxu0 0.0
        %1629 = vmatmul.mubr.f32.gmra.mrb[0].mxu0 %v1562
        %v1630 = vpop.f32.mrb[0].mxu0
        %v1631 = vadd.f32 0.0, %v1630
        %v1632 = vpop.f32.mrb[0].mxu0
        %1633 = vdwg.mxu0
        %1634 = vrot.lane.b32.xlu0 %v678, 64
        %v1635 = vpop.permute.xlu0 %1634
        %v1638 = vsel %vm704, %v1401, 0
        %1640 = vmatprep.subr.mxu0 0.0
        %1641 = vmatpush1.msra.mxu0 %v1635
        %1642 = vmatprep.subr.mxu0 0.0
        %1643 = vmatpush1.msra.mxu0 0.0
        %1644 = vmatprep.subr.mxu0 0.0
        %1645 = vmatpush1.msra.mxu0 0.0
        %1646 = vmatprep.subr.mxu0 0.0
        %1647 = vmatpush1.msra.mxu0 0.0
        %1648 = vmatprep.subr.mxu0 0.0
        %1649 = vmatpush1.msra.mxu0 0.0
        %1650 = vmatprep.subr.mxu0 0.0
        %1651 = vmatpush1.msra.mxu0 0.0
        %1652 = vmatprep.subr.mxu0 0.0
        %1653 = vmatpush1.msra.mxu0 0.0
        %1654 = vmatprep.subr.mxu0 0.0
        %1655 = vmatpush1.msra.mxu0 0.0
        %1656 = vmatprep.subr.mxu0 0.0
        %1657 = vmatpush1.msra.mxu0 0.0
        %1658 = vmatprep.subr.mxu0 0.0
        %1659 = vmatpush1.msra.mxu0 0.0
        %1660 = vmatprep.subr.mxu0 0.0
        %1661 = vmatpush1.msra.mxu0 0.0
        %1662 = vmatprep.subr.mxu0 0.0
        %1663 = vmatpush1.msra.mxu0 0.0
        %1664 = vmatprep.subr.mxu0 0.0
        %1665 = vmatpush1.msra.mxu0 0.0
        %1666 = vmatprep.subr.mxu0 0.0
        %1667 = vmatpush1.msra.mxu0 0.0
        %1668 = vmatprep.subr.mxu0 0.0
        %1669 = vmatpush1.msra.mxu0 0.0
        %1670 = vmatprep.subr.mxu0 0.0
        %1671 = vmatpush1.msra.mxu0 0.0
        %1672 = vmatprep.subr.mxu0 0.0
        %1673 = vmatpush1.msra.mxu0 0.0
        %1674 = vmatprep.subr.mxu0 0.0
        %1675 = vmatpush1.msra.mxu0 0.0
        %1676 = vmatprep.subr.mxu0 0.0
        %1677 = vmatpush1.msra.mxu0 0.0
        %1678 = vmatprep.subr.mxu0 0.0
        %1679 = vmatpush1.msra.mxu0 0.0
        %1680 = vmatprep.subr.mxu0 0.0
        %1681 = vmatpush1.msra.mxu0 0.0
        %1682 = vmatprep.subr.mxu0 0.0
        %1683 = vmatpush1.msra.mxu0 0.0
        %1684 = vmatprep.subr.mxu0 0.0
        %1685 = vmatpush1.msra.mxu0 0.0
        %1686 = vmatprep.subr.mxu0 0.0
        %1687 = vmatpush1.msra.mxu0 0.0
        %1688 = vmatprep.subr.mxu0 0.0
        %1689 = vmatpush1.msra.mxu0 0.0
        %1690 = vmatprep.subr.mxu0 0.0
        %1691 = vmatpush1.msra.mxu0 0.0
        %1692 = vmatprep.subr.mxu0 0.0
        %1693 = vmatpush1.msra.mxu0 0.0
        %1694 = vmatprep.subr.mxu0 0.0
        %1695 = vmatpush1.msra.mxu0 0.0
        %1696 = vmatprep.subr.mxu0 0.0
        %1697 = vmatpush1.msra.mxu0 0.0
        %1698 = vmatprep.subr.mxu0 0.0
        %1699 = vmatpush1.msra.mxu0 0.0
        %1700 = vmatprep.subr.mxu0 0.0
        %1701 = vmatpush1.msra.mxu0 0.0
        %1702 = vmatprep.subr.mxu0 0.0
        %1703 = vmatpush1.msra.mxu0 0.0
        %1704 = vmatprep.mubr.f32.mxu0 0.0
        %1705 = vmatmul.mubr.f32.gmra.mrb[0].mxu0 %v1638
        %v1706 = vpop.f32.mrb[0].mxu0
        %v1707 = vadd.f32 0.0, %v1706
        %v1708 = vpop.f32.mrb[0].mxu0
        %1709 = vdwg.mxu0
        %1710 = vrot.lane.b32.xlu0 %v683, 64
        %v1711 = vpop.permute.xlu0 %1710
        %v1714 = vsel %vm704, %v1402, 0
        %1716 = vmatprep.subr.mxu0 0.0
        %1717 = vmatpush1.msra.mxu0 %v1711
        %1718 = vmatprep.subr.mxu0 0.0
        %1719 = vmatpush1.msra.mxu0 0.0
        %1720 = vmatprep.subr.mxu0 0.0
        %1721 = vmatpush1.msra.mxu0 0.0
        %1722 = vmatprep.subr.mxu0 0.0
        %1723 = vmatpush1.msra.mxu0 0.0
        %1724 = vmatprep.subr.mxu0 0.0
        %1725 = vmatpush1.msra.mxu0 0.0
        %1726 = vmatprep.subr.mxu0 0.0
        %1727 = vmatpush1.msra.mxu0 0.0
        %1728 = vmatprep.subr.mxu0 0.0
        %1729 = vmatpush1.msra.mxu0 0.0
        %1730 = vmatprep.subr.mxu0 0.0
        %1731 = vmatpush1.msra.mxu0 0.0
        %1732 = vmatprep.subr.mxu0 0.0
        %1733 = vmatpush1.msra.mxu0 0.0
        %1734 = vmatprep.subr.mxu0 0.0
        %1735 = vmatpush1.msra.mxu0 0.0
        %1736 = vmatprep.subr.mxu0 0.0
        %1737 = vmatpush1.msra.mxu0 0.0
        %1738 = vmatprep.subr.mxu0 0.0
        %1739 = vmatpush1.msra.mxu0 0.0
        %1740 = vmatprep.subr.mxu0 0.0
        %1741 = vmatpush1.msra.mxu0 0.0
        %1742 = vmatprep.subr.mxu0 0.0
        %1743 = vmatpush1.msra.mxu0 0.0
        %1744 = vmatprep.subr.mxu0 0.0
        %1745 = vmatpush1.msra.mxu0 0.0
        %1746 = vmatprep.subr.mxu0 0.0
        %1747 = vmatpush1.msra.mxu0 0.0
        %1748 = vmatprep.subr.mxu0 0.0
        %1749 = vmatpush1.msra.mxu0 0.0
        %1750 = vmatprep.subr.mxu0 0.0
        %1751 = vmatpush1.msra.mxu0 0.0
        %1752 = vmatprep.subr.mxu0 0.0
        %1753 = vmatpush1.msra.mxu0 0.0
        %1754 = vmatprep.subr.mxu0 0.0
        %1755 = vmatpush1.msra.mxu0 0.0
        %1756 = vmatprep.subr.mxu0 0.0
        %1757 = vmatpush1.msra.mxu0 0.0
        %1758 = vmatprep.subr.mxu0 0.0
        %1759 = vmatpush1.msra.mxu0 0.0
        %1760 = vmatprep.subr.mxu0 0.0
        %1761 = vmatpush1.msra.mxu0 0.0
        %1762 = vmatprep.subr.mxu0 0.0
        %1763 = vmatpush1.msra.mxu0 0.0
        %1764 = vmatprep.subr.mxu0 0.0
        %1765 = vmatpush1.msra.mxu0 0.0
        %1766 = vmatprep.subr.mxu0 0.0
        %1767 = vmatpush1.msra.mxu0 0.0
        %1768 = vmatprep.subr.mxu0 0.0
        %1769 = vmatpush1.msra.mxu0 0.0
        %1770 = vmatprep.subr.mxu0 0.0
        %1771 = vmatpush1.msra.mxu0 0.0
        %1772 = vmatprep.subr.mxu0 0.0
        %1773 = vmatpush1.msra.mxu0 0.0
        %1774 = vmatprep.subr.mxu0 0.0
        %1775 = vmatpush1.msra.mxu0 0.0
        %1776 = vmatprep.subr.mxu0 0.0
        %1777 = vmatpush1.msra.mxu0 0.0
        %1778 = vmatprep.subr.mxu0 0.0
        %1779 = vmatpush1.msra.mxu0 0.0
        %1780 = vmatprep.mubr.f32.mxu0 0.0
        %1781 = vmatmul.mubr.f32.gmra.mrb[0].mxu0 %v1714
        %v1782 = vpop.f32.mrb[0].mxu0
        %v1783 = vadd.f32 0.0, %v1782
        %v1784 = vpop.f32.mrb[0].mxu0
        %1785 = vdwg.mxu0
        %1786 = vrot.lane.b32.xlu0 %v688, 64
        %v1787 = vpop.permute.xlu0 %1786
        %v1790 = vsel %vm704, %v1403, 0
        %1792 = vmatprep.subr.mxu0 0.0
        %1793 = vmatpush1.msra.mxu0 %v1787
        %1794 = vmatprep.subr.mxu0 0.0
        %1795 = vmatpush1.msra.mxu0 0.0
        %1796 = vmatprep.subr.mxu0 0.0
        %1797 = vmatpush1.msra.mxu0 0.0
        %1798 = vmatprep.subr.mxu0 0.0
        %1799 = vmatpush1.msra.mxu0 0.0
        %1800 = vmatprep.subr.mxu0 0.0
        %1801 = vmatpush1.msra.mxu0 0.0
        %1802 = vmatprep.subr.mxu0 0.0
        %1803 = vmatpush1.msra.mxu0 0.0
        %1804 = vmatprep.subr.mxu0 0.0
        %1805 = vmatpush1.msra.mxu0 0.0
        %1806 = vmatprep.subr.mxu0 0.0
        %1807 = vmatpush1.msra.mxu0 0.0
        %1808 = vmatprep.subr.mxu0 0.0
        %1809 = vmatpush1.msra.mxu0 0.0
        %1810 = vmatprep.subr.mxu0 0.0
        %1811 = vmatpush1.msra.mxu0 0.0
        %1812 = vmatprep.subr.mxu0 0.0
        %1813 = vmatpush1.msra.mxu0 0.0
        %1814 = vmatprep.subr.mxu0 0.0
        %1815 = vmatpush1.msra.mxu0 0.0
        %1816 = vmatprep.subr.mxu0 0.0
        %1817 = vmatpush1.msra.mxu0 0.0
        %1818 = vmatprep.subr.mxu0 0.0
        %1819 = vmatpush1.msra.mxu0 0.0
        %1820 = vmatprep.subr.mxu0 0.0
        %1821 = vmatpush1.msra.mxu0 0.0
        %1822 = vmatprep.subr.mxu0 0.0
        %1823 = vmatpush1.msra.mxu0 0.0
        %1824 = vmatprep.subr.mxu0 0.0
        %1825 = vmatpush1.msra.mxu0 0.0
        %1826 = vmatprep.subr.mxu0 0.0
        %1827 = vmatpush1.msra.mxu0 0.0
        %1828 = vmatprep.subr.mxu0 0.0
        %1829 = vmatpush1.msra.mxu0 0.0
        %1830 = vmatprep.subr.mxu0 0.0
        %1831 = vmatpush1.msra.mxu0 0.0
        %1832 = vmatprep.subr.mxu0 0.0
        %1833 = vmatpush1.msra.mxu0 0.0
        %1834 = vmatprep.subr.mxu0 0.0
        %1835 = vmatpush1.msra.mxu0 0.0
        %1836 = vmatprep.subr.mxu0 0.0
        %1837 = vmatpush1.msra.mxu0 0.0
        %1838 = vmatprep.subr.mxu0 0.0
        %1839 = vmatpush1.msra.mxu0 0.0
        %1840 = vmatprep.subr.mxu0 0.0
        %1841 = vmatpush1.msra.mxu0 0.0
        %1842 = vmatprep.subr.mxu0 0.0
        %1843 = vmatpush1.msra.mxu0 0.0
        %1844 = vmatprep.subr.mxu0 0.0
        %1845 = vmatpush1.msra.mxu0 0.0
        %1846 = vmatprep.subr.mxu0 0.0
        %1847 = vmatpush1.msra.mxu0 0.0
        %1848 = vmatprep.subr.mxu0 0.0
        %1849 = vmatpush1.msra.mxu0 0.0
        %1850 = vmatprep.subr.mxu0 0.0
        %1851 = vmatpush1.msra.mxu0 0.0
        %1852 = vmatprep.subr.mxu0 0.0
        %1853 = vmatpush1.msra.mxu0 0.0
        %1854 = vmatprep.subr.mxu0 0.0
        %1855 = vmatpush1.msra.mxu0 0.0
        %1856 = vmatprep.mubr.f32.mxu0 0.0
        %1857 = vmatmul.mubr.f32.gmra.mrb[0].mxu0 %v1790
        %v1858 = vpop.f32.mrb[0].mxu0
        %v1859 = vadd.f32 0.0, %v1858
        %v1860 = vpop.f32.mrb[0].mxu0
        %1861 = vdwg.mxu0
        %1862 = vrot.lane.b32.xlu0 %v693, 64
        %v1863 = vpop.permute.xlu0 %1862
        %v1866 = vsel %vm704, %v1404, 0
        %1868 = vmatprep.subr.mxu0 0.0
        %1869 = vmatpush1.msra.mxu0 %v1863
        %1870 = vmatprep.subr.mxu0 0.0
        %1871 = vmatpush1.msra.mxu0 0.0
        %1872 = vmatprep.subr.mxu0 0.0
        %1873 = vmatpush1.msra.mxu0 0.0
        %1874 = vmatprep.subr.mxu0 0.0
        %1875 = vmatpush1.msra.mxu0 0.0
        %1876 = vmatprep.subr.mxu0 0.0
        %1877 = vmatpush1.msra.mxu0 0.0
        %1878 = vmatprep.subr.mxu0 0.0
        %1879 = vmatpush1.msra.mxu0 0.0
        %1880 = vmatprep.subr.mxu0 0.0
        %1881 = vmatpush1.msra.mxu0 0.0
        %1882 = vmatprep.subr.mxu0 0.0
        %1883 = vmatpush1.msra.mxu0 0.0
        %1884 = vmatprep.subr.mxu0 0.0
        %1885 = vmatpush1.msra.mxu0 0.0
        %1886 = vmatprep.subr.mxu0 0.0
        %1887 = vmatpush1.msra.mxu0 0.0
        %1888 = vmatprep.subr.mxu0 0.0
        %1889 = vmatpush1.msra.mxu0 0.0
        %1890 = vmatprep.subr.mxu0 0.0
        %1891 = vmatpush1.msra.mxu0 0.0
        %1892 = vmatprep.subr.mxu0 0.0
        %1893 = vmatpush1.msra.mxu0 0.0
        %1894 = vmatprep.subr.mxu0 0.0
        %1895 = vmatpush1.msra.mxu0 0.0
        %1896 = vmatprep.subr.mxu0 0.0
        %1897 = vmatpush1.msra.mxu0 0.0
        %1898 = vmatprep.subr.mxu0 0.0
        %1899 = vmatpush1.msra.mxu0 0.0
        %1900 = vmatprep.subr.mxu0 0.0
        %1901 = vmatpush1.msra.mxu0 0.0
        %1902 = vmatprep.subr.mxu0 0.0
        %1903 = vmatpush1.msra.mxu0 0.0
        %1904 = vmatprep.subr.mxu0 0.0
        %1905 = vmatpush1.msra.mxu0 0.0
        %1906 = vmatprep.subr.mxu0 0.0
        %1907 = vmatpush1.msra.mxu0 0.0
        %1908 = vmatprep.subr.mxu0 0.0
        %1909 = vmatpush1.msra.mxu0 0.0
        %1910 = vmatprep.subr.mxu0 0.0
        %1911 = vmatpush1.msra.mxu0 0.0
        %1912 = vmatprep.subr.mxu0 0.0
        %1913 = vmatpush1.msra.mxu0 0.0
        %1914 = vmatprep.subr.mxu0 0.0
        %1915 = vmatpush1.msra.mxu0 0.0
        %1916 = vmatprep.subr.mxu0 0.0
        %1917 = vmatpush1.msra.mxu0 0.0
        %1918 = vmatprep.subr.mxu0 0.0
        %1919 = vmatpush1.msra.mxu0 0.0
        %1920 = vmatprep.subr.mxu0 0.0
        %1921 = vmatpush1.msra.mxu0 0.0
        %1922 = vmatprep.subr.mxu0 0.0
        %1923 = vmatpush1.msra.mxu0 0.0
        %1924 = vmatprep.subr.mxu0 0.0
        %1925 = vmatpush1.msra.mxu0 0.0
        %1926 = vmatprep.subr.mxu0 0.0
        %1927 = vmatpush1.msra.mxu0 0.0
        %1928 = vmatprep.subr.mxu0 0.0
        %1929 = vmatpush1.msra.mxu0 0.0
        %1930 = vmatprep.subr.mxu0 0.0
        %1931 = vmatpush1.msra.mxu0 0.0
        %1932 = vmatprep.mubr.f32.mxu0 0.0
        %1933 = vmatmul.mubr.f32.gmra.mrb[0].mxu0 %v1866
        %v1934 = vpop.f32.mrb[0].mxu0
        %v1935 = vadd.f32 0.0, %v1934
        %v1936 = vpop.f32.mrb[0].mxu0
        %1937 = vdwg.mxu0
        %1938 = vrot.lane.b32.xlu0 %v698, 64
        %v1939 = vpop.permute.xlu0 %1938
        %v1942 = vsel %vm704, %v1405, 0
        %1944 = vmatprep.subr.mxu0 0.0
        %1945 = vmatpush1.msra.mxu0 %v1939
        %1946 = vmatprep.subr.mxu0 0.0
        %1947 = vmatpush1.msra.mxu0 0.0
        %1948 = vmatprep.subr.mxu0 0.0
        %1949 = vmatpush1.msra.mxu0 0.0
        %1950 = vmatprep.subr.mxu0 0.0
        %1951 = vmatpush1.msra.mxu0 0.0
        %1952 = vmatprep.subr.mxu0 0.0
        %1953 = vmatpush1.msra.mxu0 0.0
        %1954 = vmatprep.subr.mxu0 0.0
        %1955 = vmatpush1.msra.mxu0 0.0
        %1956 = vmatprep.subr.mxu0 0.0
        %1957 = vmatpush1.msra.mxu0 0.0
        %1958 = vmatprep.subr.mxu0 0.0
        %1959 = vmatpush1.msra.mxu0 0.0
        %1960 = vmatprep.subr.mxu0 0.0
        %1961 = vmatpush1.msra.mxu0 0.0
        %1962 = vmatprep.subr.mxu0 0.0
        %1963 = vmatpush1.msra.mxu0 0.0
        %1964 = vmatprep.subr.mxu0 0.0
        %1965 = vmatpush1.msra.mxu0 0.0
        %1966 = vmatprep.subr.mxu0 0.0
        %1967 = vmatpush1.msra.mxu0 0.0
        %1968 = vmatprep.subr.mxu0 0.0
        %1969 = vmatpush1.msra.mxu0 0.0
        %1970 = vmatprep.subr.mxu0 0.0
        %1971 = vmatpush1.msra.mxu0 0.0
        %1972 = vmatprep.subr.mxu0 0.0
        %1973 = vmatpush1.msra.mxu0 0.0
        %1974 = vmatprep.subr.mxu0 0.0
        %1975 = vmatpush1.msra.mxu0 0.0
        %1976 = vmatprep.subr.mxu0 0.0
        %1977 = vmatpush1.msra.mxu0 0.0
        %1978 = vmatprep.subr.mxu0 0.0
        %1979 = vmatpush1.msra.mxu0 0.0
        %1980 = vmatprep.subr.mxu0 0.0
        %1981 = vmatpush1.msra.mxu0 0.0
        %1982 = vmatprep.subr.mxu0 0.0
        %1983 = vmatpush1.msra.mxu0 0.0
        %1984 = vmatprep.subr.mxu0 0.0
        %1985 = vmatpush1.msra.mxu0 0.0
        %1986 = vmatprep.subr.mxu0 0.0
        %1987 = vmatpush1.msra.mxu0 0.0
        %1988 = vmatprep.subr.mxu0 0.0
        %1989 = vmatpush1.msra.mxu0 0.0
        %1990 = vmatprep.subr.mxu0 0.0
        %1991 = vmatpush1.msra.mxu0 0.0
        %1992 = vmatprep.subr.mxu0 0.0
        %1993 = vmatpush1.msra.mxu0 0.0
        %1994 = vmatprep.subr.mxu0 0.0
        %1995 = vmatpush1.msra.mxu0 0.0
        %1996 = vmatprep.subr.mxu0 0.0
        %1997 = vmatpush1.msra.mxu0 0.0
        %1998 = vmatprep.subr.mxu0 0.0
        %1999 = vmatpush1.msra.mxu0 0.0
        %2000 = vmatprep.subr.mxu0 0.0
        %2001 = vmatpush1.msra.mxu0 0.0
        %2002 = vmatprep.subr.mxu0 0.0
        %2003 = vmatpush1.msra.mxu0 0.0
        %2004 = vmatprep.subr.mxu0 0.0
        %2005 = vmatpush1.msra.mxu0 0.0
        %2006 = vmatprep.subr.mxu0 0.0
        %2007 = vmatpush1.msra.mxu0 0.0
        %2008 = vmatprep.mubr.f32.mxu0 0.0
        %2009 = vmatmul.mubr.f32.gmra.mrb[0].mxu0 %v1942
        %v2010 = vpop.f32.mrb[0].mxu0
        %v2011 = vadd.f32 0.0, %v2010
        %v2012 = vpop.f32.mrb[0].mxu0
        %2013 = vdwg.mxu0
        %2014 = vrot.lane.b32.xlu0 %v663, 120
        %v2015 = vpop.permute.xlu0 %2014
        %2016 = vrot.lane.b32.xlu0 %v663, 88
        %v2017 = vpop.permute.xlu0 %2016
        %v2018 = vsel %vm704, %v2015, 0
        %v2020 = vsel %vm704, %v2017, 0
        %2022 = vmatprep.subr.mxu0 0.0
        %2023 = vmatpush1.xpose.msra.mxu0 %v2020
        %2024 = vmatprep.subr.mxu0 0.0
        %2025 = vmatpush1.xpose.msra.mxu0 0.0
        %2026 = vmatprep.subr.mxu0 0.0
        %2027 = vmatpush1.xpose.msra.mxu0 0.0
        %2028 = vmatprep.subr.mxu0 0.0
        %2029 = vmatpush1.xpose.msra.mxu0 0.0
        %2030 = vmatprep.subr.mxu0 0.0
        %2031 = vmatpush1.xpose.msra.mxu0 0.0
        %2032 = vmatprep.subr.mxu0 0.0
        %2033 = vmatpush1.xpose.msra.mxu0 0.0
        %2034 = vmatprep.subr.mxu0 0.0
        %2035 = vmatpush1.xpose.msra.mxu0 0.0
        %2036 = vmatprep.subr.mxu0 0.0
        %2037 = vmatpush1.xpose.msra.mxu0 0.0
        %2038 = vmatprep.subr.mxu0 0.0
        %2039 = vmatpush1.xpose.msra.mxu0 0.0
        %2040 = vmatprep.subr.mxu0 0.0
        %2041 = vmatpush1.xpose.msra.mxu0 0.0
        %2042 = vmatprep.subr.mxu0 0.0
        %2043 = vmatpush1.xpose.msra.mxu0 0.0
        %2044 = vmatprep.subr.mxu0 0.0
        %2045 = vmatpush1.xpose.msra.mxu0 0.0
        %2046 = vmatprep.subr.mxu0 0.0
        %2047 = vmatpush1.xpose.msra.mxu0 0.0
        %2048 = vmatprep.subr.mxu0 0.0
        %2049 = vmatpush1.xpose.msra.mxu0 0.0
        %2050 = vmatprep.subr.mxu0 0.0
        %2051 = vmatpush1.xpose.msra.mxu0 0.0
        %2052 = vmatprep.subr.mxu0 0.0
        %2053 = vmatpush1.xpose.msra.mxu0 0.0
        %2054 = vmatprep.subr.mxu0 0.0
        %2055 = vmatpush1.xpose.msra.mxu0 0.0
        %2056 = vmatprep.subr.mxu0 0.0
        %2057 = vmatpush1.xpose.msra.mxu0 0.0
        %2058 = vmatprep.subr.mxu0 0.0
        %2059 = vmatpush1.xpose.msra.mxu0 0.0
        %2060 = vmatprep.subr.mxu0 0.0
        %2061 = vmatpush1.xpose.msra.mxu0 0.0
        %2062 = vmatprep.subr.mxu0 0.0
        %2063 = vmatpush1.xpose.msra.mxu0 0.0
        %2064 = vmatprep.subr.mxu0 0.0
        %2065 = vmatpush1.xpose.msra.mxu0 0.0
        %2066 = vmatprep.subr.mxu0 0.0
        %2067 = vmatpush1.xpose.msra.mxu0 0.0
        %2068 = vmatprep.subr.mxu0 0.0
        %2069 = vmatpush1.xpose.msra.mxu0 0.0
        %2070 = vmatprep.subr.mxu0 0.0
        %2071 = vmatpush1.xpose.msra.mxu0 0.0
        %2072 = vmatprep.subr.mxu0 0.0
        %2073 = vmatpush1.xpose.msra.mxu0 0.0
        %2074 = vmatprep.subr.mxu0 0.0
        %2075 = vmatpush1.xpose.msra.mxu0 0.0
        %2076 = vmatprep.subr.mxu0 0.0
        %2077 = vmatpush1.xpose.msra.mxu0 0.0
        %2078 = vmatprep.subr.mxu0 0.0
        %2079 = vmatpush1.xpose.msra.mxu0 0.0
        %2080 = vmatprep.subr.mxu0 0.0
        %2081 = vmatpush1.xpose.msra.mxu0 0.0
        %2082 = vmatprep.subr.mxu0 0.0
        %2083 = vmatpush1.xpose.msra.mxu0 0.0
        %2084 = vmatprep.subr.mxu0 0.0
        %2085 = vmatpush1.xpose.msra.mxu0 0.0
        %2086 = vmatprep.mubr.f32.mxu0 0.0
        %2087 = vmatmul.mubr.f32.gmra.mrb[0].mxu0 %v2018
        %v2088 = vpop.f32.mrb[0].mxu0
        %v2089 = vadd.f32 0.0, %v2088
        %v2090 = vpop.f32.mrb[0].mxu0
        %2091 = vdwg.mxu0
        %2092 = vrot.lane.b32.xlu0 %v668, 120
        %v2093 = vpop.permute.xlu0 %2092
        %2094 = vrot.lane.b32.xlu0 %v668, 88
        %v2095 = vpop.permute.xlu0 %2094
        %v2096 = vsel %vm704, %v2093, 0
        %v2098 = vsel %vm704, %v2095, 0
        %2100 = vmatprep.subr.mxu0 0.0
        %2101 = vmatpush1.xpose.msra.mxu0 %v2098
        %2102 = vmatprep.subr.mxu0 0.0
        %2103 = vmatpush1.xpose.msra.mxu0 0.0
        %2104 = vmatprep.subr.mxu0 0.0
        %2105 = vmatpush1.xpose.msra.mxu0 0.0
        %2106 = vmatprep.subr.mxu0 0.0
        %2107 = vmatpush1.xpose.msra.mxu0 0.0
        %2108 = vmatprep.subr.mxu0 0.0
        %2109 = vmatpush1.xpose.msra.mxu0 0.0
        %2110 = vmatprep.subr.mxu0 0.0
        %2111 = vmatpush1.xpose.msra.mxu0 0.0
        %2112 = vmatprep.subr.mxu0 0.0
        %2113 = vmatpush1.xpose.msra.mxu0 0.0
        %2114 = vmatprep.subr.mxu0 0.0
        %2115 = vmatpush1.xpose.msra.mxu0 0.0
        %2116 = vmatprep.subr.mxu0 0.0
        %2117 = vmatpush1.xpose.msra.mxu0 0.0
        %2118 = vmatprep.subr.mxu0 0.0
        %2119 = vmatpush1.xpose.msra.mxu0 0.0
        %2120 = vmatprep.subr.mxu0 0.0
        %2121 = vmatpush1.xpose.msra.mxu0 0.0
        %2122 = vmatprep.subr.mxu0 0.0
        %2123 = vmatpush1.xpose.msra.mxu0 0.0
        %2124 = vmatprep.subr.mxu0 0.0
        %2125 = vmatpush1.xpose.msra.mxu0 0.0
        %2126 = vmatprep.subr.mxu0 0.0
        %2127 = vmatpush1.xpose.msra.mxu0 0.0
        %2128 = vmatprep.subr.mxu0 0.0
        %2129 = vmatpush1.xpose.msra.mxu0 0.0
        %2130 = vmatprep.subr.mxu0 0.0
        %2131 = vmatpush1.xpose.msra.mxu0 0.0
        %2132 = vmatprep.subr.mxu0 0.0
        %2133 = vmatpush1.xpose.msra.mxu0 0.0
        %2134 = vmatprep.subr.mxu0 0.0
        %2135 = vmatpush1.xpose.msra.mxu0 0.0
        %2136 = vmatprep.subr.mxu0 0.0
        %2137 = vmatpush1.xpose.msra.mxu0 0.0
        %2138 = vmatprep.subr.mxu0 0.0
        %2139 = vmatpush1.xpose.msra.mxu0 0.0
        %2140 = vmatprep.subr.mxu0 0.0
        %2141 = vmatpush1.xpose.msra.mxu0 0.0
        %2142 = vmatprep.subr.mxu0 0.0
        %2143 = vmatpush1.xpose.msra.mxu0 0.0
        %2144 = vmatprep.subr.mxu0 0.0
        %2145 = vmatpush1.xpose.msra.mxu0 0.0
        %2146 = vmatprep.subr.mxu0 0.0
        %2147 = vmatpush1.xpose.msra.mxu0 0.0
        %2148 = vmatprep.subr.mxu0 0.0
        %2149 = vmatpush1.xpose.msra.mxu0 0.0
        %2150 = vmatprep.subr.mxu0 0.0
        %2151 = vmatpush1.xpose.msra.mxu0 0.0
        %2152 = vmatprep.subr.mxu0 0.0
        %2153 = vmatpush1.xpose.msra.mxu0 0.0
        %2154 = vmatprep.subr.mxu0 0.0
        %2155 = vmatpush1.xpose.msra.mxu0 0.0
        %2156 = vmatprep.subr.mxu0 0.0
        %2157 = vmatpush1.xpose.msra.mxu0 0.0
        %2158 = vmatprep.subr.mxu0 0.0
        %2159 = vmatpush1.xpose.msra.mxu0 0.0
        %2160 = vmatprep.subr.mxu0 0.0
        %2161 = vmatpush1.xpose.msra.mxu0 0.0
        %2162 = vmatprep.subr.mxu0 0.0
        %2163 = vmatpush1.xpose.msra.mxu0 0.0
        %2164 = vmatprep.mubr.f32.mxu0 0.0
        %2165 = vmatmul.mubr.f32.gmra.mrb[0].mxu0 %v2096
        %v2166 = vpop.f32.mrb[0].mxu0
        %v2167 = vadd.f32 0.0, %v2166
        %v2168 = vpop.f32.mrb[0].mxu0
        %2169 = vdwg.mxu0
        %2170 = vrot.lane.b32.xlu0 %v673, 120
        %v2171 = vpop.permute.xlu0 %2170
        %2172 = vrot.lane.b32.xlu0 %v673, 88
        %v2173 = vpop.permute.xlu0 %2172
        %v2174 = vsel %vm704, %v2171, 0
        %v2176 = vsel %vm704, %v2173, 0
        %2178 = vmatprep.subr.mxu0 0.0
        %2179 = vmatpush1.xpose.msra.mxu0 %v2176
        %2180 = vmatprep.subr.mxu0 0.0
        %2181 = vmatpush1.xpose.msra.mxu0 0.0
        %2182 = vmatprep.subr.mxu0 0.0
        %2183 = vmatpush1.xpose.msra.mxu0 0.0
        %2184 = vmatprep.subr.mxu0 0.0
        %2185 = vmatpush1.xpose.msra.mxu0 0.0
        %2186 = vmatprep.subr.mxu0 0.0
        %2187 = vmatpush1.xpose.msra.mxu0 0.0
        %2188 = vmatprep.subr.mxu0 0.0
        %2189 = vmatpush1.xpose.msra.mxu0 0.0
        %2190 = vmatprep.subr.mxu0 0.0
        %2191 = vmatpush1.xpose.msra.mxu0 0.0
        %2192 = vmatprep.subr.mxu0 0.0
        %2193 = vmatpush1.xpose.msra.mxu0 0.0
        %2194 = vmatprep.subr.mxu0 0.0
        %2195 = vmatpush1.xpose.msra.mxu0 0.0
        %2196 = vmatprep.subr.mxu0 0.0
        %2197 = vmatpush1.xpose.msra.mxu0 0.0
        %2198 = vmatprep.subr.mxu0 0.0
        %2199 = vmatpush1.xpose.msra.mxu0 0.0
        %2200 = vmatprep.subr.mxu0 0.0
        %2201 = vmatpush1.xpose.msra.mxu0 0.0
        %2202 = vmatprep.subr.mxu0 0.0
        %2203 = vmatpush1.xpose.msra.mxu0 0.0
        %2204 = vmatprep.subr.mxu0 0.0
        %2205 = vmatpush1.xpose.msra.mxu0 0.0
        %2206 = vmatprep.subr.mxu0 0.0
        %2207 = vmatpush1.xpose.msra.mxu0 0.0
        %2208 = vmatprep.subr.mxu0 0.0
        %2209 = vmatpush1.xpose.msra.mxu0 0.0
        %2210 = vmatprep.subr.mxu0 0.0
        %2211 = vmatpush1.xpose.msra.mxu0 0.0
        %2212 = vmatprep.subr.mxu0 0.0
        %2213 = vmatpush1.xpose.msra.mxu0 0.0
        %2214 = vmatprep.subr.mxu0 0.0
        %2215 = vmatpush1.xpose.msra.mxu0 0.0
        %2216 = vmatprep.subr.mxu0 0.0
        %2217 = vmatpush1.xpose.msra.mxu0 0.0
        %2218 = vmatprep.subr.mxu0 0.0
        %2219 = vmatpush1.xpose.msra.mxu0 0.0
        %2220 = vmatprep.subr.mxu0 0.0
        %2221 = vmatpush1.xpose.msra.mxu0 0.0
        %2222 = vmatprep.subr.mxu0 0.0
        %2223 = vmatpush1.xpose.msra.mxu0 0.0
        %2224 = vmatprep.subr.mxu0 0.0
        %2225 = vmatpush1.xpose.msra.mxu0 0.0
        %2226 = vmatprep.subr.mxu0 0.0
        %2227 = vmatpush1.xpose.msra.mxu0 0.0
        %2228 = vmatprep.subr.mxu0 0.0
        %2229 = vmatpush1.xpose.msra.mxu0 0.0
        %2230 = vmatprep.subr.mxu0 0.0
        %2231 = vmatpush1.xpose.msra.mxu0 0.0
        %2232 = vmatprep.subr.mxu0 0.0
        %2233 = vmatpush1.xpose.msra.mxu0 0.0
        %2234 = vmatprep.subr.mxu0 0.0
        %2235 = vmatpush1.xpose.msra.mxu0 0.0
        %2236 = vmatprep.subr.mxu0 0.0
        %2237 = vmatpush1.xpose.msra.mxu0 0.0
        %2238 = vmatprep.subr.mxu0 0.0
        %2239 = vmatpush1.xpose.msra.mxu0 0.0
        %2240 = vmatprep.subr.mxu0 0.0
        %2241 = vmatpush1.xpose.msra.mxu0 0.0
        %2242 = vmatprep.mubr.f32.mxu0 0.0
        %2243 = vmatmul.mubr.f32.gmra.mrb[0].mxu0 %v2174
        %v2244 = vpop.f32.mrb[0].mxu0
        %v2245 = vadd.f32 0.0, %v2244
        %v2246 = vpop.f32.mrb[0].mxu0
        %2247 = vdwg.mxu0
        %2248 = vrot.lane.b32.xlu0 %v678, 120
        %v2249 = vpop.permute.xlu0 %2248
        %2250 = vrot.lane.b32.xlu0 %v678, 88
        %v2251 = vpop.permute.xlu0 %2250
        %v2252 = vsel %vm704, %v2249, 0
        %v2254 = vsel %vm704, %v2251, 0
        %2256 = vmatprep.subr.mxu0 0.0
        %2257 = vmatpush1.xpose.msra.mxu0 %v2254
        %2258 = vmatprep.subr.mxu0 0.0
        %2259 = vmatpush1.xpose.msra.mxu0 0.0
        %2260 = vmatprep.subr.mxu0 0.0
        %2261 = vmatpush1.xpose.msra.mxu0 0.0
        %2262 = vmatprep.subr.mxu0 0.0
        %2263 = vmatpush1.xpose.msra.mxu0 0.0
        %2264 = vmatprep.subr.mxu0 0.0
        %2265 = vmatpush1.xpose.msra.mxu0 0.0
        %2266 = vmatprep.subr.mxu0 0.0
        %2267 = vmatpush1.xpose.msra.mxu0 0.0
        %2268 = vmatprep.subr.mxu0 0.0
        %2269 = vmatpush1.xpose.msra.mxu0 0.0
        %2270 = vmatprep.subr.mxu0 0.0
        %2271 = vmatpush1.xpose.msra.mxu0 0.0
        %2272 = vmatprep.subr.mxu0 0.0
        %2273 = vmatpush1.xpose.msra.mxu0 0.0
        %2274 = vmatprep.subr.mxu0 0.0
        %2275 = vmatpush1.xpose.msra.mxu0 0.0
        %2276 = vmatprep.subr.mxu0 0.0
        %2277 = vmatpush1.xpose.msra.mxu0 0.0
        %2278 = vmatprep.subr.mxu0 0.0
        %2279 = vmatpush1.xpose.msra.mxu0 0.0
        %2280 = vmatprep.subr.mxu0 0.0
        %2281 = vmatpush1.xpose.msra.mxu0 0.0
        %2282 = vmatprep.subr.mxu0 0.0
        %2283 = vmatpush1.xpose.msra.mxu0 0.0
        %2284 = vmatprep.subr.mxu0 0.0
        %2285 = vmatpush1.xpose.msra.mxu0 0.0
        %2286 = vmatprep.subr.mxu0 0.0
        %2287 = vmatpush1.xpose.msra.mxu0 0.0
        %2288 = vmatprep.subr.mxu0 0.0
        %2289 = vmatpush1.xpose.msra.mxu0 0.0
        %2290 = vmatprep.subr.mxu0 0.0
        %2291 = vmatpush1.xpose.msra.mxu0 0.0
        %2292 = vmatprep.subr.mxu0 0.0
        %2293 = vmatpush1.xpose.msra.mxu0 0.0
        %2294 = vmatprep.subr.mxu0 0.0
        %2295 = vmatpush1.xpose.msra.mxu0 0.0
        %2296 = vmatprep.subr.mxu0 0.0
        %2297 = vmatpush1.xpose.msra.mxu0 0.0
        %2298 = vmatprep.subr.mxu0 0.0
        %2299 = vmatpush1.xpose.msra.mxu0 0.0
        %2300 = vmatprep.subr.mxu0 0.0
        %2301 = vmatpush1.xpose.msra.mxu0 0.0
        %2302 = vmatprep.subr.mxu0 0.0
        %2303 = vmatpush1.xpose.msra.mxu0 0.0
        %2304 = vmatprep.subr.mxu0 0.0
        %2305 = vmatpush1.xpose.msra.mxu0 0.0
        %2306 = vmatprep.subr.mxu0 0.0
        %2307 = vmatpush1.xpose.msra.mxu0 0.0
        %2308 = vmatprep.subr.mxu0 0.0
        %2309 = vmatpush1.xpose.msra.mxu0 0.0
        %2310 = vmatprep.subr.mxu0 0.0
        %2311 = vmatpush1.xpose.msra.mxu0 0.0
        %2312 = vmatprep.subr.mxu0 0.0
        %2313 = vmatpush1.xpose.msra.mxu0 0.0
        %2314 = vmatprep.subr.mxu0 0.0
        %2315 = vmatpush1.xpose.msra.mxu0 0.0
        %2316 = vmatprep.subr.mxu0 0.0
        %2317 = vmatpush1.xpose.msra.mxu0 0.0
        %2318 = vmatprep.subr.mxu0 0.0
        %2319 = vmatpush1.xpose.msra.mxu0 0.0
        %2320 = vmatprep.mubr.f32.mxu0 0.0
        %2321 = vmatmul.mubr.f32.gmra.mrb[0].mxu0 %v2252
        %v2322 = vpop.f32.mrb[0].mxu0
        %v2323 = vadd.f32 0.0, %v2322
        %v2324 = vpop.f32.mrb[0].mxu0
        %2325 = vdwg.mxu0
        %2326 = vrot.lane.b32.xlu0 %v683, 120
        %v2327 = vpop.permute.xlu0 %2326
        %2328 = vrot.lane.b32.xlu0 %v683, 88
        %v2329 = vpop.permute.xlu0 %2328
        %v2330 = vsel %vm704, %v2327, 0
        %v2332 = vsel %vm704, %v2329, 0
        %2334 = vmatprep.subr.mxu0 0.0
        %2335 = vmatpush1.xpose.msra.mxu0 %v2332
        %2336 = vmatprep.subr.mxu0 0.0
        %2337 = vmatpush1.xpose.msra.mxu0 0.0
        %2338 = vmatprep.subr.mxu0 0.0
        %2339 = vmatpush1.xpose.msra.mxu0 0.0
        %2340 = vmatprep.subr.mxu0 0.0
        %2341 = vmatpush1.xpose.msra.mxu0 0.0
        %2342 = vmatprep.subr.mxu0 0.0
        %2343 = vmatpush1.xpose.msra.mxu0 0.0
        %2344 = vmatprep.subr.mxu0 0.0
        %2345 = vmatpush1.xpose.msra.mxu0 0.0
        %2346 = vmatprep.subr.mxu0 0.0
        %2347 = vmatpush1.xpose.msra.mxu0 0.0
        %2348 = vmatprep.subr.mxu0 0.0
        %2349 = vmatpush1.xpose.msra.mxu0 0.0
        %2350 = vmatprep.subr.mxu0 0.0
        %2351 = vmatpush1.xpose.msra.mxu0 0.0
        %2352 = vmatprep.subr.mxu0 0.0
        %2353 = vmatpush1.xpose.msra.mxu0 0.0
        %2354 = vmatprep.subr.mxu0 0.0
        %2355 = vmatpush1.xpose.msra.mxu0 0.0
        %2356 = vmatprep.subr.mxu0 0.0
        %2357 = vmatpush1.xpose.msra.mxu0 0.0
        %2358 = vmatprep.subr.mxu0 0.0
        %2359 = vmatpush1.xpose.msra.mxu0 0.0
        %2360 = vmatprep.subr.mxu0 0.0
        %2361 = vmatpush1.xpose.msra.mxu0 0.0
        %2362 = vmatprep.subr.mxu0 0.0
        %2363 = vmatpush1.xpose.msra.mxu0 0.0
        %2364 = vmatprep.subr.mxu0 0.0
        %2365 = vmatpush1.xpose.msra.mxu0 0.0
        %2366 = vmatprep.subr.mxu0 0.0
        %2367 = vmatpush1.xpose.msra.mxu0 0.0
        %2368 = vmatprep.subr.mxu0 0.0
        %2369 = vmatpush1.xpose.msra.mxu0 0.0
        %2370 = vmatprep.subr.mxu0 0.0
        %2371 = vmatpush1.xpose.msra.mxu0 0.0
        %2372 = vmatprep.subr.mxu0 0.0
        %2373 = vmatpush1.xpose.msra.mxu0 0.0
        %2374 = vmatprep.subr.mxu0 0.0
        %2375 = vmatpush1.xpose.msra.mxu0 0.0
        %2376 = vmatprep.subr.mxu0 0.0
        %2377 = vmatpush1.xpose.msra.mxu0 0.0
        %2378 = vmatprep.subr.mxu0 0.0
        %2379 = vmatpush1.xpose.msra.mxu0 0.0
        %2380 = vmatprep.subr.mxu0 0.0
        %2381 = vmatpush1.xpose.msra.mxu0 0.0
        %2382 = vmatprep.subr.mxu0 0.0
        %2383 = vmatpush1.xpose.msra.mxu0 0.0
        %2384 = vmatprep.subr.mxu0 0.0
        %2385 = vmatpush1.xpose.msra.mxu0 0.0
        %2386 = vmatprep.subr.mxu0 0.0
        %2387 = vmatpush1.xpose.msra.mxu0 0.0
        %2388 = vmatprep.subr.mxu0 0.0
        %2389 = vmatpush1.xpose.msra.mxu0 0.0
        %2390 = vmatprep.subr.mxu0 0.0
        %2391 = vmatpush1.xpose.msra.mxu0 0.0
        %2392 = vmatprep.subr.mxu0 0.0
        %2393 = vmatpush1.xpose.msra.mxu0 0.0
        %2394 = vmatprep.subr.mxu0 0.0
        %2395 = vmatpush1.xpose.msra.mxu0 0.0
        %2396 = vmatprep.subr.mxu0 0.0
        %2397 = vmatpush1.xpose.msra.mxu0 0.0
        %2398 = vmatprep.mubr.f32.mxu0 0.0
        %2399 = vmatmul.mubr.f32.gmra.mrb[0].mxu0 %v2330
        %v2400 = vpop.f32.mrb[0].mxu0
        %v2401 = vadd.f32 0.0, %v2400
        %v2402 = vpop.f32.mrb[0].mxu0
        %2403 = vdwg.mxu0
        %2404 = vrot.lane.b32.xlu0 %v688, 120
        %v2405 = vpop.permute.xlu0 %2404
        %2406 = vrot.lane.b32.xlu0 %v688, 88
        %v2407 = vpop.permute.xlu0 %2406
        %v2408 = vsel %vm704, %v2405, 0
        %v2410 = vsel %vm704, %v2407, 0
        %2412 = vmatprep.subr.mxu0 0.0
        %2413 = vmatpush1.xpose.msra.mxu0 %v2410
        %2414 = vmatprep.subr.mxu0 0.0
        %2415 = vmatpush1.xpose.msra.mxu0 0.0
        %2416 = vmatprep.subr.mxu0 0.0
        %2417 = vmatpush1.xpose.msra.mxu0 0.0
        %2418 = vmatprep.subr.mxu0 0.0
        %2419 = vmatpush1.xpose.msra.mxu0 0.0
        %2420 = vmatprep.subr.mxu0 0.0
        %2421 = vmatpush1.xpose.msra.mxu0 0.0
        %2422 = vmatprep.subr.mxu0 0.0
        %2423 = vmatpush1.xpose.msra.mxu0 0.0
        %2424 = vmatprep.subr.mxu0 0.0
        %2425 = vmatpush1.xpose.msra.mxu0 0.0
        %2426 = vmatprep.subr.mxu0 0.0
        %2427 = vmatpush1.xpose.msra.mxu0 0.0
        %2428 = vmatprep.subr.mxu0 0.0
        %2429 = vmatpush1.xpose.msra.mxu0 0.0
        %2430 = vmatprep.subr.mxu0 0.0
        %2431 = vmatpush1.xpose.msra.mxu0 0.0
        %2432 = vmatprep.subr.mxu0 0.0
        %2433 = vmatpush1.xpose.msra.mxu0 0.0
        %2434 = vmatprep.subr.mxu0 0.0
        %2435 = vmatpush1.xpose.msra.mxu0 0.0
        %2436 = vmatprep.subr.mxu0 0.0
        %2437 = vmatpush1.xpose.msra.mxu0 0.0
        %2438 = vmatprep.subr.mxu0 0.0
        %2439 = vmatpush1.xpose.msra.mxu0 0.0
        %2440 = vmatprep.subr.mxu0 0.0
        %2441 = vmatpush1.xpose.msra.mxu0 0.0
        %2442 = vmatprep.subr.mxu0 0.0
        %2443 = vmatpush1.xpose.msra.mxu0 0.0
        %2444 = vmatprep.subr.mxu0 0.0
        %2445 = vmatpush1.xpose.msra.mxu0 0.0
        %2446 = vmatprep.subr.mxu0 0.0
        %2447 = vmatpush1.xpose.msra.mxu0 0.0
        %2448 = vmatprep.subr.mxu0 0.0
        %2449 = vmatpush1.xpose.msra.mxu0 0.0
        %2450 = vmatprep.subr.mxu0 0.0
        %2451 = vmatpush1.xpose.msra.mxu0 0.0
        %2452 = vmatprep.subr.mxu0 0.0
        %2453 = vmatpush1.xpose.msra.mxu0 0.0
        %2454 = vmatprep.subr.mxu0 0.0
        %2455 = vmatpush1.xpose.msra.mxu0 0.0
        %2456 = vmatprep.subr.mxu0 0.0
        %2457 = vmatpush1.xpose.msra.mxu0 0.0
        %2458 = vmatprep.subr.mxu0 0.0
        %2459 = vmatpush1.xpose.msra.mxu0 0.0
        %2460 = vmatprep.subr.mxu0 0.0
        %2461 = vmatpush1.xpose.msra.mxu0 0.0
        %2462 = vmatprep.subr.mxu0 0.0
        %2463 = vmatpush1.xpose.msra.mxu0 0.0
        %2464 = vmatprep.subr.mxu0 0.0
        %2465 = vmatpush1.xpose.msra.mxu0 0.0
        %2466 = vmatprep.subr.mxu0 0.0
        %2467 = vmatpush1.xpose.msra.mxu0 0.0
        %2468 = vmatprep.subr.mxu0 0.0
        %2469 = vmatpush1.xpose.msra.mxu0 0.0
        %2470 = vmatprep.subr.mxu0 0.0
        %2471 = vmatpush1.xpose.msra.mxu0 0.0
        %2472 = vmatprep.subr.mxu0 0.0
        %2473 = vmatpush1.xpose.msra.mxu0 0.0
        %2474 = vmatprep.subr.mxu0 0.0
        %2475 = vmatpush1.xpose.msra.mxu0 0.0
        %2476 = vmatprep.mubr.f32.mxu0 0.0
        %2477 = vmatmul.mubr.f32.gmra.mrb[0].mxu0 %v2408
        %v2478 = vpop.f32.mrb[0].mxu0
        %v2479 = vadd.f32 0.0, %v2478
        %v2480 = vpop.f32.mrb[0].mxu0
        %2481 = vdwg.mxu0
        %2482 = vrot.lane.b32.xlu0 %v693, 120
        %v2483 = vpop.permute.xlu0 %2482
        %2484 = vrot.lane.b32.xlu0 %v693, 88
        %v2485 = vpop.permute.xlu0 %2484
        %v2486 = vsel %vm704, %v2483, 0
        %v2488 = vsel %vm704, %v2485, 0
        %2490 = vmatprep.subr.mxu0 0.0
        %2491 = vmatpush1.xpose.msra.mxu0 %v2488
        %2492 = vmatprep.subr.mxu0 0.0
        %2493 = vmatpush1.xpose.msra.mxu0 0.0
        %2494 = vmatprep.subr.mxu0 0.0
        %2495 = vmatpush1.xpose.msra.mxu0 0.0
        %2496 = vmatprep.subr.mxu0 0.0
        %2497 = vmatpush1.xpose.msra.mxu0 0.0
        %2498 = vmatprep.subr.mxu0 0.0
        %2499 = vmatpush1.xpose.msra.mxu0 0.0
        %2500 = vmatprep.subr.mxu0 0.0
        %2501 = vmatpush1.xpose.msra.mxu0 0.0
        %2502 = vmatprep.subr.mxu0 0.0
        %2503 = vmatpush1.xpose.msra.mxu0 0.0
        %2504 = vmatprep.subr.mxu0 0.0
        %2505 = vmatpush1.xpose.msra.mxu0 0.0
        %2506 = vmatprep.subr.mxu0 0.0
        %2507 = vmatpush1.xpose.msra.mxu0 0.0
        %2508 = vmatprep.subr.mxu0 0.0
        %2509 = vmatpush1.xpose.msra.mxu0 0.0
        %2510 = vmatprep.subr.mxu0 0.0
        %2511 = vmatpush1.xpose.msra.mxu0 0.0
        %2512 = vmatprep.subr.mxu0 0.0
        %2513 = vmatpush1.xpose.msra.mxu0 0.0
        %2514 = vmatprep.subr.mxu0 0.0
        %2515 = vmatpush1.xpose.msra.mxu0 0.0
        %2516 = vmatprep.subr.mxu0 0.0
        %2517 = vmatpush1.xpose.msra.mxu0 0.0
        %2518 = vmatprep.subr.mxu0 0.0
        %2519 = vmatpush1.xpose.msra.mxu0 0.0
        %2520 = vmatprep.subr.mxu0 0.0
        %2521 = vmatpush1.xpose.msra.mxu0 0.0
        %2522 = vmatprep.subr.mxu0 0.0
        %2523 = vmatpush1.xpose.msra.mxu0 0.0
        %2524 = vmatprep.subr.mxu0 0.0
        %2525 = vmatpush1.xpose.msra.mxu0 0.0
        %2526 = vmatprep.subr.mxu0 0.0
        %2527 = vmatpush1.xpose.msra.mxu0 0.0
        %2528 = vmatprep.subr.mxu0 0.0
        %2529 = vmatpush1.xpose.msra.mxu0 0.0
        %2530 = vmatprep.subr.mxu0 0.0
        %2531 = vmatpush1.xpose.msra.mxu0 0.0
        %2532 = vmatprep.subr.mxu0 0.0
        %2533 = vmatpush1.xpose.msra.mxu0 0.0
        %2534 = vmatprep.subr.mxu0 0.0
        %2535 = vmatpush1.xpose.msra.mxu0 0.0
        %2536 = vmatprep.subr.mxu0 0.0
        %2537 = vmatpush1.xpose.msra.mxu0 0.0
        %2538 = vmatprep.subr.mxu0 0.0
        %2539 = vmatpush1.xpose.msra.mxu0 0.0
        %2540 = vmatprep.subr.mxu0 0.0
        %2541 = vmatpush1.xpose.msra.mxu0 0.0
        %2542 = vmatprep.subr.mxu0 0.0
        %2543 = vmatpush1.xpose.msra.mxu0 0.0
        %2544 = vmatprep.subr.mxu0 0.0
        %2545 = vmatpush1.xpose.msra.mxu0 0.0
        %2546 = vmatprep.subr.mxu0 0.0
        %2547 = vmatpush1.xpose.msra.mxu0 0.0
        %2548 = vmatprep.subr.mxu0 0.0
        %2549 = vmatpush1.xpose.msra.mxu0 0.0
        %2550 = vmatprep.subr.mxu0 0.0
        %2551 = vmatpush1.xpose.msra.mxu0 0.0
        %2552 = vmatprep.subr.mxu0 0.0
        %2553 = vmatpush1.xpose.msra.mxu0 0.0
        %2554 = vmatprep.mubr.f32.mxu0 0.0
        %2555 = vmatmul.mubr.f32.gmra.mrb[0].mxu0 %v2486
        %v2556 = vpop.f32.mrb[0].mxu0
        %v2557 = vadd.f32 0.0, %v2556
        %v2558 = vpop.f32.mrb[0].mxu0
        %2559 = vdwg.mxu0
        %2560 = vrot.lane.b32.xlu0 %v698, 120
        %v2561 = vpop.permute.xlu0 %2560
        %2562 = vrot.lane.b32.xlu0 %v698, 88
        %v2563 = vpop.permute.xlu0 %2562
        %v2564 = vsel %vm704, %v2561, 0
        %v2566 = vsel %vm704, %v2563, 0
        %2568 = vmatprep.subr.mxu0 0.0
        %2569 = vmatpush1.xpose.msra.mxu0 %v2566
        %2570 = vmatprep.subr.mxu0 0.0
        %2571 = vmatpush1.xpose.msra.mxu0 0.0
        %2572 = vmatprep.subr.mxu0 0.0
        %2573 = vmatpush1.xpose.msra.mxu0 0.0
        %2574 = vmatprep.subr.mxu0 0.0
        %2575 = vmatpush1.xpose.msra.mxu0 0.0
        %2576 = vmatprep.subr.mxu0 0.0
        %2577 = vmatpush1.xpose.msra.mxu0 0.0
        %2578 = vmatprep.subr.mxu0 0.0
        %2579 = vmatpush1.xpose.msra.mxu0 0.0
        %2580 = vmatprep.subr.mxu0 0.0
        %2581 = vmatpush1.xpose.msra.mxu0 0.0
        %2582 = vmatprep.subr.mxu0 0.0
        %2583 = vmatpush1.xpose.msra.mxu0 0.0
        %2584 = vmatprep.subr.mxu0 0.0
        %2585 = vmatpush1.xpose.msra.mxu0 0.0
        %2586 = vmatprep.subr.mxu0 0.0
        %2587 = vmatpush1.xpose.msra.mxu0 0.0
        %2588 = vmatprep.subr.mxu0 0.0
        %2589 = vmatpush1.xpose.msra.mxu0 0.0
        %2590 = vmatprep.subr.mxu0 0.0
        %2591 = vmatpush1.xpose.msra.mxu0 0.0
        %2592 = vmatprep.subr.mxu0 0.0
        %2593 = vmatpush1.xpose.msra.mxu0 0.0
        %2594 = vmatprep.subr.mxu0 0.0
        %2595 = vmatpush1.xpose.msra.mxu0 0.0
        %2596 = vmatprep.subr.mxu0 0.0
        %2597 = vmatpush1.xpose.msra.mxu0 0.0
        %2598 = vmatprep.subr.mxu0 0.0
        %2599 = vmatpush1.xpose.msra.mxu0 0.0
        %2600 = vmatprep.subr.mxu0 0.0
        %2601 = vmatpush1.xpose.msra.mxu0 0.0
        %2602 = vmatprep.subr.mxu0 0.0
        %2603 = vmatpush1.xpose.msra.mxu0 0.0
        %2604 = vmatprep.subr.mxu0 0.0
        %2605 = vmatpush1.xpose.msra.mxu0 0.0
        %2606 = vmatprep.subr.mxu0 0.0
        %2607 = vmatpush1.xpose.msra.mxu0 0.0
        %2608 = vmatprep.subr.mxu0 0.0
        %2609 = vmatpush1.xpose.msra.mxu0 0.0
        %2610 = vmatprep.subr.mxu0 0.0
        %2611 = vmatpush1.xpose.msra.mxu0 0.0
        %2612 = vmatprep.subr.mxu0 0.0
        %2613 = vmatpush1.xpose.msra.mxu0 0.0
        %2614 = vmatprep.subr.mxu0 0.0
        %2615 = vmatpush1.xpose.msra.mxu0 0.0
        %2616 = vmatprep.subr.mxu0 0.0
        %2617 = vmatpush1.xpose.msra.mxu0 0.0
        %2618 = vmatprep.subr.mxu0 0.0
        %2619 = vmatpush1.xpose.msra.mxu0 0.0
        %2620 = vmatprep.subr.mxu0 0.0
        %2621 = vmatpush1.xpose.msra.mxu0 0.0
        %2622 = vmatprep.subr.mxu0 0.0
        %2623 = vmatpush1.xpose.msra.mxu0 0.0
        %2624 = vmatprep.subr.mxu0 0.0
        %2625 = vmatpush1.xpose.msra.mxu0 0.0
        %2626 = vmatprep.subr.mxu0 0.0
        %2627 = vmatpush1.xpose.msra.mxu0 0.0
        %2628 = vmatprep.subr.mxu0 0.0
        %2629 = vmatpush1.xpose.msra.mxu0 0.0
        %2630 = vmatprep.subr.mxu0 0.0
        %2631 = vmatpush1.xpose.msra.mxu0 0.0
        %2632 = vmatprep.mubr.f32.mxu0 0.0
        %2633 = vmatmul.mubr.f32.gmra.mrb[0].mxu0 %v2564
        %v2634 = vpop.f32.mrb[0].mxu0
        %v2635 = vadd.f32 0.0, %v2634
        %v2636 = vpop.f32.mrb[0].mxu0
        %2637 = vdwg.mxu0
        %v2638 = vsel %vm704, %v2089, -inf
        %2639 = vmax.xlane.f32.xlu0 %v2638
        %v2640 = vpop.xlane.xlu0 %2639
        %v2641 = vsel %vm704, %v2167, -inf
        %2642 = vmax.xlane.f32.xlu0 %v2641
        %v2643 = vpop.xlane.xlu0 %2642
        %v2644 = vsel %vm704, %v2245, -inf
        %2645 = vmax.xlane.f32.xlu0 %v2644
        %v2646 = vpop.xlane.xlu0 %2645
        %v2647 = vsel %vm704, %v2323, -inf
        %2648 = vmax.xlane.f32.xlu0 %v2647
        %v2649 = vpop.xlane.xlu0 %2648
        %v2650 = vsel %vm704, %v2401, -inf
        %2651 = vmax.xlane.f32.xlu0 %v2650
        %v2652 = vpop.xlane.xlu0 %2651
        %v2653 = vsel %vm704, %v2479, -inf
        %2654 = vmax.xlane.f32.xlu0 %v2653
        %v2655 = vpop.xlane.xlu0 %2654
        %v2656 = vsel %vm704, %v2557, -inf
        %2657 = vmax.xlane.f32.xlu0 %v2656
        %v2658 = vpop.xlane.xlu0 %2657
        %v2659 = vsel %vm704, %v2635, -inf
        %2660 = vmax.xlane.f32.xlu0 %v2659
        %v2661 = vpop.xlane.xlu0 %2660
        %v2662 = vsub.f32 %v2089, %v2640
        %v2663 = vsub.f32 %v2167, %v2643
        %v2664 = vsub.f32 %v2245, %v2646
        %v2665 = vsub.f32 %v2323, %v2649
        %v2666 = vsub.f32 %v2401, %v2652
        %v2667 = vsub.f32 %v2479, %v2655
        %v2668 = vsub.f32 %v2557, %v2658
        %v2669 = vsub.f32 %v2635, %v2661
        %v2670 = vmul.f32 %v2662, 1.442695
        %v2671 = vpow.pop %v2670
        %v2672 = vmul.f32 %v2663, 1.442695
        %v2673 = vpow.pop %v2672
        %v2674 = vmul.f32 %v2664, 1.442695
        %v2675 = vpow.pop %v2674
        %v2676 = vmul.f32 %v2665, 1.442695
        %v2677 = vpow.pop %v2676
        %v2678 = vmul.f32 %v2666, 1.442695
        %v2679 = vpow.pop %v2678
        %v2680 = vmul.f32 %v2667, 1.442695
        %v2681 = vpow.pop %v2680
        %v2682 = vmul.f32 %v2668, 1.442695
        %v2683 = vpow.pop %v2682
        %v2684 = vmul.f32 %v2669, 1.442695
        %v2685 = vpow.pop %v2684
        %v2686 = vsel %vm704, %v2671, 0.0
        %2687 = vadd.xlane.f32.xlu0 %v2686
        %v2688 = vpop.xlane.xlu0 %2687
        %v2689 = vsel %vm704, %v2673, 0.0
        %2690 = vadd.xlane.f32.xlu0 %v2689
        %v2691 = vpop.xlane.xlu0 %2690
        %v2692 = vsel %vm704, %v2675, 0.0
        %2693 = vadd.xlane.f32.xlu0 %v2692
        %v2694 = vpop.xlane.xlu0 %2693
        %v2695 = vsel %vm704, %v2677, 0.0
        %2696 = vadd.xlane.f32.xlu0 %v2695
        %v2697 = vpop.xlane.xlu0 %2696
        %v2698 = vsel %vm704, %v2679, 0.0
        %2699 = vadd.xlane.f32.xlu0 %v2698
        %v2700 = vpop.xlane.xlu0 %2699
        %v2701 = vsel %vm704, %v2681, 0.0
        %2702 = vadd.xlane.f32.xlu0 %v2701
        %v2703 = vpop.xlane.xlu0 %2702
        %v2704 = vsel %vm704, %v2683, 0.0
        %2705 = vadd.xlane.f32.xlu0 %v2704
        %v2706 = vpop.xlane.xlu0 %2705
        %v2707 = vsel %vm704, %v2685, 0.0
        %2708 = vadd.xlane.f32.xlu0 %v2707
        %v2709 = vpop.xlane.xlu0 %2708
        %v2710 = vrcp.pop %v2688
        %v2711 = vrcp.pop %v2691
        %v2712 = vrcp.pop %v2694
        %v2713 = vrcp.pop %v2697
        %v2714 = vrcp.pop %v2700
        %v2715 = vrcp.pop %v2703
        %v2716 = vrcp.pop %v2706
        %v2717 = vrcp.pop %v2709
        %v2718 = vmul.f32 %v2671, %v2710
        %v2719 = vmul.f32 %v2673, %v2711
        %v2720 = vmul.f32 %v2675, %v2712
        %v2721 = vmul.f32 %v2677, %v2713
        %v2722 = vmul.f32 %v2679, %v2714
        %v2723 = vmul.f32 %v2681, %v2715
        %v2724 = vmul.f32 %v2683, %v2716
        %v2725 = vmul.f32 %v2685, %v2717
        %2726 = vrot.lane.b32.xlu0 %v663, 56
        %v2727 = vpop.permute.xlu0 %2726
        %v2730 = vsel %vm704, %v2718, 0
        %2732 = vmatprep.subr.mxu0 0.0
        %2733 = vmatpush1.msra.mxu0 %v2727
        %2734 = vmatprep.subr.mxu0 0.0
        %2735 = vmatpush1.msra.mxu0 0.0
        %2736 = vmatprep.subr.mxu0 0.0
        %2737 = vmatpush1.msra.mxu0 0.0
        %2738 = vmatprep.subr.mxu0 0.0
        %2739 = vmatpush1.msra.mxu0 0.0
        %2740 = vmatprep.subr.mxu0 0.0
        %2741 = vmatpush1.msra.mxu0 0.0
        %2742 = vmatprep.subr.mxu0 0.0
        %2743 = vmatpush1.msra.mxu0 0.0
        %2744 = vmatprep.subr.mxu0 0.0
        %2745 = vmatpush1.msra.mxu0 0.0
        %2746 = vmatprep.subr.mxu0 0.0
        %2747 = vmatpush1.msra.mxu0 0.0
        %2748 = vmatprep.subr.mxu0 0.0
        %2749 = vmatpush1.msra.mxu0 0.0
        %2750 = vmatprep.subr.mxu0 0.0
        %2751 = vmatpush1.msra.mxu0 0.0
        %2752 = vmatprep.subr.mxu0 0.0
        %2753 = vmatpush1.msra.mxu0 0.0
        %2754 = vmatprep.subr.mxu0 0.0
        %2755 = vmatpush1.msra.mxu0 0.0
        %2756 = vmatprep.subr.mxu0 0.0
        %2757 = vmatpush1.msra.mxu0 0.0
        %2758 = vmatprep.subr.mxu0 0.0
        %2759 = vmatpush1.msra.mxu0 0.0
        %2760 = vmatprep.subr.mxu0 0.0
        %2761 = vmatpush1.msra.mxu0 0.0
        %2762 = vmatprep.subr.mxu0 0.0
        %2763 = vmatpush1.msra.mxu0 0.0
        %2764 = vmatprep.subr.mxu0 0.0
        %2765 = vmatpush1.msra.mxu0 0.0
        %2766 = vmatprep.subr.mxu0 0.0
        %2767 = vmatpush1.msra.mxu0 0.0
        %2768 = vmatprep.subr.mxu0 0.0
        %2769 = vmatpush1.msra.mxu0 0.0
        %2770 = vmatprep.subr.mxu0 0.0
        %2771 = vmatpush1.msra.mxu0 0.0
        %2772 = vmatprep.subr.mxu0 0.0
        %2773 = vmatpush1.msra.mxu0 0.0
        %2774 = vmatprep.subr.mxu0 0.0
        %2775 = vmatpush1.msra.mxu0 0.0
        %2776 = vmatprep.subr.mxu0 0.0
        %2777 = vmatpush1.msra.mxu0 0.0
        %2778 = vmatprep.subr.mxu0 0.0
        %2779 = vmatpush1.msra.mxu0 0.0
        %2780 = vmatprep.subr.mxu0 0.0
        %2781 = vmatpush1.msra.mxu0 0.0
        %2782 = vmatprep.subr.mxu0 0.0
        %2783 = vmatpush1.msra.mxu0 0.0
        %2784 = vmatprep.subr.mxu0 0.0
        %2785 = vmatpush1.msra.mxu0 0.0
        %2786 = vmatprep.subr.mxu0 0.0
        %2787 = vmatpush1.msra.mxu0 0.0
        %2788 = vmatprep.subr.mxu0 0.0
        %2789 = vmatpush1.msra.mxu0 0.0
        %2790 = vmatprep.subr.mxu0 0.0
        %2791 = vmatpush1.msra.mxu0 0.0
        %2792 = vmatprep.subr.mxu0 0.0
        %2793 = vmatpush1.msra.mxu0 0.0
        %2794 = vmatprep.subr.mxu0 0.0
        %2795 = vmatpush1.msra.mxu0 0.0
        %2796 = vmatprep.mubr.f32.mxu0 0.0
        %2797 = vmatmul.mubr.f32.gmra.mrb[0].mxu0 %v2730
        %v2798 = vpop.f32.mrb[0].mxu0
        %v2799 = vadd.f32 0.0, %v2798
        %v2800 = vpop.f32.mrb[0].mxu0
        %2801 = vdwg.mxu0
        %2802 = vrot.lane.b32.xlu0 %v668, 56
        %v2803 = vpop.permute.xlu0 %2802
        %v2806 = vsel %vm704, %v2719, 0
        %2808 = vmatprep.subr.mxu0 0.0
        %2809 = vmatpush1.msra.mxu0 %v2803
        %2810 = vmatprep.subr.mxu0 0.0
        %2811 = vmatpush1.msra.mxu0 0.0
        %2812 = vmatprep.subr.mxu0 0.0
        %2813 = vmatpush1.msra.mxu0 0.0
        %2814 = vmatprep.subr.mxu0 0.0
        %2815 = vmatpush1.msra.mxu0 0.0
        %2816 = vmatprep.subr.mxu0 0.0
        %2817 = vmatpush1.msra.mxu0 0.0
        %2818 = vmatprep.subr.mxu0 0.0
        %2819 = vmatpush1.msra.mxu0 0.0
        %2820 = vmatprep.subr.mxu0 0.0
        %2821 = vmatpush1.msra.mxu0 0.0
        %2822 = vmatprep.subr.mxu0 0.0
        %2823 = vmatpush1.msra.mxu0 0.0
        %2824 = vmatprep.subr.mxu0 0.0
        %2825 = vmatpush1.msra.mxu0 0.0
        %2826 = vmatprep.subr.mxu0 0.0
        %2827 = vmatpush1.msra.mxu0 0.0
        %2828 = vmatprep.subr.mxu0 0.0
        %2829 = vmatpush1.msra.mxu0 0.0
        %2830 = vmatprep.subr.mxu0 0.0
        %2831 = vmatpush1.msra.mxu0 0.0
        %2832 = vmatprep.subr.mxu0 0.0
        %2833 = vmatpush1.msra.mxu0 0.0
        %2834 = vmatprep.subr.mxu0 0.0
        %2835 = vmatpush1.msra.mxu0 0.0
        %2836 = vmatprep.subr.mxu0 0.0
        %2837 = vmatpush1.msra.mxu0 0.0
        %2838 = vmatprep.subr.mxu0 0.0
        %2839 = vmatpush1.msra.mxu0 0.0
        %2840 = vmatprep.subr.mxu0 0.0
        %2841 = vmatpush1.msra.mxu0 0.0
        %2842 = vmatprep.subr.mxu0 0.0
        %2843 = vmatpush1.msra.mxu0 0.0
        %2844 = vmatprep.subr.mxu0 0.0
        %2845 = vmatpush1.msra.mxu0 0.0
        %2846 = vmatprep.subr.mxu0 0.0
        %2847 = vmatpush1.msra.mxu0 0.0
        %2848 = vmatprep.subr.mxu0 0.0
        %2849 = vmatpush1.msra.mxu0 0.0
        %2850 = vmatprep.subr.mxu0 0.0
        %2851 = vmatpush1.msra.mxu0 0.0
        %2852 = vmatprep.subr.mxu0 0.0
        %2853 = vmatpush1.msra.mxu0 0.0
        %2854 = vmatprep.subr.mxu0 0.0
        %2855 = vmatpush1.msra.mxu0 0.0
        %2856 = vmatprep.subr.mxu0 0.0
        %2857 = vmatpush1.msra.mxu0 0.0
        %2858 = vmatprep.subr.mxu0 0.0
        %2859 = vmatpush1.msra.mxu0 0.0
        %2860 = vmatprep.subr.mxu0 0.0
        %2861 = vmatpush1.msra.mxu0 0.0
        %2862 = vmatprep.subr.mxu0 0.0
        %2863 = vmatpush1.msra.mxu0 0.0
        %2864 = vmatprep.subr.mxu0 0.0
        %2865 = vmatpush1.msra.mxu0 0.0
        %2866 = vmatprep.subr.mxu0 0.0
        %2867 = vmatpush1.msra.mxu0 0.0
        %2868 = vmatprep.subr.mxu0 0.0
        %2869 = vmatpush1.msra.mxu0 0.0
        %2870 = vmatprep.subr.mxu0 0.0
        %2871 = vmatpush1.msra.mxu0 0.0
        %2872 = vmatprep.mubr.f32.mxu0 0.0
        %2873 = vmatmul.mubr.f32.gmra.mrb[0].mxu0 %v2806
        %v2874 = vpop.f32.mrb[0].mxu0
        %v2875 = vadd.f32 0.0, %v2874
        %v2876 = vpop.f32.mrb[0].mxu0
        %2877 = vdwg.mxu0
        %2878 = vrot.lane.b32.xlu0 %v673, 56
        %v2879 = vpop.permute.xlu0 %2878
        %v2882 = vsel %vm704, %v2720, 0
        %2884 = vmatprep.subr.mxu0 0.0
        %2885 = vmatpush1.msra.mxu0 %v2879
        %2886 = vmatprep.subr.mxu0 0.0
        %2887 = vmatpush1.msra.mxu0 0.0
        %2888 = vmatprep.subr.mxu0 0.0
        %2889 = vmatpush1.msra.mxu0 0.0
        %2890 = vmatprep.subr.mxu0 0.0
        %2891 = vmatpush1.msra.mxu0 0.0
        %2892 = vmatprep.subr.mxu0 0.0
        %2893 = vmatpush1.msra.mxu0 0.0
        %2894 = vmatprep.subr.mxu0 0.0
        %2895 = vmatpush1.msra.mxu0 0.0
        %2896 = vmatprep.subr.mxu0 0.0
        %2897 = vmatpush1.msra.mxu0 0.0
        %2898 = vmatprep.subr.mxu0 0.0
        %2899 = vmatpush1.msra.mxu0 0.0
        %2900 = vmatprep.subr.mxu0 0.0
        %2901 = vmatpush1.msra.mxu0 0.0
        %2902 = vmatprep.subr.mxu0 0.0
        %2903 = vmatpush1.msra.mxu0 0.0
        %2904 = vmatprep.subr.mxu0 0.0
        %2905 = vmatpush1.msra.mxu0 0.0
        %2906 = vmatprep.subr.mxu0 0.0
        %2907 = vmatpush1.msra.mxu0 0.0
        %2908 = vmatprep.subr.mxu0 0.0
        %2909 = vmatpush1.msra.mxu0 0.0
        %2910 = vmatprep.subr.mxu0 0.0
        %2911 = vmatpush1.msra.mxu0 0.0
        %2912 = vmatprep.subr.mxu0 0.0
        %2913 = vmatpush1.msra.mxu0 0.0
        %2914 = vmatprep.subr.mxu0 0.0
        %2915 = vmatpush1.msra.mxu0 0.0
        %2916 = vmatprep.subr.mxu0 0.0
        %2917 = vmatpush1.msra.mxu0 0.0
        %2918 = vmatprep.subr.mxu0 0.0
        %2919 = vmatpush1.msra.mxu0 0.0
        %2920 = vmatprep.subr.mxu0 0.0
        %2921 = vmatpush1.msra.mxu0 0.0
        %2922 = vmatprep.subr.mxu0 0.0
        %2923 = vmatpush1.msra.mxu0 0.0
        %2924 = vmatprep.subr.mxu0 0.0
        %2925 = vmatpush1.msra.mxu0 0.0
        %2926 = vmatprep.subr.mxu0 0.0
        %2927 = vmatpush1.msra.mxu0 0.0
        %2928 = vmatprep.subr.mxu0 0.0
        %2929 = vmatpush1.msra.mxu0 0.0
        %2930 = vmatprep.subr.mxu0 0.0
        %2931 = vmatpush1.msra.mxu0 0.0
        %2932 = vmatprep.subr.mxu0 0.0
        %2933 = vmatpush1.msra.mxu0 0.0
        %2934 = vmatprep.subr.mxu0 0.0
        %2935 = vmatpush1.msra.mxu0 0.0
        %2936 = vmatprep.subr.mxu0 0.0
        %2937 = vmatpush1.msra.mxu0 0.0
        %2938 = vmatprep.subr.mxu0 0.0
        %2939 = vmatpush1.msra.mxu0 0.0
        %2940 = vmatprep.subr.mxu0 0.0
        %2941 = vmatpush1.msra.mxu0 0.0
        %2942 = vmatprep.subr.mxu0 0.0
        %2943 = vmatpush1.msra.mxu0 0.0
        %2944 = vmatprep.subr.mxu0 0.0
        %2945 = vmatpush1.msra.mxu0 0.0
        %2946 = vmatprep.subr.mxu0 0.0
        %2947 = vmatpush1.msra.mxu0 0.0
        %2948 = vmatprep.mubr.f32.mxu0 0.0
        %2949 = vmatmul.mubr.f32.gmra.mrb[0].mxu0 %v2882
        %v2950 = vpop.f32.mrb[0].mxu0
        %v2951 = vadd.f32 0.0, %v2950
        %v2952 = vpop.f32.mrb[0].mxu0
        %2953 = vdwg.mxu0
        %2954 = vrot.lane.b32.xlu0 %v678, 56
        %v2955 = vpop.permute.xlu0 %2954
        %v2958 = vsel %vm704, %v2721, 0
        %2960 = vmatprep.subr.mxu0 0.0
        %2961 = vmatpush1.msra.mxu0 %v2955
        %2962 = vmatprep.subr.mxu0 0.0
        %2963 = vmatpush1.msra.mxu0 0.0
        %2964 = vmatprep.subr.mxu0 0.0
        %2965 = vmatpush1.msra.mxu0 0.0
        %2966 = vmatprep.subr.mxu0 0.0
        %2967 = vmatpush1.msra.mxu0 0.0
        %2968 = vmatprep.subr.mxu0 0.0
        %2969 = vmatpush1.msra.mxu0 0.0
        %2970 = vmatprep.subr.mxu0 0.0
        %2971 = vmatpush1.msra.mxu0 0.0
        %2972 = vmatprep.subr.mxu0 0.0
        %2973 = vmatpush1.msra.mxu0 0.0
        %2974 = vmatprep.subr.mxu0 0.0
        %2975 = vmatpush1.msra.mxu0 0.0
        %2976 = vmatprep.subr.mxu0 0.0
        %2977 = vmatpush1.msra.mxu0 0.0
        %2978 = vmatprep.subr.mxu0 0.0
        %2979 = vmatpush1.msra.mxu0 0.0
        %2980 = vmatprep.subr.mxu0 0.0
        %2981 = vmatpush1.msra.mxu0 0.0
        %2982 = vmatprep.subr.mxu0 0.0
        %2983 = vmatpush1.msra.mxu0 0.0
        %2984 = vmatprep.subr.mxu0 0.0
        %2985 = vmatpush1.msra.mxu0 0.0
        %2986 = vmatprep.subr.mxu0 0.0
        %2987 = vmatpush1.msra.mxu0 0.0
        %2988 = vmatprep.subr.mxu0 0.0
        %2989 = vmatpush1.msra.mxu0 0.0
        %2990 = vmatprep.subr.mxu0 0.0
        %2991 = vmatpush1.msra.mxu0 0.0
        %2992 = vmatprep.subr.mxu0 0.0
        %2993 = vmatpush1.msra.mxu0 0.0
        %2994 = vmatprep.subr.mxu0 0.0
        %2995 = vmatpush1.msra.mxu0 0.0
        %2996 = vmatprep.subr.mxu0 0.0
        %2997 = vmatpush1.msra.mxu0 0.0
        %2998 = vmatprep.subr.mxu0 0.0
        %2999 = vmatpush1.msra.mxu0 0.0
        %3000 = vmatprep.subr.mxu0 0.0
        %3001 = vmatpush1.msra.mxu0 0.0
        %3002 = vmatprep.subr.mxu0 0.0
        %3003 = vmatpush1.msra.mxu0 0.0
        %3004 = vmatprep.subr.mxu0 0.0
        %3005 = vmatpush1.msra.mxu0 0.0
        %3006 = vmatprep.subr.mxu0 0.0
        %3007 = vmatpush1.msra.mxu0 0.0
        %3008 = vmatprep.subr.mxu0 0.0
        %3009 = vmatpush1.msra.mxu0 0.0
        %3010 = vmatprep.subr.mxu0 0.0
        %3011 = vmatpush1.msra.mxu0 0.0
        %3012 = vmatprep.subr.mxu0 0.0
        %3013 = vmatpush1.msra.mxu0 0.0
        %3014 = vmatprep.subr.mxu0 0.0
        %3015 = vmatpush1.msra.mxu0 0.0
        %3016 = vmatprep.subr.mxu0 0.0
        %3017 = vmatpush1.msra.mxu0 0.0
        %3018 = vmatprep.subr.mxu0 0.0
        %3019 = vmatpush1.msra.mxu0 0.0
        %3020 = vmatprep.subr.mxu0 0.0
        %3021 = vmatpush1.msra.mxu0 0.0
        %3022 = vmatprep.subr.mxu0 0.0
        %3023 = vmatpush1.msra.mxu0 0.0
        %3024 = vmatprep.mubr.f32.mxu0 0.0
        %3025 = vmatmul.mubr.f32.gmra.mrb[0].mxu0 %v2958
        %v3026 = vpop.f32.mrb[0].mxu0
        %v3027 = vadd.f32 0.0, %v3026
        %v3028 = vpop.f32.mrb[0].mxu0
        %3029 = vdwg.mxu0
        %3030 = vrot.lane.b32.xlu0 %v683, 56
        %v3031 = vpop.permute.xlu0 %3030
        %v3034 = vsel %vm704, %v2722, 0
        %3036 = vmatprep.subr.mxu0 0.0
        %3037 = vmatpush1.msra.mxu0 %v3031
        %3038 = vmatprep.subr.mxu0 0.0
        %3039 = vmatpush1.msra.mxu0 0.0
        %3040 = vmatprep.subr.mxu0 0.0
        %3041 = vmatpush1.msra.mxu0 0.0
        %3042 = vmatprep.subr.mxu0 0.0
        %3043 = vmatpush1.msra.mxu0 0.0
        %3044 = vmatprep.subr.mxu0 0.0
        %3045 = vmatpush1.msra.mxu0 0.0
        %3046 = vmatprep.subr.mxu0 0.0
        %3047 = vmatpush1.msra.mxu0 0.0
        %3048 = vmatprep.subr.mxu0 0.0
        %3049 = vmatpush1.msra.mxu0 0.0
        %3050 = vmatprep.subr.mxu0 0.0
        %3051 = vmatpush1.msra.mxu0 0.0
        %3052 = vmatprep.subr.mxu0 0.0
        %3053 = vmatpush1.msra.mxu0 0.0
        %3054 = vmatprep.subr.mxu0 0.0
        %3055 = vmatpush1.msra.mxu0 0.0
        %3056 = vmatprep.subr.mxu0 0.0
        %3057 = vmatpush1.msra.mxu0 0.0
        %3058 = vmatprep.subr.mxu0 0.0
        %3059 = vmatpush1.msra.mxu0 0.0
        %3060 = vmatprep.subr.mxu0 0.0
        %3061 = vmatpush1.msra.mxu0 0.0
        %3062 = vmatprep.subr.mxu0 0.0
        %3063 = vmatpush1.msra.mxu0 0.0
        %3064 = vmatprep.subr.mxu0 0.0
        %3065 = vmatpush1.msra.mxu0 0.0
        %3066 = vmatprep.subr.mxu0 0.0
        %3067 = vmatpush1.msra.mxu0 0.0
        %3068 = vmatprep.subr.mxu0 0.0
        %3069 = vmatpush1.msra.mxu0 0.0
        %3070 = vmatprep.subr.mxu0 0.0
        %3071 = vmatpush1.msra.mxu0 0.0
        %3072 = vmatprep.subr.mxu0 0.0
        %3073 = vmatpush1.msra.mxu0 0.0
        %3074 = vmatprep.subr.mxu0 0.0
        %3075 = vmatpush1.msra.mxu0 0.0
        %3076 = vmatprep.subr.mxu0 0.0
        %3077 = vmatpush1.msra.mxu0 0.0
        %3078 = vmatprep.subr.mxu0 0.0
        %3079 = vmatpush1.msra.mxu0 0.0
        %3080 = vmatprep.subr.mxu0 0.0
        %3081 = vmatpush1.msra.mxu0 0.0
        %3082 = vmatprep.subr.mxu0 0.0
        %3083 = vmatpush1.msra.mxu0 0.0
        %3084 = vmatprep.subr.mxu0 0.0
        %3085 = vmatpush1.msra.mxu0 0.0
        %3086 = vmatprep.subr.mxu0 0.0
        %3087 = vmatpush1.msra.mxu0 0.0
        %3088 = vmatprep.subr.mxu0 0.0
        %3089 = vmatpush1.msra.mxu0 0.0
        %3090 = vmatprep.subr.mxu0 0.0
        %3091 = vmatpush1.msra.mxu0 0.0
        %3092 = vmatprep.subr.mxu0 0.0
        %3093 = vmatpush1.msra.mxu0 0.0
        %3094 = vmatprep.subr.mxu0 0.0
        %3095 = vmatpush1.msra.mxu0 0.0
        %3096 = vmatprep.subr.mxu0 0.0
        %3097 = vmatpush1.msra.mxu0 0.0
        %3098 = vmatprep.subr.mxu0 0.0
        %3099 = vmatpush1.msra.mxu0 0.0
        %3100 = vmatprep.mubr.f32.mxu0 0.0
        %3101 = vmatmul.mubr.f32.gmra.mrb[0].mxu0 %v3034
        %v3102 = vpop.f32.mrb[0].mxu0
        %v3103 = vadd.f32 0.0, %v3102
        %v3104 = vpop.f32.mrb[0].mxu0
        %3105 = vdwg.mxu0
        %3106 = vrot.lane.b32.xlu0 %v688, 56
        %v3107 = vpop.permute.xlu0 %3106
        %v3110 = vsel %vm704, %v2723, 0
        %3112 = vmatprep.subr.mxu0 0.0
        %3113 = vmatpush1.msra.mxu0 %v3107
        %3114 = vmatprep.subr.mxu0 0.0
        %3115 = vmatpush1.msra.mxu0 0.0
        %3116 = vmatprep.subr.mxu0 0.0
        %3117 = vmatpush1.msra.mxu0 0.0
        %3118 = vmatprep.subr.mxu0 0.0
        %3119 = vmatpush1.msra.mxu0 0.0
        %3120 = vmatprep.subr.mxu0 0.0
        %3121 = vmatpush1.msra.mxu0 0.0
        %3122 = vmatprep.subr.mxu0 0.0
        %3123 = vmatpush1.msra.mxu0 0.0
        %3124 = vmatprep.subr.mxu0 0.0
        %3125 = vmatpush1.msra.mxu0 0.0
        %3126 = vmatprep.subr.mxu0 0.0
        %3127 = vmatpush1.msra.mxu0 0.0
        %3128 = vmatprep.subr.mxu0 0.0
        %3129 = vmatpush1.msra.mxu0 0.0
        %3130 = vmatprep.subr.mxu0 0.0
        %3131 = vmatpush1.msra.mxu0 0.0
        %3132 = vmatprep.subr.mxu0 0.0
        %3133 = vmatpush1.msra.mxu0 0.0
        %3134 = vmatprep.subr.mxu0 0.0
        %3135 = vmatpush1.msra.mxu0 0.0
        %3136 = vmatprep.subr.mxu0 0.0
        %3137 = vmatpush1.msra.mxu0 0.0
        %3138 = vmatprep.subr.mxu0 0.0
        %3139 = vmatpush1.msra.mxu0 0.0
        %3140 = vmatprep.subr.mxu0 0.0
        %3141 = vmatpush1.msra.mxu0 0.0
        %3142 = vmatprep.subr.mxu0 0.0
        %3143 = vmatpush1.msra.mxu0 0.0
        %3144 = vmatprep.subr.mxu0 0.0
        %3145 = vmatpush1.msra.mxu0 0.0
        %3146 = vmatprep.subr.mxu0 0.0
        %3147 = vmatpush1.msra.mxu0 0.0
        %3148 = vmatprep.subr.mxu0 0.0
        %3149 = vmatpush1.msra.mxu0 0.0
        %3150 = vmatprep.subr.mxu0 0.0
        %3151 = vmatpush1.msra.mxu0 0.0
        %3152 = vmatprep.subr.mxu0 0.0
        %3153 = vmatpush1.msra.mxu0 0.0
        %3154 = vmatprep.subr.mxu0 0.0
        %3155 = vmatpush1.msra.mxu0 0.0
        %3156 = vmatprep.subr.mxu0 0.0
        %3157 = vmatpush1.msra.mxu0 0.0
        %3158 = vmatprep.subr.mxu0 0.0
        %3159 = vmatpush1.msra.mxu0 0.0
        %3160 = vmatprep.subr.mxu0 0.0
        %3161 = vmatpush1.msra.mxu0 0.0
        %3162 = vmatprep.subr.mxu0 0.0
        %3163 = vmatpush1.msra.mxu0 0.0
        %3164 = vmatprep.subr.mxu0 0.0
        %3165 = vmatpush1.msra.mxu0 0.0
        %3166 = vmatprep.subr.mxu0 0.0
        %3167 = vmatpush1.msra.mxu0 0.0
        %3168 = vmatprep.subr.mxu0 0.0
        %3169 = vmatpush1.msra.mxu0 0.0
        %3170 = vmatprep.subr.mxu0 0.0
        %3171 = vmatpush1.msra.mxu0 0.0
        %3172 = vmatprep.subr.mxu0 0.0
        %3173 = vmatpush1.msra.mxu0 0.0
        %3174 = vmatprep.subr.mxu0 0.0
        %3175 = vmatpush1.msra.mxu0 0.0
        %3176 = vmatprep.mubr.f32.mxu0 0.0
        %3177 = vmatmul.mubr.f32.gmra.mrb[0].mxu0 %v3110
        %v3178 = vpop.f32.mrb[0].mxu0
        %v3179 = vadd.f32 0.0, %v3178
        %v3180 = vpop.f32.mrb[0].mxu0
        %3181 = vdwg.mxu0
        %3182 = vrot.lane.b32.xlu0 %v693, 56
        %v3183 = vpop.permute.xlu0 %3182
        %v3186 = vsel %vm704, %v2724, 0
        %3188 = vmatprep.subr.mxu0 0.0
        %3189 = vmatpush1.msra.mxu0 %v3183
        %3190 = vmatprep.subr.mxu0 0.0
        %3191 = vmatpush1.msra.mxu0 0.0
        %3192 = vmatprep.subr.mxu0 0.0
        %3193 = vmatpush1.msra.mxu0 0.0
        %3194 = vmatprep.subr.mxu0 0.0
        %3195 = vmatpush1.msra.mxu0 0.0
        %3196 = vmatprep.subr.mxu0 0.0
        %3197 = vmatpush1.msra.mxu0 0.0
        %3198 = vmatprep.subr.mxu0 0.0
        %3199 = vmatpush1.msra.mxu0 0.0
        %3200 = vmatprep.subr.mxu0 0.0
        %3201 = vmatpush1.msra.mxu0 0.0
        %3202 = vmatprep.subr.mxu0 0.0
        %3203 = vmatpush1.msra.mxu0 0.0
        %3204 = vmatprep.subr.mxu0 0.0
        %3205 = vmatpush1.msra.mxu0 0.0
        %3206 = vmatprep.subr.mxu0 0.0
        %3207 = vmatpush1.msra.mxu0 0.0
        %3208 = vmatprep.subr.mxu0 0.0
        %3209 = vmatpush1.msra.mxu0 0.0
        %3210 = vmatprep.subr.mxu0 0.0
        %3211 = vmatpush1.msra.mxu0 0.0
        %3212 = vmatprep.subr.mxu0 0.0
        %3213 = vmatpush1.msra.mxu0 0.0
        %3214 = vmatprep.subr.mxu0 0.0
        %3215 = vmatpush1.msra.mxu0 0.0
        %3216 = vmatprep.subr.mxu0 0.0
        %3217 = vmatpush1.msra.mxu0 0.0
        %3218 = vmatprep.subr.mxu0 0.0
        %3219 = vmatpush1.msra.mxu0 0.0
        %3220 = vmatprep.subr.mxu0 0.0
        %3221 = vmatpush1.msra.mxu0 0.0
        %3222 = vmatprep.subr.mxu0 0.0
        %3223 = vmatpush1.msra.mxu0 0.0
        %3224 = vmatprep.subr.mxu0 0.0
        %3225 = vmatpush1.msra.mxu0 0.0
        %3226 = vmatprep.subr.mxu0 0.0
        %3227 = vmatpush1.msra.mxu0 0.0
        %3228 = vmatprep.subr.mxu0 0.0
        %3229 = vmatpush1.msra.mxu0 0.0
        %3230 = vmatprep.subr.mxu0 0.0
        %3231 = vmatpush1.msra.mxu0 0.0
        %3232 = vmatprep.subr.mxu0 0.0
        %3233 = vmatpush1.msra.mxu0 0.0
        %3234 = vmatprep.subr.mxu0 0.0
        %3235 = vmatpush1.msra.mxu0 0.0
        %3236 = vmatprep.subr.mxu0 0.0
        %3237 = vmatpush1.msra.mxu0 0.0
        %3238 = vmatprep.subr.mxu0 0.0
        %3239 = vmatpush1.msra.mxu0 0.0
        %3240 = vmatprep.subr.mxu0 0.0
        %3241 = vmatpush1.msra.mxu0 0.0
        %3242 = vmatprep.subr.mxu0 0.0
        %3243 = vmatpush1.msra.mxu0 0.0
        %3244 = vmatprep.subr.mxu0 0.0
        %3245 = vmatpush1.msra.mxu0 0.0
        %3246 = vmatprep.subr.mxu0 0.0
        %3247 = vmatpush1.msra.mxu0 0.0
        %3248 = vmatprep.subr.mxu0 0.0
        %3249 = vmatpush1.msra.mxu0 0.0
        %3250 = vmatprep.subr.mxu0 0.0
        %3251 = vmatpush1.msra.mxu0 0.0
        %3252 = vmatprep.mubr.f32.mxu0 0.0
        %3253 = vmatmul.mubr.f32.gmra.mrb[0].mxu0 %v3186
        %v3254 = vpop.f32.mrb[0].mxu0
        %v3255 = vadd.f32 0.0, %v3254
        %v3256 = vpop.f32.mrb[0].mxu0
        %3257 = vdwg.mxu0
        %3258 = vrot.lane.b32.xlu0 %v698, 56
        %v3259 = vpop.permute.xlu0 %3258
        %v3262 = vsel %vm704, %v2725, 0
        %3264 = vmatprep.subr.mxu0 0.0
        %3265 = vmatpush1.msra.mxu0 %v3259
        %3266 = vmatprep.subr.mxu0 0.0
        %3267 = vmatpush1.msra.mxu0 0.0
        %3268 = vmatprep.subr.mxu0 0.0
        %3269 = vmatpush1.msra.mxu0 0.0
        %3270 = vmatprep.subr.mxu0 0.0
        %3271 = vmatpush1.msra.mxu0 0.0
        %3272 = vmatprep.subr.mxu0 0.0
        %3273 = vmatpush1.msra.mxu0 0.0
        %3274 = vmatprep.subr.mxu0 0.0
        %3275 = vmatpush1.msra.mxu0 0.0
        %3276 = vmatprep.subr.mxu0 0.0
        %3277 = vmatpush1.msra.mxu0 0.0
        %3278 = vmatprep.subr.mxu0 0.0
        %3279 = vmatpush1.msra.mxu0 0.0
        %3280 = vmatprep.subr.mxu0 0.0
        %3281 = vmatpush1.msra.mxu0 0.0
        %3282 = vmatprep.subr.mxu0 0.0
        %3283 = vmatpush1.msra.mxu0 0.0
        %3284 = vmatprep.subr.mxu0 0.0
        %3285 = vmatpush1.msra.mxu0 0.0
        %3286 = vmatprep.subr.mxu0 0.0
        %3287 = vmatpush1.msra.mxu0 0.0
        %3288 = vmatprep.subr.mxu0 0.0
        %3289 = vmatpush1.msra.mxu0 0.0
        %3290 = vmatprep.subr.mxu0 0.0
        %3291 = vmatpush1.msra.mxu0 0.0
        %3292 = vmatprep.subr.mxu0 0.0
        %3293 = vmatpush1.msra.mxu0 0.0
        %3294 = vmatprep.subr.mxu0 0.0
        %3295 = vmatpush1.msra.mxu0 0.0
        %3296 = vmatprep.subr.mxu0 0.0
        %3297 = vmatpush1.msra.mxu0 0.0
        %3298 = vmatprep.subr.mxu0 0.0
        %3299 = vmatpush1.msra.mxu0 0.0
        %3300 = vmatprep.subr.mxu0 0.0
        %3301 = vmatpush1.msra.mxu0 0.0
        %3302 = vmatprep.subr.mxu0 0.0
        %3303 = vmatpush1.msra.mxu0 0.0
        %3304 = vmatprep.subr.mxu0 0.0
        %3305 = vmatpush1.msra.mxu0 0.0
        %3306 = vmatprep.subr.mxu0 0.0
        %3307 = vmatpush1.msra.mxu0 0.0
        %3308 = vmatprep.subr.mxu0 0.0
        %3309 = vmatpush1.msra.mxu0 0.0
        %3310 = vmatprep.subr.mxu0 0.0
        %3311 = vmatpush1.msra.mxu0 0.0
        %3312 = vmatprep.subr.mxu0 0.0
        %3313 = vmatpush1.msra.mxu0 0.0
        %3314 = vmatprep.subr.mxu0 0.0
        %3315 = vmatpush1.msra.mxu0 0.0
        %3316 = vmatprep.subr.mxu0 0.0
        %3317 = vmatpush1.msra.mxu0 0.0
        %3318 = vmatprep.subr.mxu0 0.0
        %3319 = vmatpush1.msra.mxu0 0.0
        %3320 = vmatprep.subr.mxu0 0.0
        %3321 = vmatpush1.msra.mxu0 0.0
        %3322 = vmatprep.subr.mxu0 0.0
        %3323 = vmatpush1.msra.mxu0 0.0
        %3324 = vmatprep.subr.mxu0 0.0
        %3325 = vmatpush1.msra.mxu0 0.0
        %3326 = vmatprep.subr.mxu0 0.0
        %3327 = vmatpush1.msra.mxu0 0.0
        %3328 = vmatprep.mubr.f32.mxu0 0.0
        %3329 = vmatmul.mubr.f32.gmra.mrb[0].mxu0 %v3262
        %v3330 = vpop.f32.mrb[0].mxu0
        %v3331 = vadd.f32 0.0, %v3330
        %v3332 = vpop.f32.mrb[0].mxu0
        %3333 = vdwg.mxu0
        %3334 = vrot.lane.b32.xlu0 %v663, 112
        %v3335 = vpop.permute.xlu0 %3334
        %3336 = vrot.lane.b32.xlu0 %v663, 80
        %v3337 = vpop.permute.xlu0 %3336
        %v3338 = vsel %vm704, %v3335, 0
        %v3340 = vsel %vm704, %v3337, 0
        %3342 = vmatprep.subr.mxu0 0.0
        %3343 = vmatpush1.xpose.msra.mxu0 %v3340
        %3344 = vmatprep.subr.mxu0 0.0
        %3345 = vmatpush1.xpose.msra.mxu0 0.0
        %3346 = vmatprep.subr.mxu0 0.0
        %3347 = vmatpush1.xpose.msra.mxu0 0.0
        %3348 = vmatprep.subr.mxu0 0.0
        %3349 = vmatpush1.xpose.msra.mxu0 0.0
        %3350 = vmatprep.subr.mxu0 0.0
        %3351 = vmatpush1.xpose.msra.mxu0 0.0
        %3352 = vmatprep.subr.mxu0 0.0
        %3353 = vmatpush1.xpose.msra.mxu0 0.0
        %3354 = vmatprep.subr.mxu0 0.0
        %3355 = vmatpush1.xpose.msra.mxu0 0.0
        %3356 = vmatprep.subr.mxu0 0.0
        %3357 = vmatpush1.xpose.msra.mxu0 0.0
        %3358 = vmatprep.subr.mxu0 0.0
        %3359 = vmatpush1.xpose.msra.mxu0 0.0
        %3360 = vmatprep.subr.mxu0 0.0
        %3361 = vmatpush1.xpose.msra.mxu0 0.0
        %3362 = vmatprep.subr.mxu0 0.0
        %3363 = vmatpush1.xpose.msra.mxu0 0.0
        %3364 = vmatprep.subr.mxu0 0.0
        %3365 = vmatpush1.xpose.msra.mxu0 0.0
        %3366 = vmatprep.subr.mxu0 0.0
        %3367 = vmatpush1.xpose.msra.mxu0 0.0
        %3368 = vmatprep.subr.mxu0 0.0
        %3369 = vmatpush1.xpose.msra.mxu0 0.0
        %3370 = vmatprep.subr.mxu0 0.0
        %3371 = vmatpush1.xpose.msra.mxu0 0.0
        %3372 = vmatprep.subr.mxu0 0.0
        %3373 = vmatpush1.xpose.msra.mxu0 0.0
        %3374 = vmatprep.subr.mxu0 0.0
        %3375 = vmatpush1.xpose.msra.mxu0 0.0
        %3376 = vmatprep.subr.mxu0 0.0
        %3377 = vmatpush1.xpose.msra.mxu0 0.0
        %3378 = vmatprep.subr.mxu0 0.0
        %3379 = vmatpush1.xpose.msra.mxu0 0.0
        %3380 = vmatprep.subr.mxu0 0.0
        %3381 = vmatpush1.xpose.msra.mxu0 0.0
        %3382 = vmatprep.subr.mxu0 0.0
        %3383 = vmatpush1.xpose.msra.mxu0 0.0
        %3384 = vmatprep.subr.mxu0 0.0
        %3385 = vmatpush1.xpose.msra.mxu0 0.0
        %3386 = vmatprep.subr.mxu0 0.0
        %3387 = vmatpush1.xpose.msra.mxu0 0.0
        %3388 = vmatprep.subr.mxu0 0.0
        %3389 = vmatpush1.xpose.msra.mxu0 0.0
        %3390 = vmatprep.subr.mxu0 0.0
        %3391 = vmatpush1.xpose.msra.mxu0 0.0
        %3392 = vmatprep.subr.mxu0 0.0
        %3393 = vmatpush1.xpose.msra.mxu0 0.0
        %3394 = vmatprep.subr.mxu0 0.0
        %3395 = vmatpush1.xpose.msra.mxu0 0.0
        %3396 = vmatprep.subr.mxu0 0.0
        %3397 = vmatpush1.xpose.msra.mxu0 0.0
        %3398 = vmatprep.subr.mxu0 0.0
        %3399 = vmatpush1.xpose.msra.mxu0 0.0
        %3400 = vmatprep.subr.mxu0 0.0
        %3401 = vmatpush1.xpose.msra.mxu0 0.0
        %3402 = vmatprep.subr.mxu0 0.0
        %3403 = vmatpush1.xpose.msra.mxu0 0.0
        %3404 = vmatprep.subr.mxu0 0.0
        %3405 = vmatpush1.xpose.msra.mxu0 0.0
        %3406 = vmatprep.mubr.f32.mxu0 0.0
        %3407 = vmatmul.mubr.f32.gmra.mrb[0].mxu0 %v3338
        %v3408 = vpop.f32.mrb[0].mxu0
        %v3409 = vadd.f32 0.0, %v3408
        %v3410 = vpop.f32.mrb[0].mxu0
        %3411 = vdwg.mxu0
        %3412 = vrot.lane.b32.xlu0 %v668, 112
        %v3413 = vpop.permute.xlu0 %3412
        %3414 = vrot.lane.b32.xlu0 %v668, 80
        %v3415 = vpop.permute.xlu0 %3414
        %v3416 = vsel %vm704, %v3413, 0
        %v3418 = vsel %vm704, %v3415, 0
        %3420 = vmatprep.subr.mxu0 0.0
        %3421 = vmatpush1.xpose.msra.mxu0 %v3418
        %3422 = vmatprep.subr.mxu0 0.0
        %3423 = vmatpush1.xpose.msra.mxu0 0.0
        %3424 = vmatprep.subr.mxu0 0.0
        %3425 = vmatpush1.xpose.msra.mxu0 0.0
        %3426 = vmatprep.subr.mxu0 0.0
        %3427 = vmatpush1.xpose.msra.mxu0 0.0
        %3428 = vmatprep.subr.mxu0 0.0
        %3429 = vmatpush1.xpose.msra.mxu0 0.0
        %3430 = vmatprep.subr.mxu0 0.0
        %3431 = vmatpush1.xpose.msra.mxu0 0.0
        %3432 = vmatprep.subr.mxu0 0.0
        %3433 = vmatpush1.xpose.msra.mxu0 0.0
        %3434 = vmatprep.subr.mxu0 0.0
        %3435 = vmatpush1.xpose.msra.mxu0 0.0
        %3436 = vmatprep.subr.mxu0 0.0
        %3437 = vmatpush1.xpose.msra.mxu0 0.0
        %3438 = vmatprep.subr.mxu0 0.0
        %3439 = vmatpush1.xpose.msra.mxu0 0.0
        %3440 = vmatprep.subr.mxu0 0.0
        %3441 = vmatpush1.xpose.msra.mxu0 0.0
        %3442 = vmatprep.subr.mxu0 0.0
        %3443 = vmatpush1.xpose.msra.mxu0 0.0
        %3444 = vmatprep.subr.mxu0 0.0
        %3445 = vmatpush1.xpose.msra.mxu0 0.0
        %3446 = vmatprep.subr.mxu0 0.0
        %3447 = vmatpush1.xpose.msra.mxu0 0.0
        %3448 = vmatprep.subr.mxu0 0.0
        %3449 = vmatpush1.xpose.msra.mxu0 0.0
        %3450 = vmatprep.subr.mxu0 0.0
        %3451 = vmatpush1.xpose.msra.mxu0 0.0
        %3452 = vmatprep.subr.mxu0 0.0
        %3453 = vmatpush1.xpose.msra.mxu0 0.0
        %3454 = vmatprep.subr.mxu0 0.0
        %3455 = vmatpush1.xpose.msra.mxu0 0.0
        %3456 = vmatprep.subr.mxu0 0.0
        %3457 = vmatpush1.xpose.msra.mxu0 0.0
        %3458 = vmatprep.subr.mxu0 0.0
        %3459 = vmatpush1.xpose.msra.mxu0 0.0
        %3460 = vmatprep.subr.mxu0 0.0
        %3461 = vmatpush1.xpose.msra.mxu0 0.0
        %3462 = vmatprep.subr.mxu0 0.0
        %3463 = vmatpush1.xpose.msra.mxu0 0.0
        %3464 = vmatprep.subr.mxu0 0.0
        %3465 = vmatpush1.xpose.msra.mxu0 0.0
        %3466 = vmatprep.subr.mxu0 0.0
        %3467 = vmatpush1.xpose.msra.mxu0 0.0
        %3468 = vmatprep.subr.mxu0 0.0
        %3469 = vmatpush1.xpose.msra.mxu0 0.0
        %3470 = vmatprep.subr.mxu0 0.0
        %3471 = vmatpush1.xpose.msra.mxu0 0.0
        %3472 = vmatprep.subr.mxu0 0.0
        %3473 = vmatpush1.xpose.msra.mxu0 0.0
        %3474 = vmatprep.subr.mxu0 0.0
        %3475 = vmatpush1.xpose.msra.mxu0 0.0
        %3476 = vmatprep.subr.mxu0 0.0
        %3477 = vmatpush1.xpose.msra.mxu0 0.0
        %3478 = vmatprep.subr.mxu0 0.0
        %3479 = vmatpush1.xpose.msra.mxu0 0.0
        %3480 = vmatprep.subr.mxu0 0.0
        %3481 = vmatpush1.xpose.msra.mxu0 0.0
        %3482 = vmatprep.subr.mxu0 0.0
        %3483 = vmatpush1.xpose.msra.mxu0 0.0
        %3484 = vmatprep.mubr.f32.mxu0 0.0
        %3485 = vmatmul.mubr.f32.gmra.mrb[0].mxu0 %v3416
        %v3486 = vpop.f32.mrb[0].mxu0
        %v3487 = vadd.f32 0.0, %v3486
        %v3488 = vpop.f32.mrb[0].mxu0
        %3489 = vdwg.mxu0
        %3490 = vrot.lane.b32.xlu0 %v673, 112
        %v3491 = vpop.permute.xlu0 %3490
        %3492 = vrot.lane.b32.xlu0 %v673, 80
        %v3493 = vpop.permute.xlu0 %3492
        %v3494 = vsel %vm704, %v3491, 0
        %v3496 = vsel %vm704, %v3493, 0
        %3498 = vmatprep.subr.mxu0 0.0
        %3499 = vmatpush1.xpose.msra.mxu0 %v3496
        %3500 = vmatprep.subr.mxu0 0.0
        %3501 = vmatpush1.xpose.msra.mxu0 0.0
        %3502 = vmatprep.subr.mxu0 0.0
        %3503 = vmatpush1.xpose.msra.mxu0 0.0
        %3504 = vmatprep.subr.mxu0 0.0
        %3505 = vmatpush1.xpose.msra.mxu0 0.0
        %3506 = vmatprep.subr.mxu0 0.0
        %3507 = vmatpush1.xpose.msra.mxu0 0.0
        %3508 = vmatprep.subr.mxu0 0.0
        %3509 = vmatpush1.xpose.msra.mxu0 0.0
        %3510 = vmatprep.subr.mxu0 0.0
        %3511 = vmatpush1.xpose.msra.mxu0 0.0
        %3512 = vmatprep.subr.mxu0 0.0
        %3513 = vmatpush1.xpose.msra.mxu0 0.0
        %3514 = vmatprep.subr.mxu0 0.0
        %3515 = vmatpush1.xpose.msra.mxu0 0.0
        %3516 = vmatprep.subr.mxu0 0.0
        %3517 = vmatpush1.xpose.msra.mxu0 0.0
        %3518 = vmatprep.subr.mxu0 0.0
        %3519 = vmatpush1.xpose.msra.mxu0 0.0
        %3520 = vmatprep.subr.mxu0 0.0
        %3521 = vmatpush1.xpose.msra.mxu0 0.0
        %3522 = vmatprep.subr.mxu0 0.0
        %3523 = vmatpush1.xpose.msra.mxu0 0.0
        %3524 = vmatprep.subr.mxu0 0.0
        %3525 = vmatpush1.xpose.msra.mxu0 0.0
        %3526 = vmatprep.subr.mxu0 0.0
        %3527 = vmatpush1.xpose.msra.mxu0 0.0
        %3528 = vmatprep.subr.mxu0 0.0
        %3529 = vmatpush1.xpose.msra.mxu0 0.0
        %3530 = vmatprep.subr.mxu0 0.0
        %3531 = vmatpush1.xpose.msra.mxu0 0.0
        %3532 = vmatprep.subr.mxu0 0.0
        %3533 = vmatpush1.xpose.msra.mxu0 0.0
        %3534 = vmatprep.subr.mxu0 0.0
        %3535 = vmatpush1.xpose.msra.mxu0 0.0
        %3536 = vmatprep.subr.mxu0 0.0
        %3537 = vmatpush1.xpose.msra.mxu0 0.0
        %3538 = vmatprep.subr.mxu0 0.0
        %3539 = vmatpush1.xpose.msra.mxu0 0.0
        %3540 = vmatprep.subr.mxu0 0.0
        %3541 = vmatpush1.xpose.msra.mxu0 0.0
        %3542 = vmatprep.subr.mxu0 0.0
        %3543 = vmatpush1.xpose.msra.mxu0 0.0
        %3544 = vmatprep.subr.mxu0 0.0
        %3545 = vmatpush1.xpose.msra.mxu0 0.0
        %3546 = vmatprep.subr.mxu0 0.0
        %3547 = vmatpush1.xpose.msra.mxu0 0.0
        %3548 = vmatprep.subr.mxu0 0.0
        %3549 = vmatpush1.xpose.msra.mxu0 0.0
        %3550 = vmatprep.subr.mxu0 0.0
        %3551 = vmatpush1.xpose.msra.mxu0 0.0
        %3552 = vmatprep.subr.mxu0 0.0
        %3553 = vmatpush1.xpose.msra.mxu0 0.0
        %3554 = vmatprep.subr.mxu0 0.0
        %3555 = vmatpush1.xpose.msra.mxu0 0.0
        %3556 = vmatprep.subr.mxu0 0.0
        %3557 = vmatpush1.xpose.msra.mxu0 0.0
        %3558 = vmatprep.subr.mxu0 0.0
        %3559 = vmatpush1.xpose.msra.mxu0 0.0
        %3560 = vmatprep.subr.mxu0 0.0
        %3561 = vmatpush1.xpose.msra.mxu0 0.0
        %3562 = vmatprep.mubr.f32.mxu0 0.0
        %3563 = vmatmul.mubr.f32.gmra.mrb[0].mxu0 %v3494
        %v3564 = vpop.f32.mrb[0].mxu0
        %v3565 = vadd.f32 0.0, %v3564
        %v3566 = vpop.f32.mrb[0].mxu0
        %3567 = vdwg.mxu0
        %3568 = vrot.lane.b32.xlu0 %v678, 112
        %v3569 = vpop.permute.xlu0 %3568
        %3570 = vrot.lane.b32.xlu0 %v678, 80
        %v3571 = vpop.permute.xlu0 %3570
        %v3572 = vsel %vm704, %v3569, 0
        %v3574 = vsel %vm704, %v3571, 0
        %3576 = vmatprep.subr.mxu0 0.0
        %3577 = vmatpush1.xpose.msra.mxu0 %v3574
        %3578 = vmatprep.subr.mxu0 0.0
        %3579 = vmatpush1.xpose.msra.mxu0 0.0
        %3580 = vmatprep.subr.mxu0 0.0
        %3581 = vmatpush1.xpose.msra.mxu0 0.0
        %3582 = vmatprep.subr.mxu0 0.0
        %3583 = vmatpush1.xpose.msra.mxu0 0.0
        %3584 = vmatprep.subr.mxu0 0.0
        %3585 = vmatpush1.xpose.msra.mxu0 0.0
        %3586 = vmatprep.subr.mxu0 0.0
        %3587 = vmatpush1.xpose.msra.mxu0 0.0
        %3588 = vmatprep.subr.mxu0 0.0
        %3589 = vmatpush1.xpose.msra.mxu0 0.0
        %3590 = vmatprep.subr.mxu0 0.0
        %3591 = vmatpush1.xpose.msra.mxu0 0.0
        %3592 = vmatprep.subr.mxu0 0.0
        %3593 = vmatpush1.xpose.msra.mxu0 0.0
        %3594 = vmatprep.subr.mxu0 0.0
        %3595 = vmatpush1.xpose.msra.mxu0 0.0
        %3596 = vmatprep.subr.mxu0 0.0
        %3597 = vmatpush1.xpose.msra.mxu0 0.0
        %3598 = vmatprep.subr.mxu0 0.0
        %3599 = vmatpush1.xpose.msra.mxu0 0.0
        %3600 = vmatprep.subr.mxu0 0.0
        %3601 = vmatpush1.xpose.msra.mxu0 0.0
        %3602 = vmatprep.subr.mxu0 0.0
        %3603 = vmatpush1.xpose.msra.mxu0 0.0
        %3604 = vmatprep.subr.mxu0 0.0
        %3605 = vmatpush1.xpose.msra.mxu0 0.0
        %3606 = vmatprep.subr.mxu0 0.0
        %3607 = vmatpush1.xpose.msra.mxu0 0.0
        %3608 = vmatprep.subr.mxu0 0.0
        %3609 = vmatpush1.xpose.msra.mxu0 0.0
        %3610 = vmatprep.subr.mxu0 0.0
        %3611 = vmatpush1.xpose.msra.mxu0 0.0
        %3612 = vmatprep.subr.mxu0 0.0
        %3613 = vmatpush1.xpose.msra.mxu0 0.0
        %3614 = vmatprep.subr.mxu0 0.0
        %3615 = vmatpush1.xpose.msra.mxu0 0.0
        %3616 = vmatprep.subr.mxu0 0.0
        %3617 = vmatpush1.xpose.msra.mxu0 0.0
        %3618 = vmatprep.subr.mxu0 0.0
        %3619 = vmatpush1.xpose.msra.mxu0 0.0
        %3620 = vmatprep.subr.mxu0 0.0
        %3621 = vmatpush1.xpose.msra.mxu0 0.0
        %3622 = vmatprep.subr.mxu0 0.0
        %3623 = vmatpush1.xpose.msra.mxu0 0.0
        %3624 = vmatprep.subr.mxu0 0.0
        %3625 = vmatpush1.xpose.msra.mxu0 0.0
        %3626 = vmatprep.subr.mxu0 0.0
        %3627 = vmatpush1.xpose.msra.mxu0 0.0
        %3628 = vmatprep.subr.mxu0 0.0
        %3629 = vmatpush1.xpose.msra.mxu0 0.0
        %3630 = vmatprep.subr.mxu0 0.0
        %3631 = vmatpush1.xpose.msra.mxu0 0.0
        %3632 = vmatprep.subr.mxu0 0.0
        %3633 = vmatpush1.xpose.msra.mxu0 0.0
        %3634 = vmatprep.subr.mxu0 0.0
        %3635 = vmatpush1.xpose.msra.mxu0 0.0
        %3636 = vmatprep.subr.mxu0 0.0
        %3637 = vmatpush1.xpose.msra.mxu0 0.0
        %3638 = vmatprep.subr.mxu0 0.0
        %3639 = vmatpush1.xpose.msra.mxu0 0.0
        %3640 = vmatprep.mubr.f32.mxu0 0.0
        %3641 = vmatmul.mubr.f32.gmra.mrb[0].mxu0 %v3572
        %v3642 = vpop.f32.mrb[0].mxu0
        %v3643 = vadd.f32 0.0, %v3642
        %v3644 = vpop.f32.mrb[0].mxu0
        %3645 = vdwg.mxu0
        %3646 = vrot.lane.b32.xlu0 %v683, 112
        %v3647 = vpop.permute.xlu0 %3646
        %3648 = vrot.lane.b32.xlu0 %v683, 80
        %v3649 = vpop.permute.xlu0 %3648
        %v3650 = vsel %vm704, %v3647, 0
        %v3652 = vsel %vm704, %v3649, 0
        %3654 = vmatprep.subr.mxu0 0.0
        %3655 = vmatpush1.xpose.msra.mxu0 %v3652
        %3656 = vmatprep.subr.mxu0 0.0
        %3657 = vmatpush1.xpose.msra.mxu0 0.0
        %3658 = vmatprep.subr.mxu0 0.0
        %3659 = vmatpush1.xpose.msra.mxu0 0.0
        %3660 = vmatprep.subr.mxu0 0.0
        %3661 = vmatpush1.xpose.msra.mxu0 0.0
        %3662 = vmatprep.subr.mxu0 0.0
        %3663 = vmatpush1.xpose.msra.mxu0 0.0
        %3664 = vmatprep.subr.mxu0 0.0
        %3665 = vmatpush1.xpose.msra.mxu0 0.0
        %3666 = vmatprep.subr.mxu0 0.0
        %3667 = vmatpush1.xpose.msra.mxu0 0.0
        %3668 = vmatprep.subr.mxu0 0.0
        %3669 = vmatpush1.xpose.msra.mxu0 0.0
        %3670 = vmatprep.subr.mxu0 0.0
        %3671 = vmatpush1.xpose.msra.mxu0 0.0
        %3672 = vmatprep.subr.mxu0 0.0
        %3673 = vmatpush1.xpose.msra.mxu0 0.0
        %3674 = vmatprep.subr.mxu0 0.0
        %3675 = vmatpush1.xpose.msra.mxu0 0.0
        %3676 = vmatprep.subr.mxu0 0.0
        %3677 = vmatpush1.xpose.msra.mxu0 0.0
        %3678 = vmatprep.subr.mxu0 0.0
        %3679 = vmatpush1.xpose.msra.mxu0 0.0
        %3680 = vmatprep.subr.mxu0 0.0
        %3681 = vmatpush1.xpose.msra.mxu0 0.0
        %3682 = vmatprep.subr.mxu0 0.0
        %3683 = vmatpush1.xpose.msra.mxu0 0.0
        %3684 = vmatprep.subr.mxu0 0.0
        %3685 = vmatpush1.xpose.msra.mxu0 0.0
        %3686 = vmatprep.subr.mxu0 0.0
        %3687 = vmatpush1.xpose.msra.mxu0 0.0
        %3688 = vmatprep.subr.mxu0 0.0
        %3689 = vmatpush1.xpose.msra.mxu0 0.0
        %3690 = vmatprep.subr.mxu0 0.0
        %3691 = vmatpush1.xpose.msra.mxu0 0.0
        %3692 = vmatprep.subr.mxu0 0.0
        %3693 = vmatpush1.xpose.msra.mxu0 0.0
        %3694 = vmatprep.subr.mxu0 0.0
        %3695 = vmatpush1.xpose.msra.mxu0 0.0
        %3696 = vmatprep.subr.mxu0 0.0
        %3697 = vmatpush1.xpose.msra.mxu0 0.0
        %3698 = vmatprep.subr.mxu0 0.0
        %3699 = vmatpush1.xpose.msra.mxu0 0.0
        %3700 = vmatprep.subr.mxu0 0.0
        %3701 = vmatpush1.xpose.msra.mxu0 0.0
        %3702 = vmatprep.subr.mxu0 0.0
        %3703 = vmatpush1.xpose.msra.mxu0 0.0
        %3704 = vmatprep.subr.mxu0 0.0
        %3705 = vmatpush1.xpose.msra.mxu0 0.0
        %3706 = vmatprep.subr.mxu0 0.0
        %3707 = vmatpush1.xpose.msra.mxu0 0.0
        %3708 = vmatprep.subr.mxu0 0.0
        %3709 = vmatpush1.xpose.msra.mxu0 0.0
        %3710 = vmatprep.subr.mxu0 0.0
        %3711 = vmatpush1.xpose.msra.mxu0 0.0
        %3712 = vmatprep.subr.mxu0 0.0
        %3713 = vmatpush1.xpose.msra.mxu0 0.0
        %3714 = vmatprep.subr.mxu0 0.0
        %3715 = vmatpush1.xpose.msra.mxu0 0.0
        %3716 = vmatprep.subr.mxu0 0.0
        %3717 = vmatpush1.xpose.msra.mxu0 0.0
        %3718 = vmatprep.mubr.f32.mxu0 0.0
        %3719 = vmatmul.mubr.f32.gmra.mrb[0].mxu0 %v3650
        %v3720 = vpop.f32.mrb[0].mxu0
        %v3721 = vadd.f32 0.0, %v3720
        %v3722 = vpop.f32.mrb[0].mxu0
        %3723 = vdwg.mxu0
        %3724 = vrot.lane.b32.xlu0 %v688, 112
        %v3725 = vpop.permute.xlu0 %3724
        %3726 = vrot.lane.b32.xlu0 %v688, 80
        %v3727 = vpop.permute.xlu0 %3726
        %v3728 = vsel %vm704, %v3725, 0
        %v3730 = vsel %vm704, %v3727, 0
        %3732 = vmatprep.subr.mxu0 0.0
        %3733 = vmatpush1.xpose.msra.mxu0 %v3730
        %3734 = vmatprep.subr.mxu0 0.0
        %3735 = vmatpush1.xpose.msra.mxu0 0.0
        %3736 = vmatprep.subr.mxu0 0.0
        %3737 = vmatpush1.xpose.msra.mxu0 0.0
        %3738 = vmatprep.subr.mxu0 0.0
        %3739 = vmatpush1.xpose.msra.mxu0 0.0
        %3740 = vmatprep.subr.mxu0 0.0
        %3741 = vmatpush1.xpose.msra.mxu0 0.0
        %3742 = vmatprep.subr.mxu0 0.0
        %3743 = vmatpush1.xpose.msra.mxu0 0.0
        %3744 = vmatprep.subr.mxu0 0.0
        %3745 = vmatpush1.xpose.msra.mxu0 0.0
        %3746 = vmatprep.subr.mxu0 0.0
        %3747 = vmatpush1.xpose.msra.mxu0 0.0
        %3748 = vmatprep.subr.mxu0 0.0
        %3749 = vmatpush1.xpose.msra.mxu0 0.0
        %3750 = vmatprep.subr.mxu0 0.0
        %3751 = vmatpush1.xpose.msra.mxu0 0.0
        %3752 = vmatprep.subr.mxu0 0.0
        %3753 = vmatpush1.xpose.msra.mxu0 0.0
        %3754 = vmatprep.subr.mxu0 0.0
        %3755 = vmatpush1.xpose.msra.mxu0 0.0
        %3756 = vmatprep.subr.mxu0 0.0
        %3757 = vmatpush1.xpose.msra.mxu0 0.0
        %3758 = vmatprep.subr.mxu0 0.0
        %3759 = vmatpush1.xpose.msra.mxu0 0.0
        %3760 = vmatprep.subr.mxu0 0.0
        %3761 = vmatpush1.xpose.msra.mxu0 0.0
        %3762 = vmatprep.subr.mxu0 0.0
        %3763 = vmatpush1.xpose.msra.mxu0 0.0
        %3764 = vmatprep.subr.mxu0 0.0
        %3765 = vmatpush1.xpose.msra.mxu0 0.0
        %3766 = vmatprep.subr.mxu0 0.0
        %3767 = vmatpush1.xpose.msra.mxu0 0.0
        %3768 = vmatprep.subr.mxu0 0.0
        %3769 = vmatpush1.xpose.msra.mxu0 0.0
        %3770 = vmatprep.subr.mxu0 0.0
        %3771 = vmatpush1.xpose.msra.mxu0 0.0
        %3772 = vmatprep.subr.mxu0 0.0
        %3773 = vmatpush1.xpose.msra.mxu0 0.0
        %3774 = vmatprep.subr.mxu0 0.0
        %3775 = vmatpush1.xpose.msra.mxu0 0.0
        %3776 = vmatprep.subr.mxu0 0.0
        %3777 = vmatpush1.xpose.msra.mxu0 0.0
        %3778 = vmatprep.subr.mxu0 0.0
        %3779 = vmatpush1.xpose.msra.mxu0 0.0
        %3780 = vmatprep.subr.mxu0 0.0
        %3781 = vmatpush1.xpose.msra.mxu0 0.0
        %3782 = vmatprep.subr.mxu0 0.0
        %3783 = vmatpush1.xpose.msra.mxu0 0.0
        %3784 = vmatprep.subr.mxu0 0.0
        %3785 = vmatpush1.xpose.msra.mxu0 0.0
        %3786 = vmatprep.subr.mxu0 0.0
        %3787 = vmatpush1.xpose.msra.mxu0 0.0
        %3788 = vmatprep.subr.mxu0 0.0
        %3789 = vmatpush1.xpose.msra.mxu0 0.0
        %3790 = vmatprep.subr.mxu0 0.0
        %3791 = vmatpush1.xpose.msra.mxu0 0.0
        %3792 = vmatprep.subr.mxu0 0.0
        %3793 = vmatpush1.xpose.msra.mxu0 0.0
        %3794 = vmatprep.subr.mxu0 0.0
        %3795 = vmatpush1.xpose.msra.mxu0 0.0
        %3796 = vmatprep.mubr.f32.mxu0 0.0
        %3797 = vmatmul.mubr.f32.gmra.mrb[0].mxu0 %v3728
        %v3798 = vpop.f32.mrb[0].mxu0
        %v3799 = vadd.f32 0.0, %v3798
        %v3800 = vpop.f32.mrb[0].mxu0
        %3801 = vdwg.mxu0
        %3802 = vrot.lane.b32.xlu0 %v693, 112
        %v3803 = vpop.permute.xlu0 %3802
        %3804 = vrot.lane.b32.xlu0 %v693, 80
        %v3805 = vpop.permute.xlu0 %3804
        %v3806 = vsel %vm704, %v3803, 0
        %v3808 = vsel %vm704, %v3805, 0
        %3810 = vmatprep.subr.mxu0 0.0
        %3811 = vmatpush1.xpose.msra.mxu0 %v3808
        %3812 = vmatprep.subr.mxu0 0.0
        %3813 = vmatpush1.xpose.msra.mxu0 0.0
        %3814 = vmatprep.subr.mxu0 0.0
        %3815 = vmatpush1.xpose.msra.mxu0 0.0
        %3816 = vmatprep.subr.mxu0 0.0
        %3817 = vmatpush1.xpose.msra.mxu0 0.0
        %3818 = vmatprep.subr.mxu0 0.0
        %3819 = vmatpush1.xpose.msra.mxu0 0.0
        %3820 = vmatprep.subr.mxu0 0.0
        %3821 = vmatpush1.xpose.msra.mxu0 0.0
        %3822 = vmatprep.subr.mxu0 0.0
        %3823 = vmatpush1.xpose.msra.mxu0 0.0
        %3824 = vmatprep.subr.mxu0 0.0
        %3825 = vmatpush1.xpose.msra.mxu0 0.0
        %3826 = vmatprep.subr.mxu0 0.0
        %3827 = vmatpush1.xpose.msra.mxu0 0.0
        %3828 = vmatprep.subr.mxu0 0.0
        %3829 = vmatpush1.xpose.msra.mxu0 0.0
        %3830 = vmatprep.subr.mxu0 0.0
        %3831 = vmatpush1.xpose.msra.mxu0 0.0
        %3832 = vmatprep.subr.mxu0 0.0
        %3833 = vmatpush1.xpose.msra.mxu0 0.0
        %3834 = vmatprep.subr.mxu0 0.0
        %3835 = vmatpush1.xpose.msra.mxu0 0.0
        %3836 = vmatprep.subr.mxu0 0.0
        %3837 = vmatpush1.xpose.msra.mxu0 0.0
        %3838 = vmatprep.subr.mxu0 0.0
        %3839 = vmatpush1.xpose.msra.mxu0 0.0
        %3840 = vmatprep.subr.mxu0 0.0
        %3841 = vmatpush1.xpose.msra.mxu0 0.0
        %3842 = vmatprep.subr.mxu0 0.0
        %3843 = vmatpush1.xpose.msra.mxu0 0.0
        %3844 = vmatprep.subr.mxu0 0.0
        %3845 = vmatpush1.xpose.msra.mxu0 0.0
        %3846 = vmatprep.subr.mxu0 0.0
        %3847 = vmatpush1.xpose.msra.mxu0 0.0
        %3848 = vmatprep.subr.mxu0 0.0
        %3849 = vmatpush1.xpose.msra.mxu0 0.0
        %3850 = vmatprep.subr.mxu0 0.0
        %3851 = vmatpush1.xpose.msra.mxu0 0.0
        %3852 = vmatprep.subr.mxu0 0.0
        %3853 = vmatpush1.xpose.msra.mxu0 0.0
        %3854 = vmatprep.subr.mxu0 0.0
        %3855 = vmatpush1.xpose.msra.mxu0 0.0
        %3856 = vmatprep.subr.mxu0 0.0
        %3857 = vmatpush1.xpose.msra.mxu0 0.0
        %3858 = vmatprep.subr.mxu0 0.0
        %3859 = vmatpush1.xpose.msra.mxu0 0.0
        %3860 = vmatprep.subr.mxu0 0.0
        %3861 = vmatpush1.xpose.msra.mxu0 0.0
        %3862 = vmatprep.subr.mxu0 0.0
        %3863 = vmatpush1.xpose.msra.mxu0 0.0
        %3864 = vmatprep.subr.mxu0 0.0
        %3865 = vmatpush1.xpose.msra.mxu0 0.0
        %3866 = vmatprep.subr.mxu0 0.0
        %3867 = vmatpush1.xpose.msra.mxu0 0.0
        %3868 = vmatprep.subr.mxu0 0.0
        %3869 = vmatpush1.xpose.msra.mxu0 0.0
        %3870 = vmatprep.subr.mxu0 0.0
        %3871 = vmatpush1.xpose.msra.mxu0 0.0
        %3872 = vmatprep.subr.mxu0 0.0
        %3873 = vmatpush1.xpose.msra.mxu0 0.0
        %3874 = vmatprep.mubr.f32.mxu0 0.0
        %3875 = vmatmul.mubr.f32.gmra.mrb[0].mxu0 %v3806
        %v3876 = vpop.f32.mrb[0].mxu0
        %v3877 = vadd.f32 0.0, %v3876
        %v3878 = vpop.f32.mrb[0].mxu0
        %3879 = vdwg.mxu0
        %3880 = vrot.lane.b32.xlu0 %v698, 112
        %v3881 = vpop.permute.xlu0 %3880
        %3882 = vrot.lane.b32.xlu0 %v698, 80
        %v3883 = vpop.permute.xlu0 %3882
        %v3884 = vsel %vm704, %v3881, 0
        %v3886 = vsel %vm704, %v3883, 0
        %3888 = vmatprep.subr.mxu0 0.0
        %3889 = vmatpush1.xpose.msra.mxu0 %v3886
        %3890 = vmatprep.subr.mxu0 0.0
        %3891 = vmatpush1.xpose.msra.mxu0 0.0
        %3892 = vmatprep.subr.mxu0 0.0
        %3893 = vmatpush1.xpose.msra.mxu0 0.0
        %3894 = vmatprep.subr.mxu0 0.0
        %3895 = vmatpush1.xpose.msra.mxu0 0.0
        %3896 = vmatprep.subr.mxu0 0.0
        %3897 = vmatpush1.xpose.msra.mxu0 0.0
        %3898 = vmatprep.subr.mxu0 0.0
        %3899 = vmatpush1.xpose.msra.mxu0 0.0
        %3900 = vmatprep.subr.mxu0 0.0
        %3901 = vmatpush1.xpose.msra.mxu0 0.0
        %3902 = vmatprep.subr.mxu0 0.0
        %3903 = vmatpush1.xpose.msra.mxu0 0.0
        %3904 = vmatprep.subr.mxu0 0.0
        %3905 = vmatpush1.xpose.msra.mxu0 0.0
        %3906 = vmatprep.subr.mxu0 0.0
        %3907 = vmatpush1.xpose.msra.mxu0 0.0
        %3908 = vmatprep.subr.mxu0 0.0
        %3909 = vmatpush1.xpose.msra.mxu0 0.0
        %3910 = vmatprep.subr.mxu0 0.0
        %3911 = vmatpush1.xpose.msra.mxu0 0.0
        %3912 = vmatprep.subr.mxu0 0.0
        %3913 = vmatpush1.xpose.msra.mxu0 0.0
        %3914 = vmatprep.subr.mxu0 0.0
        %3915 = vmatpush1.xpose.msra.mxu0 0.0
        %3916 = vmatprep.subr.mxu0 0.0
        %3917 = vmatpush1.xpose.msra.mxu0 0.0
        %3918 = vmatprep.subr.mxu0 0.0
        %3919 = vmatpush1.xpose.msra.mxu0 0.0
        %3920 = vmatprep.subr.mxu0 0.0
        %3921 = vmatpush1.xpose.msra.mxu0 0.0
        %3922 = vmatprep.subr.mxu0 0.0
        %3923 = vmatpush1.xpose.msra.mxu0 0.0
        %3924 = vmatprep.subr.mxu0 0.0
        %3925 = vmatpush1.xpose.msra.mxu0 0.0
        %3926 = vmatprep.subr.mxu0 0.0
        %3927 = vmatpush1.xpose.msra.mxu0 0.0
        %3928 = vmatprep.subr.mxu0 0.0
        %3929 = vmatpush1.xpose.msra.mxu0 0.0
        %3930 = vmatprep.subr.mxu0 0.0
        %3931 = vmatpush1.xpose.msra.mxu0 0.0
        %3932 = vmatprep.subr.mxu0 0.0
        %3933 = vmatpush1.xpose.msra.mxu0 0.0
        %3934 = vmatprep.subr.mxu0 0.0
        %3935 = vmatpush1.xpose.msra.mxu0 0.0
        %3936 = vmatprep.subr.mxu0 0.0
        %3937 = vmatpush1.xpose.msra.mxu0 0.0
        %3938 = vmatprep.subr.mxu0 0.0
        %3939 = vmatpush1.xpose.msra.mxu0 0.0
        %3940 = vmatprep.subr.mxu0 0.0
        %3941 = vmatpush1.xpose.msra.mxu0 0.0
        %3942 = vmatprep.subr.mxu0 0.0
        %3943 = vmatpush1.xpose.msra.mxu0 0.0
        %3944 = vmatprep.subr.mxu0 0.0
        %3945 = vmatpush1.xpose.msra.mxu0 0.0
        %3946 = vmatprep.subr.mxu0 0.0
        %3947 = vmatpush1.xpose.msra.mxu0 0.0
        %3948 = vmatprep.subr.mxu0 0.0
        %3949 = vmatpush1.xpose.msra.mxu0 0.0
        %3950 = vmatprep.subr.mxu0 0.0
        %3951 = vmatpush1.xpose.msra.mxu0 0.0
        %3952 = vmatprep.mubr.f32.mxu0 0.0
        %3953 = vmatmul.mubr.f32.gmra.mrb[0].mxu0 %v3884
        %v3954 = vpop.f32.mrb[0].mxu0
        %v3955 = vadd.f32 0.0, %v3954
        %v3956 = vpop.f32.mrb[0].mxu0
        %3957 = vdwg.mxu0
        %v3958 = vsel %vm704, %v3409, -inf
        %3959 = vmax.xlane.f32.xlu0 %v3958
        %v3960 = vpop.xlane.xlu0 %3959
        %v3961 = vsel %vm704, %v3487, -inf
        %3962 = vmax.xlane.f32.xlu0 %v3961
        %v3963 = vpop.xlane.xlu0 %3962
        %v3964 = vsel %vm704, %v3565, -inf
        %3965 = vmax.xlane.f32.xlu0 %v3964
        %v3966 = vpop.xlane.xlu0 %3965
        %v3967 = vsel %vm704, %v3643, -inf
        %3968 = vmax.xlane.f32.xlu0 %v3967
        %v3969 = vpop.xlane.xlu0 %3968
        %v3970 = vsel %vm704, %v3721, -inf
        %3971 = vmax.xlane.f32.xlu0 %v3970
        %v3972 = vpop.xlane.xlu0 %3971
        %v3973 = vsel %vm704, %v3799, -inf
        %3974 = vmax.xlane.f32.xlu0 %v3973
        %v3975 = vpop.xlane.xlu0 %3974
        %v3976 = vsel %vm704, %v3877, -inf
        %3977 = vmax.xlane.f32.xlu0 %v3976
        %v3978 = vpop.xlane.xlu0 %3977
        %v3979 = vsel %vm704, %v3955, -inf
        %3980 = vmax.xlane.f32.xlu0 %v3979
        %v3981 = vpop.xlane.xlu0 %3980
        %v3982 = vsub.f32 %v3409, %v3960
        %v3983 = vsub.f32 %v3487, %v3963
        %v3984 = vsub.f32 %v3565, %v3966
        %v3985 = vsub.f32 %v3643, %v3969
        %v3986 = vsub.f32 %v3721, %v3972
        %v3987 = vsub.f32 %v3799, %v3975
        %v3988 = vsub.f32 %v3877, %v3978
        %v3989 = vsub.f32 %v3955, %v3981
        %v3990 = vmul.f32 %v3982, 1.442695
        %v3991 = vpow.pop %v3990
        %v3992 = vmul.f32 %v3983, 1.442695
        %v3993 = vpow.pop %v3992
        %v3994 = vmul.f32 %v3984, 1.442695
        %v3995 = vpow.pop %v3994
        %v3996 = vmul.f32 %v3985, 1.442695
        %v3997 = vpow.pop %v3996
        %v3998 = vmul.f32 %v3986, 1.442695
        %v3999 = vpow.pop %v3998
        %v4000 = vmul.f32 %v3987, 1.442695
        %v4001 = vpow.pop %v4000
        %v4002 = vmul.f32 %v3988, 1.442695
        %v4003 = vpow.pop %v4002
        %v4004 = vmul.f32 %v3989, 1.442695
        %v4005 = vpow.pop %v4004
        %v4006 = vsel %vm704, %v3991, 0.0
        %4007 = vadd.xlane.f32.xlu0 %v4006
        %v4008 = vpop.xlane.xlu0 %4007
        %v4009 = vsel %vm704, %v3993, 0.0
        %4010 = vadd.xlane.f32.xlu0 %v4009
        %v4011 = vpop.xlane.xlu0 %4010
        %v4012 = vsel %vm704, %v3995, 0.0
        %4013 = vadd.xlane.f32.xlu0 %v4012
        %v4014 = vpop.xlane.xlu0 %4013
        %v4015 = vsel %vm704, %v3997, 0.0
        %4016 = vadd.xlane.f32.xlu0 %v4015
        %v4017 = vpop.xlane.xlu0 %4016
        %v4018 = vsel %vm704, %v3999, 0.0
        %4019 = vadd.xlane.f32.xlu0 %v4018
        %v4020 = vpop.xlane.xlu0 %4019
        %v4021 = vsel %vm704, %v4001, 0.0
        %4022 = vadd.xlane.f32.xlu0 %v4021
        %v4023 = vpop.xlane.xlu0 %4022
        %v4024 = vsel %vm704, %v4003, 0.0
        %4025 = vadd.xlane.f32.xlu0 %v4024
        %v4026 = vpop.xlane.xlu0 %4025
        %v4027 = vsel %vm704, %v4005, 0.0
        %4028 = vadd.xlane.f32.xlu0 %v4027
        %v4029 = vpop.xlane.xlu0 %4028
        %v4030 = vrcp.pop %v4008
        %v4031 = vrcp.pop %v4011
        %v4032 = vrcp.pop %v4014
        %v4033 = vrcp.pop %v4017
        %v4034 = vrcp.pop %v4020
        %v4035 = vrcp.pop %v4023
        %v4036 = vrcp.pop %v4026
        %v4037 = vrcp.pop %v4029
        %v4038 = vmul.f32 %v3991, %v4030
        %v4039 = vmul.f32 %v3993, %v4031
        %v4040 = vmul.f32 %v3995, %v4032
        %v4041 = vmul.f32 %v3997, %v4033
        %v4042 = vmul.f32 %v3999, %v4034
        %v4043 = vmul.f32 %v4001, %v4035
        %v4044 = vmul.f32 %v4003, %v4036
        %v4045 = vmul.f32 %v4005, %v4037
        %4046 = vrot.lane.b32.xlu0 %v663, 48
        %v4047 = vpop.permute.xlu0 %4046
        %v4050 = vsel %vm704, %v4038, 0
        %4052 = vmatprep.subr.mxu0 0.0
        %4053 = vmatpush1.msra.mxu0 %v4047
        %4054 = vmatprep.subr.mxu0 0.0
        %4055 = vmatpush1.msra.mxu0 0.0
        %4056 = vmatprep.subr.mxu0 0.0
        %4057 = vmatpush1.msra.mxu0 0.0
        %4058 = vmatprep.subr.mxu0 0.0
        %4059 = vmatpush1.msra.mxu0 0.0
        %4060 = vmatprep.subr.mxu0 0.0
        %4061 = vmatpush1.msra.mxu0 0.0
        %4062 = vmatprep.subr.mxu0 0.0
        %4063 = vmatpush1.msra.mxu0 0.0
        %4064 = vmatprep.subr.mxu0 0.0
        %4065 = vmatpush1.msra.mxu0 0.0
        %4066 = vmatprep.subr.mxu0 0.0
        %4067 = vmatpush1.msra.mxu0 0.0
        %4068 = vmatprep.subr.mxu0 0.0
        %4069 = vmatpush1.msra.mxu0 0.0
        %4070 = vmatprep.subr.mxu0 0.0
        %4071 = vmatpush1.msra.mxu0 0.0
        %4072 = vmatprep.subr.mxu0 0.0
        %4073 = vmatpush1.msra.mxu0 0.0
        %4074 = vmatprep.subr.mxu0 0.0
        %4075 = vmatpush1.msra.mxu0 0.0
        %4076 = vmatprep.subr.mxu0 0.0
        %4077 = vmatpush1.msra.mxu0 0.0
        %4078 = vmatprep.subr.mxu0 0.0
        %4079 = vmatpush1.msra.mxu0 0.0
        %4080 = vmatprep.subr.mxu0 0.0
        %4081 = vmatpush1.msra.mxu0 0.0
        %4082 = vmatprep.subr.mxu0 0.0
        %4083 = vmatpush1.msra.mxu0 0.0
        %4084 = vmatprep.subr.mxu0 0.0
        %4085 = vmatpush1.msra.mxu0 0.0
        %4086 = vmatprep.subr.mxu0 0.0
        %4087 = vmatpush1.msra.mxu0 0.0
        %4088 = vmatprep.subr.mxu0 0.0
        %4089 = vmatpush1.msra.mxu0 0.0
        %4090 = vmatprep.subr.mxu0 0.0
        %4091 = vmatpush1.msra.mxu0 0.0
        %4092 = vmatprep.subr.mxu0 0.0
        %4093 = vmatpush1.msra.mxu0 0.0
        %4094 = vmatprep.subr.mxu0 0.0
        %4095 = vmatpush1.msra.mxu0 0.0
        %4096 = vmatprep.subr.mxu0 0.0
        %4097 = vmatpush1.msra.mxu0 0.0
        %4098 = vmatprep.subr.mxu0 0.0
        %4099 = vmatpush1.msra.mxu0 0.0
        %4100 = vmatprep.subr.mxu0 0.0
        %4101 = vmatpush1.msra.mxu0 0.0
        %4102 = vmatprep.subr.mxu0 0.0
        %4103 = vmatpush1.msra.mxu0 0.0
        %4104 = vmatprep.subr.mxu0 0.0
        %4105 = vmatpush1.msra.mxu0 0.0
        %4106 = vmatprep.subr.mxu0 0.0
        %4107 = vmatpush1.msra.mxu0 0.0
        %4108 = vmatprep.subr.mxu0 0.0
        %4109 = vmatpush1.msra.mxu0 0.0
        %4110 = vmatprep.subr.mxu0 0.0
        %4111 = vmatpush1.msra.mxu0 0.0
        %4112 = vmatprep.subr.mxu0 0.0
        %4113 = vmatpush1.msra.mxu0 0.0
        %4114 = vmatprep.subr.mxu0 0.0
        %4115 = vmatpush1.msra.mxu0 0.0
        %4116 = vmatprep.mubr.f32.mxu0 0.0
        %4117 = vmatmul.mubr.f32.gmra.mrb[0].mxu0 %v4050
        %v4118 = vpop.f32.mrb[0].mxu0
        %v4119 = vadd.f32 0.0, %v4118
        %v4120 = vpop.f32.mrb[0].mxu0
        %4121 = vdwg.mxu0
        %4122 = vrot.lane.b32.xlu0 %v668, 48
        %v4123 = vpop.permute.xlu0 %4122
        %v4126 = vsel %vm704, %v4039, 0
        %4128 = vmatprep.subr.mxu0 0.0
        %4129 = vmatpush1.msra.mxu0 %v4123
        %4130 = vmatprep.subr.mxu0 0.0
        %4131 = vmatpush1.msra.mxu0 0.0
        %4132 = vmatprep.subr.mxu0 0.0
        %4133 = vmatpush1.msra.mxu0 0.0
        %4134 = vmatprep.subr.mxu0 0.0
        %4135 = vmatpush1.msra.mxu0 0.0
        %4136 = vmatprep.subr.mxu0 0.0
        %4137 = vmatpush1.msra.mxu0 0.0
        %4138 = vmatprep.subr.mxu0 0.0
        %4139 = vmatpush1.msra.mxu0 0.0
        %4140 = vmatprep.subr.mxu0 0.0
        %4141 = vmatpush1.msra.mxu0 0.0
        %4142 = vmatprep.subr.mxu0 0.0
        %4143 = vmatpush1.msra.mxu0 0.0
        %4144 = vmatprep.subr.mxu0 0.0
        %4145 = vmatpush1.msra.mxu0 0.0
        %4146 = vmatprep.subr.mxu0 0.0
        %4147 = vmatpush1.msra.mxu0 0.0
        %4148 = vmatprep.subr.mxu0 0.0
        %4149 = vmatpush1.msra.mxu0 0.0
        %4150 = vmatprep.subr.mxu0 0.0
        %4151 = vmatpush1.msra.mxu0 0.0
        %4152 = vmatprep.subr.mxu0 0.0
        %4153 = vmatpush1.msra.mxu0 0.0
        %4154 = vmatprep.subr.mxu0 0.0
        %4155 = vmatpush1.msra.mxu0 0.0
        %4156 = vmatprep.subr.mxu0 0.0
        %4157 = vmatpush1.msra.mxu0 0.0
        %4158 = vmatprep.subr.mxu0 0.0
        %4159 = vmatpush1.msra.mxu0 0.0
        %4160 = vmatprep.subr.mxu0 0.0
        %4161 = vmatpush1.msra.mxu0 0.0
        %4162 = vmatprep.subr.mxu0 0.0
        %4163 = vmatpush1.msra.mxu0 0.0
        %4164 = vmatprep.subr.mxu0 0.0
        %4165 = vmatpush1.msra.mxu0 0.0
        %4166 = vmatprep.subr.mxu0 0.0
        %4167 = vmatpush1.msra.mxu0 0.0
        %4168 = vmatprep.subr.mxu0 0.0
        %4169 = vmatpush1.msra.mxu0 0.0
        %4170 = vmatprep.subr.mxu0 0.0
        %4171 = vmatpush1.msra.mxu0 0.0
        %4172 = vmatprep.subr.mxu0 0.0
        %4173 = vmatpush1.msra.mxu0 0.0
        %4174 = vmatprep.subr.mxu0 0.0
        %4175 = vmatpush1.msra.mxu0 0.0
        %4176 = vmatprep.subr.mxu0 0.0
        %4177 = vmatpush1.msra.mxu0 0.0
        %4178 = vmatprep.subr.mxu0 0.0
        %4179 = vmatpush1.msra.mxu0 0.0
        %4180 = vmatprep.subr.mxu0 0.0
        %4181 = vmatpush1.msra.mxu0 0.0
        %4182 = vmatprep.subr.mxu0 0.0
        %4183 = vmatpush1.msra.mxu0 0.0
        %4184 = vmatprep.subr.mxu0 0.0
        %4185 = vmatpush1.msra.mxu0 0.0
        %4186 = vmatprep.subr.mxu0 0.0
        %4187 = vmatpush1.msra.mxu0 0.0
        %4188 = vmatprep.subr.mxu0 0.0
        %4189 = vmatpush1.msra.mxu0 0.0
        %4190 = vmatprep.subr.mxu0 0.0
        %4191 = vmatpush1.msra.mxu0 0.0
        %4192 = vmatprep.mubr.f32.mxu0 0.0
        %4193 = vmatmul.mubr.f32.gmra.mrb[0].mxu0 %v4126
        %v4194 = vpop.f32.mrb[0].mxu0
        %v4195 = vadd.f32 0.0, %v4194
        %v4196 = vpop.f32.mrb[0].mxu0
        %4197 = vdwg.mxu0
        %4198 = vrot.lane.b32.xlu0 %v673, 48
        %v4199 = vpop.permute.xlu0 %4198
        %v4202 = vsel %vm704, %v4040, 0
        %4204 = vmatprep.subr.mxu0 0.0
        %4205 = vmatpush1.msra.mxu0 %v4199
        %4206 = vmatprep.subr.mxu0 0.0
        %4207 = vmatpush1.msra.mxu0 0.0
        %4208 = vmatprep.subr.mxu0 0.0
        %4209 = vmatpush1.msra.mxu0 0.0
        %4210 = vmatprep.subr.mxu0 0.0
        %4211 = vmatpush1.msra.mxu0 0.0
        %4212 = vmatprep.subr.mxu0 0.0
        %4213 = vmatpush1.msra.mxu0 0.0
        %4214 = vmatprep.subr.mxu0 0.0
        %4215 = vmatpush1.msra.mxu0 0.0
        %4216 = vmatprep.subr.mxu0 0.0
        %4217 = vmatpush1.msra.mxu0 0.0
        %4218 = vmatprep.subr.mxu0 0.0
        %4219 = vmatpush1.msra.mxu0 0.0
        %4220 = vmatprep.subr.mxu0 0.0
        %4221 = vmatpush1.msra.mxu0 0.0
        %4222 = vmatprep.subr.mxu0 0.0
        %4223 = vmatpush1.msra.mxu0 0.0
        %4224 = vmatprep.subr.mxu0 0.0
        %4225 = vmatpush1.msra.mxu0 0.0
        %4226 = vmatprep.subr.mxu0 0.0
        %4227 = vmatpush1.msra.mxu0 0.0
        %4228 = vmatprep.subr.mxu0 0.0
        %4229 = vmatpush1.msra.mxu0 0.0
        %4230 = vmatprep.subr.mxu0 0.0
        %4231 = vmatpush1.msra.mxu0 0.0
        %4232 = vmatprep.subr.mxu0 0.0
        %4233 = vmatpush1.msra.mxu0 0.0
        %4234 = vmatprep.subr.mxu0 0.0
        %4235 = vmatpush1.msra.mxu0 0.0
        %4236 = vmatprep.subr.mxu0 0.0
        %4237 = vmatpush1.msra.mxu0 0.0
        %4238 = vmatprep.subr.mxu0 0.0
        %4239 = vmatpush1.msra.mxu0 0.0
        %4240 = vmatprep.subr.mxu0 0.0
        %4241 = vmatpush1.msra.mxu0 0.0
        %4242 = vmatprep.subr.mxu0 0.0
        %4243 = vmatpush1.msra.mxu0 0.0
        %4244 = vmatprep.subr.mxu0 0.0
        %4245 = vmatpush1.msra.mxu0 0.0
        %4246 = vmatprep.subr.mxu0 0.0
        %4247 = vmatpush1.msra.mxu0 0.0
        %4248 = vmatprep.subr.mxu0 0.0
        %4249 = vmatpush1.msra.mxu0 0.0
        %4250 = vmatprep.subr.mxu0 0.0
        %4251 = vmatpush1.msra.mxu0 0.0
        %4252 = vmatprep.subr.mxu0 0.0
        %4253 = vmatpush1.msra.mxu0 0.0
        %4254 = vmatprep.subr.mxu0 0.0
        %4255 = vmatpush1.msra.mxu0 0.0
        %4256 = vmatprep.subr.mxu0 0.0
        %4257 = vmatpush1.msra.mxu0 0.0
        %4258 = vmatprep.subr.mxu0 0.0
        %4259 = vmatpush1.msra.mxu0 0.0
        %4260 = vmatprep.subr.mxu0 0.0
        %4261 = vmatpush1.msra.mxu0 0.0
        %4262 = vmatprep.subr.mxu0 0.0
        %4263 = vmatpush1.msra.mxu0 0.0
        %4264 = vmatprep.subr.mxu0 0.0
        %4265 = vmatpush1.msra.mxu0 0.0
        %4266 = vmatprep.subr.mxu0 0.0
        %4267 = vmatpush1.msra.mxu0 0.0
        %4268 = vmatprep.mubr.f32.mxu0 0.0
        %4269 = vmatmul.mubr.f32.gmra.mrb[0].mxu0 %v4202
        %v4270 = vpop.f32.mrb[0].mxu0
        %v4271 = vadd.f32 0.0, %v4270
        %v4272 = vpop.f32.mrb[0].mxu0
        %4273 = vdwg.mxu0
        %4274 = vrot.lane.b32.xlu0 %v678, 48
        %v4275 = vpop.permute.xlu0 %4274
        %v4278 = vsel %vm704, %v4041, 0
        %4280 = vmatprep.subr.mxu0 0.0
        %4281 = vmatpush1.msra.mxu0 %v4275
        %4282 = vmatprep.subr.mxu0 0.0
        %4283 = vmatpush1.msra.mxu0 0.0
        %4284 = vmatprep.subr.mxu0 0.0
        %4285 = vmatpush1.msra.mxu0 0.0
        %4286 = vmatprep.subr.mxu0 0.0
        %4287 = vmatpush1.msra.mxu0 0.0
        %4288 = vmatprep.subr.mxu0 0.0
        %4289 = vmatpush1.msra.mxu0 0.0
        %4290 = vmatprep.subr.mxu0 0.0
        %4291 = vmatpush1.msra.mxu0 0.0
        %4292 = vmatprep.subr.mxu0 0.0
        %4293 = vmatpush1.msra.mxu0 0.0
        %4294 = vmatprep.subr.mxu0 0.0
        %4295 = vmatpush1.msra.mxu0 0.0
        %4296 = vmatprep.subr.mxu0 0.0
        %4297 = vmatpush1.msra.mxu0 0.0
        %4298 = vmatprep.subr.mxu0 0.0
        %4299 = vmatpush1.msra.mxu0 0.0
        %4300 = vmatprep.subr.mxu0 0.0
        %4301 = vmatpush1.msra.mxu0 0.0
        %4302 = vmatprep.subr.mxu0 0.0
        %4303 = vmatpush1.msra.mxu0 0.0
        %4304 = vmatprep.subr.mxu0 0.0
        %4305 = vmatpush1.msra.mxu0 0.0
        %4306 = vmatprep.subr.mxu0 0.0
        %4307 = vmatpush1.msra.mxu0 0.0
        %4308 = vmatprep.subr.mxu0 0.0
        %4309 = vmatpush1.msra.mxu0 0.0
        %4310 = vmatprep.subr.mxu0 0.0
        %4311 = vmatpush1.msra.mxu0 0.0
        %4312 = vmatprep.subr.mxu0 0.0
        %4313 = vmatpush1.msra.mxu0 0.0
        %4314 = vmatprep.subr.mxu0 0.0
        %4315 = vmatpush1.msra.mxu0 0.0
        %4316 = vmatprep.subr.mxu0 0.0
        %4317 = vmatpush1.msra.mxu0 0.0
        %4318 = vmatprep.subr.mxu0 0.0
        %4319 = vmatpush1.msra.mxu0 0.0
        %4320 = vmatprep.subr.mxu0 0.0
        %4321 = vmatpush1.msra.mxu0 0.0
        %4322 = vmatprep.subr.mxu0 0.0
        %4323 = vmatpush1.msra.mxu0 0.0
        %4324 = vmatprep.subr.mxu0 0.0
        %4325 = vmatpush1.msra.mxu0 0.0
        %4326 = vmatprep.subr.mxu0 0.0
        %4327 = vmatpush1.msra.mxu0 0.0
        %4328 = vmatprep.subr.mxu0 0.0
        %4329 = vmatpush1.msra.mxu0 0.0
        %4330 = vmatprep.subr.mxu0 0.0
        %4331 = vmatpush1.msra.mxu0 0.0
        %4332 = vmatprep.subr.mxu0 0.0
        %4333 = vmatpush1.msra.mxu0 0.0
        %4334 = vmatprep.subr.mxu0 0.0
        %4335 = vmatpush1.msra.mxu0 0.0
        %4336 = vmatprep.subr.mxu0 0.0
        %4337 = vmatpush1.msra.mxu0 0.0
        %4338 = vmatprep.subr.mxu0 0.0
        %4339 = vmatpush1.msra.mxu0 0.0
        %4340 = vmatprep.subr.mxu0 0.0
        %4341 = vmatpush1.msra.mxu0 0.0
        %4342 = vmatprep.subr.mxu0 0.0
        %4343 = vmatpush1.msra.mxu0 0.0
        %4344 = vmatprep.mubr.f32.mxu0 0.0
        %4345 = vmatmul.mubr.f32.gmra.mrb[0].mxu0 %v4278
        %v4346 = vpop.f32.mrb[0].mxu0
        %v4347 = vadd.f32 0.0, %v4346
        %v4348 = vpop.f32.mrb[0].mxu0
        %4349 = vdwg.mxu0
        %4350 = vrot.lane.b32.xlu0 %v683, 48
        %v4351 = vpop.permute.xlu0 %4350
        %v4354 = vsel %vm704, %v4042, 0
        %4356 = vmatprep.subr.mxu0 0.0
        %4357 = vmatpush1.msra.mxu0 %v4351
        %4358 = vmatprep.subr.mxu0 0.0
        %4359 = vmatpush1.msra.mxu0 0.0
        %4360 = vmatprep.subr.mxu0 0.0
        %4361 = vmatpush1.msra.mxu0 0.0
        %4362 = vmatprep.subr.mxu0 0.0
        %4363 = vmatpush1.msra.mxu0 0.0
        %4364 = vmatprep.subr.mxu0 0.0
        %4365 = vmatpush1.msra.mxu0 0.0
        %4366 = vmatprep.subr.mxu0 0.0
        %4367 = vmatpush1.msra.mxu0 0.0
        %4368 = vmatprep.subr.mxu0 0.0
        %4369 = vmatpush1.msra.mxu0 0.0
        %4370 = vmatprep.subr.mxu0 0.0
        %4371 = vmatpush1.msra.mxu0 0.0
        %4372 = vmatprep.subr.mxu0 0.0
        %4373 = vmatpush1.msra.mxu0 0.0
        %4374 = vmatprep.subr.mxu0 0.0
        %4375 = vmatpush1.msra.mxu0 0.0
        %4376 = vmatprep.subr.mxu0 0.0
        %4377 = vmatpush1.msra.mxu0 0.0
        %4378 = vmatprep.subr.mxu0 0.0
        %4379 = vmatpush1.msra.mxu0 0.0
        %4380 = vmatprep.subr.mxu0 0.0
        %4381 = vmatpush1.msra.mxu0 0.0
        %4382 = vmatprep.subr.mxu0 0.0
        %4383 = vmatpush1.msra.mxu0 0.0
        %4384 = vmatprep.subr.mxu0 0.0
        %4385 = vmatpush1.msra.mxu0 0.0
        %4386 = vmatprep.subr.mxu0 0.0
        %4387 = vmatpush1.msra.mxu0 0.0
        %4388 = vmatprep.subr.mxu0 0.0
        %4389 = vmatpush1.msra.mxu0 0.0
        %4390 = vmatprep.subr.mxu0 0.0
        %4391 = vmatpush1.msra.mxu0 0.0
        %4392 = vmatprep.subr.mxu0 0.0
        %4393 = vmatpush1.msra.mxu0 0.0
        %4394 = vmatprep.subr.mxu0 0.0
        %4395 = vmatpush1.msra.mxu0 0.0
        %4396 = vmatprep.subr.mxu0 0.0
        %4397 = vmatpush1.msra.mxu0 0.0
        %4398 = vmatprep.subr.mxu0 0.0
        %4399 = vmatpush1.msra.mxu0 0.0
        %4400 = vmatprep.subr.mxu0 0.0
        %4401 = vmatpush1.msra.mxu0 0.0
        %4402 = vmatprep.subr.mxu0 0.0
        %4403 = vmatpush1.msra.mxu0 0.0
        %4404 = vmatprep.subr.mxu0 0.0
        %4405 = vmatpush1.msra.mxu0 0.0
        %4406 = vmatprep.subr.mxu0 0.0
        %4407 = vmatpush1.msra.mxu0 0.0
        %4408 = vmatprep.subr.mxu0 0.0
        %4409 = vmatpush1.msra.mxu0 0.0
        %4410 = vmatprep.subr.mxu0 0.0
        %4411 = vmatpush1.msra.mxu0 0.0
        %4412 = vmatprep.subr.mxu0 0.0
        %4413 = vmatpush1.msra.mxu0 0.0
        %4414 = vmatprep.subr.mxu0 0.0
        %4415 = vmatpush1.msra.mxu0 0.0
        %4416 = vmatprep.subr.mxu0 0.0
        %4417 = vmatpush1.msra.mxu0 0.0
        %4418 = vmatprep.subr.mxu0 0.0
        %4419 = vmatpush1.msra.mxu0 0.0
        %4420 = vmatprep.mubr.f32.mxu0 0.0
        %4421 = vmatmul.mubr.f32.gmra.mrb[0].mxu0 %v4354
        %v4422 = vpop.f32.mrb[0].mxu0
        %v4423 = vadd.f32 0.0, %v4422
        %v4424 = vpop.f32.mrb[0].mxu0
        %4425 = vdwg.mxu0
        %4426 = vrot.lane.b32.xlu0 %v688, 48
        %v4427 = vpop.permute.xlu0 %4426
        %v4430 = vsel %vm704, %v4043, 0
        %4432 = vmatprep.subr.mxu0 0.0
        %4433 = vmatpush1.msra.mxu0 %v4427
        %4434 = vmatprep.subr.mxu0 0.0
        %4435 = vmatpush1.msra.mxu0 0.0
        %4436 = vmatprep.subr.mxu0 0.0
        %4437 = vmatpush1.msra.mxu0 0.0
        %4438 = vmatprep.subr.mxu0 0.0
        %4439 = vmatpush1.msra.mxu0 0.0
        %4440 = vmatprep.subr.mxu0 0.0
        %4441 = vmatpush1.msra.mxu0 0.0
        %4442 = vmatprep.subr.mxu0 0.0
        %4443 = vmatpush1.msra.mxu0 0.0
        %4444 = vmatprep.subr.mxu0 0.0
        %4445 = vmatpush1.msra.mxu0 0.0
        %4446 = vmatprep.subr.mxu0 0.0
        %4447 = vmatpush1.msra.mxu0 0.0
        %4448 = vmatprep.subr.mxu0 0.0
        %4449 = vmatpush1.msra.mxu0 0.0
        %4450 = vmatprep.subr.mxu0 0.0
        %4451 = vmatpush1.msra.mxu0 0.0
        %4452 = vmatprep.subr.mxu0 0.0
        %4453 = vmatpush1.msra.mxu0 0.0
        %4454 = vmatprep.subr.mxu0 0.0
        %4455 = vmatpush1.msra.mxu0 0.0
        %4456 = vmatprep.subr.mxu0 0.0
        %4457 = vmatpush1.msra.mxu0 0.0
        %4458 = vmatprep.subr.mxu0 0.0
        %4459 = vmatpush1.msra.mxu0 0.0
        %4460 = vmatprep.subr.mxu0 0.0
        %4461 = vmatpush1.msra.mxu0 0.0
        %4462 = vmatprep.subr.mxu0 0.0
        %4463 = vmatpush1.msra.mxu0 0.0
        %4464 = vmatprep.subr.mxu0 0.0
        %4465 = vmatpush1.msra.mxu0 0.0
        %4466 = vmatprep.subr.mxu0 0.0
        %4467 = vmatpush1.msra.mxu0 0.0
        %4468 = vmatprep.subr.mxu0 0.0
        %4469 = vmatpush1.msra.mxu0 0.0
        %4470 = vmatprep.subr.mxu0 0.0
        %4471 = vmatpush1.msra.mxu0 0.0
        %4472 = vmatprep.subr.mxu0 0.0
        %4473 = vmatpush1.msra.mxu0 0.0
        %4474 = vmatprep.subr.mxu0 0.0
        %4475 = vmatpush1.msra.mxu0 0.0
        %4476 = vmatprep.subr.mxu0 0.0
        %4477 = vmatpush1.msra.mxu0 0.0
        %4478 = vmatprep.subr.mxu0 0.0
        %4479 = vmatpush1.msra.mxu0 0.0
        %4480 = vmatprep.subr.mxu0 0.0
        %4481 = vmatpush1.msra.mxu0 0.0
        %4482 = vmatprep.subr.mxu0 0.0
        %4483 = vmatpush1.msra.mxu0 0.0
        %4484 = vmatprep.subr.mxu0 0.0
        %4485 = vmatpush1.msra.mxu0 0.0
        %4486 = vmatprep.subr.mxu0 0.0
        %4487 = vmatpush1.msra.mxu0 0.0
        %4488 = vmatprep.subr.mxu0 0.0
        %4489 = vmatpush1.msra.mxu0 0.0
        %4490 = vmatprep.subr.mxu0 0.0
        %4491 = vmatpush1.msra.mxu0 0.0
        %4492 = vmatprep.subr.mxu0 0.0
        %4493 = vmatpush1.msra.mxu0 0.0
        %4494 = vmatprep.subr.mxu0 0.0
        %4495 = vmatpush1.msra.mxu0 0.0
        %4496 = vmatprep.mubr.f32.mxu0 0.0
        %4497 = vmatmul.mubr.f32.gmra.mrb[0].mxu0 %v4430
        %v4498 = vpop.f32.mrb[0].mxu0
        %v4499 = vadd.f32 0.0, %v4498
        %v4500 = vpop.f32.mrb[0].mxu0
        %4501 = vdwg.mxu0
        %4502 = vrot.lane.b32.xlu0 %v693, 48
        %v4503 = vpop.permute.xlu0 %4502
        %v4506 = vsel %vm704, %v4044, 0
        %4508 = vmatprep.subr.mxu0 0.0
        %4509 = vmatpush1.msra.mxu0 %v4503
        %4510 = vmatprep.subr.mxu0 0.0
        %4511 = vmatpush1.msra.mxu0 0.0
        %4512 = vmatprep.subr.mxu0 0.0
        %4513 = vmatpush1.msra.mxu0 0.0
        %4514 = vmatprep.subr.mxu0 0.0
        %4515 = vmatpush1.msra.mxu0 0.0
        %4516 = vmatprep.subr.mxu0 0.0
        %4517 = vmatpush1.msra.mxu0 0.0
        %4518 = vmatprep.subr.mxu0 0.0
        %4519 = vmatpush1.msra.mxu0 0.0
        %4520 = vmatprep.subr.mxu0 0.0
        %4521 = vmatpush1.msra.mxu0 0.0
        %4522 = vmatprep.subr.mxu0 0.0
        %4523 = vmatpush1.msra.mxu0 0.0
        %4524 = vmatprep.subr.mxu0 0.0
        %4525 = vmatpush1.msra.mxu0 0.0
        %4526 = vmatprep.subr.mxu0 0.0
        %4527 = vmatpush1.msra.mxu0 0.0
        %4528 = vmatprep.subr.mxu0 0.0
        %4529 = vmatpush1.msra.mxu0 0.0
        %4530 = vmatprep.subr.mxu0 0.0
        %4531 = vmatpush1.msra.mxu0 0.0
        %4532 = vmatprep.subr.mxu0 0.0
        %4533 = vmatpush1.msra.mxu0 0.0
        %4534 = vmatprep.subr.mxu0 0.0
        %4535 = vmatpush1.msra.mxu0 0.0
        %4536 = vmatprep.subr.mxu0 0.0
        %4537 = vmatpush1.msra.mxu0 0.0
        %4538 = vmatprep.subr.mxu0 0.0
        %4539 = vmatpush1.msra.mxu0 0.0
        %4540 = vmatprep.subr.mxu0 0.0
        %4541 = vmatpush1.msra.mxu0 0.0
        %4542 = vmatprep.subr.mxu0 0.0
        %4543 = vmatpush1.msra.mxu0 0.0
        %4544 = vmatprep.subr.mxu0 0.0
        %4545 = vmatpush1.msra.mxu0 0.0
        %4546 = vmatprep.subr.mxu0 0.0
        %4547 = vmatpush1.msra.mxu0 0.0
        %4548 = vmatprep.subr.mxu0 0.0
        %4549 = vmatpush1.msra.mxu0 0.0
        %4550 = vmatprep.subr.mxu0 0.0
        %4551 = vmatpush1.msra.mxu0 0.0
        %4552 = vmatprep.subr.mxu0 0.0
        %4553 = vmatpush1.msra.mxu0 0.0
        %4554 = vmatprep.subr.mxu0 0.0
        %4555 = vmatpush1.msra.mxu0 0.0
        %4556 = vmatprep.subr.mxu0 0.0
        %4557 = vmatpush1.msra.mxu0 0.0
        %4558 = vmatprep.subr.mxu0 0.0
        %4559 = vmatpush1.msra.mxu0 0.0
        %4560 = vmatprep.subr.mxu0 0.0
        %4561 = vmatpush1.msra.mxu0 0.0
        %4562 = vmatprep.subr.mxu0 0.0
        %4563 = vmatpush1.msra.mxu0 0.0
        %4564 = vmatprep.subr.mxu0 0.0
        %4565 = vmatpush1.msra.mxu0 0.0
        %4566 = vmatprep.subr.mxu0 0.0
        %4567 = vmatpush1.msra.mxu0 0.0
        %4568 = vmatprep.subr.mxu0 0.0
        %4569 = vmatpush1.msra.mxu0 0.0
        %4570 = vmatprep.subr.mxu0 0.0
        %4571 = vmatpush1.msra.mxu0 0.0
        %4572 = vmatprep.mubr.f32.mxu0 0.0
        %4573 = vmatmul.mubr.f32.gmra.mrb[0].mxu0 %v4506
        %v4574 = vpop.f32.mrb[0].mxu0
        %v4575 = vadd.f32 0.0, %v4574
        %v4576 = vpop.f32.mrb[0].mxu0
        %4577 = vdwg.mxu0
        %4578 = vrot.lane.b32.xlu0 %v698, 48
        %v4579 = vpop.permute.xlu0 %4578
        %v4582 = vsel %vm704, %v4045, 0
        %4584 = vmatprep.subr.mxu0 0.0
        %4585 = vmatpush1.msra.mxu0 %v4579
        %4586 = vmatprep.subr.mxu0 0.0
        %4587 = vmatpush1.msra.mxu0 0.0
        %4588 = vmatprep.subr.mxu0 0.0
        %4589 = vmatpush1.msra.mxu0 0.0
        %4590 = vmatprep.subr.mxu0 0.0
        %4591 = vmatpush1.msra.mxu0 0.0
        %4592 = vmatprep.subr.mxu0 0.0
        %4593 = vmatpush1.msra.mxu0 0.0
        %4594 = vmatprep.subr.mxu0 0.0
        %4595 = vmatpush1.msra.mxu0 0.0
        %4596 = vmatprep.subr.mxu0 0.0
        %4597 = vmatpush1.msra.mxu0 0.0
        %4598 = vmatprep.subr.mxu0 0.0
        %4599 = vmatpush1.msra.mxu0 0.0
        %4600 = vmatprep.subr.mxu0 0.0
        %4601 = vmatpush1.msra.mxu0 0.0
        %4602 = vmatprep.subr.mxu0 0.0
        %4603 = vmatpush1.msra.mxu0 0.0
        %4604 = vmatprep.subr.mxu0 0.0
        %4605 = vmatpush1.msra.mxu0 0.0
        %4606 = vmatprep.subr.mxu0 0.0
        %4607 = vmatpush1.msra.mxu0 0.0
        %4608 = vmatprep.subr.mxu0 0.0
        %4609 = vmatpush1.msra.mxu0 0.0
        %4610 = vmatprep.subr.mxu0 0.0
        %4611 = vmatpush1.msra.mxu0 0.0
        %4612 = vmatprep.subr.mxu0 0.0
        %4613 = vmatpush1.msra.mxu0 0.0
        %4614 = vmatprep.subr.mxu0 0.0
        %4615 = vmatpush1.msra.mxu0 0.0
        %4616 = vmatprep.subr.mxu0 0.0
        %4617 = vmatpush1.msra.mxu0 0.0
        %4618 = vmatprep.subr.mxu0 0.0
        %4619 = vmatpush1.msra.mxu0 0.0
        %4620 = vmatprep.subr.mxu0 0.0
        %4621 = vmatpush1.msra.mxu0 0.0
        %4622 = vmatprep.subr.mxu0 0.0
        %4623 = vmatpush1.msra.mxu0 0.0
        %4624 = vmatprep.subr.mxu0 0.0
        %4625 = vmatpush1.msra.mxu0 0.0
        %4626 = vmatprep.subr.mxu0 0.0
        %4627 = vmatpush1.msra.mxu0 0.0
        %4628 = vmatprep.subr.mxu0 0.0
        %4629 = vmatpush1.msra.mxu0 0.0
        %4630 = vmatprep.subr.mxu0 0.0
        %4631 = vmatpush1.msra.mxu0 0.0
        %4632 = vmatprep.subr.mxu0 0.0
        %4633 = vmatpush1.msra.mxu0 0.0
        %4634 = vmatprep.subr.mxu0 0.0
        %4635 = vmatpush1.msra.mxu0 0.0
        %4636 = vmatprep.subr.mxu0 0.0
        %4637 = vmatpush1.msra.mxu0 0.0
        %4638 = vmatprep.subr.mxu0 0.0
        %4639 = vmatpush1.msra.mxu0 0.0
        %4640 = vmatprep.subr.mxu0 0.0
        %4641 = vmatpush1.msra.mxu0 0.0
        %4642 = vmatprep.subr.mxu0 0.0
        %4643 = vmatpush1.msra.mxu0 0.0
        %4644 = vmatprep.subr.mxu0 0.0
        %4645 = vmatpush1.msra.mxu0 0.0
        %4646 = vmatprep.subr.mxu0 0.0
        %4647 = vmatpush1.msra.mxu0 0.0
        %4648 = vmatprep.mubr.f32.mxu0 0.0
        %4649 = vmatmul.mubr.f32.gmra.mrb[0].mxu0 %v4582
        %v4650 = vpop.f32.mrb[0].mxu0
        %v4651 = vadd.f32 0.0, %v4650
        %v4652 = vpop.f32.mrb[0].mxu0
        %4653 = vdwg.mxu0
        %4654 = vrot.lane.b32.xlu0 %v663, 104
        %v4655 = vpop.permute.xlu0 %4654
        %4656 = vrot.lane.b32.xlu0 %v663, 72
        %v4657 = vpop.permute.xlu0 %4656
        %v4658 = vsel %vm704, %v4655, 0
        %v4660 = vsel %vm704, %v4657, 0
        %4662 = vmatprep.subr.mxu0 0.0
        %4663 = vmatpush1.xpose.msra.mxu0 %v4660
        %4664 = vmatprep.subr.mxu0 0.0
        %4665 = vmatpush1.xpose.msra.mxu0 0.0
        %4666 = vmatprep.subr.mxu0 0.0
        %4667 = vmatpush1.xpose.msra.mxu0 0.0
        %4668 = vmatprep.subr.mxu0 0.0
        %4669 = vmatpush1.xpose.msra.mxu0 0.0
        %4670 = vmatprep.subr.mxu0 0.0
        %4671 = vmatpush1.xpose.msra.mxu0 0.0
        %4672 = vmatprep.subr.mxu0 0.0
        %4673 = vmatpush1.xpose.msra.mxu0 0.0
        %4674 = vmatprep.subr.mxu0 0.0
        %4675 = vmatpush1.xpose.msra.mxu0 0.0
        %4676 = vmatprep.subr.mxu0 0.0
        %4677 = vmatpush1.xpose.msra.mxu0 0.0
        %4678 = vmatprep.subr.mxu0 0.0
        %4679 = vmatpush1.xpose.msra.mxu0 0.0
        %4680 = vmatprep.subr.mxu0 0.0
        %4681 = vmatpush1.xpose.msra.mxu0 0.0
        %4682 = vmatprep.subr.mxu0 0.0
        %4683 = vmatpush1.xpose.msra.mxu0 0.0
        %4684 = vmatprep.subr.mxu0 0.0
        %4685 = vmatpush1.xpose.msra.mxu0 0.0
        %4686 = vmatprep.subr.mxu0 0.0
        %4687 = vmatpush1.xpose.msra.mxu0 0.0
        %4688 = vmatprep.subr.mxu0 0.0
        %4689 = vmatpush1.xpose.msra.mxu0 0.0
        %4690 = vmatprep.subr.mxu0 0.0
        %4691 = vmatpush1.xpose.msra.mxu0 0.0
        %4692 = vmatprep.subr.mxu0 0.0
        %4693 = vmatpush1.xpose.msra.mxu0 0.0
        %4694 = vmatprep.subr.mxu0 0.0
        %4695 = vmatpush1.xpose.msra.mxu0 0.0
        %4696 = vmatprep.subr.mxu0 0.0
        %4697 = vmatpush1.xpose.msra.mxu0 0.0
        %4698 = vmatprep.subr.mxu0 0.0
        %4699 = vmatpush1.xpose.msra.mxu0 0.0
        %4700 = vmatprep.subr.mxu0 0.0
        %4701 = vmatpush1.xpose.msra.mxu0 0.0
        %4702 = vmatprep.subr.mxu0 0.0
        %4703 = vmatpush1.xpose.msra.mxu0 0.0
        %4704 = vmatprep.subr.mxu0 0.0
        %4705 = vmatpush1.xpose.msra.mxu0 0.0
        %4706 = vmatprep.subr.mxu0 0.0
        %4707 = vmatpush1.xpose.msra.mxu0 0.0
        %4708 = vmatprep.subr.mxu0 0.0
        %4709 = vmatpush1.xpose.msra.mxu0 0.0
        %4710 = vmatprep.subr.mxu0 0.0
        %4711 = vmatpush1.xpose.msra.mxu0 0.0
        %4712 = vmatprep.subr.mxu0 0.0
        %4713 = vmatpush1.xpose.msra.mxu0 0.0
        %4714 = vmatprep.subr.mxu0 0.0
        %4715 = vmatpush1.xpose.msra.mxu0 0.0
        %4716 = vmatprep.subr.mxu0 0.0
        %4717 = vmatpush1.xpose.msra.mxu0 0.0
        %4718 = vmatprep.subr.mxu0 0.0
        %4719 = vmatpush1.xpose.msra.mxu0 0.0
        %4720 = vmatprep.subr.mxu0 0.0
        %4721 = vmatpush1.xpose.msra.mxu0 0.0
        %4722 = vmatprep.subr.mxu0 0.0
        %4723 = vmatpush1.xpose.msra.mxu0 0.0
        %4724 = vmatprep.subr.mxu0 0.0
        %4725 = vmatpush1.xpose.msra.mxu0 0.0
        %4726 = vmatprep.mubr.f32.mxu0 0.0
        %4727 = vmatmul.mubr.f32.gmra.mrb[0].mxu0 %v4658
        %v4728 = vpop.f32.mrb[0].mxu0
        %v4729 = vadd.f32 0.0, %v4728
        %v4730 = vpop.f32.mrb[0].mxu0
        %4731 = vdwg.mxu0
        %4732 = vrot.lane.b32.xlu0 %v668, 104
        %v4733 = vpop.permute.xlu0 %4732
        %4734 = vrot.lane.b32.xlu0 %v668, 72
        %v4735 = vpop.permute.xlu0 %4734
        %v4736 = vsel %vm704, %v4733, 0
        %v4738 = vsel %vm704, %v4735, 0
        %4740 = vmatprep.subr.mxu0 0.0
        %4741 = vmatpush1.xpose.msra.mxu0 %v4738
        %4742 = vmatprep.subr.mxu0 0.0
        %4743 = vmatpush1.xpose.msra.mxu0 0.0
        %4744 = vmatprep.subr.mxu0 0.0
        %4745 = vmatpush1.xpose.msra.mxu0 0.0
        %4746 = vmatprep.subr.mxu0 0.0
        %4747 = vmatpush1.xpose.msra.mxu0 0.0
        %4748 = vmatprep.subr.mxu0 0.0
        %4749 = vmatpush1.xpose.msra.mxu0 0.0
        %4750 = vmatprep.subr.mxu0 0.0
        %4751 = vmatpush1.xpose.msra.mxu0 0.0
        %4752 = vmatprep.subr.mxu0 0.0
        %4753 = vmatpush1.xpose.msra.mxu0 0.0
        %4754 = vmatprep.subr.mxu0 0.0
        %4755 = vmatpush1.xpose.msra.mxu0 0.0
        %4756 = vmatprep.subr.mxu0 0.0
        %4757 = vmatpush1.xpose.msra.mxu0 0.0
        %4758 = vmatprep.subr.mxu0 0.0
        %4759 = vmatpush1.xpose.msra.mxu0 0.0
        %4760 = vmatprep.subr.mxu0 0.0
        %4761 = vmatpush1.xpose.msra.mxu0 0.0
        %4762 = vmatprep.subr.mxu0 0.0
        %4763 = vmatpush1.xpose.msra.mxu0 0.0
        %4764 = vmatprep.subr.mxu0 0.0
        %4765 = vmatpush1.xpose.msra.mxu0 0.0
        %4766 = vmatprep.subr.mxu0 0.0
        %4767 = vmatpush1.xpose.msra.mxu0 0.0
        %4768 = vmatprep.subr.mxu0 0.0
        %4769 = vmatpush1.xpose.msra.mxu0 0.0
        %4770 = vmatprep.subr.mxu0 0.0
        %4771 = vmatpush1.xpose.msra.mxu0 0.0
        %4772 = vmatprep.subr.mxu0 0.0
        %4773 = vmatpush1.xpose.msra.mxu0 0.0
        %4774 = vmatprep.subr.mxu0 0.0
        %4775 = vmatpush1.xpose.msra.mxu0 0.0
        %4776 = vmatprep.subr.mxu0 0.0
        %4777 = vmatpush1.xpose.msra.mxu0 0.0
        %4778 = vmatprep.subr.mxu0 0.0
        %4779 = vmatpush1.xpose.msra.mxu0 0.0
        %4780 = vmatprep.subr.mxu0 0.0
        %4781 = vmatpush1.xpose.msra.mxu0 0.0
        %4782 = vmatprep.subr.mxu0 0.0
        %4783 = vmatpush1.xpose.msra.mxu0 0.0
        %4784 = vmatprep.subr.mxu0 0.0
        %4785 = vmatpush1.xpose.msra.mxu0 0.0
        %4786 = vmatprep.subr.mxu0 0.0
        %4787 = vmatpush1.xpose.msra.mxu0 0.0
        %4788 = vmatprep.subr.mxu0 0.0
        %4789 = vmatpush1.xpose.msra.mxu0 0.0
        %4790 = vmatprep.subr.mxu0 0.0
        %4791 = vmatpush1.xpose.msra.mxu0 0.0
        %4792 = vmatprep.subr.mxu0 0.0
        %4793 = vmatpush1.xpose.msra.mxu0 0.0
        %4794 = vmatprep.subr.mxu0 0.0
        %4795 = vmatpush1.xpose.msra.mxu0 0.0
        %4796 = vmatprep.subr.mxu0 0.0
        %4797 = vmatpush1.xpose.msra.mxu0 0.0
        %4798 = vmatprep.subr.mxu0 0.0
        %4799 = vmatpush1.xpose.msra.mxu0 0.0
        %4800 = vmatprep.subr.mxu0 0.0
        %4801 = vmatpush1.xpose.msra.mxu0 0.0
        %4802 = vmatprep.subr.mxu0 0.0
        %4803 = vmatpush1.xpose.msra.mxu0 0.0
        %4804 = vmatprep.mubr.f32.mxu0 0.0
        %4805 = vmatmul.mubr.f32.gmra.mrb[0].mxu0 %v4736
        %v4806 = vpop.f32.mrb[0].mxu0
        %v4807 = vadd.f32 0.0, %v4806
        %v4808 = vpop.f32.mrb[0].mxu0
        %4809 = vdwg.mxu0
        %4810 = vrot.lane.b32.xlu0 %v673, 104
        %v4811 = vpop.permute.xlu0 %4810
        %4812 = vrot.lane.b32.xlu0 %v673, 72
        %v4813 = vpop.permute.xlu0 %4812
        %v4814 = vsel %vm704, %v4811, 0
        %v4816 = vsel %vm704, %v4813, 0
        %4818 = vmatprep.subr.mxu0 0.0
        %4819 = vmatpush1.xpose.msra.mxu0 %v4816
        %4820 = vmatprep.subr.mxu0 0.0
        %4821 = vmatpush1.xpose.msra.mxu0 0.0
        %4822 = vmatprep.subr.mxu0 0.0
        %4823 = vmatpush1.xpose.msra.mxu0 0.0
        %4824 = vmatprep.subr.mxu0 0.0
        %4825 = vmatpush1.xpose.msra.mxu0 0.0
        %4826 = vmatprep.subr.mxu0 0.0
        %4827 = vmatpush1.xpose.msra.mxu0 0.0
        %4828 = vmatprep.subr.mxu0 0.0
        %4829 = vmatpush1.xpose.msra.mxu0 0.0
        %4830 = vmatprep.subr.mxu0 0.0
        %4831 = vmatpush1.xpose.msra.mxu0 0.0
        %4832 = vmatprep.subr.mxu0 0.0
        %4833 = vmatpush1.xpose.msra.mxu0 0.0
        %4834 = vmatprep.subr.mxu0 0.0
        %4835 = vmatpush1.xpose.msra.mxu0 0.0
        %4836 = vmatprep.subr.mxu0 0.0
        %4837 = vmatpush1.xpose.msra.mxu0 0.0
        %4838 = vmatprep.subr.mxu0 0.0
        %4839 = vmatpush1.xpose.msra.mxu0 0.0
        %4840 = vmatprep.subr.mxu0 0.0
        %4841 = vmatpush1.xpose.msra.mxu0 0.0
        %4842 = vmatprep.subr.mxu0 0.0
        %4843 = vmatpush1.xpose.msra.mxu0 0.0
        %4844 = vmatprep.subr.mxu0 0.0
        %4845 = vmatpush1.xpose.msra.mxu0 0.0
        %4846 = vmatprep.subr.mxu0 0.0
        %4847 = vmatpush1.xpose.msra.mxu0 0.0
        %4848 = vmatprep.subr.mxu0 0.0
        %4849 = vmatpush1.xpose.msra.mxu0 0.0
        %4850 = vmatprep.subr.mxu0 0.0
        %4851 = vmatpush1.xpose.msra.mxu0 0.0
        %4852 = vmatprep.subr.mxu0 0.0
        %4853 = vmatpush1.xpose.msra.mxu0 0.0
        %4854 = vmatprep.subr.mxu0 0.0
        %4855 = vmatpush1.xpose.msra.mxu0 0.0
        %4856 = vmatprep.subr.mxu0 0.0
        %4857 = vmatpush1.xpose.msra.mxu0 0.0
        %4858 = vmatprep.subr.mxu0 0.0
        %4859 = vmatpush1.xpose.msra.mxu0 0.0
        %4860 = vmatprep.subr.mxu0 0.0
        %4861 = vmatpush1.xpose.msra.mxu0 0.0
        %4862 = vmatprep.subr.mxu0 0.0
        %4863 = vmatpush1.xpose.msra.mxu0 0.0
        %4864 = vmatprep.subr.mxu0 0.0
        %4865 = vmatpush1.xpose.msra.mxu0 0.0
        %4866 = vmatprep.subr.mxu0 0.0
        %4867 = vmatpush1.xpose.msra.mxu0 0.0
        %4868 = vmatprep.subr.mxu0 0.0
        %4869 = vmatpush1.xpose.msra.mxu0 0.0
        %4870 = vmatprep.subr.mxu0 0.0
        %4871 = vmatpush1.xpose.msra.mxu0 0.0
        %4872 = vmatprep.subr.mxu0 0.0
        %4873 = vmatpush1.xpose.msra.mxu0 0.0
        %4874 = vmatprep.subr.mxu0 0.0
        %4875 = vmatpush1.xpose.msra.mxu0 0.0
        %4876 = vmatprep.subr.mxu0 0.0
        %4877 = vmatpush1.xpose.msra.mxu0 0.0
        %4878 = vmatprep.subr.mxu0 0.0
        %4879 = vmatpush1.xpose.msra.mxu0 0.0
        %4880 = vmatprep.subr.mxu0 0.0
        %4881 = vmatpush1.xpose.msra.mxu0 0.0
        %4882 = vmatprep.mubr.f32.mxu0 0.0
        %4883 = vmatmul.mubr.f32.gmra.mrb[0].mxu0 %v4814
        %v4884 = vpop.f32.mrb[0].mxu0
        %v4885 = vadd.f32 0.0, %v4884
        %v4886 = vpop.f32.mrb[0].mxu0
        %4887 = vdwg.mxu0
        %4888 = vrot.lane.b32.xlu0 %v678, 104
        %v4889 = vpop.permute.xlu0 %4888
        %4890 = vrot.lane.b32.xlu0 %v678, 72
        %v4891 = vpop.permute.xlu0 %4890
        %v4892 = vsel %vm704, %v4889, 0
        %v4894 = vsel %vm704, %v4891, 0
        %4896 = vmatprep.subr.mxu0 0.0
        %4897 = vmatpush1.xpose.msra.mxu0 %v4894
        %4898 = vmatprep.subr.mxu0 0.0
        %4899 = vmatpush1.xpose.msra.mxu0 0.0
        %4900 = vmatprep.subr.mxu0 0.0
        %4901 = vmatpush1.xpose.msra.mxu0 0.0
        %4902 = vmatprep.subr.mxu0 0.0
        %4903 = vmatpush1.xpose.msra.mxu0 0.0
        %4904 = vmatprep.subr.mxu0 0.0
        %4905 = vmatpush1.xpose.msra.mxu0 0.0
        %4906 = vmatprep.subr.mxu0 0.0
        %4907 = vmatpush1.xpose.msra.mxu0 0.0
        %4908 = vmatprep.subr.mxu0 0.0
        %4909 = vmatpush1.xpose.msra.mxu0 0.0
        %4910 = vmatprep.subr.mxu0 0.0
        %4911 = vmatpush1.xpose.msra.mxu0 0.0
        %4912 = vmatprep.subr.mxu0 0.0
        %4913 = vmatpush1.xpose.msra.mxu0 0.0
        %4914 = vmatprep.subr.mxu0 0.0
        %4915 = vmatpush1.xpose.msra.mxu0 0.0
        %4916 = vmatprep.subr.mxu0 0.0
        %4917 = vmatpush1.xpose.msra.mxu0 0.0
        %4918 = vmatprep.subr.mxu0 0.0
        %4919 = vmatpush1.xpose.msra.mxu0 0.0
        %4920 = vmatprep.subr.mxu0 0.0
        %4921 = vmatpush1.xpose.msra.mxu0 0.0
        %4922 = vmatprep.subr.mxu0 0.0
        %4923 = vmatpush1.xpose.msra.mxu0 0.0
        %4924 = vmatprep.subr.mxu0 0.0
        %4925 = vmatpush1.xpose.msra.mxu0 0.0
        %4926 = vmatprep.subr.mxu0 0.0
        %4927 = vmatpush1.xpose.msra.mxu0 0.0
        %4928 = vmatprep.subr.mxu0 0.0
        %4929 = vmatpush1.xpose.msra.mxu0 0.0
        %4930 = vmatprep.subr.mxu0 0.0
        %4931 = vmatpush1.xpose.msra.mxu0 0.0
        %4932 = vmatprep.subr.mxu0 0.0
        %4933 = vmatpush1.xpose.msra.mxu0 0.0
        %4934 = vmatprep.subr.mxu0 0.0
        %4935 = vmatpush1.xpose.msra.mxu0 0.0
        %4936 = vmatprep.subr.mxu0 0.0
        %4937 = vmatpush1.xpose.msra.mxu0 0.0
        %4938 = vmatprep.subr.mxu0 0.0
        %4939 = vmatpush1.xpose.msra.mxu0 0.0
        %4940 = vmatprep.subr.mxu0 0.0
        %4941 = vmatpush1.xpose.msra.mxu0 0.0
        %4942 = vmatprep.subr.mxu0 0.0
        %4943 = vmatpush1.xpose.msra.mxu0 0.0
        %4944 = vmatprep.subr.mxu0 0.0
        %4945 = vmatpush1.xpose.msra.mxu0 0.0
        %4946 = vmatprep.subr.mxu0 0.0
        %4947 = vmatpush1.xpose.msra.mxu0 0.0
        %4948 = vmatprep.subr.mxu0 0.0
        %4949 = vmatpush1.xpose.msra.mxu0 0.0
        %4950 = vmatprep.subr.mxu0 0.0
        %4951 = vmatpush1.xpose.msra.mxu0 0.0
        %4952 = vmatprep.subr.mxu0 0.0
        %4953 = vmatpush1.xpose.msra.mxu0 0.0
        %4954 = vmatprep.subr.mxu0 0.0
        %4955 = vmatpush1.xpose.msra.mxu0 0.0
        %4956 = vmatprep.subr.mxu0 0.0
        %4957 = vmatpush1.xpose.msra.mxu0 0.0
        %4958 = vmatprep.subr.mxu0 0.0
        %4959 = vmatpush1.xpose.msra.mxu0 0.0
        %4960 = vmatprep.mubr.f32.mxu0 0.0
        %4961 = vmatmul.mubr.f32.gmra.mrb[0].mxu0 %v4892
        %v4962 = vpop.f32.mrb[0].mxu0
        %v4963 = vadd.f32 0.0, %v4962
        %v4964 = vpop.f32.mrb[0].mxu0
        %4965 = vdwg.mxu0
        %4966 = vrot.lane.b32.xlu0 %v683, 104
        %v4967 = vpop.permute.xlu0 %4966
        %4968 = vrot.lane.b32.xlu0 %v683, 72
        %v4969 = vpop.permute.xlu0 %4968
        %v4970 = vsel %vm704, %v4967, 0
        %v4972 = vsel %vm704, %v4969, 0
        %4974 = vmatprep.subr.mxu0 0.0
        %4975 = vmatpush1.xpose.msra.mxu0 %v4972
        %4976 = vmatprep.subr.mxu0 0.0
        %4977 = vmatpush1.xpose.msra.mxu0 0.0
        %4978 = vmatprep.subr.mxu0 0.0
        %4979 = vmatpush1.xpose.msra.mxu0 0.0
        %4980 = vmatprep.subr.mxu0 0.0
        %4981 = vmatpush1.xpose.msra.mxu0 0.0
        %4982 = vmatprep.subr.mxu0 0.0
        %4983 = vmatpush1.xpose.msra.mxu0 0.0
        %4984 = vmatprep.subr.mxu0 0.0
        %4985 = vmatpush1.xpose.msra.mxu0 0.0
        %4986 = vmatprep.subr.mxu0 0.0
        %4987 = vmatpush1.xpose.msra.mxu0 0.0
        %4988 = vmatprep.subr.mxu0 0.0
        %4989 = vmatpush1.xpose.msra.mxu0 0.0
        %4990 = vmatprep.subr.mxu0 0.0
        %4991 = vmatpush1.xpose.msra.mxu0 0.0
        %4992 = vmatprep.subr.mxu0 0.0
        %4993 = vmatpush1.xpose.msra.mxu0 0.0
        %4994 = vmatprep.subr.mxu0 0.0
        %4995 = vmatpush1.xpose.msra.mxu0 0.0
        %4996 = vmatprep.subr.mxu0 0.0
        %4997 = vmatpush1.xpose.msra.mxu0 0.0
        %4998 = vmatprep.subr.mxu0 0.0
        %4999 = vmatpush1.xpose.msra.mxu0 0.0
        %5000 = vmatprep.subr.mxu0 0.0
        %5001 = vmatpush1.xpose.msra.mxu0 0.0
        %5002 = vmatprep.subr.mxu0 0.0
        %5003 = vmatpush1.xpose.msra.mxu0 0.0
        %5004 = vmatprep.subr.mxu0 0.0
        %5005 = vmatpush1.xpose.msra.mxu0 0.0
        %5006 = vmatprep.subr.mxu0 0.0
        %5007 = vmatpush1.xpose.msra.mxu0 0.0
        %5008 = vmatprep.subr.mxu0 0.0
        %5009 = vmatpush1.xpose.msra.mxu0 0.0
        %5010 = vmatprep.subr.mxu0 0.0
        %5011 = vmatpush1.xpose.msra.mxu0 0.0
        %5012 = vmatprep.subr.mxu0 0.0
        %5013 = vmatpush1.xpose.msra.mxu0 0.0
        %5014 = vmatprep.subr.mxu0 0.0
        %5015 = vmatpush1.xpose.msra.mxu0 0.0
        %5016 = vmatprep.subr.mxu0 0.0
        %5017 = vmatpush1.xpose.msra.mxu0 0.0
        %5018 = vmatprep.subr.mxu0 0.0
        %5019 = vmatpush1.xpose.msra.mxu0 0.0
        %5020 = vmatprep.subr.mxu0 0.0
        %5021 = vmatpush1.xpose.msra.mxu0 0.0
        %5022 = vmatprep.subr.mxu0 0.0
        %5023 = vmatpush1.xpose.msra.mxu0 0.0
        %5024 = vmatprep.subr.mxu0 0.0
        %5025 = vmatpush1.xpose.msra.mxu0 0.0
        %5026 = vmatprep.subr.mxu0 0.0
        %5027 = vmatpush1.xpose.msra.mxu0 0.0
        %5028 = vmatprep.subr.mxu0 0.0
        %5029 = vmatpush1.xpose.msra.mxu0 0.0
        %5030 = vmatprep.subr.mxu0 0.0
        %5031 = vmatpush1.xpose.msra.mxu0 0.0
        %5032 = vmatprep.subr.mxu0 0.0
        %5033 = vmatpush1.xpose.msra.mxu0 0.0
        %5034 = vmatprep.subr.mxu0 0.0
        %5035 = vmatpush1.xpose.msra.mxu0 0.0
        %5036 = vmatprep.subr.mxu0 0.0
        %5037 = vmatpush1.xpose.msra.mxu0 0.0
        %5038 = vmatprep.mubr.f32.mxu0 0.0
        %5039 = vmatmul.mubr.f32.gmra.mrb[0].mxu0 %v4970
        %v5040 = vpop.f32.mrb[0].mxu0
        %v5041 = vadd.f32 0.0, %v5040
        %v5042 = vpop.f32.mrb[0].mxu0
        %5043 = vdwg.mxu0
        %5044 = vrot.lane.b32.xlu0 %v688, 104
        %v5045 = vpop.permute.xlu0 %5044
        %5046 = vrot.lane.b32.xlu0 %v688, 72
        %v5047 = vpop.permute.xlu0 %5046
        %v5048 = vsel %vm704, %v5045, 0
        %v5050 = vsel %vm704, %v5047, 0
        %5052 = vmatprep.subr.mxu0 0.0
        %5053 = vmatpush1.xpose.msra.mxu0 %v5050
        %5054 = vmatprep.subr.mxu0 0.0
        %5055 = vmatpush1.xpose.msra.mxu0 0.0
        %5056 = vmatprep.subr.mxu0 0.0
        %5057 = vmatpush1.xpose.msra.mxu0 0.0
        %5058 = vmatprep.subr.mxu0 0.0
        %5059 = vmatpush1.xpose.msra.mxu0 0.0
        %5060 = vmatprep.subr.mxu0 0.0
        %5061 = vmatpush1.xpose.msra.mxu0 0.0
        %5062 = vmatprep.subr.mxu0 0.0
        %5063 = vmatpush1.xpose.msra.mxu0 0.0
        %5064 = vmatprep.subr.mxu0 0.0
        %5065 = vmatpush1.xpose.msra.mxu0 0.0
        %5066 = vmatprep.subr.mxu0 0.0
        %5067 = vmatpush1.xpose.msra.mxu0 0.0
        %5068 = vmatprep.subr.mxu0 0.0
        %5069 = vmatpush1.xpose.msra.mxu0 0.0
        %5070 = vmatprep.subr.mxu0 0.0
        %5071 = vmatpush1.xpose.msra.mxu0 0.0
        %5072 = vmatprep.subr.mxu0 0.0
        %5073 = vmatpush1.xpose.msra.mxu0 0.0
        %5074 = vmatprep.subr.mxu0 0.0
        %5075 = vmatpush1.xpose.msra.mxu0 0.0
        %5076 = vmatprep.subr.mxu0 0.0
        %5077 = vmatpush1.xpose.msra.mxu0 0.0
        %5078 = vmatprep.subr.mxu0 0.0
        %5079 = vmatpush1.xpose.msra.mxu0 0.0
        %5080 = vmatprep.subr.mxu0 0.0
        %5081 = vmatpush1.xpose.msra.mxu0 0.0
        %5082 = vmatprep.subr.mxu0 0.0
        %5083 = vmatpush1.xpose.msra.mxu0 0.0
        %5084 = vmatprep.subr.mxu0 0.0
        %5085 = vmatpush1.xpose.msra.mxu0 0.0
        %5086 = vmatprep.subr.mxu0 0.0
        %5087 = vmatpush1.xpose.msra.mxu0 0.0
        %5088 = vmatprep.subr.mxu0 0.0
        %5089 = vmatpush1.xpose.msra.mxu0 0.0
        %5090 = vmatprep.subr.mxu0 0.0
        %5091 = vmatpush1.xpose.msra.mxu0 0.0
        %5092 = vmatprep.subr.mxu0 0.0
        %5093 = vmatpush1.xpose.msra.mxu0 0.0
        %5094 = vmatprep.subr.mxu0 0.0
        %5095 = vmatpush1.xpose.msra.mxu0 0.0
        %5096 = vmatprep.subr.mxu0 0.0
        %5097 = vmatpush1.xpose.msra.mxu0 0.0
        %5098 = vmatprep.subr.mxu0 0.0
        %5099 = vmatpush1.xpose.msra.mxu0 0.0
        %5100 = vmatprep.subr.mxu0 0.0
        %5101 = vmatpush1.xpose.msra.mxu0 0.0
        %5102 = vmatprep.subr.mxu0 0.0
        %5103 = vmatpush1.xpose.msra.mxu0 0.0
        %5104 = vmatprep.subr.mxu0 0.0
        %5105 = vmatpush1.xpose.msra.mxu0 0.0
        %5106 = vmatprep.subr.mxu0 0.0
        %5107 = vmatpush1.xpose.msra.mxu0 0.0
        %5108 = vmatprep.subr.mxu0 0.0
        %5109 = vmatpush1.xpose.msra.mxu0 0.0
        %5110 = vmatprep.subr.mxu0 0.0
        %5111 = vmatpush1.xpose.msra.mxu0 0.0
        %5112 = vmatprep.subr.mxu0 0.0
        %5113 = vmatpush1.xpose.msra.mxu0 0.0
        %5114 = vmatprep.subr.mxu0 0.0
        %5115 = vmatpush1.xpose.msra.mxu0 0.0
        %5116 = vmatprep.mubr.f32.mxu0 0.0
        %5117 = vmatmul.mubr.f32.gmra.mrb[0].mxu0 %v5048
        %v5118 = vpop.f32.mrb[0].mxu0
        %v5119 = vadd.f32 0.0, %v5118
        %v5120 = vpop.f32.mrb[0].mxu0
        %5121 = vdwg.mxu0
        %5122 = vrot.lane.b32.xlu0 %v693, 104
        %v5123 = vpop.permute.xlu0 %5122
        %5124 = vrot.lane.b32.xlu0 %v693, 72
        %v5125 = vpop.permute.xlu0 %5124
        %v5126 = vsel %vm704, %v5123, 0
        %v5128 = vsel %vm704, %v5125, 0
        %5130 = vmatprep.subr.mxu0 0.0
        %5131 = vmatpush1.xpose.msra.mxu0 %v5128
        %5132 = vmatprep.subr.mxu0 0.0
        %5133 = vmatpush1.xpose.msra.mxu0 0.0
        %5134 = vmatprep.subr.mxu0 0.0
        %5135 = vmatpush1.xpose.msra.mxu0 0.0
        %5136 = vmatprep.subr.mxu0 0.0
        %5137 = vmatpush1.xpose.msra.mxu0 0.0
        %5138 = vmatprep.subr.mxu0 0.0
        %5139 = vmatpush1.xpose.msra.mxu0 0.0
        %5140 = vmatprep.subr.mxu0 0.0
        %5141 = vmatpush1.xpose.msra.mxu0 0.0
        %5142 = vmatprep.subr.mxu0 0.0
        %5143 = vmatpush1.xpose.msra.mxu0 0.0
        %5144 = vmatprep.subr.mxu0 0.0
        %5145 = vmatpush1.xpose.msra.mxu0 0.0
        %5146 = vmatprep.subr.mxu0 0.0
        %5147 = vmatpush1.xpose.msra.mxu0 0.0
        %5148 = vmatprep.subr.mxu0 0.0
        %5149 = vmatpush1.xpose.msra.mxu0 0.0
        %5150 = vmatprep.subr.mxu0 0.0
        %5151 = vmatpush1.xpose.msra.mxu0 0.0
        %5152 = vmatprep.subr.mxu0 0.0
        %5153 = vmatpush1.xpose.msra.mxu0 0.0
        %5154 = vmatprep.subr.mxu0 0.0
        %5155 = vmatpush1.xpose.msra.mxu0 0.0
        %5156 = vmatprep.subr.mxu0 0.0
        %5157 = vmatpush1.xpose.msra.mxu0 0.0
        %5158 = vmatprep.subr.mxu0 0.0
        %5159 = vmatpush1.xpose.msra.mxu0 0.0
        %5160 = vmatprep.subr.mxu0 0.0
        %5161 = vmatpush1.xpose.msra.mxu0 0.0
        %5162 = vmatprep.subr.mxu0 0.0
        %5163 = vmatpush1.xpose.msra.mxu0 0.0
        %5164 = vmatprep.subr.mxu0 0.0
        %5165 = vmatpush1.xpose.msra.mxu0 0.0
        %5166 = vmatprep.subr.mxu0 0.0
        %5167 = vmatpush1.xpose.msra.mxu0 0.0
        %5168 = vmatprep.subr.mxu0 0.0
        %5169 = vmatpush1.xpose.msra.mxu0 0.0
        %5170 = vmatprep.subr.mxu0 0.0
        %5171 = vmatpush1.xpose.msra.mxu0 0.0
        %5172 = vmatprep.subr.mxu0 0.0
        %5173 = vmatpush1.xpose.msra.mxu0 0.0
        %5174 = vmatprep.subr.mxu0 0.0
        %5175 = vmatpush1.xpose.msra.mxu0 0.0
        %5176 = vmatprep.subr.mxu0 0.0
        %5177 = vmatpush1.xpose.msra.mxu0 0.0
        %5178 = vmatprep.subr.mxu0 0.0
        %5179 = vmatpush1.xpose.msra.mxu0 0.0
        %5180 = vmatprep.subr.mxu0 0.0
        %5181 = vmatpush1.xpose.msra.mxu0 0.0
        %5182 = vmatprep.subr.mxu0 0.0
        %5183 = vmatpush1.xpose.msra.mxu0 0.0
        %5184 = vmatprep.subr.mxu0 0.0
        %5185 = vmatpush1.xpose.msra.mxu0 0.0
        %5186 = vmatprep.subr.mxu0 0.0
        %5187 = vmatpush1.xpose.msra.mxu0 0.0
        %5188 = vmatprep.subr.mxu0 0.0
        %5189 = vmatpush1.xpose.msra.mxu0 0.0
        %5190 = vmatprep.subr.mxu0 0.0
        %5191 = vmatpush1.xpose.msra.mxu0 0.0
        %5192 = vmatprep.subr.mxu0 0.0
        %5193 = vmatpush1.xpose.msra.mxu0 0.0
        %5194 = vmatprep.mubr.f32.mxu0 0.0
        %5195 = vmatmul.mubr.f32.gmra.mrb[0].mxu0 %v5126
        %v5196 = vpop.f32.mrb[0].mxu0
        %v5197 = vadd.f32 0.0, %v5196
        %v5198 = vpop.f32.mrb[0].mxu0
        %5199 = vdwg.mxu0
        %5200 = vrot.lane.b32.xlu0 %v698, 104
        %v5201 = vpop.permute.xlu0 %5200
        %5202 = vrot.lane.b32.xlu0 %v698, 72
        %v5203 = vpop.permute.xlu0 %5202
        %v5204 = vsel %vm704, %v5201, 0
        %v5206 = vsel %vm704, %v5203, 0
        %5208 = vmatprep.subr.mxu0 0.0
        %5209 = vmatpush1.xpose.msra.mxu0 %v5206
        %5210 = vmatprep.subr.mxu0 0.0
        %5211 = vmatpush1.xpose.msra.mxu0 0.0
        %5212 = vmatprep.subr.mxu0 0.0
        %5213 = vmatpush1.xpose.msra.mxu0 0.0
        %5214 = vmatprep.subr.mxu0 0.0
        %5215 = vmatpush1.xpose.msra.mxu0 0.0
        %5216 = vmatprep.subr.mxu0 0.0
        %5217 = vmatpush1.xpose.msra.mxu0 0.0
        %5218 = vmatprep.subr.mxu0 0.0
        %5219 = vmatpush1.xpose.msra.mxu0 0.0
        %5220 = vmatprep.subr.mxu0 0.0
        %5221 = vmatpush1.xpose.msra.mxu0 0.0
        %5222 = vmatprep.subr.mxu0 0.0
        %5223 = vmatpush1.xpose.msra.mxu0 0.0
        %5224 = vmatprep.subr.mxu0 0.0
        %5225 = vmatpush1.xpose.msra.mxu0 0.0
        %5226 = vmatprep.subr.mxu0 0.0
        %5227 = vmatpush1.xpose.msra.mxu0 0.0
        %5228 = vmatprep.subr.mxu0 0.0
        %5229 = vmatpush1.xpose.msra.mxu0 0.0
        %5230 = vmatprep.subr.mxu0 0.0
        %5231 = vmatpush1.xpose.msra.mxu0 0.0
        %5232 = vmatprep.subr.mxu0 0.0
        %5233 = vmatpush1.xpose.msra.mxu0 0.0
        %5234 = vmatprep.subr.mxu0 0.0
        %5235 = vmatpush1.xpose.msra.mxu0 0.0
        %5236 = vmatprep.subr.mxu0 0.0
        %5237 = vmatpush1.xpose.msra.mxu0 0.0
        %5238 = vmatprep.subr.mxu0 0.0
        %5239 = vmatpush1.xpose.msra.mxu0 0.0
        %5240 = vmatprep.subr.mxu0 0.0
        %5241 = vmatpush1.xpose.msra.mxu0 0.0
        %5242 = vmatprep.subr.mxu0 0.0
        %5243 = vmatpush1.xpose.msra.mxu0 0.0
        %5244 = vmatprep.subr.mxu0 0.0
        %5245 = vmatpush1.xpose.msra.mxu0 0.0
        %5246 = vmatprep.subr.mxu0 0.0
        %5247 = vmatpush1.xpose.msra.mxu0 0.0
        %5248 = vmatprep.subr.mxu0 0.0
        %5249 = vmatpush1.xpose.msra.mxu0 0.0
        %5250 = vmatprep.subr.mxu0 0.0
        %5251 = vmatpush1.xpose.msra.mxu0 0.0
        %5252 = vmatprep.subr.mxu0 0.0
        %5253 = vmatpush1.xpose.msra.mxu0 0.0
        %5254 = vmatprep.subr.mxu0 0.0
        %5255 = vmatpush1.xpose.msra.mxu0 0.0
        %5256 = vmatprep.subr.mxu0 0.0
        %5257 = vmatpush1.xpose.msra.mxu0 0.0
        %5258 = vmatprep.subr.mxu0 0.0
        %5259 = vmatpush1.xpose.msra.mxu0 0.0
        %5260 = vmatprep.subr.mxu0 0.0
        %5261 = vmatpush1.xpose.msra.mxu0 0.0
        %5262 = vmatprep.subr.mxu0 0.0
        %5263 = vmatpush1.xpose.msra.mxu0 0.0
        %5264 = vmatprep.subr.mxu0 0.0
        %5265 = vmatpush1.xpose.msra.mxu0 0.0
        %5266 = vmatprep.subr.mxu0 0.0
        %5267 = vmatpush1.xpose.msra.mxu0 0.0
        %5268 = vmatprep.subr.mxu0 0.0
        %5269 = vmatpush1.xpose.msra.mxu0 0.0
        %5270 = vmatprep.subr.mxu0 0.0
        %5271 = vmatpush1.xpose.msra.mxu0 0.0
        %5272 = vmatprep.mubr.f32.mxu0 0.0
        %5273 = vmatmul.mubr.f32.gmra.mrb[0].mxu0 %v5204
        %v5274 = vpop.f32.mrb[0].mxu0
        %v5275 = vadd.f32 0.0, %v5274
        %v5276 = vpop.f32.mrb[0].mxu0
        %5277 = vdwg.mxu0
        %v5278 = vsel %vm704, %v4729, -inf
        %5279 = vmax.xlane.f32.xlu0 %v5278
        %v5280 = vpop.xlane.xlu0 %5279
        %v5281 = vsel %vm704, %v4807, -inf
        %5282 = vmax.xlane.f32.xlu0 %v5281
        %v5283 = vpop.xlane.xlu0 %5282
        %v5284 = vsel %vm704, %v4885, -inf
        %5285 = vmax.xlane.f32.xlu0 %v5284
        %v5286 = vpop.xlane.xlu0 %5285
        %v5287 = vsel %vm704, %v4963, -inf
        %5288 = vmax.xlane.f32.xlu0 %v5287
        %v5289 = vpop.xlane.xlu0 %5288
        %v5290 = vsel %vm704, %v5041, -inf
        %5291 = vmax.xlane.f32.xlu0 %v5290
        %v5292 = vpop.xlane.xlu0 %5291
        %v5293 = vsel %vm704, %v5119, -inf
        %5294 = vmax.xlane.f32.xlu0 %v5293
        %v5295 = vpop.xlane.xlu0 %5294
        %v5296 = vsel %vm704, %v5197, -inf
        %5297 = vmax.xlane.f32.xlu0 %v5296
        %v5298 = vpop.xlane.xlu0 %5297
        %v5299 = vsel %vm704, %v5275, -inf
        %5300 = vmax.xlane.f32.xlu0 %v5299
        %v5301 = vpop.xlane.xlu0 %5300
        %v5302 = vsub.f32 %v4729, %v5280
        %v5303 = vsub.f32 %v4807, %v5283
        %v5304 = vsub.f32 %v4885, %v5286
        %v5305 = vsub.f32 %v4963, %v5289
        %v5306 = vsub.f32 %v5041, %v5292
        %v5307 = vsub.f32 %v5119, %v5295
        %v5308 = vsub.f32 %v5197, %v5298
        %v5309 = vsub.f32 %v5275, %v5301
        %v5310 = vmul.f32 %v5302, 1.442695
        %v5311 = vpow.pop %v5310
        %v5312 = vmul.f32 %v5303, 1.442695
        %v5313 = vpow.pop %v5312
        %v5314 = vmul.f32 %v5304, 1.442695
        %v5315 = vpow.pop %v5314
        %v5316 = vmul.f32 %v5305, 1.442695
        %v5317 = vpow.pop %v5316
        %v5318 = vmul.f32 %v5306, 1.442695
        %v5319 = vpow.pop %v5318
        %v5320 = vmul.f32 %v5307, 1.442695
        %v5321 = vpow.pop %v5320
        %v5322 = vmul.f32 %v5308, 1.442695
        %v5323 = vpow.pop %v5322
        %v5324 = vmul.f32 %v5309, 1.442695
        %v5325 = vpow.pop %v5324
        %v5326 = vsel %vm704, %v5311, 0.0
        %5327 = vadd.xlane.f32.xlu0 %v5326
        %v5328 = vpop.xlane.xlu0 %5327
        %v5329 = vsel %vm704, %v5313, 0.0
        %5330 = vadd.xlane.f32.xlu0 %v5329
        %v5331 = vpop.xlane.xlu0 %5330
        %v5332 = vsel %vm704, %v5315, 0.0
        %5333 = vadd.xlane.f32.xlu0 %v5332
        %v5334 = vpop.xlane.xlu0 %5333
        %v5335 = vsel %vm704, %v5317, 0.0
        %5336 = vadd.xlane.f32.xlu0 %v5335
        %v5337 = vpop.xlane.xlu0 %5336
        %v5338 = vsel %vm704, %v5319, 0.0
        %5339 = vadd.xlane.f32.xlu0 %v5338
        %v5340 = vpop.xlane.xlu0 %5339
        %v5341 = vsel %vm704, %v5321, 0.0
        %5342 = vadd.xlane.f32.xlu0 %v5341
        %v5343 = vpop.xlane.xlu0 %5342
        %v5344 = vsel %vm704, %v5323, 0.0
        %5345 = vadd.xlane.f32.xlu0 %v5344
        %v5346 = vpop.xlane.xlu0 %5345
        %v5347 = vsel %vm704, %v5325, 0.0
        %5348 = vadd.xlane.f32.xlu0 %v5347
        %v5349 = vpop.xlane.xlu0 %5348
        %v5350 = vrcp.pop %v5328
        %v5351 = vrcp.pop %v5331
        %v5352 = vrcp.pop %v5334
        %v5353 = vrcp.pop %v5337
        %v5354 = vrcp.pop %v5340
        %v5355 = vrcp.pop %v5343
        %v5356 = vrcp.pop %v5346
        %v5357 = vrcp.pop %v5349
        %v5358 = vmul.f32 %v5311, %v5350
        %v5359 = vmul.f32 %v5313, %v5351
        %v5360 = vmul.f32 %v5315, %v5352
        %v5361 = vmul.f32 %v5317, %v5353
        %v5362 = vmul.f32 %v5319, %v5354
        %v5363 = vmul.f32 %v5321, %v5355
        %v5364 = vmul.f32 %v5323, %v5356
        %v5365 = vmul.f32 %v5325, %v5357
        %5366 = vrot.lane.b32.xlu0 %v663, 40
        %v5367 = vpop.permute.xlu0 %5366
        %v5370 = vsel %vm704, %v5358, 0
        %5372 = vmatprep.subr.mxu0 0.0
        %5373 = vmatpush1.msra.mxu0 %v5367
        %5374 = vmatprep.subr.mxu0 0.0
        %5375 = vmatpush1.msra.mxu0 0.0
        %5376 = vmatprep.subr.mxu0 0.0
        %5377 = vmatpush1.msra.mxu0 0.0
        %5378 = vmatprep.subr.mxu0 0.0
        %5379 = vmatpush1.msra.mxu0 0.0
        %5380 = vmatprep.subr.mxu0 0.0
        %5381 = vmatpush1.msra.mxu0 0.0
        %5382 = vmatprep.subr.mxu0 0.0
        %5383 = vmatpush1.msra.mxu0 0.0
        %5384 = vmatprep.subr.mxu0 0.0
        %5385 = vmatpush1.msra.mxu0 0.0
        %5386 = vmatprep.subr.mxu0 0.0
        %5387 = vmatpush1.msra.mxu0 0.0
        %5388 = vmatprep.subr.mxu0 0.0
        %5389 = vmatpush1.msra.mxu0 0.0
        %5390 = vmatprep.subr.mxu0 0.0
        %5391 = vmatpush1.msra.mxu0 0.0
        %5392 = vmatprep.subr.mxu0 0.0
        %5393 = vmatpush1.msra.mxu0 0.0
        %5394 = vmatprep.subr.mxu0 0.0
        %5395 = vmatpush1.msra.mxu0 0.0
        %5396 = vmatprep.subr.mxu0 0.0
        %5397 = vmatpush1.msra.mxu0 0.0
        %5398 = vmatprep.subr.mxu0 0.0
        %5399 = vmatpush1.msra.mxu0 0.0
        %5400 = vmatprep.subr.mxu0 0.0
        %5401 = vmatpush1.msra.mxu0 0.0
        %5402 = vmatprep.subr.mxu0 0.0
        %5403 = vmatpush1.msra.mxu0 0.0
        %5404 = vmatprep.subr.mxu0 0.0
        %5405 = vmatpush1.msra.mxu0 0.0
        %5406 = vmatprep.subr.mxu0 0.0
        %5407 = vmatpush1.msra.mxu0 0.0
        %5408 = vmatprep.subr.mxu0 0.0
        %5409 = vmatpush1.msra.mxu0 0.0
        %5410 = vmatprep.subr.mxu0 0.0
        %5411 = vmatpush1.msra.mxu0 0.0
        %5412 = vmatprep.subr.mxu0 0.0
        %5413 = vmatpush1.msra.mxu0 0.0
        %5414 = vmatprep.subr.mxu0 0.0
        %5415 = vmatpush1.msra.mxu0 0.0
        %5416 = vmatprep.subr.mxu0 0.0
        %5417 = vmatpush1.msra.mxu0 0.0
        %5418 = vmatprep.subr.mxu0 0.0
        %5419 = vmatpush1.msra.mxu0 0.0
        %5420 = vmatprep.subr.mxu0 0.0
        %5421 = vmatpush1.msra.mxu0 0.0
        %5422 = vmatprep.subr.mxu0 0.0
        %5423 = vmatpush1.msra.mxu0 0.0
        %5424 = vmatprep.subr.mxu0 0.0
        %5425 = vmatpush1.msra.mxu0 0.0
        %5426 = vmatprep.subr.mxu0 0.0
        %5427 = vmatpush1.msra.mxu0 0.0
        %5428 = vmatprep.subr.mxu0 0.0
        %5429 = vmatpush1.msra.mxu0 0.0
        %5430 = vmatprep.subr.mxu0 0.0
        %5431 = vmatpush1.msra.mxu0 0.0
        %5432 = vmatprep.subr.mxu0 0.0
        %5433 = vmatpush1.msra.mxu0 0.0
        %5434 = vmatprep.subr.mxu0 0.0
        %5435 = vmatpush1.msra.mxu0 0.0
        %5436 = vmatprep.mubr.f32.mxu0 0.0
        %5437 = vmatmul.mubr.f32.gmra.mrb[0].mxu0 %v5370
        %v5438 = vpop.f32.mrb[0].mxu0
        %v5439 = vadd.f32 0.0, %v5438
        %v5440 = vpop.f32.mrb[0].mxu0
        %5441 = vdwg.mxu0
        %5442 = vrot.lane.b32.xlu0 %v668, 40
        %v5443 = vpop.permute.xlu0 %5442
        %v5446 = vsel %vm704, %v5359, 0
        %5448 = vmatprep.subr.mxu0 0.0
        %5449 = vmatpush1.msra.mxu0 %v5443
        %5450 = vmatprep.subr.mxu0 0.0
        %5451 = vmatpush1.msra.mxu0 0.0
        %5452 = vmatprep.subr.mxu0 0.0
        %5453 = vmatpush1.msra.mxu0 0.0
        %5454 = vmatprep.subr.mxu0 0.0
        %5455 = vmatpush1.msra.mxu0 0.0
        %5456 = vmatprep.subr.mxu0 0.0
        %5457 = vmatpush1.msra.mxu0 0.0
        %5458 = vmatprep.subr.mxu0 0.0
        %5459 = vmatpush1.msra.mxu0 0.0
        %5460 = vmatprep.subr.mxu0 0.0
        %5461 = vmatpush1.msra.mxu0 0.0
        %5462 = vmatprep.subr.mxu0 0.0
        %5463 = vmatpush1.msra.mxu0 0.0
        %5464 = vmatprep.subr.mxu0 0.0
        %5465 = vmatpush1.msra.mxu0 0.0
        %5466 = vmatprep.subr.mxu0 0.0
        %5467 = vmatpush1.msra.mxu0 0.0
        %5468 = vmatprep.subr.mxu0 0.0
        %5469 = vmatpush1.msra.mxu0 0.0
        %5470 = vmatprep.subr.mxu0 0.0
        %5471 = vmatpush1.msra.mxu0 0.0
        %5472 = vmatprep.subr.mxu0 0.0
        %5473 = vmatpush1.msra.mxu0 0.0
        %5474 = vmatprep.subr.mxu0 0.0
        %5475 = vmatpush1.msra.mxu0 0.0
        %5476 = vmatprep.subr.mxu0 0.0
        %5477 = vmatpush1.msra.mxu0 0.0
        %5478 = vmatprep.subr.mxu0 0.0
        %5479 = vmatpush1.msra.mxu0 0.0
        %5480 = vmatprep.subr.mxu0 0.0
        %5481 = vmatpush1.msra.mxu0 0.0
        %5482 = vmatprep.subr.mxu0 0.0
        %5483 = vmatpush1.msra.mxu0 0.0
        %5484 = vmatprep.subr.mxu0 0.0
        %5485 = vmatpush1.msra.mxu0 0.0
        %5486 = vmatprep.subr.mxu0 0.0
        %5487 = vmatpush1.msra.mxu0 0.0
        %5488 = vmatprep.subr.mxu0 0.0
        %5489 = vmatpush1.msra.mxu0 0.0
        %5490 = vmatprep.subr.mxu0 0.0
        %5491 = vmatpush1.msra.mxu0 0.0
        %5492 = vmatprep.subr.mxu0 0.0
        %5493 = vmatpush1.msra.mxu0 0.0
        %5494 = vmatprep.subr.mxu0 0.0
        %5495 = vmatpush1.msra.mxu0 0.0
        %5496 = vmatprep.subr.mxu0 0.0
        %5497 = vmatpush1.msra.mxu0 0.0
        %5498 = vmatprep.subr.mxu0 0.0
        %5499 = vmatpush1.msra.mxu0 0.0
        %5500 = vmatprep.subr.mxu0 0.0
        %5501 = vmatpush1.msra.mxu0 0.0
        %5502 = vmatprep.subr.mxu0 0.0
        %5503 = vmatpush1.msra.mxu0 0.0
        %5504 = vmatprep.subr.mxu0 0.0
        %5505 = vmatpush1.msra.mxu0 0.0
        %5506 = vmatprep.subr.mxu0 0.0
        %5507 = vmatpush1.msra.mxu0 0.0
        %5508 = vmatprep.subr.mxu0 0.0
        %5509 = vmatpush1.msra.mxu0 0.0
        %5510 = vmatprep.subr.mxu0 0.0
        %5511 = vmatpush1.msra.mxu0 0.0
        %5512 = vmatprep.mubr.f32.mxu0 0.0
        %5513 = vmatmul.mubr.f32.gmra.mrb[0].mxu0 %v5446
        %v5514 = vpop.f32.mrb[0].mxu0
        %v5515 = vadd.f32 0.0, %v5514
        %v5516 = vpop.f32.mrb[0].mxu0
        %5517 = vdwg.mxu0
        %5518 = vrot.lane.b32.xlu0 %v673, 40
        %v5519 = vpop.permute.xlu0 %5518
        %v5522 = vsel %vm704, %v5360, 0
        %5524 = vmatprep.subr.mxu0 0.0
        %5525 = vmatpush1.msra.mxu0 %v5519
        %5526 = vmatprep.subr.mxu0 0.0
        %5527 = vmatpush1.msra.mxu0 0.0
        %5528 = vmatprep.subr.mxu0 0.0
        %5529 = vmatpush1.msra.mxu0 0.0
        %5530 = vmatprep.subr.mxu0 0.0
        %5531 = vmatpush1.msra.mxu0 0.0
        %5532 = vmatprep.subr.mxu0 0.0
        %5533 = vmatpush1.msra.mxu0 0.0
        %5534 = vmatprep.subr.mxu0 0.0
        %5535 = vmatpush1.msra.mxu0 0.0
        %5536 = vmatprep.subr.mxu0 0.0
        %5537 = vmatpush1.msra.mxu0 0.0
        %5538 = vmatprep.subr.mxu0 0.0
        %5539 = vmatpush1.msra.mxu0 0.0
        %5540 = vmatprep.subr.mxu0 0.0
        %5541 = vmatpush1.msra.mxu0 0.0
        %5542 = vmatprep.subr.mxu0 0.0
        %5543 = vmatpush1.msra.mxu0 0.0
        %5544 = vmatprep.subr.mxu0 0.0
        %5545 = vmatpush1.msra.mxu0 0.0
        %5546 = vmatprep.subr.mxu0 0.0
        %5547 = vmatpush1.msra.mxu0 0.0
        %5548 = vmatprep.subr.mxu0 0.0
        %5549 = vmatpush1.msra.mxu0 0.0
        %5550 = vmatprep.subr.mxu0 0.0
        %5551 = vmatpush1.msra.mxu0 0.0
        %5552 = vmatprep.subr.mxu0 0.0
        %5553 = vmatpush1.msra.mxu0 0.0
        %5554 = vmatprep.subr.mxu0 0.0
        %5555 = vmatpush1.msra.mxu0 0.0
        %5556 = vmatprep.subr.mxu0 0.0
        %5557 = vmatpush1.msra.mxu0 0.0
        %5558 = vmatprep.subr.mxu0 0.0
        %5559 = vmatpush1.msra.mxu0 0.0
        %5560 = vmatprep.subr.mxu0 0.0
        %5561 = vmatpush1.msra.mxu0 0.0
        %5562 = vmatprep.subr.mxu0 0.0
        %5563 = vmatpush1.msra.mxu0 0.0
        %5564 = vmatprep.subr.mxu0 0.0
        %5565 = vmatpush1.msra.mxu0 0.0
        %5566 = vmatprep.subr.mxu0 0.0
        %5567 = vmatpush1.msra.mxu0 0.0
        %5568 = vmatprep.subr.mxu0 0.0
        %5569 = vmatpush1.msra.mxu0 0.0
        %5570 = vmatprep.subr.mxu0 0.0
        %5571 = vmatpush1.msra.mxu0 0.0
        %5572 = vmatprep.subr.mxu0 0.0
        %5573 = vmatpush1.msra.mxu0 0.0
        %5574 = vmatprep.subr.mxu0 0.0
        %5575 = vmatpush1.msra.mxu0 0.0
        %5576 = vmatprep.subr.mxu0 0.0
        %5577 = vmatpush1.msra.mxu0 0.0
        %5578 = vmatprep.subr.mxu0 0.0
        %5579 = vmatpush1.msra.mxu0 0.0
        %5580 = vmatprep.subr.mxu0 0.0
        %5581 = vmatpush1.msra.mxu0 0.0
        %5582 = vmatprep.subr.mxu0 0.0
        %5583 = vmatpush1.msra.mxu0 0.0
        %5584 = vmatprep.subr.mxu0 0.0
        %5585 = vmatpush1.msra.mxu0 0.0
        %5586 = vmatprep.subr.mxu0 0.0
        %5587 = vmatpush1.msra.mxu0 0.0
        %5588 = vmatprep.mubr.f32.mxu0 0.0
        %5589 = vmatmul.mubr.f32.gmra.mrb[0].mxu0 %v5522
        %v5590 = vpop.f32.mrb[0].mxu0
        %v5591 = vadd.f32 0.0, %v5590
        %v5592 = vpop.f32.mrb[0].mxu0
        %5593 = vdwg.mxu0
        %5594 = vrot.lane.b32.xlu0 %v678, 40
        %v5595 = vpop.permute.xlu0 %5594
        %v5598 = vsel %vm704, %v5361, 0
        %5600 = vmatprep.subr.mxu0 0.0
        %5601 = vmatpush1.msra.mxu0 %v5595
        %5602 = vmatprep.subr.mxu0 0.0
        %5603 = vmatpush1.msra.mxu0 0.0
        %5604 = vmatprep.subr.mxu0 0.0
        %5605 = vmatpush1.msra.mxu0 0.0
        %5606 = vmatprep.subr.mxu0 0.0
        %5607 = vmatpush1.msra.mxu0 0.0
        %5608 = vmatprep.subr.mxu0 0.0
        %5609 = vmatpush1.msra.mxu0 0.0
        %5610 = vmatprep.subr.mxu0 0.0
        %5611 = vmatpush1.msra.mxu0 0.0
        %5612 = vmatprep.subr.mxu0 0.0
        %5613 = vmatpush1.msra.mxu0 0.0
        %5614 = vmatprep.subr.mxu0 0.0
        %5615 = vmatpush1.msra.mxu0 0.0
        %5616 = vmatprep.subr.mxu0 0.0
        %5617 = vmatpush1.msra.mxu0 0.0
        %5618 = vmatprep.subr.mxu0 0.0
        %5619 = vmatpush1.msra.mxu0 0.0
        %5620 = vmatprep.subr.mxu0 0.0
        %5621 = vmatpush1.msra.mxu0 0.0
        %5622 = vmatprep.subr.mxu0 0.0
        %5623 = vmatpush1.msra.mxu0 0.0
        %5624 = vmatprep.subr.mxu0 0.0
        %5625 = vmatpush1.msra.mxu0 0.0
        %5626 = vmatprep.subr.mxu0 0.0
        %5627 = vmatpush1.msra.mxu0 0.0
        %5628 = vmatprep.subr.mxu0 0.0
        %5629 = vmatpush1.msra.mxu0 0.0
        %5630 = vmatprep.subr.mxu0 0.0
        %5631 = vmatpush1.msra.mxu0 0.0
        %5632 = vmatprep.subr.mxu0 0.0
        %5633 = vmatpush1.msra.mxu0 0.0
        %5634 = vmatprep.subr.mxu0 0.0
        %5635 = vmatpush1.msra.mxu0 0.0
        %5636 = vmatprep.subr.mxu0 0.0
        %5637 = vmatpush1.msra.mxu0 0.0
        %5638 = vmatprep.subr.mxu0 0.0
        %5639 = vmatpush1.msra.mxu0 0.0
        %5640 = vmatprep.subr.mxu0 0.0
        %5641 = vmatpush1.msra.mxu0 0.0
        %5642 = vmatprep.subr.mxu0 0.0
        %5643 = vmatpush1.msra.mxu0 0.0
        %5644 = vmatprep.subr.mxu0 0.0
        %5645 = vmatpush1.msra.mxu0 0.0
        %5646 = vmatprep.subr.mxu0 0.0
        %5647 = vmatpush1.msra.mxu0 0.0
        %5648 = vmatprep.subr.mxu0 0.0
        %5649 = vmatpush1.msra.mxu0 0.0
        %5650 = vmatprep.subr.mxu0 0.0
        %5651 = vmatpush1.msra.mxu0 0.0
        %5652 = vmatprep.subr.mxu0 0.0
        %5653 = vmatpush1.msra.mxu0 0.0
        %5654 = vmatprep.subr.mxu0 0.0
        %5655 = vmatpush1.msra.mxu0 0.0
        %5656 = vmatprep.subr.mxu0 0.0
        %5657 = vmatpush1.msra.mxu0 0.0
        %5658 = vmatprep.subr.mxu0 0.0
        %5659 = vmatpush1.msra.mxu0 0.0
        %5660 = vmatprep.subr.mxu0 0.0
        %5661 = vmatpush1.msra.mxu0 0.0
        %5662 = vmatprep.subr.mxu0 0.0
        %5663 = vmatpush1.msra.mxu0 0.0
        %5664 = vmatprep.mubr.f32.mxu0 0.0
        %5665 = vmatmul.mubr.f32.gmra.mrb[0].mxu0 %v5598
        %v5666 = vpop.f32.mrb[0].mxu0
        %v5667 = vadd.f32 0.0, %v5666
        %v5668 = vpop.f32.mrb[0].mxu0
        %5669 = vdwg.mxu0
        %5670 = vrot.lane.b32.xlu0 %v683, 40
        %v5671 = vpop.permute.xlu0 %5670
        %v5674 = vsel %vm704, %v5362, 0
        %5676 = vmatprep.subr.mxu0 0.0
        %5677 = vmatpush1.msra.mxu0 %v5671
        %5678 = vmatprep.subr.mxu0 0.0
        %5679 = vmatpush1.msra.mxu0 0.0
        %5680 = vmatprep.subr.mxu0 0.0
        %5681 = vmatpush1.msra.mxu0 0.0
        %5682 = vmatprep.subr.mxu0 0.0
        %5683 = vmatpush1.msra.mxu0 0.0
        %5684 = vmatprep.subr.mxu0 0.0
        %5685 = vmatpush1.msra.mxu0 0.0
        %5686 = vmatprep.subr.mxu0 0.0
        %5687 = vmatpush1.msra.mxu0 0.0
        %5688 = vmatprep.subr.mxu0 0.0
        %5689 = vmatpush1.msra.mxu0 0.0
        %5690 = vmatprep.subr.mxu0 0.0
        %5691 = vmatpush1.msra.mxu0 0.0
        %5692 = vmatprep.subr.mxu0 0.0
        %5693 = vmatpush1.msra.mxu0 0.0
        %5694 = vmatprep.subr.mxu0 0.0
        %5695 = vmatpush1.msra.mxu0 0.0
        %5696 = vmatprep.subr.mxu0 0.0
        %5697 = vmatpush1.msra.mxu0 0.0
        %5698 = vmatprep.subr.mxu0 0.0
        %5699 = vmatpush1.msra.mxu0 0.0
        %5700 = vmatprep.subr.mxu0 0.0
        %5701 = vmatpush1.msra.mxu0 0.0
        %5702 = vmatprep.subr.mxu0 0.0
        %5703 = vmatpush1.msra.mxu0 0.0
        %5704 = vmatprep.subr.mxu0 0.0
        %5705 = vmatpush1.msra.mxu0 0.0
        %5706 = vmatprep.subr.mxu0 0.0
        %5707 = vmatpush1.msra.mxu0 0.0
        %5708 = vmatprep.subr.mxu0 0.0
        %5709 = vmatpush1.msra.mxu0 0.0
        %5710 = vmatprep.subr.mxu0 0.0
        %5711 = vmatpush1.msra.mxu0 0.0
        %5712 = vmatprep.subr.mxu0 0.0
        %5713 = vmatpush1.msra.mxu0 0.0
        %5714 = vmatprep.subr.mxu0 0.0
        %5715 = vmatpush1.msra.mxu0 0.0
        %5716 = vmatprep.subr.mxu0 0.0
        %5717 = vmatpush1.msra.mxu0 0.0
        %5718 = vmatprep.subr.mxu0 0.0
        %5719 = vmatpush1.msra.mxu0 0.0
        %5720 = vmatprep.subr.mxu0 0.0
        %5721 = vmatpush1.msra.mxu0 0.0
        %5722 = vmatprep.subr.mxu0 0.0
        %5723 = vmatpush1.msra.mxu0 0.0
        %5724 = vmatprep.subr.mxu0 0.0
        %5725 = vmatpush1.msra.mxu0 0.0
        %5726 = vmatprep.subr.mxu0 0.0
        %5727 = vmatpush1.msra.mxu0 0.0
        %5728 = vmatprep.subr.mxu0 0.0
        %5729 = vmatpush1.msra.mxu0 0.0
        %5730 = vmatprep.subr.mxu0 0.0
        %5731 = vmatpush1.msra.mxu0 0.0
        %5732 = vmatprep.subr.mxu0 0.0
        %5733 = vmatpush1.msra.mxu0 0.0
        %5734 = vmatprep.subr.mxu0 0.0
        %5735 = vmatpush1.msra.mxu0 0.0
        %5736 = vmatprep.subr.mxu0 0.0
        %5737 = vmatpush1.msra.mxu0 0.0
        %5738 = vmatprep.subr.mxu0 0.0
        %5739 = vmatpush1.msra.mxu0 0.0
        %5740 = vmatprep.mubr.f32.mxu0 0.0
        %5741 = vmatmul.mubr.f32.gmra.mrb[0].mxu0 %v5674
        %v5742 = vpop.f32.mrb[0].mxu0
        %v5743 = vadd.f32 0.0, %v5742
        %v5744 = vpop.f32.mrb[0].mxu0
        %5745 = vdwg.mxu0
        %5746 = vrot.lane.b32.xlu0 %v688, 40
        %v5747 = vpop.permute.xlu0 %5746
        %v5750 = vsel %vm704, %v5363, 0
        %5752 = vmatprep.subr.mxu0 0.0
        %5753 = vmatpush1.msra.mxu0 %v5747
        %5754 = vmatprep.subr.mxu0 0.0
        %5755 = vmatpush1.msra.mxu0 0.0
        %5756 = vmatprep.subr.mxu0 0.0
        %5757 = vmatpush1.msra.mxu0 0.0
        %5758 = vmatprep.subr.mxu0 0.0
        %5759 = vmatpush1.msra.mxu0 0.0
        %5760 = vmatprep.subr.mxu0 0.0
        %5761 = vmatpush1.msra.mxu0 0.0
        %5762 = vmatprep.subr.mxu0 0.0
        %5763 = vmatpush1.msra.mxu0 0.0
        %5764 = vmatprep.subr.mxu0 0.0
        %5765 = vmatpush1.msra.mxu0 0.0
        %5766 = vmatprep.subr.mxu0 0.0
        %5767 = vmatpush1.msra.mxu0 0.0
        %5768 = vmatprep.subr.mxu0 0.0
        %5769 = vmatpush1.msra.mxu0 0.0
        %5770 = vmatprep.subr.mxu0 0.0
        %5771 = vmatpush1.msra.mxu0 0.0
        %5772 = vmatprep.subr.mxu0 0.0
        %5773 = vmatpush1.msra.mxu0 0.0
        %5774 = vmatprep.subr.mxu0 0.0
        %5775 = vmatpush1.msra.mxu0 0.0
        %5776 = vmatprep.subr.mxu0 0.0
        %5777 = vmatpush1.msra.mxu0 0.0
        %5778 = vmatprep.subr.mxu0 0.0
        %5779 = vmatpush1.msra.mxu0 0.0
        %5780 = vmatprep.subr.mxu0 0.0
        %5781 = vmatpush1.msra.mxu0 0.0
        %5782 = vmatprep.subr.mxu0 0.0
        %5783 = vmatpush1.msra.mxu0 0.0
        %5784 = vmatprep.subr.mxu0 0.0
        %5785 = vmatpush1.msra.mxu0 0.0
        %5786 = vmatprep.subr.mxu0 0.0
        %5787 = vmatpush1.msra.mxu0 0.0
        %5788 = vmatprep.subr.mxu0 0.0
        %5789 = vmatpush1.msra.mxu0 0.0
        %5790 = vmatprep.subr.mxu0 0.0
        %5791 = vmatpush1.msra.mxu0 0.0
        %5792 = vmatprep.subr.mxu0 0.0
        %5793 = vmatpush1.msra.mxu0 0.0
        %5794 = vmatprep.subr.mxu0 0.0
        %5795 = vmatpush1.msra.mxu0 0.0
        %5796 = vmatprep.subr.mxu0 0.0
        %5797 = vmatpush1.msra.mxu0 0.0
        %5798 = vmatprep.subr.mxu0 0.0
        %5799 = vmatpush1.msra.mxu0 0.0
        %5800 = vmatprep.subr.mxu0 0.0
        %5801 = vmatpush1.msra.mxu0 0.0
        %5802 = vmatprep.subr.mxu0 0.0
        %5803 = vmatpush1.msra.mxu0 0.0
        %5804 = vmatprep.subr.mxu0 0.0
        %5805 = vmatpush1.msra.mxu0 0.0
        %5806 = vmatprep.subr.mxu0 0.0
        %5807 = vmatpush1.msra.mxu0 0.0
        %5808 = vmatprep.subr.mxu0 0.0
        %5809 = vmatpush1.msra.mxu0 0.0
        %5810 = vmatprep.subr.mxu0 0.0
        %5811 = vmatpush1.msra.mxu0 0.0
        %5812 = vmatprep.subr.mxu0 0.0
        %5813 = vmatpush1.msra.mxu0 0.0
        %5814 = vmatprep.subr.mxu0 0.0
        %5815 = vmatpush1.msra.mxu0 0.0
        %5816 = vmatprep.mubr.f32.mxu0 0.0
        %5817 = vmatmul.mubr.f32.gmra.mrb[0].mxu0 %v5750
        %v5818 = vpop.f32.mrb[0].mxu0
        %v5819 = vadd.f32 0.0, %v5818
        %v5820 = vpop.f32.mrb[0].mxu0
        %5821 = vdwg.mxu0
        %5822 = vrot.lane.b32.xlu0 %v693, 40
        %v5823 = vpop.permute.xlu0 %5822
        %v5826 = vsel %vm704, %v5364, 0
        %5828 = vmatprep.subr.mxu0 0.0
        %5829 = vmatpush1.msra.mxu0 %v5823
        %5830 = vmatprep.subr.mxu0 0.0
        %5831 = vmatpush1.msra.mxu0 0.0
        %5832 = vmatprep.subr.mxu0 0.0
        %5833 = vmatpush1.msra.mxu0 0.0
        %5834 = vmatprep.subr.mxu0 0.0
        %5835 = vmatpush1.msra.mxu0 0.0
        %5836 = vmatprep.subr.mxu0 0.0
        %5837 = vmatpush1.msra.mxu0 0.0
        %5838 = vmatprep.subr.mxu0 0.0
        %5839 = vmatpush1.msra.mxu0 0.0
        %5840 = vmatprep.subr.mxu0 0.0
        %5841 = vmatpush1.msra.mxu0 0.0
        %5842 = vmatprep.subr.mxu0 0.0
        %5843 = vmatpush1.msra.mxu0 0.0
        %5844 = vmatprep.subr.mxu0 0.0
        %5845 = vmatpush1.msra.mxu0 0.0
        %5846 = vmatprep.subr.mxu0 0.0
        %5847 = vmatpush1.msra.mxu0 0.0
        %5848 = vmatprep.subr.mxu0 0.0
        %5849 = vmatpush1.msra.mxu0 0.0
        %5850 = vmatprep.subr.mxu0 0.0
        %5851 = vmatpush1.msra.mxu0 0.0
        %5852 = vmatprep.subr.mxu0 0.0
        %5853 = vmatpush1.msra.mxu0 0.0
        %5854 = vmatprep.subr.mxu0 0.0
        %5855 = vmatpush1.msra.mxu0 0.0
        %5856 = vmatprep.subr.mxu0 0.0
        %5857 = vmatpush1.msra.mxu0 0.0
        %5858 = vmatprep.subr.mxu0 0.0
        %5859 = vmatpush1.msra.mxu0 0.0
        %5860 = vmatprep.subr.mxu0 0.0
        %5861 = vmatpush1.msra.mxu0 0.0
        %5862 = vmatprep.subr.mxu0 0.0
        %5863 = vmatpush1.msra.mxu0 0.0
        %5864 = vmatprep.subr.mxu0 0.0
        %5865 = vmatpush1.msra.mxu0 0.0
        %5866 = vmatprep.subr.mxu0 0.0
        %5867 = vmatpush1.msra.mxu0 0.0
        %5868 = vmatprep.subr.mxu0 0.0
        %5869 = vmatpush1.msra.mxu0 0.0
        %5870 = vmatprep.subr.mxu0 0.0
        %5871 = vmatpush1.msra.mxu0 0.0
        %5872 = vmatprep.subr.mxu0 0.0
        %5873 = vmatpush1.msra.mxu0 0.0
        %5874 = vmatprep.subr.mxu0 0.0
        %5875 = vmatpush1.msra.mxu0 0.0
        %5876 = vmatprep.subr.mxu0 0.0
        %5877 = vmatpush1.msra.mxu0 0.0
        %5878 = vmatprep.subr.mxu0 0.0
        %5879 = vmatpush1.msra.mxu0 0.0
        %5880 = vmatprep.subr.mxu0 0.0
        %5881 = vmatpush1.msra.mxu0 0.0
        %5882 = vmatprep.subr.mxu0 0.0
        %5883 = vmatpush1.msra.mxu0 0.0
        %5884 = vmatprep.subr.mxu0 0.0
        %5885 = vmatpush1.msra.mxu0 0.0
        %5886 = vmatprep.subr.mxu0 0.0
        %5887 = vmatpush1.msra.mxu0 0.0
        %5888 = vmatprep.subr.mxu0 0.0
        %5889 = vmatpush1.msra.mxu0 0.0
        %5890 = vmatprep.subr.mxu0 0.0
        %5891 = vmatpush1.msra.mxu0 0.0
        %5892 = vmatprep.mubr.f32.mxu0 0.0
        %5893 = vmatmul.mubr.f32.gmra.mrb[0].mxu0 %v5826
        %v5894 = vpop.f32.mrb[0].mxu0
        %v5895 = vadd.f32 0.0, %v5894
        %v5896 = vpop.f32.mrb[0].mxu0
        %5897 = vdwg.mxu0
        %5898 = vrot.lane.b32.xlu0 %v698, 40
        %v5899 = vpop.permute.xlu0 %5898
        %v5902 = vsel %vm704, %v5365, 0
        %5904 = vmatprep.subr.mxu0 0.0
        %5905 = vmatpush1.msra.mxu0 %v5899
        %5906 = vmatprep.subr.mxu0 0.0
        %5907 = vmatpush1.msra.mxu0 0.0
        %5908 = vmatprep.subr.mxu0 0.0
        %5909 = vmatpush1.msra.mxu0 0.0
        %5910 = vmatprep.subr.mxu0 0.0
        %5911 = vmatpush1.msra.mxu0 0.0
        %5912 = vmatprep.subr.mxu0 0.0
        %5913 = vmatpush1.msra.mxu0 0.0
        %5914 = vmatprep.subr.mxu0 0.0
        %5915 = vmatpush1.msra.mxu0 0.0
        %5916 = vmatprep.subr.mxu0 0.0
        %5917 = vmatpush1.msra.mxu0 0.0
        %5918 = vmatprep.subr.mxu0 0.0
        %5919 = vmatpush1.msra.mxu0 0.0
        %5920 = vmatprep.subr.mxu0 0.0
        %5921 = vmatpush1.msra.mxu0 0.0
        %5922 = vmatprep.subr.mxu0 0.0
        %5923 = vmatpush1.msra.mxu0 0.0
        %5924 = vmatprep.subr.mxu0 0.0
        %5925 = vmatpush1.msra.mxu0 0.0
        %5926 = vmatprep.subr.mxu0 0.0
        %5927 = vmatpush1.msra.mxu0 0.0
        %5928 = vmatprep.subr.mxu0 0.0
        %5929 = vmatpush1.msra.mxu0 0.0
        %5930 = vmatprep.subr.mxu0 0.0
        %5931 = vmatpush1.msra.mxu0 0.0
        %5932 = vmatprep.subr.mxu0 0.0
        %5933 = vmatpush1.msra.mxu0 0.0
        %5934 = vmatprep.subr.mxu0 0.0
        %5935 = vmatpush1.msra.mxu0 0.0
        %5936 = vmatprep.subr.mxu0 0.0
        %5937 = vmatpush1.msra.mxu0 0.0
        %5938 = vmatprep.subr.mxu0 0.0
        %5939 = vmatpush1.msra.mxu0 0.0
        %5940 = vmatprep.subr.mxu0 0.0
        %5941 = vmatpush1.msra.mxu0 0.0
        %5942 = vmatprep.subr.mxu0 0.0
        %5943 = vmatpush1.msra.mxu0 0.0
        %5944 = vmatprep.subr.mxu0 0.0
        %5945 = vmatpush1.msra.mxu0 0.0
        %5946 = vmatprep.subr.mxu0 0.0
        %5947 = vmatpush1.msra.mxu0 0.0
        %5948 = vmatprep.subr.mxu0 0.0
        %5949 = vmatpush1.msra.mxu0 0.0
        %5950 = vmatprep.subr.mxu0 0.0
        %5951 = vmatpush1.msra.mxu0 0.0
        %5952 = vmatprep.subr.mxu0 0.0
        %5953 = vmatpush1.msra.mxu0 0.0
        %5954 = vmatprep.subr.mxu0 0.0
        %5955 = vmatpush1.msra.mxu0 0.0
        %5956 = vmatprep.subr.mxu0 0.0
        %5957 = vmatpush1.msra.mxu0 0.0
        %5958 = vmatprep.subr.mxu0 0.0
        %5959 = vmatpush1.msra.mxu0 0.0
        %5960 = vmatprep.subr.mxu0 0.0
        %5961 = vmatpush1.msra.mxu0 0.0
        %5962 = vmatprep.subr.mxu0 0.0
        %5963 = vmatpush1.msra.mxu0 0.0
        %5964 = vmatprep.subr.mxu0 0.0
        %5965 = vmatpush1.msra.mxu0 0.0
        %5966 = vmatprep.subr.mxu0 0.0
        %5967 = vmatpush1.msra.mxu0 0.0
        %5968 = vmatprep.mubr.f32.mxu0 0.0
        %5969 = vmatmul.mubr.f32.gmra.mrb[0].mxu0 %v5902
        %v5970 = vpop.f32.mrb[0].mxu0
        %v5971 = vadd.f32 0.0, %v5970
        %v5972 = vpop.f32.mrb[0].mxu0
        %5973 = vdwg.mxu0
        %5982 = vrot.lane.b32.xlu0 %v2799, 8
        %v5983 = vpop.permute.xlu0 %5982
        %5984 = vrot.lane.b32.xlu0 %v2875, 8
        %v5985 = vpop.permute.xlu0 %5984
        %5986 = vrot.lane.b32.xlu0 %v2951, 8
        %v5987 = vpop.permute.xlu0 %5986
        %5988 = vrot.lane.b32.xlu0 %v3027, 8
        %v5989 = vpop.permute.xlu0 %5988
        %5990 = vrot.lane.b32.xlu0 %v3103, 8
        %v5991 = vpop.permute.xlu0 %5990
        %5992 = vrot.lane.b32.xlu0 %v3179, 8
        %v5993 = vpop.permute.xlu0 %5992
        %5994 = vrot.lane.b32.xlu0 %v3255, 8
        %v5995 = vpop.permute.xlu0 %5994
        %5996 = vrot.lane.b32.xlu0 %v3331, 8
        %v5997 = vpop.permute.xlu0 %5996
        %6014 = vrot.lane.b32.xlu0 %v4119, 16
        %v6015 = vpop.permute.xlu0 %6014
        %6016 = vrot.lane.b32.xlu0 %v4195, 16
        %v6017 = vpop.permute.xlu0 %6016
        %6018 = vrot.lane.b32.xlu0 %v4271, 16
        %v6019 = vpop.permute.xlu0 %6018
        %6020 = vrot.lane.b32.xlu0 %v4347, 16
        %v6021 = vpop.permute.xlu0 %6020
        %6022 = vrot.lane.b32.xlu0 %v4423, 16
        %v6023 = vpop.permute.xlu0 %6022
        %6024 = vrot.lane.b32.xlu0 %v4499, 16
        %v6025 = vpop.permute.xlu0 %6024
        %6026 = vrot.lane.b32.xlu0 %v4575, 16
        %v6027 = vpop.permute.xlu0 %6026
        %6028 = vrot.lane.b32.xlu0 %v4651, 16
        %v6029 = vpop.permute.xlu0 %6028
        %6046 = vrot.lane.b32.xlu0 %v5439, 24
        %v6047 = vpop.permute.xlu0 %6046
        %6048 = vrot.lane.b32.xlu0 %v5515, 24
        %v6049 = vpop.permute.xlu0 %6048
        %6050 = vrot.lane.b32.xlu0 %v5591, 24
        %v6051 = vpop.permute.xlu0 %6050
        %6052 = vrot.lane.b32.xlu0 %v5667, 24
        %v6053 = vpop.permute.xlu0 %6052
        %6054 = vrot.lane.b32.xlu0 %v5743, 24
        %v6055 = vpop.permute.xlu0 %6054
        %6056 = vrot.lane.b32.xlu0 %v5819, 24
        %v6057 = vpop.permute.xlu0 %6056
        %6058 = vrot.lane.b32.xlu0 %v5895, 24
        %v6059 = vpop.permute.xlu0 %6058
        %6060 = vrot.lane.b32.xlu0 %v5971, 24
        %v6061 = vpop.permute.xlu0 %6060
        %v6070 = vsel %vm704, %v1479, %v5983
        %v6071 = vsel %vm704, %v1555, %v5985
        %v6072 = vsel %vm704, %v1631, %v5987
        %v6073 = vsel %vm704, %v1707, %v5989
        %v6074 = vsel %vm704, %v1783, %v5991
        %v6075 = vsel %vm704, %v1859, %v5993
        %v6076 = vsel %vm704, %v1935, %v5995
        %v6077 = vsel %vm704, %v2011, %v5997
        %vm6078 = vcmask 130048
        %v6079 = vsel %vm6078, %v6070, %v6015
        %v6080 = vsel %vm6078, %v6071, %v6017
        %v6081 = vsel %vm6078, %v6072, %v6019
        %v6082 = vsel %vm6078, %v6073, %v6021
        %v6083 = vsel %vm6078, %v6074, %v6023
        %v6084 = vsel %vm6078, %v6075, %v6025
        %v6085 = vsel %vm6078, %v6076, %v6027
        %v6086 = vsel %vm6078, %v6077, %v6029
        %vm6087 = vcmask 195584
        %v6088 = vsel %vm6087, %v6079, %v6047
        %v6089 = vsel %vm6087, %v6080, %v6049
        %v6090 = vsel %vm6087, %v6081, %v6051
        %v6091 = vsel %vm6087, %v6082, %v6053
        %v6092 = vsel %vm6087, %v6083, %v6055
        %v6093 = vsel %vm6087, %v6084, %v6057
        %v6094 = vsel %vm6087, %v6085, %v6059
        %v6095 = vsel %vm6087, %v6086, %v6061
        %v6096 = vld [vmem:[#allocation10] sm:$0xff]
        %v6097 = vld [vmem:[#allocation10 + $0x8] sm:$0xff]
        %v6098 = vld [vmem:[#allocation10 + $0x10] sm:$0xff]
        %v6099 = vld [vmem:[#allocation10 + $0x18] sm:$0xff]
        %v6100 = vlaneseq
        %v6101 = vshrl.u32 %v6100, 7
        %v6102 = vsub.s32 0, %v6101
        %v6103 = vrot.slane %v356, %v6102
        %v6105 = vsel %vm367, %v6088, 0
        %v6108 = vsel %vm367, %v6089, 0
        %v6111 = vsel %vm367, %v6090, 0
        %v6114 = vsel %vm367, %v6091, 0
        %v6117 = vsel %vm367, %v6092, 0
        %v6120 = vsel %vm367, %v6093, 0
        %v6123 = vsel %vm367, %v6094, 0
        %v6126 = vsel %vm367, %v6095, 0
        %6128 = vmatprep.subr.mxu0 0.0
        %6129 = vmatpush1.msra.mxu0 %v6096
        %6130 = vmatprep.subr.mxu0 0.0
        %6131 = vmatpush1.msra.mxu0 %v6097
        %6132 = vmatprep.subr.mxu0 0.0
        %6133 = vmatpush1.msra.mxu0 %v6098
        %6134 = vmatprep.subr.mxu0 0.0
        %6135 = vmatpush1.msra.mxu0 %v6099
        %6136 = vmatprep.subr.mxu0 0.0
        %6137 = vmatpush1.msra.mxu0 0.0
        %6138 = vmatprep.subr.mxu0 0.0
        %6139 = vmatpush1.msra.mxu0 0.0
        %6140 = vmatprep.subr.mxu0 0.0
        %6141 = vmatpush1.msra.mxu0 0.0
        %6142 = vmatprep.subr.mxu0 0.0
        %6143 = vmatpush1.msra.mxu0 0.0
        %6144 = vmatprep.subr.mxu0 0.0
        %6145 = vmatpush1.msra.mxu0 0.0
        %6146 = vmatprep.subr.mxu0 0.0
        %6147 = vmatpush1.msra.mxu0 0.0
        %6148 = vmatprep.subr.mxu0 0.0
        %6149 = vmatpush1.msra.mxu0 0.0
        %6150 = vmatprep.subr.mxu0 0.0
        %6151 = vmatpush1.msra.mxu0 0.0
        %6152 = vmatprep.subr.mxu0 0.0
        %6153 = vmatpush1.msra.mxu0 0.0
        %6154 = vmatprep.subr.mxu0 0.0
        %6155 = vmatpush1.msra.mxu0 0.0
        %6156 = vmatprep.subr.mxu0 0.0
        %6157 = vmatpush1.msra.mxu0 0.0
        %6158 = vmatprep.subr.mxu0 0.0
        %6159 = vmatpush1.msra.mxu0 0.0
        %6160 = vmatprep.subr.mxu0 0.0
        %6161 = vmatpush1.msra.mxu0 0.0
        %6162 = vmatprep.subr.mxu0 0.0
        %6163 = vmatpush1.msra.mxu0 0.0
        %6164 = vmatprep.subr.mxu0 0.0
        %6165 = vmatpush1.msra.mxu0 0.0
        %6166 = vmatprep.subr.mxu0 0.0
        %6167 = vmatpush1.msra.mxu0 0.0
        %6168 = vmatprep.subr.mxu0 0.0
        %6169 = vmatpush1.msra.mxu0 0.0
        %6170 = vmatprep.subr.mxu0 0.0
        %6171 = vmatpush1.msra.mxu0 0.0
        %6172 = vmatprep.subr.mxu0 0.0
        %6173 = vmatpush1.msra.mxu0 0.0
        %6174 = vmatprep.subr.mxu0 0.0
        %6175 = vmatpush1.msra.mxu0 0.0
        %6176 = vmatprep.subr.mxu0 0.0
        %6177 = vmatpush1.msra.mxu0 0.0
        %6178 = vmatprep.subr.mxu0 0.0
        %6179 = vmatpush1.msra.mxu0 0.0
        %6180 = vmatprep.subr.mxu0 0.0
        %6181 = vmatpush1.msra.mxu0 0.0
        %6182 = vmatprep.subr.mxu0 0.0
        %6183 = vmatpush1.msra.mxu0 0.0
        %6184 = vmatprep.subr.mxu0 0.0
        %6185 = vmatpush1.msra.mxu0 0.0
        %6186 = vmatprep.subr.mxu0 0.0
        %6187 = vmatpush1.msra.mxu0 0.0
        %6188 = vmatprep.subr.mxu0 0.0
        %6189 = vmatpush1.msra.mxu0 0.0
        %6190 = vmatprep.subr.mxu0 0.0
        %6191 = vmatpush1.msra.mxu0 0.0
        %6192 = vmatprep.mubr.f32.mxu0 0.0
        %6193 = vmatmul.mubr.f32.gmra.mrb[0].mxu0 %v6105
        %v6194 = vpop.f32.mrb[0].mxu0
        %v6195 = vadd.f32 %v6103, %v6194
        %v6196 = vpop.f32.mrb[0].mxu0
        %6197 = vmatprep.mubr.f32.mxu0 0.0
        %6198 = vmatmul.mubr.f32.gmra.mrb[0].mxu0 %v6108
        %v6199 = vpop.f32.mrb[0].mxu0
        %v6200 = vadd.f32 %v6103, %v6199
        %v6201 = vpop.f32.mrb[0].mxu0
        %6202 = vmatprep.mubr.f32.mxu0 0.0
        %6203 = vmatmul.mubr.f32.gmra.mrb[0].mxu0 %v6111
        %v6204 = vpop.f32.mrb[0].mxu0
        %v6205 = vadd.f32 %v6103, %v6204
        %v6206 = vpop.f32.mrb[0].mxu0
        %6207 = vmatprep.mubr.f32.mxu0 0.0
        %6208 = vmatmul.mubr.f32.gmra.mrb[0].mxu0 %v6114
        %v6209 = vpop.f32.mrb[0].mxu0
        %v6210 = vadd.f32 %v6103, %v6209
        %v6211 = vpop.f32.mrb[0].mxu0
        %6212 = vmatprep.mubr.f32.mxu0 0.0
        %6213 = vmatmul.mubr.f32.gmra.mrb[0].mxu0 %v6117
        %v6214 = vpop.f32.mrb[0].mxu0
        %v6215 = vadd.f32 %v6103, %v6214
        %v6216 = vpop.f32.mrb[0].mxu0
        %6217 = vmatprep.mubr.f32.mxu0 0.0
        %6218 = vmatmul.mubr.f32.gmra.mrb[0].mxu0 %v6120
        %v6219 = vpop.f32.mrb[0].mxu0
        %v6220 = vadd.f32 %v6103, %v6219
        %v6221 = vpop.f32.mrb[0].mxu0
        %6222 = vmatprep.mubr.f32.mxu0 0.0
        %6223 = vmatmul.mubr.f32.gmra.mrb[0].mxu0 %v6123
        %v6224 = vpop.f32.mrb[0].mxu0
        %v6225 = vadd.f32 %v6103, %v6224
        %v6226 = vpop.f32.mrb[0].mxu0
        %6227 = vmatprep.mubr.f32.mxu0 0.0
        %6228 = vmatmul.mubr.f32.gmra.mrb[0].mxu0 %v6126
        %v6229 = vpop.f32.mrb[0].mxu0
        %v6230 = vadd.f32 %v6103, %v6229
        %v6231 = vpop.f32.mrb[0].mxu0
        %6232 = vdwg.mxu0
        %v6233 = vadd.f32 %v6195, %v6195
        %v6234 = vadd.f32 %v6200, %v6200
        %v6235 = vadd.f32 %v6205, %v6205
        %v6236 = vadd.f32 %v6210, %v6210
        %v6237 = vadd.f32 %v6215, %v6215
        %v6238 = vadd.f32 %v6220, %v6220
        %v6239 = vadd.f32 %v6225, %v6225
        %v6240 = vadd.f32 %v6230, %v6230
        %v6241 = vsel %vm367, %v6233, 0.0
        %6242 = vadd.xlane.f32.xlu0 %v6241
        %v6243 = vpop.xlane.xlu0 %6242
        %v6244 = vsel %vm367, %v6234, 0.0
        %6245 = vadd.xlane.f32.xlu0 %v6244
        %v6246 = vpop.xlane.xlu0 %6245
        %v6247 = vsel %vm367, %v6235, 0.0
        %6248 = vadd.xlane.f32.xlu0 %v6247
        %v6249 = vpop.xlane.xlu0 %6248
        %v6250 = vsel %vm367, %v6236, 0.0
        %6251 = vadd.xlane.f32.xlu0 %v6250
        %v6252 = vpop.xlane.xlu0 %6251
        %v6253 = vsel %vm367, %v6237, 0.0
        %6254 = vadd.xlane.f32.xlu0 %v6253
        %v6255 = vpop.xlane.xlu0 %6254
        %v6256 = vsel %vm367, %v6238, 0.0
        %6257 = vadd.xlane.f32.xlu0 %v6256
        %v6258 = vpop.xlane.xlu0 %6257
        %v6259 = vsel %vm367, %v6239, 0.0
        %6260 = vadd.xlane.f32.xlu0 %v6259
        %v6261 = vpop.xlane.xlu0 %6260
        %v6262 = vsel %vm367, %v6240, 0.0
        %6263 = vadd.xlane.f32.xlu0 %v6262
        %v6264 = vpop.xlane.xlu0 %6263
        %v6265 = vmul.f32 %v6243, %v392
        %v6266 = vmul.f32 %v6246, %v392
        %v6267 = vmul.f32 %v6249, %v392
        %v6268 = vmul.f32 %v6252, %v392
        %v6269 = vmul.f32 %v6255, %v392
        %v6270 = vmul.f32 %v6258, %v392
        %v6271 = vmul.f32 %v6261, %v392
        %v6272 = vmul.f32 %v6264, %v392
        %v6273 = vsub.f32 %v6233, %v6265
        %v6274 = vsub.f32 %v6234, %v6266
        %v6275 = vsub.f32 %v6235, %v6267
        %v6276 = vsub.f32 %v6236, %v6268
        %v6277 = vsub.f32 %v6237, %v6269
        %v6278 = vsub.f32 %v6238, %v6270
        %v6279 = vsub.f32 %v6239, %v6271
        %v6280 = vsub.f32 %v6240, %v6272
        %v6281 = vmul.f32 %v6273, %v6273
        %v6282 = vmul.f32 %v6274, %v6274
        %v6283 = vmul.f32 %v6275, %v6275
        %v6284 = vmul.f32 %v6276, %v6276
        %v6285 = vmul.f32 %v6277, %v6277
        %v6286 = vmul.f32 %v6278, %v6278
        %v6287 = vmul.f32 %v6279, %v6279
        %v6288 = vmul.f32 %v6280, %v6280
        %v6289 = vsel %vm367, %v6281, 0.0
        %6290 = vadd.xlane.f32.xlu0 %v6289
        %v6291 = vpop.xlane.xlu0 %6290
        %v6292 = vsel %vm367, %v6282, 0.0
        %6293 = vadd.xlane.f32.xlu0 %v6292
        %v6294 = vpop.xlane.xlu0 %6293
        %v6295 = vsel %vm367, %v6283, 0.0
        %6296 = vadd.xlane.f32.xlu0 %v6295
        %v6297 = vpop.xlane.xlu0 %6296
        %v6298 = vsel %vm367, %v6284, 0.0
        %6299 = vadd.xlane.f32.xlu0 %v6298
        %v6300 = vpop.xlane.xlu0 %6299
        %v6301 = vsel %vm367, %v6285, 0.0
        %6302 = vadd.xlane.f32.xlu0 %v6301
        %v6303 = vpop.xlane.xlu0 %6302
        %v6304 = vsel %vm367, %v6286, 0.0
        %6305 = vadd.xlane.f32.xlu0 %v6304
        %v6306 = vpop.xlane.xlu0 %6305
        %v6307 = vsel %vm367, %v6287, 0.0
        %6308 = vadd.xlane.f32.xlu0 %v6307
        %v6309 = vpop.xlane.xlu0 %6308
        %v6310 = vsel %vm367, %v6288, 0.0
        %6311 = vadd.xlane.f32.xlu0 %v6310
        %v6312 = vpop.xlane.xlu0 %6311
        %v6313 = vmul.f32 %v6291, %v392
        %v6314 = vmul.f32 %v6294, %v392
        %v6315 = vmul.f32 %v6297, %v392
        %v6316 = vmul.f32 %v6300, %v392
        %v6317 = vmul.f32 %v6303, %v392
        %v6318 = vmul.f32 %v6306, %v392
        %v6319 = vmul.f32 %v6309, %v392
        %v6320 = vmul.f32 %v6312, %v392
        %v6321 = vadd.f32 %v6313, 1e-05
        %v6322 = vadd.f32 %v6314, 1e-05
        %v6323 = vadd.f32 %v6315, 1e-05
        %v6324 = vadd.f32 %v6316, 1e-05
        %v6325 = vadd.f32 %v6317, 1e-05
        %v6326 = vadd.f32 %v6318, 1e-05
        %v6327 = vadd.f32 %v6319, 1e-05
        %v6328 = vadd.f32 %v6320, 1e-05
        %v6329 = vrsqrt.pop %v6321
        %v6330 = vrsqrt.pop %v6322
        %v6331 = vrsqrt.pop %v6323
        %v6332 = vrsqrt.pop %v6324
        %v6333 = vrsqrt.pop %v6325
        %v6334 = vrsqrt.pop %v6326
        %v6335 = vrsqrt.pop %v6327
        %v6336 = vrsqrt.pop %v6328
        %v6337 = vmul.f32 %v6273, %v6329
        %v6338 = vmul.f32 %v6274, %v6330
        %v6339 = vmul.f32 %v6275, %v6331
        %v6340 = vmul.f32 %v6276, %v6332
        %v6341 = vmul.f32 %v6277, %v6333
        %v6342 = vmul.f32 %v6278, %v6334
        %v6343 = vmul.f32 %v6279, %v6335
        %v6344 = vmul.f32 %v6280, %v6336
        %v6345 = vlaneseq
        %v6346 = vshrl.u32 %v6345, 7
        %v6347 = vsub.s32 0, %v6346
        %v6348 = vrot.slane %v357, %v6347
        %v6349 = vmul.f32 %v6337, %v6348
        %v6350 = vmul.f32 %v6338, %v6348
        %v6351 = vmul.f32 %v6339, %v6348
        %v6352 = vmul.f32 %v6340, %v6348
        %v6353 = vmul.f32 %v6341, %v6348
        %v6354 = vmul.f32 %v6342, %v6348
        %v6355 = vmul.f32 %v6343, %v6348
        %v6356 = vmul.f32 %v6344, %v6348
        %v6357 = vlaneseq
        %v6358 = vshrl.u32 %v6357, 7
        %v6359 = vsub.s32 0, %v6358
        %v6360 = vrot.slane %v358, %v6359
        %v6361 = vadd.f32 %v6349, %v6360
        %v6362 = vadd.f32 %v6350, %v6360
        %v6363 = vadd.f32 %v6351, %v6360
        %v6364 = vadd.f32 %v6352, %v6360
        %v6365 = vadd.f32 %v6353, %v6360
        %v6366 = vadd.f32 %v6354, %v6360
        %v6367 = vadd.f32 %v6355, %v6360
        %v6368 = vadd.f32 %v6356, %v6360
        %6369 = vst.msk [vmem:[%s350] sm:$0xff] %vm367, %v6361
        %6370 = vst.msk [vmem:[%s350 + $0x8] sm:$0xff] %vm367, %v6362
        %6371 = vst.msk [vmem:[%s350 + $0x10] sm:$0xff] %vm367, %v6363
        %6372 = vst.msk [vmem:[%s350 + $0x18] sm:$0xff] %vm367, %v6364
        %6373 = vst.msk [vmem:[%s350 + $0x20] sm:$0xff] %vm367, %v6365
        %6374 = vst.msk [vmem:[%s350 + $0x28] sm:$0xff] %vm367, %v6366
        %6375 = vst.msk [vmem:[%s350 + $0x30] sm:$0xff] %vm367, %v6367
        %6376 = vst.msk [vmem:[%s350 + $0x38] sm:$0xff] %vm367, %v6368
        %s6377 = sand.u32 %s171, 1
        %s6378 = scalar_lea.sflag [#allocation4], %s6377
        %s6379 = sand.u32 %s171, 1
        %s6380 = smul.addr %s6379, 64
        %s6381 = scalar_lea.vmem [#allocation11], %s6380
        // Predicated region
        $region65: #{tpu_custom_call.1} parent=43 // pred_check
          %p6382 = pneg %p181
        $region66: #{tpu_custom_call.1} parent=43 // pred_check_branch
          %6384 = sbr.rel (%p6382) target = $region68
        $region67: #{tpu_custom_call.1} parent=43 // pred_region
          %s6385 = smul.u32 8, %s27
          %s6387 = ssub.s32 1024, 1024
          %6388 = vsyncadd %s6378, %s6387
          %s6389 = smul.addr %s6385, 128
          %s6390 = scalar_lea.hbm %s6, %s6389
          %s6391 = sshll.u32 %s6381, 4
          %s6392 = int_to_ptr.vmem [resolvable:$true] %s6391
          %6397 = dma.vmem_to_hbm [thread:$0]  %s6392, 1024, %s6390, %s6378, 128, 128, 8
        $region68: #{tpu_custom_call.1} parent=43 // pred_fallthru
          _
      $region44: #{tpu_custom_call.1} parent=5 // pred_fallthru
        _
      %p6398 = scmp.le.s32.totalorder 2, %s22
      // Predicated region
      $region69: #{tpu_custom_call.1} parent=5 // pred_check
        %p6399 = pneg %p6398
      $region70: #{tpu_custom_call.1} parent=5 // pred_check_branch
        %6401 = sbr.rel (%p6399) target = $region72
      $region71: #{tpu_custom_call.1} parent=5 // pred_region
        %s6402 = ssub.s32 %s22, 2
        // Predicated region
        $region73: #{tpu_custom_call.1} parent=71 // pred_check
          %p6403 = pneg %p187
        $region74: #{tpu_custom_call.1} parent=71 // pred_check_branch
          %6405 = sbr.rel (%p6403) target = $region76
        $region75: #{tpu_custom_call.1} parent=71 // pred_region
          %s6406 = sand.u32 %s172, 1
          %s6407 = scalar_lea.sflag [#allocation4], %s6406
          %s6408 = sand.u32 %s172, 1
          %s6409 = smul.addr %s6408, 64
          %s6410 = scalar_lea.vmem [#allocation11], %s6409
          %6411 = dma.done %s6407, 1024
        $region76: #{tpu_custom_call.1} parent=71 // pred_fallthru
          _
      $region72: #{tpu_custom_call.1} parent=5 // pred_fallthru
        _
    $region6: #{tpu_custom_call.1} parent=1 // loop_footer
      %s26 = sadd.s32 1, %s22
    $region7: #{tpu_custom_call.1} parent=1 // loop_footer_branch
      %21 = sbr.rel target = $region3
    $region8: #{tpu_custom_call.1} parent=1 // loop_exit
      _
    %6412 = vsyncpa [#allocation3], 1
    %s6413 = scalar_lea.sflag [#allocation3], 1
    %6414 = vsyncpa %s6413, 1
    %6415 = vsyncpa [#allocation6], 1
    %s6416 = scalar_lea.sflag [#allocation6], 1
    %6417 = vsyncpa %s6416, 1
    %6418 = vsyncpa [#allocation9], 1
    %6419 = vsyncpa [#allocation4], 1
    %s6420 = scalar_lea.sflag [#allocation4], 1
    %6421 = vsyncpa %s6420, 1

</llo_original>
